<compile_context>
chip_gen: v7x
topology: tpu7x:2x2x1
jax: 0.10.0
libtpu: 0.0.40
codegen_flags: <defaults>
</compile_context>

<pallas_src>
import functools

import jax
import jax.numpy as jnp
from jax import lax
from jax.experimental import pallas as pl
from jax.experimental.pallas import tpu as pltpu


def _attention_kernel(f_ref, uvt_ref, w_ref, o_ref):
    """One bag-tile of the gated-attention forward pass.

    f_ref:   (g_tile*B, C)  instance feature rows for g_tile bags (bag-major).
    uvt_ref: (C, 2P)        concat([u, v], 0).T   -- resident across the grid.
    w_ref:   (1, P)         w.T lane-dense row    -- resident across the grid.
    o_ref:   (B, g_tile)    per-bag softmax; instances on sublanes, bags on lanes.
    """
    P = w_ref.shape[1]
    B, g_tile = o_ref.shape

    # One fused MXU pass for BOTH projections over all g_tile*B instance rows:
    # (M, C) x (C, 2P).  Precision pinned so the f32 matmul is not silently
    # decomposed into low-precision passes.
    h = jnp.dot(f_ref[...], uvt_ref[...],
                preferred_element_type=jnp.float32,
                precision=lax.Precision.HIGHEST)                  # (M, 2P)

    # Gate split at the 128-lane tile boundary (zero-cost slice; keep P a
    # multiple of 128 to preserve this).
    xu = jnp.tanh(h[:, :P])                                       # (M, P)
    xv = jax.nn.sigmoid(h[:, P:])                                 # (M, P)
    gated = xu * xv                                               # (M, P)

    # Attention logits: VPU multiply + lane reduction against the lane-dense w
    # row.  The (M, P) -> (g_tile, B, P) reshape only splits the leading dim
    # (B == 8 == native sublane count), so (8, 128) tiles stay intact and no
    # cross-lane relayout is generated.
    gated3 = gated.reshape(g_tile, B, P)
    logits_gb = jnp.sum(gated3 * w_ref[...], axis=-1)             # (g_tile, B)

    # Relayout the tiny logits tile to (B, g_tile) -- instances on sublanes,
    # bags on lanes -- via a fixed (8x8) identity contraction on the MXU.
    # Unlike the old eye-mask (which scaled O(tile^2) on the VPU), this is one
    # vreg of identity regardless of the bag tile and rides the idle MXU slot;
    # it makes the softmax reductions sublane reduces and the final store a
    # wide, unmasked lane-dense vst.
    rows = lax.broadcasted_iota(jnp.int32, (B, B), 0)
    cols = lax.broadcasted_iota(jnp.int32, (B, B), 1)
    eye = (rows == cols).astype(jnp.float32)                      # (B, B)
    logits = lax.dot_general(
        eye, logits_gb,
        dimension_numbers=(((1,), (1,)), ((), ())),
        precision=lax.Precision.HIGHEST,
        preferred_element_type=jnp.float32)                       # (B, g_tile)

    # Per-bag softmax over the B instances (sublane axis).  Exact divide on
    # purpose: the approx EUP reciprocal (~2^-12 rel err) would not reliably
    # meet the 1e-5 comparison tolerance.
    mx = jnp.max(logits, axis=0, keepdims=True)
    e = jnp.exp(logits - mx)
    o_ref[...] = e / jnp.sum(e, axis=0, keepdims=True)


def prepare_attention_params(u, v, w):
    """One-time weight preprocessing (constant params), off the per-call path.

    u, v: (P, C), w: (P, 1)  ->  uvt: (C, 2P), w_row: (1, P)
    """
    uvt = jnp.concatenate([u, v], axis=0).T.astype(jnp.float32)   # (C, 2P)
    w_row = w.reshape(1, -1).astype(jnp.float32)                  # (1, P)
    return uvt, w_row


@functools.partial(jax.jit, static_argnames=("bag_tile",))
def attention_model_forward_batched(bags, uvt, w_row, *, bag_tile=128):
    """Batched forward: bags (G, B, C) float32 -> per-bag attention (G, B).

    B (instances per bag) is assumed to be a multiple of 8 (sublane count);
    bag count G is padded up to a multiple of the bag tile with zero bags.
    """
    G, B, C = bags.shape
    twoP = uvt.shape[1]
    P = w_row.shape[1]

    g_tile = bag_tile if G >= bag_tile else G
    num_tiles = pl.cdiv(G, g_tile)
    G_pad = num_tiles * g_tile

    # Flatten to instance rows (bag-major); metadata-only reshape in XLA.
    feats = bags.reshape(G * B, C)
    if G_pad != G:
        feats = jnp.pad(feats, ((0, (G_pad - G) * B), (0, 0)))

    out = pl.pallas_call(
        _attention_kernel,
        out_shape=jax.ShapeDtypeStruct((B, G_pad), jnp.float32),
        grid=(num_tiles,),
        in_specs=[
            # Streaming feature tile: g_tile bags x B instance rows per step.
            pl.BlockSpec((g_tile * B, C), lambda g: (g, 0)),
            # Weight tiles: constant block index -> DMA'd once, kept resident.
            pl.BlockSpec((C, twoP), lambda g: (0, 0)),
            pl.BlockSpec((1, P), lambda g: (0, 0)),
        ],
        # Lane-dense output slab: instances on sublanes, bags on lanes.
        out_specs=pl.BlockSpec((B, g_tile), lambda g: (0, g)),
        compiler_params=pltpu.CompilerParams(
            dimension_semantics=("parallel",)),   # shards bag tiles across TCs on v7x
    )(feats, uvt, w_row)

    return out[:, :G].T                            # (G, B)


def attention_model_forward(features, uvt, w_row):
    """Original module semantics: features (B, C) -> softmax attention (B,)."""
    B = features.shape[0]
    return attention_model_forward_batched(features[None, ...], uvt, w_row).reshape(B)


def _reference_batched(bags, u, v, w):
    hp = lax.Precision.HIGHEST
    xu = jnp.tanh(jnp.einsum("gbc,pc->gbp", bags, u, precision=hp))
    xv = jax.nn.sigmoid(jnp.einsum("gbc,pc->gbp", bags, v, precision=hp))
    logits = jnp.einsum("gbp,pq->gbq", xu * xv, w, precision=hp)[..., 0]   # (G, B)
    return jax.nn.softmax(logits, axis=-1)


if __name__ == "__main__":
    B = 8               # instances per bag (the module's batch dim)
    num_features = 32   # C
    params_count = 128  # P
    num_bags = 200      # batched throughput demo: 2 grid steps (128-bag tiles) + padding

    key = jax.random.PRNGKey(0)
    k_f, k_u, k_v, k_w = jax.random.split(key, 4)
    bags = jax.random.normal(k_f, (num_bags, B, num_features), dtype=jnp.float32)
    u = jax.random.normal(k_u, (params_count, num_features), dtype=jnp.float32)
    v = jax.random.normal(k_v, (params_count, num_features), dtype=jnp.float32)
    w = jax.random.normal(k_w, (params_count, 1), dtype=jnp.float32)

    # Weight prep done once (constant params), not per forward call.
    uvt, w_row = prepare_attention_params(u, v, w)

    # Batched path: many bags per pallas_call (grid over bag tiles).
    out_batched = jax.block_until_ready(
        attention_model_forward_batched(bags, uvt, w_row))

    # Single-bag path == the original module's forward(features) -> (B,).
    out_single = jax.block_until_ready(
        attention_model_forward(bags[0], uvt, w_row))

    ref = _reference_batched(bags, u, v, w)
    assert out_batched.shape == (num_bags, B)
    assert out_single.shape == (B,)
    assert jnp.allclose(out_batched, ref, atol=1e-5, rtol=1e-5)
    assert jnp.allclose(out_single, ref[0], atol=1e-5, rtol=1e-5)
    assert jnp.allclose(jnp.sum(out_batched, axis=-1), 1.0, atol=1e-5)

    print("KERNEL_OK")
</pallas_src>

<mosaic_0001>
module attributes {stable_mosaic.version = 11 : i64} {
  func.func @_attention_kernel(%arg0: i32, %arg1: memref<1024x32xf32, #tpu.memory_space<vmem>>, %arg2: memref<32x256xf32, #tpu.memory_space<vmem>>, %arg3: memref<1x128xf32, #tpu.memory_space<vmem>>, %arg4: memref<8x128xf32, #tpu.memory_space<vmem>>) attributes {dimension_semantics = [#tpu.dimension_semantics<parallel>], iteration_bounds = array<i64: 2>, scalar_prefetch = 0 : i64, scratch_operands = 0 : i64, tpu.core_type = #tpu.core_type<tc>, window_params = [{transform_indices = @transform_0, window_bounds = array<i64: 1024, 32>}, {pipeline_mode = #tpu.pipeline_mode<synchronous>, transform_indices = @transform_1, window_bounds = array<i64: 32, 256>}, {pipeline_mode = #tpu.pipeline_mode<synchronous>, transform_indices = @transform_2, window_bounds = array<i64: 1, 128>}, {transform_indices = @transform_3, window_bounds = array<i64: 8, 128>}]} {
    %c0 = arith.constant 0 : index
    %c0_0 = arith.constant 0 : index
    %0 = vector.load %arg1[%c0, %c0_0] : memref<1024x32xf32, #tpu.memory_space<vmem>>, vector<1024x32xf32>
    %c0_1 = arith.constant 0 : index
    %c0_2 = arith.constant 0 : index
    %1 = vector.load %arg2[%c0_1, %c0_2] : memref<32x256xf32, #tpu.memory_space<vmem>>, vector<32x256xf32>
    %cst = arith.constant dense<0.000000e+00> : vector<1024x256xf32>
    %2 = tpu.matmul %0, %1, %cst {dimension_numbers = #tpu.dot_dimension_numbers<[1], [0], [0], [1], [0, 0, 1, 1], [], []>, precision = #tpu.contract_precision<fp32>} : vector<1024x32xf32>, vector<32x256xf32>, vector<1024x256xf32> -> vector<1024x256xf32>
    %3 = vector.extract_strided_slice %2 {offsets = [0, 0], sizes = [1024, 128], strides = [1, 1]} : vector<1024x256xf32> to vector<1024x128xf32>
    %4 = math.tanh %3 : vector<1024x128xf32>
    %5 = vector.extract_strided_slice %2 {offsets = [0, 128], sizes = [1024, 128], strides = [1, 1]} : vector<1024x256xf32> to vector<1024x128xf32>
    %6 = arith.negf %5 : vector<1024x128xf32>
    %7 = math.exp %6 : vector<1024x128xf32>
    %cst_3 = arith.constant 1.000000e+00 : f32
    %8 = vector.broadcast %cst_3 : f32 to vector<1024x128xf32>
    %9 = arith.addf %8, %7 : vector<1024x128xf32>
    %10 = arith.divf %8, %9 : vector<1024x128xf32>
    %11 = arith.mulf %4, %10 : vector<1024x128xf32>
    %12 = vector.shape_cast %11 : vector<1024x128xf32> to vector<128x8x128xf32>
    %c0_4 = arith.constant 0 : index
    %c0_5 = arith.constant 0 : index
    %13 = vector.load %arg3[%c0_4, %c0_5] : memref<1x128xf32, #tpu.memory_space<vmem>>, vector<1x128xf32>
    %14 = vector.shape_cast %13 : vector<1x128xf32> to vector<1x1x128xf32>
    %15 = vector.broadcast %14 : vector<1x1x128xf32> to vector<128x8x128xf32>
    %16 = arith.mulf %12, %15 : vector<128x8x128xf32>
    %cst_6 = arith.constant dense<0.000000e+00> : vector<128x8xf32>
    %17 = vector.multi_reduction <add>, %16, %cst_6 [2] : vector<128x8x128xf32> to vector<128x8xf32>
    %18 = tpu.iota {dimensions = array<i32: 0>} : vector<8x8xi32>
    %19 = tpu.iota {dimensions = array<i32: 1>} : vector<8x8xi32>
    %20 = arith.cmpi eq, %18, %19 : vector<8x8xi32>
    %21 = arith.extui %20 : vector<8x8xi1> to vector<8x8xi32>
    %22 = arith.sitofp %21 : vector<8x8xi32> to vector<8x8xf32>
    %cst_7 = arith.constant dense<0.000000e+00> : vector<8x128xf32>
    %23 = tpu.matmul %22, %17, %cst_7 {dimension_numbers = #tpu.dot_dimension_numbers<[1], [1], [0], [0], [0, 0, 1, 0], [], []>, precision = #tpu.contract_precision<fp32>} : vector<8x8xf32>, vector<128x8xf32>, vector<8x128xf32> -> vector<8x128xf32>
    %cst_8 = arith.constant dense<0xFF800000> : vector<128xf32>
    %24 = vector.multi_reduction <maximumf>, %23, %cst_8 [0] : vector<8x128xf32> to vector<128xf32>
    %25 = vector.shape_cast %24 : vector<128xf32> to vector<1x128xf32>
    %26 = vector.broadcast %25 : vector<1x128xf32> to vector<8x128xf32>
    %27 = arith.subf %23, %26 : vector<8x128xf32>
    %28 = math.exp %27 : vector<8x128xf32>
    %cst_9 = arith.constant dense<0.000000e+00> : vector<128xf32>
    %29 = vector.multi_reduction <add>, %28, %cst_9 [0] : vector<8x128xf32> to vector<128xf32>
    %30 = vector.shape_cast %29 : vector<128xf32> to vector<1x128xf32>
    %31 = vector.broadcast %30 : vector<1x128xf32> to vector<8x128xf32>
    %32 = arith.divf %28, %31 : vector<8x128xf32>
    %c0_10 = arith.constant 0 : index
    %c0_11 = arith.constant 0 : index
    %33 = vector.load %arg4[%c0_10, %c0_11] : memref<8x128xf32, #tpu.memory_space<vmem>>, vector<8x128xf32>
    tpu.vector_store %arg4[%c0_10, %c0_11], %32 {strides = array<i32>} : memref<8x128xf32, #tpu.memory_space<vmem>>, vector<8x128xf32>,
    return
  }
  func.func @transform_0(%arg0: i32) -> (i32, i32) {
    %c0_i32 = arith.constant 0 : i32
    %c0_i32_0 = arith.constant 0 : i32
    return %arg0, %c0_i32 : i32, i32
  }
  func.func @transform_1(%arg0: i32) -> (i32, i32) {
    %c0_i32 = arith.constant 0 : i32
    %c0_i32_0 = arith.constant 0 : i32
    %c0_i32_1 = arith.constant 0 : i32
    return %c0_i32, %c0_i32_0 : i32, i32
  }
  func.func @transform_2(%arg0: i32) -> (i32, i32) {
    %c0_i32 = arith.constant 0 : i32
    %c0_i32_0 = arith.constant 0 : i32
    %c0_i32_1 = arith.constant 0 : i32
    return %c0_i32, %c0_i32_0 : i32, i32
  }
  func.func @transform_3(%arg0: i32) -> (i32, i32) {
    %c0_i32 = arith.constant 0 : i32
    %c0_i32_0 = arith.constant 0 : i32
    return %c0_i32, %arg0 : i32, i32
  }
}

</mosaic_0001>

<llo_original>
// kernel: attention_model_forward_batched.1
$region0: #{attention_model_forward_batched.1}
  #allocation0 [shape = 'u32[]', space=smem, size = 0x4, offset = 0x4, fixed_abs, tag = 'smem constant byte address 0x4 - core index']
  #allocation1 [shape = 'u32[144,128]{1,0:T(1,128)}', space=vmem, size = 0x12000, scoped, tag = 'internal scratch']
  %s0 = inlined_call_operand.vmem [shape: f32[2048,32], index: 0, kind: input, shape index: {}]
  %s1 = inlined_call_operand.vmem [shape: f32[32,256], index: 1, kind: input, shape index: {}]
  %s2 = inlined_call_operand.vmem [shape: f32[1,128], index: 2, kind: input, shape index: {}]
  %s3 = inlined_call_operand.vmem [shape: f32[8,256], index: 3, kind: output, shape index: {}]
  %s4 = sld [smem:[#allocation0]]
  $region45: #{attention_model_forward_batched.1} parent=0
    _
  %s6 = ssub.s32 1, %s4
  %s7 = scalar_select 0, %s6, %s4
  loop: start=0, step=1, limit=4
  $region2: #{attention_model_forward_batched.1} parent=0 // loop_pre_header
    _
  $region3: #{attention_model_forward_batched.1} parent=0 // loop_header
    %s9 = sphi 0, %s13
    %p10 = scmp.ge.s32.totalorder %s9, 4
    %s19 = sphi 0, %s21
    %s22 = sphi 0, %s19
    %s23 = sphi 0, %s22
    %s39 = sphi 0, %s23
    %s43 = sphi 0, %s43
    %s45 = sphi 0, %s43
    %s46 = sphi 0, %s45
    %s60 = sphi 0, %s46
    %s64 = sphi 0, %s64
    %s66 = sphi 0, %s64
    %s67 = sphi 0, %s66
    %s81 = sphi 0, %s67
    %s87 = sphi 0, %s89
    %s90 = sphi 0, %s87
    %s91 = sphi 0, %s90
    %s107 = sphi 0, %s91
  $region4: #{attention_model_forward_batched.1} parent=0 // loop_header_branch
    %12 = sbr.rel (%p10) target = $region8
  $region5: #{attention_model_forward_batched.1} parent=0 // loop_body
    %s14 = ssub.s32 %s9, 1
    %s15 = ssub.s32 %s9, 2
    %s16 = sadd.s32 %s9, 1
    %s17 = ssub.s32 %s9, %s16
    %p18 = scmp.eq.s32.totalorder %s17, 0
    %s20 = sadd.s32 %s19, 1
    %s21 = scalar_select %p18, %s19, %s20
    %p24 = pneg %p18
    %p25 = scmp.eq.s32.totalorder %s9, 1
    %p26 = por %p24, %p25
    %p27 = scmp.ne.s32.totalorder %s19, %s22
    %p28 = scmp.eq.s32.totalorder %s9, 0
    %p29 = por %p27, %p28
    %p30 = scmp.ne.s32.totalorder %s19, %s22
    %p31 = scmp.eq.s32.totalorder %s14, 1
    %p32 = por %p30, %p31
    %p33 = scmp.ne.s32.totalorder %s22, %s23
    %p34 = scmp.eq.s32.totalorder %s14, 0
    %p35 = por %p33, %p34
    %p36 = scmp.ne.s32.totalorder %s22, %s23
    %p37 = scmp.eq.s32.totalorder %s15, 1
    %p38 = por %p36, %p37
    %p40 = scmp.ne.s32.totalorder %s23, %s39
    %p41 = scmp.eq.s32.totalorder %s15, 0
    %p42 = por %p40, %p41
    %s44 = sadd.s32 %s43, 1
    %p47 = scmp.eq.s32.totalorder %s9, 1
    %p48 = scmp.ne.s32.totalorder %s43, %s45
    %p49 = scmp.eq.s32.totalorder %s9, 0
    %p50 = por %p48, %p49
    %p51 = scmp.ne.s32.totalorder %s43, %s45
    %p52 = scmp.eq.s32.totalorder %s14, 1
    %p53 = por %p51, %p52
    %p54 = scmp.ne.s32.totalorder %s45, %s46
    %p55 = scmp.eq.s32.totalorder %s14, 0
    %p56 = por %p54, %p55
    %p57 = scmp.ne.s32.totalorder %s45, %s46
    %p58 = scmp.eq.s32.totalorder %s15, 1
    %p59 = por %p57, %p58
    %p61 = scmp.ne.s32.totalorder %s46, %s60
    %p62 = scmp.eq.s32.totalorder %s15, 0
    %p63 = por %p61, %p62
    %s65 = sadd.s32 %s64, 1
    %p68 = scmp.eq.s32.totalorder %s9, 1
    %p69 = scmp.ne.s32.totalorder %s64, %s66
    %p70 = scmp.eq.s32.totalorder %s9, 0
    %p71 = por %p69, %p70
    %p72 = scmp.ne.s32.totalorder %s64, %s66
    %p73 = scmp.eq.s32.totalorder %s14, 1
    %p74 = por %p72, %p73
    %p75 = scmp.ne.s32.totalorder %s66, %s67
    %p76 = scmp.eq.s32.totalorder %s14, 0
    %p77 = por %p75, %p76
    %p78 = scmp.ne.s32.totalorder %s66, %s67
    %p79 = scmp.eq.s32.totalorder %s15, 1
    %p80 = por %p78, %p79
    %p82 = scmp.ne.s32.totalorder %s67, %s81
    %p83 = scmp.eq.s32.totalorder %s15, 0
    %p84 = por %p82, %p83
    %s85 = ssub.s32 %s9, %s16
    %p86 = scmp.eq.s32.totalorder %s85, 0
    %s88 = sadd.s32 %s87, 1
    %s89 = scalar_select %p86, %s87, %s88
    %p92 = pneg %p86
    %p93 = scmp.eq.s32.totalorder %s9, 1
    %p94 = por %p92, %p93
    %p95 = scmp.ne.s32.totalorder %s87, %s90
    %p96 = scmp.eq.s32.totalorder %s9, 0
    %p97 = por %p95, %p96
    %p98 = scmp.ne.s32.totalorder %s87, %s90
    %p99 = scmp.eq.s32.totalorder %s14, 1
    %p100 = por %p98, %p99
    %p101 = scmp.ne.s32.totalorder %s90, %s91
    %p102 = scmp.eq.s32.totalorder %s14, 0
    %p103 = por %p101, %p102
    %p104 = scmp.ne.s32.totalorder %s90, %s91
    %p105 = scmp.eq.s32.totalorder %s15, 1
    %p106 = por %p104, %p105
    %p108 = scmp.ne.s32.totalorder %s91, %s107
    %p109 = scmp.eq.s32.totalorder %s15, 0
    %p110 = por %p108, %p109
    %p111 = scmp.le.s32.totalorder 1, %s9
    %p112 = scmp.lt.s32.totalorder %s9, 3
    %p113 = pnand %p111, %p112
    %p114 = pneg %p113
    // Predicated region
    $region9: #{attention_model_forward_batched.1} parent=5 // pred_check
      _
    $region10: #{attention_model_forward_batched.1} parent=5 // pred_check_branch
      %116 = sbr.rel (%p113) target = $region12
    $region11: #{attention_model_forward_batched.1} parent=5 // pred_region
      %s117 = ssub.s32 %s9, 1
      // Predicated region
      $region13: #{attention_model_forward_batched.1} parent=11 // pred_check
        %p118 = pneg %p56
      $region14: #{attention_model_forward_batched.1} parent=11 // pred_check_branch
        %120 = sbr.rel (%p118) target = $region16
      $region15: #{attention_model_forward_batched.1} parent=11 // pred_region
        _
      $region16: #{attention_model_forward_batched.1} parent=11 // pred_fallthru
        _
      // Predicated region
      $region17: #{attention_model_forward_batched.1} parent=11 // pred_check
        %p121 = pneg %p77
      $region18: #{attention_model_forward_batched.1} parent=11 // pred_check_branch
        %123 = sbr.rel (%p121) target = $region20
      $region19: #{attention_model_forward_batched.1} parent=11 // pred_region
        _
      $region20: #{attention_model_forward_batched.1} parent=11 // pred_fallthru
        _
    $region12: #{attention_model_forward_batched.1} parent=5 // pred_fallthru
      _
    %p124 = scmp.lt.s32.totalorder %s9, 2
    // Predicated region
    $region21: #{attention_model_forward_batched.1} parent=5 // pred_check
      %p125 = pneg %p124
    $region22: #{attention_model_forward_batched.1} parent=5 // pred_check_branch
      %127 = sbr.rel (%p125) target = $region24
    $region23: #{attention_model_forward_batched.1} parent=5 // pred_region
      // Predicated region
      $region25: #{attention_model_forward_batched.1} parent=23 // pred_check
        %p128 = pneg %p29
      $region26: #{attention_model_forward_batched.1} parent=23 // pred_check_branch
        %130 = sbr.rel (%p128) target = $region28
      $region27: #{attention_model_forward_batched.1} parent=23 // pred_region
        %s131 = smul.u32 128, %s9
        %p132 = scmp.lt.s32.totalorder %s131, 255
        %s133 = scalar_select %p132, %s131, 255
        %s134 = smul.addr %s133, 8
        %s135 = scalar_lea.vmem %s0, %s134
        %s136 = smul.u32 128, %s9
      $region28: #{attention_model_forward_batched.1} parent=23 // pred_fallthru
        _
    $region24: #{attention_model_forward_batched.1} parent=5 // pred_fallthru
      _
    %p137 = scmp.le.s32.totalorder 1, %s9
    %p138 = scmp.lt.s32.totalorder %s9, 3
    %p139 = pnand %p137, %p138
    %p140 = pneg %p139
    // Predicated region
    $region29: #{attention_model_forward_batched.1} parent=5 // pred_check
      _
    $region30: #{attention_model_forward_batched.1} parent=5 // pred_check_branch
      %142 = sbr.rel (%p139) target = $region32
    $region31: #{attention_model_forward_batched.1} parent=5 // pred_region
      %s143 = ssub.s32 %s9, 1
      %s144 = smul.u32 128, %s14
      %p145 = scmp.lt.s32.totalorder %s144, 255
      %s146 = scalar_select %p145, %s144, 255
      %s147 = smul.addr %s146, 8
      %s148 = scalar_lea.vmem %s0, %s147
      %p149 = pneg %p35
      %p150 = pneg %p32
      %p151 = pneg %p56
      %p152 = pneg %p53
      %p153 = pneg %p77
      %p154 = pneg %p74
      %p155 = pneg %p103
      %p156 = pneg %p100
      %p157 = scmp.lt.s32.totalorder %s14, 1
      %s158 = scalar_select %p157, %s14, 1
      %s159 = smul.addr %s158, 8
      %s160 = scalar_lea.vmem %s3, %s159
      %s161 = smul.u32 128, %s14
      %p162 = scmp.lt.s32.totalorder %s161, 255
      %s163 = scalar_select %p162, %s161, 255
      %s164 = smul.addr %s163, 8
      %s165 = scalar_lea.vmem %s0, %s164
      %s166 = smul.u32 128, %s14
      %p167 = scmp.lt.s32.totalorder %s14, 1
      %s168 = scalar_select %p167, %s14, 1
      %s169 = smul.addr %s168, 8
      %s170 = scalar_lea.vmem %s3, %s169
      %v171 = vld [vmem:[%s165] sm:$0xff]
      %v172 = vld [vmem:[%s165 + $0x8] sm:$0xff]
      %v173 = vld [vmem:[%s165 + $0x10] sm:$0xff]
      %v174 = vld [vmem:[%s165 + $0x18] sm:$0xff]
      %v175 = vld [vmem:[%s165 + $0x20] sm:$0xff]
      %v176 = vld [vmem:[%s165 + $0x28] sm:$0xff]
      %v177 = vld [vmem:[%s165 + $0x30] sm:$0xff]
      %v178 = vld [vmem:[%s165 + $0x38] sm:$0xff]
      %v179 = vld [vmem:[%s165 + $0x40] sm:$0xff]
      %v180 = vld [vmem:[%s165 + $0x48] sm:$0xff]
      %v181 = vld [vmem:[%s165 + $0x50] sm:$0xff]
      %v182 = vld [vmem:[%s165 + $0x58] sm:$0xff]
      %v183 = vld [vmem:[%s165 + $0x60] sm:$0xff]
      %v184 = vld [vmem:[%s165 + $0x68] sm:$0xff]
      %v185 = vld [vmem:[%s165 + $0x70] sm:$0xff]
      %v186 = vld [vmem:[%s165 + $0x78] sm:$0xff]
      %v187 = vld [vmem:[%s165 + $0x80] sm:$0xff]
      %v188 = vld [vmem:[%s165 + $0x88] sm:$0xff]
      %v189 = vld [vmem:[%s165 + $0x90] sm:$0xff]
      %v190 = vld [vmem:[%s165 + $0x98] sm:$0xff]
      %v191 = vld [vmem:[%s165 + $0xa0] sm:$0xff]
      %v192 = vld [vmem:[%s165 + $0xa8] sm:$0xff]
      %v193 = vld [vmem:[%s165 + $0xb0] sm:$0xff]
      %v194 = vld [vmem:[%s165 + $0xb8] sm:$0xff]
      %v195 = vld [vmem:[%s165 + $0xc0] sm:$0xff]
      %v196 = vld [vmem:[%s165 + $0xc8] sm:$0xff]
      %v197 = vld [vmem:[%s165 + $0xd0] sm:$0xff]
      %v198 = vld [vmem:[%s165 + $0xd8] sm:$0xff]
      %v199 = vld [vmem:[%s165 + $0xe0] sm:$0xff]
      %v200 = vld [vmem:[%s165 + $0xe8] sm:$0xff]
      %v201 = vld [vmem:[%s165 + $0xf0] sm:$0xff]
      %v202 = vld [vmem:[%s165 + $0xf8] sm:$0xff]
      %v203 = vld [vmem:[%s165 + $0x100] sm:$0xff]
      %v204 = vld [vmem:[%s165 + $0x108] sm:$0xff]
      %v205 = vld [vmem:[%s165 + $0x110] sm:$0xff]
      %v206 = vld [vmem:[%s165 + $0x118] sm:$0xff]
      %v207 = vld [vmem:[%s165 + $0x120] sm:$0xff]
      %v208 = vld [vmem:[%s165 + $0x128] sm:$0xff]
      %v209 = vld [vmem:[%s165 + $0x130] sm:$0xff]
      %v210 = vld [vmem:[%s165 + $0x138] sm:$0xff]
      %v211 = vld [vmem:[%s165 + $0x140] sm:$0xff]
      %v212 = vld [vmem:[%s165 + $0x148] sm:$0xff]
      %v213 = vld [vmem:[%s165 + $0x150] sm:$0xff]
      %v214 = vld [vmem:[%s165 + $0x158] sm:$0xff]
      %v215 = vld [vmem:[%s165 + $0x160] sm:$0xff]
      %v216 = vld [vmem:[%s165 + $0x168] sm:$0xff]
      %v217 = vld [vmem:[%s165 + $0x170] sm:$0xff]
      %v218 = vld [vmem:[%s165 + $0x178] sm:$0xff]
      %v219 = vld [vmem:[%s165 + $0x180] sm:$0xff]
      %v220 = vld [vmem:[%s165 + $0x188] sm:$0xff]
      %v221 = vld [vmem:[%s165 + $0x190] sm:$0xff]
      %v222 = vld [vmem:[%s165 + $0x198] sm:$0xff]
      %v223 = vld [vmem:[%s165 + $0x1a0] sm:$0xff]
      %v224 = vld [vmem:[%s165 + $0x1a8] sm:$0xff]
      %v225 = vld [vmem:[%s165 + $0x1b0] sm:$0xff]
      %v226 = vld [vmem:[%s165 + $0x1b8] sm:$0xff]
      %v227 = vld [vmem:[%s165 + $0x1c0] sm:$0xff]
      %v228 = vld [vmem:[%s165 + $0x1c8] sm:$0xff]
      %v229 = vld [vmem:[%s165 + $0x1d0] sm:$0xff]
      %v230 = vld [vmem:[%s165 + $0x1d8] sm:$0xff]
      %v231 = vld [vmem:[%s165 + $0x1e0] sm:$0xff]
      %v232 = vld [vmem:[%s165 + $0x1e8] sm:$0xff]
      %v233 = vld [vmem:[%s165 + $0x1f0] sm:$0xff]
      %v234 = vld [vmem:[%s165 + $0x1f8] sm:$0xff]
      %v235 = vld [vmem:[%s165 + $0x200] sm:$0xff]
      %v236 = vld [vmem:[%s165 + $0x208] sm:$0xff]
      %v237 = vld [vmem:[%s165 + $0x210] sm:$0xff]
      %v238 = vld [vmem:[%s165 + $0x218] sm:$0xff]
      %v239 = vld [vmem:[%s165 + $0x220] sm:$0xff]
      %v240 = vld [vmem:[%s165 + $0x228] sm:$0xff]
      %v241 = vld [vmem:[%s165 + $0x230] sm:$0xff]
      %v242 = vld [vmem:[%s165 + $0x238] sm:$0xff]
      %v243 = vld [vmem:[%s165 + $0x240] sm:$0xff]
      %v244 = vld [vmem:[%s165 + $0x248] sm:$0xff]
      %v245 = vld [vmem:[%s165 + $0x250] sm:$0xff]
      %v246 = vld [vmem:[%s165 + $0x258] sm:$0xff]
      %v247 = vld [vmem:[%s165 + $0x260] sm:$0xff]
      %v248 = vld [vmem:[%s165 + $0x268] sm:$0xff]
      %v249 = vld [vmem:[%s165 + $0x270] sm:$0xff]
      %v250 = vld [vmem:[%s165 + $0x278] sm:$0xff]
      %v251 = vld [vmem:[%s165 + $0x280] sm:$0xff]
      %v252 = vld [vmem:[%s165 + $0x288] sm:$0xff]
      %v253 = vld [vmem:[%s165 + $0x290] sm:$0xff]
      %v254 = vld [vmem:[%s165 + $0x298] sm:$0xff]
      %v255 = vld [vmem:[%s165 + $0x2a0] sm:$0xff]
      %v256 = vld [vmem:[%s165 + $0x2a8] sm:$0xff]
      %v257 = vld [vmem:[%s165 + $0x2b0] sm:$0xff]
      %v258 = vld [vmem:[%s165 + $0x2b8] sm:$0xff]
      %v259 = vld [vmem:[%s165 + $0x2c0] sm:$0xff]
      %v260 = vld [vmem:[%s165 + $0x2c8] sm:$0xff]
      %v261 = vld [vmem:[%s165 + $0x2d0] sm:$0xff]
      %v262 = vld [vmem:[%s165 + $0x2d8] sm:$0xff]
      %v263 = vld [vmem:[%s165 + $0x2e0] sm:$0xff]
      %v264 = vld [vmem:[%s165 + $0x2e8] sm:$0xff]
      %v265 = vld [vmem:[%s165 + $0x2f0] sm:$0xff]
      %v266 = vld [vmem:[%s165 + $0x2f8] sm:$0xff]
      %v267 = vld [vmem:[%s165 + $0x300] sm:$0xff]
      %v268 = vld [vmem:[%s165 + $0x308] sm:$0xff]
      %v269 = vld [vmem:[%s165 + $0x310] sm:$0xff]
      %v270 = vld [vmem:[%s165 + $0x318] sm:$0xff]
      %v271 = vld [vmem:[%s165 + $0x320] sm:$0xff]
      %v272 = vld [vmem:[%s165 + $0x328] sm:$0xff]
      %v273 = vld [vmem:[%s165 + $0x330] sm:$0xff]
      %v274 = vld [vmem:[%s165 + $0x338] sm:$0xff]
      %v275 = vld [vmem:[%s165 + $0x340] sm:$0xff]
      %v276 = vld [vmem:[%s165 + $0x348] sm:$0xff]
      %v277 = vld [vmem:[%s165 + $0x350] sm:$0xff]
      %v278 = vld [vmem:[%s165 + $0x358] sm:$0xff]
      %v279 = vld [vmem:[%s165 + $0x360] sm:$0xff]
      %v280 = vld [vmem:[%s165 + $0x368] sm:$0xff]
      %v281 = vld [vmem:[%s165 + $0x370] sm:$0xff]
      %v282 = vld [vmem:[%s165 + $0x378] sm:$0xff]
      %v283 = vld [vmem:[%s165 + $0x380] sm:$0xff]
      %v284 = vld [vmem:[%s165 + $0x388] sm:$0xff]
      %v285 = vld [vmem:[%s165 + $0x390] sm:$0xff]
      %v286 = vld [vmem:[%s165 + $0x398] sm:$0xff]
      %v287 = vld [vmem:[%s165 + $0x3a0] sm:$0xff]
      %v288 = vld [vmem:[%s165 + $0x3a8] sm:$0xff]
      %v289 = vld [vmem:[%s165 + $0x3b0] sm:$0xff]
      %v290 = vld [vmem:[%s165 + $0x3b8] sm:$0xff]
      %v291 = vld [vmem:[%s165 + $0x3c0] sm:$0xff]
      %v292 = vld [vmem:[%s165 + $0x3c8] sm:$0xff]
      %v293 = vld [vmem:[%s165 + $0x3d0] sm:$0xff]
      %v294 = vld [vmem:[%s165 + $0x3d8] sm:$0xff]
      %v295 = vld [vmem:[%s165 + $0x3e0] sm:$0xff]
      %v296 = vld [vmem:[%s165 + $0x3e8] sm:$0xff]
      %v297 = vld [vmem:[%s165 + $0x3f0] sm:$0xff]
      %v298 = vld [vmem:[%s165 + $0x3f8] sm:$0xff]
      %v299 = vld [vmem:[%s1] sm:$0xff]
      %v300 = vld [vmem:[%s1 + $0x8] sm:$0xff]
      %v301 = vld [vmem:[%s1 + $0x10] sm:$0xff]
      %v302 = vld [vmem:[%s1 + $0x18] sm:$0xff]
      %v303 = vld [vmem:[%s1 + $0x20] sm:$0xff]
      %v304 = vld [vmem:[%s1 + $0x28] sm:$0xff]
      %v305 = vld [vmem:[%s1 + $0x30] sm:$0xff]
      %v306 = vld [vmem:[%s1 + $0x38] sm:$0xff]
      %vm307 = vcmask 261120
      %v309 = vsel %vm307, %v171, 0
      %v312 = vsel %vm307, %v172, 0
      %v315 = vsel %vm307, %v173, 0
      %v318 = vsel %vm307, %v174, 0
      %v321 = vsel %vm307, %v175, 0
      %v324 = vsel %vm307, %v176, 0
      %v327 = vsel %vm307, %v177, 0
      %v330 = vsel %vm307, %v178, 0
      %v333 = vsel %vm307, %v179, 0
      %v336 = vsel %vm307, %v180, 0
      %v339 = vsel %vm307, %v181, 0
      %v342 = vsel %vm307, %v182, 0
      %v345 = vsel %vm307, %v183, 0
      %v348 = vsel %vm307, %v184, 0
      %v351 = vsel %vm307, %v185, 0
      %v354 = vsel %vm307, %v186, 0
      %v357 = vsel %vm307, %v187, 0
      %v360 = vsel %vm307, %v188, 0
      %v363 = vsel %vm307, %v189, 0
      %v366 = vsel %vm307, %v190, 0
      %v369 = vsel %vm307, %v191, 0
      %v372 = vsel %vm307, %v192, 0
      %v375 = vsel %vm307, %v193, 0
      %v378 = vsel %vm307, %v194, 0
      %v381 = vsel %vm307, %v195, 0
      %v384 = vsel %vm307, %v196, 0
      %v387 = vsel %vm307, %v197, 0
      %v390 = vsel %vm307, %v198, 0
      %v393 = vsel %vm307, %v199, 0
      %v396 = vsel %vm307, %v200, 0
      %v399 = vsel %vm307, %v201, 0
      %v402 = vsel %vm307, %v202, 0
      %v405 = vsel %vm307, %v203, 0
      %v408 = vsel %vm307, %v204, 0
      %v411 = vsel %vm307, %v205, 0
      %v414 = vsel %vm307, %v206, 0
      %v417 = vsel %vm307, %v207, 0
      %v420 = vsel %vm307, %v208, 0
      %v423 = vsel %vm307, %v209, 0
      %v426 = vsel %vm307, %v210, 0
      %v429 = vsel %vm307, %v211, 0
      %v432 = vsel %vm307, %v212, 0
      %v435 = vsel %vm307, %v213, 0
      %v438 = vsel %vm307, %v214, 0
      %v441 = vsel %vm307, %v215, 0
      %v444 = vsel %vm307, %v216, 0
      %v447 = vsel %vm307, %v217, 0
      %v450 = vsel %vm307, %v218, 0
      %v453 = vsel %vm307, %v219, 0
      %v456 = vsel %vm307, %v220, 0
      %v459 = vsel %vm307, %v221, 0
      %v462 = vsel %vm307, %v222, 0
      %v465 = vsel %vm307, %v223, 0
      %v468 = vsel %vm307, %v224, 0
      %v471 = vsel %vm307, %v225, 0
      %v474 = vsel %vm307, %v226, 0
      %v477 = vsel %vm307, %v227, 0
      %v480 = vsel %vm307, %v228, 0
      %v483 = vsel %vm307, %v229, 0
      %v486 = vsel %vm307, %v230, 0
      %v489 = vsel %vm307, %v231, 0
      %v492 = vsel %vm307, %v232, 0
      %v495 = vsel %vm307, %v233, 0
      %v498 = vsel %vm307, %v234, 0
      %v501 = vsel %vm307, %v235, 0
      %v504 = vsel %vm307, %v236, 0
      %v507 = vsel %vm307, %v237, 0
      %v510 = vsel %vm307, %v238, 0
      %v513 = vsel %vm307, %v239, 0
      %v516 = vsel %vm307, %v240, 0
      %v519 = vsel %vm307, %v241, 0
      %v522 = vsel %vm307, %v242, 0
      %v525 = vsel %vm307, %v243, 0
      %v528 = vsel %vm307, %v244, 0
      %v531 = vsel %vm307, %v245, 0
      %v534 = vsel %vm307, %v246, 0
      %v537 = vsel %vm307, %v247, 0
      %v540 = vsel %vm307, %v248, 0
      %v543 = vsel %vm307, %v249, 0
      %v546 = vsel %vm307, %v250, 0
      %v549 = vsel %vm307, %v251, 0
      %v552 = vsel %vm307, %v252, 0
      %v555 = vsel %vm307, %v253, 0
      %v558 = vsel %vm307, %v254, 0
      %v561 = vsel %vm307, %v255, 0
      %v564 = vsel %vm307, %v256, 0
      %v567 = vsel %vm307, %v257, 0
      %v570 = vsel %vm307, %v258, 0
      %v573 = vsel %vm307, %v259, 0
      %v576 = vsel %vm307, %v260, 0
      %v579 = vsel %vm307, %v261, 0
      %v582 = vsel %vm307, %v262, 0
      %v585 = vsel %vm307, %v263, 0
      %v588 = vsel %vm307, %v264, 0
      %v591 = vsel %vm307, %v265, 0
      %v594 = vsel %vm307, %v266, 0
      %v597 = vsel %vm307, %v267, 0
      %v600 = vsel %vm307, %v268, 0
      %v603 = vsel %vm307, %v269, 0
      %v606 = vsel %vm307, %v270, 0
      %v609 = vsel %vm307, %v271, 0
      %v612 = vsel %vm307, %v272, 0
      %v615 = vsel %vm307, %v273, 0
      %v618 = vsel %vm307, %v274, 0
      %v621 = vsel %vm307, %v275, 0
      %v624 = vsel %vm307, %v276, 0
      %v627 = vsel %vm307, %v277, 0
      %v630 = vsel %vm307, %v278, 0
      %v633 = vsel %vm307, %v279, 0
      %v636 = vsel %vm307, %v280, 0
      %v639 = vsel %vm307, %v281, 0
      %v642 = vsel %vm307, %v282, 0
      %v645 = vsel %vm307, %v283, 0
      %v648 = vsel %vm307, %v284, 0
      %v651 = vsel %vm307, %v285, 0
      %v654 = vsel %vm307, %v286, 0
      %v657 = vsel %vm307, %v287, 0
      %v660 = vsel %vm307, %v288, 0
      %v663 = vsel %vm307, %v289, 0
      %v666 = vsel %vm307, %v290, 0
      %v669 = vsel %vm307, %v291, 0
      %v672 = vsel %vm307, %v292, 0
      %v675 = vsel %vm307, %v293, 0
      %v678 = vsel %vm307, %v294, 0
      %v681 = vsel %vm307, %v295, 0
      %v684 = vsel %vm307, %v296, 0
      %v687 = vsel %vm307, %v297, 0
      %v690 = vsel %vm307, %v298, 0
      %v692 = vand.u32 %v300, 4294901760
      %693 = vmatprep.subr.mxu0 %v692
      %v694 = vand.u32 %v299, 4294901760
      %695 = vmatpush1.msra.mxu0 %v694
      %v696 = vand.u32 %v302, 4294901760
      %697 = vmatprep.subr.mxu0 %v696
      %v698 = vand.u32 %v301, 4294901760
      %699 = vmatpush1.msra.mxu0 %v698
      %v700 = vand.u32 %v304, 4294901760
      %701 = vmatprep.subr.mxu0 %v700
      %v702 = vand.u32 %v303, 4294901760
      %703 = vmatpush1.msra.mxu0 %v702
      %v704 = vand.u32 %v306, 4294901760
      %705 = vmatprep.subr.mxu0 %v704
      %v706 = vand.u32 %v305, 4294901760
      %707 = vmatpush1.msra.mxu0 %v706
      %708 = vmatprep.subr.mxu0 0.0
      %709 = vmatpush1.msra.mxu0 0.0
      %710 = vmatprep.subr.mxu0 0.0
      %711 = vmatpush1.msra.mxu0 0.0
      %712 = vmatprep.subr.mxu0 0.0
      %713 = vmatpush1.msra.mxu0 0.0
      %714 = vmatprep.subr.mxu0 0.0
      %715 = vmatpush1.msra.mxu0 0.0
      %716 = vmatprep.subr.mxu0 0.0
      %717 = vmatpush1.msra.mxu0 0.0
      %718 = vmatprep.subr.mxu0 0.0
      %719 = vmatpush1.msra.mxu0 0.0
      %720 = vmatprep.subr.mxu0 0.0
      %721 = vmatpush1.msra.mxu0 0.0
      %722 = vmatprep.subr.mxu0 0.0
      %723 = vmatpush1.msra.mxu0 0.0
      %724 = vmatprep.subr.mxu0 0.0
      %725 = vmatpush1.msra.mxu0 0.0
      %726 = vmatprep.subr.mxu0 0.0
      %727 = vmatpush1.msra.mxu0 0.0
      %728 = vmatprep.subr.mxu0 0.0
      %729 = vmatpush1.msra.mxu0 0.0
      %730 = vmatprep.subr.mxu0 0.0
      %731 = vmatpush1.msra.mxu0 0.0
      %732 = vmatprep.subr.mxu0 0.0
      %733 = vmatpush1.msra.mxu0 0.0
      %734 = vmatprep.subr.mxu0 0.0
      %735 = vmatpush1.msra.mxu0 0.0
      %736 = vmatprep.subr.mxu0 0.0
      %737 = vmatpush1.msra.mxu0 0.0
      %738 = vmatprep.subr.mxu0 0.0
      %739 = vmatpush1.msra.mxu0 0.0
      %740 = vmatprep.subr.mxu0 0.0
      %741 = vmatpush1.msra.mxu0 0.0
      %742 = vmatprep.subr.mxu0 0.0
      %743 = vmatpush1.msra.mxu0 0.0
      %744 = vmatprep.subr.mxu0 0.0
      %745 = vmatpush1.msra.mxu0 0.0
      %746 = vmatprep.subr.mxu0 0.0
      %747 = vmatpush1.msra.mxu0 0.0
      %748 = vmatprep.subr.mxu0 0.0
      %749 = vmatpush1.msra.mxu0 0.0
      %750 = vmatprep.subr.mxu0 0.0
      %751 = vmatpush1.msra.mxu0 0.0
      %752 = vmatprep.subr.mxu0 0.0
      %753 = vmatpush1.msra.mxu0 0.0
      %754 = vmatprep.subr.mxu0 0.0
      %755 = vmatpush1.msra.mxu0 0.0
      %756 = vmatprep.subr.mxu0 0.0
      %757 = vmatpush1.msra.mxu0 0.0
      %758 = vmatprep.subr.mxu0 0.0
      %759 = vmatpush1.msra.mxu0 0.0
      %760 = vmatprep.subr.mxu0 0.0
      %761 = vmatpush1.msra.mxu0 0.0
      %762 = vmatprep.subr.mxu0 0.0
      %763 = vmatpush1.msra.mxu0 0.0
      %764 = vmatprep.mubr.f32.mxu0 0.0
      %v765 = vand.u32 %v309, 4294901760
      %v766 = vsub.f32 %v309, %v765
      %v767 = vand.u32 %v766, 4294901760
      %v768 = vsub.f32 %v766, %v767
      %v769 = vand.u32 %v768, 4294901760
      %770 = vmatmul.mubr.f32.gmra.mrb[0].mxu0 %v769
      %v771 = vpop.f32.mrb[0].mxu0
      %v772 = vadd.f32 0.0, %v771
      %v773 = vpop.f32.mrb[0].mxu0
      %v774 = vadd.f32 0.0, %v773
      %775 = vmatprep.mubr.f32.mxu0 0.0
      %v776 = vand.u32 %v312, 4294901760
      %v777 = vsub.f32 %v312, %v776
      %v778 = vand.u32 %v777, 4294901760
      %v779 = vsub.f32 %v777, %v778
      %v780 = vand.u32 %v779, 4294901760
      %781 = vmatmul.mubr.f32.gmra.mrb[0].mxu0 %v780
      %v782 = vpop.f32.mrb[0].mxu0
      %v783 = vadd.f32 0.0, %v782
      %v784 = vpop.f32.mrb[0].mxu0
      %v785 = vadd.f32 0.0, %v784
      %786 = vmatprep.mubr.f32.mxu0 0.0
      %v787 = vand.u32 %v315, 4294901760
      %v788 = vsub.f32 %v315, %v787
      %v789 = vand.u32 %v788, 4294901760
      %v790 = vsub.f32 %v788, %v789
      %v791 = vand.u32 %v790, 4294901760
      %792 = vmatmul.mubr.f32.gmra.mrb[0].mxu0 %v791
      %v793 = vpop.f32.mrb[0].mxu0
      %v794 = vadd.f32 0.0, %v793
      %v795 = vpop.f32.mrb[0].mxu0
      %v796 = vadd.f32 0.0, %v795
      %797 = vmatprep.mubr.f32.mxu0 0.0
      %v798 = vand.u32 %v318, 4294901760
      %v799 = vsub.f32 %v318, %v798
      %v800 = vand.u32 %v799, 4294901760
      %v801 = vsub.f32 %v799, %v800
      %v802 = vand.u32 %v801, 4294901760
      %803 = vmatmul.mubr.f32.gmra.mrb[0].mxu0 %v802
      %v804 = vpop.f32.mrb[0].mxu0
      %v805 = vadd.f32 0.0, %v804
      %v806 = vpop.f32.mrb[0].mxu0
      %v807 = vadd.f32 0.0, %v806
      %808 = vmatprep.mubr.f32.mxu0 0.0
      %v809 = vand.u32 %v321, 4294901760
      %v810 = vsub.f32 %v321, %v809
      %v811 = vand.u32 %v810, 4294901760
      %v812 = vsub.f32 %v810, %v811
      %v813 = vand.u32 %v812, 4294901760
      %814 = vmatmul.mubr.f32.gmra.mrb[0].mxu0 %v813
      %v815 = vpop.f32.mrb[0].mxu0
      %v816 = vadd.f32 0.0, %v815
      %v817 = vpop.f32.mrb[0].mxu0
      %v818 = vadd.f32 0.0, %v817
      %819 = vmatprep.mubr.f32.mxu0 0.0
      %v820 = vand.u32 %v324, 4294901760
      %v821 = vsub.f32 %v324, %v820
      %v822 = vand.u32 %v821, 4294901760
      %v823 = vsub.f32 %v821, %v822
      %v824 = vand.u32 %v823, 4294901760
      %825 = vmatmul.mubr.f32.gmra.mrb[0].mxu0 %v824
      %v826 = vpop.f32.mrb[0].mxu0
      %v827 = vadd.f32 0.0, %v826
      %v828 = vpop.f32.mrb[0].mxu0
      %v829 = vadd.f32 0.0, %v828
      %830 = vmatprep.mubr.f32.mxu0 0.0
      %v831 = vand.u32 %v327, 4294901760
      %v832 = vsub.f32 %v327, %v831
      %v833 = vand.u32 %v832, 4294901760
      %v834 = vsub.f32 %v832, %v833
      %v835 = vand.u32 %v834, 4294901760
      %836 = vmatmul.mubr.f32.gmra.mrb[0].mxu0 %v835
      %v837 = vpop.f32.mrb[0].mxu0
      %v838 = vadd.f32 0.0, %v837
      %v839 = vpop.f32.mrb[0].mxu0
      %v840 = vadd.f32 0.0, %v839
      %841 = vmatprep.mubr.f32.mxu0 0.0
      %v842 = vand.u32 %v330, 4294901760
      %v843 = vsub.f32 %v330, %v842
      %v844 = vand.u32 %v843, 4294901760
      %v845 = vsub.f32 %v843, %v844
      %v846 = vand.u32 %v845, 4294901760
      %847 = vmatmul.mubr.f32.gmra.mrb[0].mxu0 %v846
      %v848 = vpop.f32.mrb[0].mxu0
      %v849 = vadd.f32 0.0, %v848
      %v850 = vpop.f32.mrb[0].mxu0
      %v851 = vadd.f32 0.0, %v850
      %852 = vmatprep.mubr.f32.mxu0 0.0
      %v853 = vand.u32 %v333, 4294901760
      %v854 = vsub.f32 %v333, %v853
      %v855 = vand.u32 %v854, 4294901760
      %v856 = vsub.f32 %v854, %v855
      %v857 = vand.u32 %v856, 4294901760
      %858 = vmatmul.mubr.f32.gmra.mrb[0].mxu0 %v857
      %v859 = vpop.f32.mrb[0].mxu0
      %v860 = vadd.f32 0.0, %v859
      %v861 = vpop.f32.mrb[0].mxu0
      %v862 = vadd.f32 0.0, %v861
      %863 = vmatprep.mubr.f32.mxu0 0.0
      %v864 = vand.u32 %v336, 4294901760
      %v865 = vsub.f32 %v336, %v864
      %v866 = vand.u32 %v865, 4294901760
      %v867 = vsub.f32 %v865, %v866
      %v868 = vand.u32 %v867, 4294901760
      %869 = vmatmul.mubr.f32.gmra.mrb[0].mxu0 %v868
      %v870 = vpop.f32.mrb[0].mxu0
      %v871 = vadd.f32 0.0, %v870
      %v872 = vpop.f32.mrb[0].mxu0
      %v873 = vadd.f32 0.0, %v872
      %874 = vmatprep.mubr.f32.mxu0 0.0
      %v875 = vand.u32 %v339, 4294901760
      %v876 = vsub.f32 %v339, %v875
      %v877 = vand.u32 %v876, 4294901760
      %v878 = vsub.f32 %v876, %v877
      %v879 = vand.u32 %v878, 4294901760
      %880 = vmatmul.mubr.f32.gmra.mrb[0].mxu0 %v879
      %v881 = vpop.f32.mrb[0].mxu0
      %v882 = vadd.f32 0.0, %v881
      %v883 = vpop.f32.mrb[0].mxu0
      %v884 = vadd.f32 0.0, %v883
      %885 = vmatprep.mubr.f32.mxu0 0.0
      %v886 = vand.u32 %v342, 4294901760
      %v887 = vsub.f32 %v342, %v886
      %v888 = vand.u32 %v887, 4294901760
      %v889 = vsub.f32 %v887, %v888
      %v890 = vand.u32 %v889, 4294901760
      %891 = vmatmul.mubr.f32.gmra.mrb[0].mxu0 %v890
      %v892 = vpop.f32.mrb[0].mxu0
      %v893 = vadd.f32 0.0, %v892
      %v894 = vpop.f32.mrb[0].mxu0
      %v895 = vadd.f32 0.0, %v894
      %896 = vmatprep.mubr.f32.mxu0 0.0
      %v897 = vand.u32 %v345, 4294901760
      %v898 = vsub.f32 %v345, %v897
      %v899 = vand.u32 %v898, 4294901760
      %v900 = vsub.f32 %v898, %v899
      %v901 = vand.u32 %v900, 4294901760
      %902 = vmatmul.mubr.f32.gmra.mrb[0].mxu0 %v901
      %v903 = vpop.f32.mrb[0].mxu0
      %v904 = vadd.f32 0.0, %v903
      %v905 = vpop.f32.mrb[0].mxu0
      %v906 = vadd.f32 0.0, %v905
      %907 = vmatprep.mubr.f32.mxu0 0.0
      %v908 = vand.u32 %v348, 4294901760
      %v909 = vsub.f32 %v348, %v908
      %v910 = vand.u32 %v909, 4294901760
      %v911 = vsub.f32 %v909, %v910
      %v912 = vand.u32 %v911, 4294901760
      %913 = vmatmul.mubr.f32.gmra.mrb[0].mxu0 %v912
      %v914 = vpop.f32.mrb[0].mxu0
      %v915 = vadd.f32 0.0, %v914
      %v916 = vpop.f32.mrb[0].mxu0
      %v917 = vadd.f32 0.0, %v916
      %918 = vmatprep.mubr.f32.mxu0 0.0
      %v919 = vand.u32 %v351, 4294901760
      %v920 = vsub.f32 %v351, %v919
      %v921 = vand.u32 %v920, 4294901760
      %v922 = vsub.f32 %v920, %v921
      %v923 = vand.u32 %v922, 4294901760
      %924 = vmatmul.mubr.f32.gmra.mrb[0].mxu0 %v923
      %v925 = vpop.f32.mrb[0].mxu0
      %v926 = vadd.f32 0.0, %v925
      %v927 = vpop.f32.mrb[0].mxu0
      %v928 = vadd.f32 0.0, %v927
      %929 = vmatprep.mubr.f32.mxu0 0.0
      %v930 = vand.u32 %v354, 4294901760
      %v931 = vsub.f32 %v354, %v930
      %v932 = vand.u32 %v931, 4294901760
      %v933 = vsub.f32 %v931, %v932
      %v934 = vand.u32 %v933, 4294901760
      %935 = vmatmul.mubr.f32.gmra.mrb[0].mxu0 %v934
      %v936 = vpop.f32.mrb[0].mxu0
      %v937 = vadd.f32 0.0, %v936
      %v938 = vpop.f32.mrb[0].mxu0
      %v939 = vadd.f32 0.0, %v938
      %940 = vmatprep.mubr.f32.mxu0 0.0
      %v941 = vand.u32 %v357, 4294901760
      %v942 = vsub.f32 %v357, %v941
      %v943 = vand.u32 %v942, 4294901760
      %v944 = vsub.f32 %v942, %v943
      %v945 = vand.u32 %v944, 4294901760
      %946 = vmatmul.mubr.f32.gmra.mrb[0].mxu0 %v945
      %v947 = vpop.f32.mrb[0].mxu0
      %v948 = vadd.f32 0.0, %v947
      %v949 = vpop.f32.mrb[0].mxu0
      %v950 = vadd.f32 0.0, %v949
      %951 = vmatprep.mubr.f32.mxu0 0.0
      %v952 = vand.u32 %v360, 4294901760
      %v953 = vsub.f32 %v360, %v952
      %v954 = vand.u32 %v953, 4294901760
      %v955 = vsub.f32 %v953, %v954
      %v956 = vand.u32 %v955, 4294901760
      %957 = vmatmul.mubr.f32.gmra.mrb[0].mxu0 %v956
      %v958 = vpop.f32.mrb[0].mxu0
      %v959 = vadd.f32 0.0, %v958
      %v960 = vpop.f32.mrb[0].mxu0
      %v961 = vadd.f32 0.0, %v960
      %962 = vmatprep.mubr.f32.mxu0 0.0
      %v963 = vand.u32 %v363, 4294901760
      %v964 = vsub.f32 %v363, %v963
      %v965 = vand.u32 %v964, 4294901760
      %v966 = vsub.f32 %v964, %v965
      %v967 = vand.u32 %v966, 4294901760
      %968 = vmatmul.mubr.f32.gmra.mrb[0].mxu0 %v967
      %v969 = vpop.f32.mrb[0].mxu0
      %v970 = vadd.f32 0.0, %v969
      %v971 = vpop.f32.mrb[0].mxu0
      %v972 = vadd.f32 0.0, %v971
      %973 = vmatprep.mubr.f32.mxu0 0.0
      %v974 = vand.u32 %v366, 4294901760
      %v975 = vsub.f32 %v366, %v974
      %v976 = vand.u32 %v975, 4294901760
      %v977 = vsub.f32 %v975, %v976
      %v978 = vand.u32 %v977, 4294901760
      %979 = vmatmul.mubr.f32.gmra.mrb[0].mxu0 %v978
      %v980 = vpop.f32.mrb[0].mxu0
      %v981 = vadd.f32 0.0, %v980
      %v982 = vpop.f32.mrb[0].mxu0
      %v983 = vadd.f32 0.0, %v982
      %984 = vmatprep.mubr.f32.mxu0 0.0
      %v985 = vand.u32 %v369, 4294901760
      %v986 = vsub.f32 %v369, %v985
      %v987 = vand.u32 %v986, 4294901760
      %v988 = vsub.f32 %v986, %v987
      %v989 = vand.u32 %v988, 4294901760
      %990 = vmatmul.mubr.f32.gmra.mrb[0].mxu0 %v989
      %v991 = vpop.f32.mrb[0].mxu0
      %v992 = vadd.f32 0.0, %v991
      %v993 = vpop.f32.mrb[0].mxu0
      %v994 = vadd.f32 0.0, %v993
      %995 = vmatprep.mubr.f32.mxu0 0.0
      %v996 = vand.u32 %v372, 4294901760
      %v997 = vsub.f32 %v372, %v996
      %v998 = vand.u32 %v997, 4294901760
      %v999 = vsub.f32 %v997, %v998
      %v1000 = vand.u32 %v999, 4294901760
      %1001 = vmatmul.mubr.f32.gmra.mrb[0].mxu0 %v1000
      %v1002 = vpop.f32.mrb[0].mxu0
      %v1003 = vadd.f32 0.0, %v1002
      %v1004 = vpop.f32.mrb[0].mxu0
      %v1005 = vadd.f32 0.0, %v1004
      %1006 = vmatprep.mubr.f32.mxu0 0.0
      %v1007 = vand.u32 %v375, 4294901760
      %v1008 = vsub.f32 %v375, %v1007
      %v1009 = vand.u32 %v1008, 4294901760
      %v1010 = vsub.f32 %v1008, %v1009
      %v1011 = vand.u32 %v1010, 4294901760
      %1012 = vmatmul.mubr.f32.gmra.mrb[0].mxu0 %v1011
      %v1013 = vpop.f32.mrb[0].mxu0
      %v1014 = vadd.f32 0.0, %v1013
      %v1015 = vpop.f32.mrb[0].mxu0
      %v1016 = vadd.f32 0.0, %v1015
      %1017 = vmatprep.mubr.f32.mxu0 0.0
      %v1018 = vand.u32 %v378, 4294901760
      %v1019 = vsub.f32 %v378, %v1018
      %v1020 = vand.u32 %v1019, 4294901760
      %v1021 = vsub.f32 %v1019, %v1020
      %v1022 = vand.u32 %v1021, 4294901760
      %1023 = vmatmul.mubr.f32.gmra.mrb[0].mxu0 %v1022
      %v1024 = vpop.f32.mrb[0].mxu0
      %v1025 = vadd.f32 0.0, %v1024
      %v1026 = vpop.f32.mrb[0].mxu0
      %v1027 = vadd.f32 0.0, %v1026
      %1028 = vmatprep.mubr.f32.mxu0 0.0
      %v1029 = vand.u32 %v381, 4294901760
      %v1030 = vsub.f32 %v381, %v1029
      %v1031 = vand.u32 %v1030, 4294901760
      %v1032 = vsub.f32 %v1030, %v1031
      %v1033 = vand.u32 %v1032, 4294901760
      %1034 = vmatmul.mubr.f32.gmra.mrb[0].mxu0 %v1033
      %v1035 = vpop.f32.mrb[0].mxu0
      %v1036 = vadd.f32 0.0, %v1035
      %v1037 = vpop.f32.mrb[0].mxu0
      %v1038 = vadd.f32 0.0, %v1037
      %1039 = vmatprep.mubr.f32.mxu0 0.0
      %v1040 = vand.u32 %v384, 4294901760
      %v1041 = vsub.f32 %v384, %v1040
      %v1042 = vand.u32 %v1041, 4294901760
      %v1043 = vsub.f32 %v1041, %v1042
      %v1044 = vand.u32 %v1043, 4294901760
      %1045 = vmatmul.mubr.f32.gmra.mrb[0].mxu0 %v1044
      %v1046 = vpop.f32.mrb[0].mxu0
      %v1047 = vadd.f32 0.0, %v1046
      %v1048 = vpop.f32.mrb[0].mxu0
      %v1049 = vadd.f32 0.0, %v1048
      %1050 = vmatprep.mubr.f32.mxu0 0.0
      %v1051 = vand.u32 %v387, 4294901760
      %v1052 = vsub.f32 %v387, %v1051
      %v1053 = vand.u32 %v1052, 4294901760
      %v1054 = vsub.f32 %v1052, %v1053
      %v1055 = vand.u32 %v1054, 4294901760
      %1056 = vmatmul.mubr.f32.gmra.mrb[0].mxu0 %v1055
      %v1057 = vpop.f32.mrb[0].mxu0
      %v1058 = vadd.f32 0.0, %v1057
      %v1059 = vpop.f32.mrb[0].mxu0
      %v1060 = vadd.f32 0.0, %v1059
      %1061 = vmatprep.mubr.f32.mxu0 0.0
      %v1062 = vand.u32 %v390, 4294901760
      %v1063 = vsub.f32 %v390, %v1062
      %v1064 = vand.u32 %v1063, 4294901760
      %v1065 = vsub.f32 %v1063, %v1064
      %v1066 = vand.u32 %v1065, 4294901760
      %1067 = vmatmul.mubr.f32.gmra.mrb[0].mxu0 %v1066
      %v1068 = vpop.f32.mrb[0].mxu0
      %v1069 = vadd.f32 0.0, %v1068
      %v1070 = vpop.f32.mrb[0].mxu0
      %v1071 = vadd.f32 0.0, %v1070
      %1072 = vmatprep.mubr.f32.mxu0 0.0
      %v1073 = vand.u32 %v393, 4294901760
      %v1074 = vsub.f32 %v393, %v1073
      %v1075 = vand.u32 %v1074, 4294901760
      %v1076 = vsub.f32 %v1074, %v1075
      %v1077 = vand.u32 %v1076, 4294901760
      %1078 = vmatmul.mubr.f32.gmra.mrb[0].mxu0 %v1077
      %v1079 = vpop.f32.mrb[0].mxu0
      %v1080 = vadd.f32 0.0, %v1079
      %v1081 = vpop.f32.mrb[0].mxu0
      %v1082 = vadd.f32 0.0, %v1081
      %1083 = vmatprep.mubr.f32.mxu0 0.0
      %v1084 = vand.u32 %v396, 4294901760
      %v1085 = vsub.f32 %v396, %v1084
      %v1086 = vand.u32 %v1085, 4294901760
      %v1087 = vsub.f32 %v1085, %v1086
      %v1088 = vand.u32 %v1087, 4294901760
      %1089 = vmatmul.mubr.f32.gmra.mrb[0].mxu0 %v1088
      %v1090 = vpop.f32.mrb[0].mxu0
      %v1091 = vadd.f32 0.0, %v1090
      %v1092 = vpop.f32.mrb[0].mxu0
      %v1093 = vadd.f32 0.0, %v1092
      %1094 = vmatprep.mubr.f32.mxu0 0.0
      %v1095 = vand.u32 %v399, 4294901760
      %v1096 = vsub.f32 %v399, %v1095
      %v1097 = vand.u32 %v1096, 4294901760
      %v1098 = vsub.f32 %v1096, %v1097
      %v1099 = vand.u32 %v1098, 4294901760
      %1100 = vmatmul.mubr.f32.gmra.mrb[0].mxu0 %v1099
      %v1101 = vpop.f32.mrb[0].mxu0
      %v1102 = vadd.f32 0.0, %v1101
      %v1103 = vpop.f32.mrb[0].mxu0
      %v1104 = vadd.f32 0.0, %v1103
      %1105 = vmatprep.mubr.f32.mxu0 0.0
      %v1106 = vand.u32 %v402, 4294901760
      %v1107 = vsub.f32 %v402, %v1106
      %v1108 = vand.u32 %v1107, 4294901760
      %v1109 = vsub.f32 %v1107, %v1108
      %v1110 = vand.u32 %v1109, 4294901760
      %1111 = vmatmul.mubr.f32.gmra.mrb[0].mxu0 %v1110
      %v1112 = vpop.f32.mrb[0].mxu0
      %v1113 = vadd.f32 0.0, %v1112
      %v1114 = vpop.f32.mrb[0].mxu0
      %v1115 = vadd.f32 0.0, %v1114
      %1116 = vmatprep.mubr.f32.mxu0 0.0
      %v1117 = vand.u32 %v405, 4294901760
      %v1118 = vsub.f32 %v405, %v1117
      %v1119 = vand.u32 %v1118, 4294901760
      %v1120 = vsub.f32 %v1118, %v1119
      %v1121 = vand.u32 %v1120, 4294901760
      %1122 = vmatmul.mubr.f32.gmra.mrb[0].mxu0 %v1121
      %v1123 = vpop.f32.mrb[0].mxu0
      %v1124 = vadd.f32 0.0, %v1123
      %v1125 = vpop.f32.mrb[0].mxu0
      %v1126 = vadd.f32 0.0, %v1125
      %1127 = vmatprep.mubr.f32.mxu0 0.0
      %v1128 = vand.u32 %v408, 4294901760
      %v1129 = vsub.f32 %v408, %v1128
      %v1130 = vand.u32 %v1129, 4294901760
      %v1131 = vsub.f32 %v1129, %v1130
      %v1132 = vand.u32 %v1131, 4294901760
      %1133 = vmatmul.mubr.f32.gmra.mrb[0].mxu0 %v1132
      %v1134 = vpop.f32.mrb[0].mxu0
      %v1135 = vadd.f32 0.0, %v1134
      %v1136 = vpop.f32.mrb[0].mxu0
      %v1137 = vadd.f32 0.0, %v1136
      %1138 = vmatprep.mubr.f32.mxu0 0.0
      %v1139 = vand.u32 %v411, 4294901760
      %v1140 = vsub.f32 %v411, %v1139
      %v1141 = vand.u32 %v1140, 4294901760
      %v1142 = vsub.f32 %v1140, %v1141
      %v1143 = vand.u32 %v1142, 4294901760
      %1144 = vmatmul.mubr.f32.gmra.mrb[0].mxu0 %v1143
      %v1145 = vpop.f32.mrb[0].mxu0
      %v1146 = vadd.f32 0.0, %v1145
      %v1147 = vpop.f32.mrb[0].mxu0
      %v1148 = vadd.f32 0.0, %v1147
      %1149 = vmatprep.mubr.f32.mxu0 0.0
      %v1150 = vand.u32 %v414, 4294901760
      %v1151 = vsub.f32 %v414, %v1150
      %v1152 = vand.u32 %v1151, 4294901760
      %v1153 = vsub.f32 %v1151, %v1152
      %v1154 = vand.u32 %v1153, 4294901760
      %1155 = vmatmul.mubr.f32.gmra.mrb[0].mxu0 %v1154
      %v1156 = vpop.f32.mrb[0].mxu0
      %v1157 = vadd.f32 0.0, %v1156
      %v1158 = vpop.f32.mrb[0].mxu0
      %v1159 = vadd.f32 0.0, %v1158
      %1160 = vmatprep.mubr.f32.mxu0 0.0
      %v1161 = vand.u32 %v417, 4294901760
      %v1162 = vsub.f32 %v417, %v1161
      %v1163 = vand.u32 %v1162, 4294901760
      %v1164 = vsub.f32 %v1162, %v1163
      %v1165 = vand.u32 %v1164, 4294901760
      %1166 = vmatmul.mubr.f32.gmra.mrb[0].mxu0 %v1165
      %v1167 = vpop.f32.mrb[0].mxu0
      %v1168 = vadd.f32 0.0, %v1167
      %v1169 = vpop.f32.mrb[0].mxu0
      %v1170 = vadd.f32 0.0, %v1169
      %1171 = vmatprep.mubr.f32.mxu0 0.0
      %v1172 = vand.u32 %v420, 4294901760
      %v1173 = vsub.f32 %v420, %v1172
      %v1174 = vand.u32 %v1173, 4294901760
      %v1175 = vsub.f32 %v1173, %v1174
      %v1176 = vand.u32 %v1175, 4294901760
      %1177 = vmatmul.mubr.f32.gmra.mrb[0].mxu0 %v1176
      %v1178 = vpop.f32.mrb[0].mxu0
      %v1179 = vadd.f32 0.0, %v1178
      %v1180 = vpop.f32.mrb[0].mxu0
      %v1181 = vadd.f32 0.0, %v1180
      %1182 = vmatprep.mubr.f32.mxu0 0.0
      %v1183 = vand.u32 %v423, 4294901760
      %v1184 = vsub.f32 %v423, %v1183
      %v1185 = vand.u32 %v1184, 4294901760
      %v1186 = vsub.f32 %v1184, %v1185
      %v1187 = vand.u32 %v1186, 4294901760
      %1188 = vmatmul.mubr.f32.gmra.mrb[0].mxu0 %v1187
      %v1189 = vpop.f32.mrb[0].mxu0
      %v1190 = vadd.f32 0.0, %v1189
      %v1191 = vpop.f32.mrb[0].mxu0
      %v1192 = vadd.f32 0.0, %v1191
      %1193 = vmatprep.mubr.f32.mxu0 0.0
      %v1194 = vand.u32 %v426, 4294901760
      %v1195 = vsub.f32 %v426, %v1194
      %v1196 = vand.u32 %v1195, 4294901760
      %v1197 = vsub.f32 %v1195, %v1196
      %v1198 = vand.u32 %v1197, 4294901760
      %1199 = vmatmul.mubr.f32.gmra.mrb[0].mxu0 %v1198
      %v1200 = vpop.f32.mrb[0].mxu0
      %v1201 = vadd.f32 0.0, %v1200
      %v1202 = vpop.f32.mrb[0].mxu0
      %v1203 = vadd.f32 0.0, %v1202
      %1204 = vmatprep.mubr.f32.mxu0 0.0
      %v1205 = vand.u32 %v429, 4294901760
      %v1206 = vsub.f32 %v429, %v1205
      %v1207 = vand.u32 %v1206, 4294901760
      %v1208 = vsub.f32 %v1206, %v1207
      %v1209 = vand.u32 %v1208, 4294901760
      %1210 = vmatmul.mubr.f32.gmra.mrb[0].mxu0 %v1209
      %v1211 = vpop.f32.mrb[0].mxu0
      %v1212 = vadd.f32 0.0, %v1211
      %v1213 = vpop.f32.mrb[0].mxu0
      %v1214 = vadd.f32 0.0, %v1213
      %1215 = vmatprep.mubr.f32.mxu0 0.0
      %v1216 = vand.u32 %v432, 4294901760
      %v1217 = vsub.f32 %v432, %v1216
      %v1218 = vand.u32 %v1217, 4294901760
      %v1219 = vsub.f32 %v1217, %v1218
      %v1220 = vand.u32 %v1219, 4294901760
      %1221 = vmatmul.mubr.f32.gmra.mrb[0].mxu0 %v1220
      %v1222 = vpop.f32.mrb[0].mxu0
      %v1223 = vadd.f32 0.0, %v1222
      %v1224 = vpop.f32.mrb[0].mxu0
      %v1225 = vadd.f32 0.0, %v1224
      %1226 = vmatprep.mubr.f32.mxu0 0.0
      %v1227 = vand.u32 %v435, 4294901760
      %v1228 = vsub.f32 %v435, %v1227
      %v1229 = vand.u32 %v1228, 4294901760
      %v1230 = vsub.f32 %v1228, %v1229
      %v1231 = vand.u32 %v1230, 4294901760
      %1232 = vmatmul.mubr.f32.gmra.mrb[0].mxu0 %v1231
      %v1233 = vpop.f32.mrb[0].mxu0
      %v1234 = vadd.f32 0.0, %v1233
      %v1235 = vpop.f32.mrb[0].mxu0
      %v1236 = vadd.f32 0.0, %v1235
      %1237 = vmatprep.mubr.f32.mxu0 0.0
      %v1238 = vand.u32 %v438, 4294901760
      %v1239 = vsub.f32 %v438, %v1238
      %v1240 = vand.u32 %v1239, 4294901760
      %v1241 = vsub.f32 %v1239, %v1240
      %v1242 = vand.u32 %v1241, 4294901760
      %1243 = vmatmul.mubr.f32.gmra.mrb[0].mxu0 %v1242
      %v1244 = vpop.f32.mrb[0].mxu0
      %v1245 = vadd.f32 0.0, %v1244
      %v1246 = vpop.f32.mrb[0].mxu0
      %v1247 = vadd.f32 0.0, %v1246
      %1248 = vmatprep.mubr.f32.mxu0 0.0
      %v1249 = vand.u32 %v441, 4294901760
      %v1250 = vsub.f32 %v441, %v1249
      %v1251 = vand.u32 %v1250, 4294901760
      %v1252 = vsub.f32 %v1250, %v1251
      %v1253 = vand.u32 %v1252, 4294901760
      %1254 = vmatmul.mubr.f32.gmra.mrb[0].mxu0 %v1253
      %v1255 = vpop.f32.mrb[0].mxu0
      %v1256 = vadd.f32 0.0, %v1255
      %v1257 = vpop.f32.mrb[0].mxu0
      %v1258 = vadd.f32 0.0, %v1257
      %1259 = vmatprep.mubr.f32.mxu0 0.0
      %v1260 = vand.u32 %v444, 4294901760
      %v1261 = vsub.f32 %v444, %v1260
      %v1262 = vand.u32 %v1261, 4294901760
      %v1263 = vsub.f32 %v1261, %v1262
      %v1264 = vand.u32 %v1263, 4294901760
      %1265 = vmatmul.mubr.f32.gmra.mrb[0].mxu0 %v1264
      %v1266 = vpop.f32.mrb[0].mxu0
      %v1267 = vadd.f32 0.0, %v1266
      %v1268 = vpop.f32.mrb[0].mxu0
      %v1269 = vadd.f32 0.0, %v1268
      %1270 = vmatprep.mubr.f32.mxu0 0.0
      %v1271 = vand.u32 %v447, 4294901760
      %v1272 = vsub.f32 %v447, %v1271
      %v1273 = vand.u32 %v1272, 4294901760
      %v1274 = vsub.f32 %v1272, %v1273
      %v1275 = vand.u32 %v1274, 4294901760
      %1276 = vmatmul.mubr.f32.gmra.mrb[0].mxu0 %v1275
      %v1277 = vpop.f32.mrb[0].mxu0
      %v1278 = vadd.f32 0.0, %v1277
      %v1279 = vpop.f32.mrb[0].mxu0
      %v1280 = vadd.f32 0.0, %v1279
      %1281 = vmatprep.mubr.f32.mxu0 0.0
      %v1282 = vand.u32 %v450, 4294901760
      %v1283 = vsub.f32 %v450, %v1282
      %v1284 = vand.u32 %v1283, 4294901760
      %v1285 = vsub.f32 %v1283, %v1284
      %v1286 = vand.u32 %v1285, 4294901760
      %1287 = vmatmul.mubr.f32.gmra.mrb[0].mxu0 %v1286
      %v1288 = vpop.f32.mrb[0].mxu0
      %v1289 = vadd.f32 0.0, %v1288
      %v1290 = vpop.f32.mrb[0].mxu0
      %v1291 = vadd.f32 0.0, %v1290
      %1292 = vmatprep.mubr.f32.mxu0 0.0
      %v1293 = vand.u32 %v453, 4294901760
      %v1294 = vsub.f32 %v453, %v1293
      %v1295 = vand.u32 %v1294, 4294901760
      %v1296 = vsub.f32 %v1294, %v1295
      %v1297 = vand.u32 %v1296, 4294901760
      %1298 = vmatmul.mubr.f32.gmra.mrb[0].mxu0 %v1297
      %v1299 = vpop.f32.mrb[0].mxu0
      %v1300 = vadd.f32 0.0, %v1299
      %v1301 = vpop.f32.mrb[0].mxu0
      %v1302 = vadd.f32 0.0, %v1301
      %1303 = vmatprep.mubr.f32.mxu0 0.0
      %v1304 = vand.u32 %v456, 4294901760
      %v1305 = vsub.f32 %v456, %v1304
      %v1306 = vand.u32 %v1305, 4294901760
      %v1307 = vsub.f32 %v1305, %v1306
      %v1308 = vand.u32 %v1307, 4294901760
      %1309 = vmatmul.mubr.f32.gmra.mrb[0].mxu0 %v1308
      %v1310 = vpop.f32.mrb[0].mxu0
      %v1311 = vadd.f32 0.0, %v1310
      %v1312 = vpop.f32.mrb[0].mxu0
      %v1313 = vadd.f32 0.0, %v1312
      %1314 = vmatprep.mubr.f32.mxu0 0.0
      %v1315 = vand.u32 %v459, 4294901760
      %v1316 = vsub.f32 %v459, %v1315
      %v1317 = vand.u32 %v1316, 4294901760
      %v1318 = vsub.f32 %v1316, %v1317
      %v1319 = vand.u32 %v1318, 4294901760
      %1320 = vmatmul.mubr.f32.gmra.mrb[0].mxu0 %v1319
      %v1321 = vpop.f32.mrb[0].mxu0
      %v1322 = vadd.f32 0.0, %v1321
      %v1323 = vpop.f32.mrb[0].mxu0
      %v1324 = vadd.f32 0.0, %v1323
      %1325 = vmatprep.mubr.f32.mxu0 0.0
      %v1326 = vand.u32 %v462, 4294901760
      %v1327 = vsub.f32 %v462, %v1326
      %v1328 = vand.u32 %v1327, 4294901760
      %v1329 = vsub.f32 %v1327, %v1328
      %v1330 = vand.u32 %v1329, 4294901760
      %1331 = vmatmul.mubr.f32.gmra.mrb[0].mxu0 %v1330
      %v1332 = vpop.f32.mrb[0].mxu0
      %v1333 = vadd.f32 0.0, %v1332
      %v1334 = vpop.f32.mrb[0].mxu0
      %v1335 = vadd.f32 0.0, %v1334
      %1336 = vmatprep.mubr.f32.mxu0 0.0
      %v1337 = vand.u32 %v465, 4294901760
      %v1338 = vsub.f32 %v465, %v1337
      %v1339 = vand.u32 %v1338, 4294901760
      %v1340 = vsub.f32 %v1338, %v1339
      %v1341 = vand.u32 %v1340, 4294901760
      %1342 = vmatmul.mubr.f32.gmra.mrb[0].mxu0 %v1341
      %v1343 = vpop.f32.mrb[0].mxu0
      %v1344 = vadd.f32 0.0, %v1343
      %v1345 = vpop.f32.mrb[0].mxu0
      %v1346 = vadd.f32 0.0, %v1345
      %1347 = vmatprep.mubr.f32.mxu0 0.0
      %v1348 = vand.u32 %v468, 4294901760
      %v1349 = vsub.f32 %v468, %v1348
      %v1350 = vand.u32 %v1349, 4294901760
      %v1351 = vsub.f32 %v1349, %v1350
      %v1352 = vand.u32 %v1351, 4294901760
      %1353 = vmatmul.mubr.f32.gmra.mrb[0].mxu0 %v1352
      %v1354 = vpop.f32.mrb[0].mxu0
      %v1355 = vadd.f32 0.0, %v1354
      %v1356 = vpop.f32.mrb[0].mxu0
      %v1357 = vadd.f32 0.0, %v1356
      %1358 = vmatprep.mubr.f32.mxu0 0.0
      %v1359 = vand.u32 %v471, 4294901760
      %v1360 = vsub.f32 %v471, %v1359
      %v1361 = vand.u32 %v1360, 4294901760
      %v1362 = vsub.f32 %v1360, %v1361
      %v1363 = vand.u32 %v1362, 4294901760
      %1364 = vmatmul.mubr.f32.gmra.mrb[0].mxu0 %v1363
      %v1365 = vpop.f32.mrb[0].mxu0
      %v1366 = vadd.f32 0.0, %v1365
      %v1367 = vpop.f32.mrb[0].mxu0
      %v1368 = vadd.f32 0.0, %v1367
      %1369 = vmatprep.mubr.f32.mxu0 0.0
      %v1370 = vand.u32 %v474, 4294901760
      %v1371 = vsub.f32 %v474, %v1370
      %v1372 = vand.u32 %v1371, 4294901760
      %v1373 = vsub.f32 %v1371, %v1372
      %v1374 = vand.u32 %v1373, 4294901760
      %1375 = vmatmul.mubr.f32.gmra.mrb[0].mxu0 %v1374
      %v1376 = vpop.f32.mrb[0].mxu0
      %v1377 = vadd.f32 0.0, %v1376
      %v1378 = vpop.f32.mrb[0].mxu0
      %v1379 = vadd.f32 0.0, %v1378
      %1380 = vmatprep.mubr.f32.mxu0 0.0
      %v1381 = vand.u32 %v477, 4294901760
      %v1382 = vsub.f32 %v477, %v1381
      %v1383 = vand.u32 %v1382, 4294901760
      %v1384 = vsub.f32 %v1382, %v1383
      %v1385 = vand.u32 %v1384, 4294901760
      %1386 = vmatmul.mubr.f32.gmra.mrb[0].mxu0 %v1385
      %v1387 = vpop.f32.mrb[0].mxu0
      %v1388 = vadd.f32 0.0, %v1387
      %v1389 = vpop.f32.mrb[0].mxu0
      %v1390 = vadd.f32 0.0, %v1389
      %1391 = vmatprep.mubr.f32.mxu0 0.0
      %v1392 = vand.u32 %v480, 4294901760
      %v1393 = vsub.f32 %v480, %v1392
      %v1394 = vand.u32 %v1393, 4294901760
      %v1395 = vsub.f32 %v1393, %v1394
      %v1396 = vand.u32 %v1395, 4294901760
      %1397 = vmatmul.mubr.f32.gmra.mrb[0].mxu0 %v1396
      %v1398 = vpop.f32.mrb[0].mxu0
      %v1399 = vadd.f32 0.0, %v1398
      %v1400 = vpop.f32.mrb[0].mxu0
      %v1401 = vadd.f32 0.0, %v1400
      %1402 = vmatprep.mubr.f32.mxu0 0.0
      %v1403 = vand.u32 %v483, 4294901760
      %v1404 = vsub.f32 %v483, %v1403
      %v1405 = vand.u32 %v1404, 4294901760
      %v1406 = vsub.f32 %v1404, %v1405
      %v1407 = vand.u32 %v1406, 4294901760
      %1408 = vmatmul.mubr.f32.gmra.mrb[0].mxu0 %v1407
      %v1409 = vpop.f32.mrb[0].mxu0
      %v1410 = vadd.f32 0.0, %v1409
      %v1411 = vpop.f32.mrb[0].mxu0
      %v1412 = vadd.f32 0.0, %v1411
      %1413 = vmatprep.mubr.f32.mxu0 0.0
      %v1414 = vand.u32 %v486, 4294901760
      %v1415 = vsub.f32 %v486, %v1414
      %v1416 = vand.u32 %v1415, 4294901760
      %v1417 = vsub.f32 %v1415, %v1416
      %v1418 = vand.u32 %v1417, 4294901760
      %1419 = vmatmul.mubr.f32.gmra.mrb[0].mxu0 %v1418
      %v1420 = vpop.f32.mrb[0].mxu0
      %v1421 = vadd.f32 0.0, %v1420
      %v1422 = vpop.f32.mrb[0].mxu0
      %v1423 = vadd.f32 0.0, %v1422
      %1424 = vmatprep.mubr.f32.mxu0 0.0
      %v1425 = vand.u32 %v489, 4294901760
      %v1426 = vsub.f32 %v489, %v1425
      %v1427 = vand.u32 %v1426, 4294901760
      %v1428 = vsub.f32 %v1426, %v1427
      %v1429 = vand.u32 %v1428, 4294901760
      %1430 = vmatmul.mubr.f32.gmra.mrb[0].mxu0 %v1429
      %v1431 = vpop.f32.mrb[0].mxu0
      %v1432 = vadd.f32 0.0, %v1431
      %v1433 = vpop.f32.mrb[0].mxu0
      %v1434 = vadd.f32 0.0, %v1433
      %1435 = vmatprep.mubr.f32.mxu0 0.0
      %v1436 = vand.u32 %v492, 4294901760
      %v1437 = vsub.f32 %v492, %v1436
      %v1438 = vand.u32 %v1437, 4294901760
      %v1439 = vsub.f32 %v1437, %v1438
      %v1440 = vand.u32 %v1439, 4294901760
      %1441 = vmatmul.mubr.f32.gmra.mrb[0].mxu0 %v1440
      %v1442 = vpop.f32.mrb[0].mxu0
      %v1443 = vadd.f32 0.0, %v1442
      %v1444 = vpop.f32.mrb[0].mxu0
      %v1445 = vadd.f32 0.0, %v1444
      %1446 = vmatprep.mubr.f32.mxu0 0.0
      %v1447 = vand.u32 %v495, 4294901760
      %v1448 = vsub.f32 %v495, %v1447
      %v1449 = vand.u32 %v1448, 4294901760
      %v1450 = vsub.f32 %v1448, %v1449
      %v1451 = vand.u32 %v1450, 4294901760
      %1452 = vmatmul.mubr.f32.gmra.mrb[0].mxu0 %v1451
      %v1453 = vpop.f32.mrb[0].mxu0
      %v1454 = vadd.f32 0.0, %v1453
      %v1455 = vpop.f32.mrb[0].mxu0
      %v1456 = vadd.f32 0.0, %v1455
      %1457 = vmatprep.mubr.f32.mxu0 0.0
      %v1458 = vand.u32 %v498, 4294901760
      %v1459 = vsub.f32 %v498, %v1458
      %v1460 = vand.u32 %v1459, 4294901760
      %v1461 = vsub.f32 %v1459, %v1460
      %v1462 = vand.u32 %v1461, 4294901760
      %1463 = vmatmul.mubr.f32.gmra.mrb[0].mxu0 %v1462
      %v1464 = vpop.f32.mrb[0].mxu0
      %v1465 = vadd.f32 0.0, %v1464
      %v1466 = vpop.f32.mrb[0].mxu0
      %v1467 = vadd.f32 0.0, %v1466
      %1468 = vmatprep.mubr.f32.mxu0 0.0
      %v1469 = vand.u32 %v501, 4294901760
      %v1470 = vsub.f32 %v501, %v1469
      %v1471 = vand.u32 %v1470, 4294901760
      %v1472 = vsub.f32 %v1470, %v1471
      %v1473 = vand.u32 %v1472, 4294901760
      %1474 = vmatmul.mubr.f32.gmra.mrb[0].mxu0 %v1473
      %v1475 = vpop.f32.mrb[0].mxu0
      %v1476 = vadd.f32 0.0, %v1475
      %v1477 = vpop.f32.mrb[0].mxu0
      %v1478 = vadd.f32 0.0, %v1477
      %1479 = vmatprep.mubr.f32.mxu0 0.0
      %v1480 = vand.u32 %v504, 4294901760
      %v1481 = vsub.f32 %v504, %v1480
      %v1482 = vand.u32 %v1481, 4294901760
      %v1483 = vsub.f32 %v1481, %v1482
      %v1484 = vand.u32 %v1483, 4294901760
      %1485 = vmatmul.mubr.f32.gmra.mrb[0].mxu0 %v1484
      %v1486 = vpop.f32.mrb[0].mxu0
      %v1487 = vadd.f32 0.0, %v1486
      %v1488 = vpop.f32.mrb[0].mxu0
      %v1489 = vadd.f32 0.0, %v1488
      %1490 = vmatprep.mubr.f32.mxu0 0.0
      %v1491 = vand.u32 %v507, 4294901760
      %v1492 = vsub.f32 %v507, %v1491
      %v1493 = vand.u32 %v1492, 4294901760
      %v1494 = vsub.f32 %v1492, %v1493
      %v1495 = vand.u32 %v1494, 4294901760
      %1496 = vmatmul.mubr.f32.gmra.mrb[0].mxu0 %v1495
      %v1497 = vpop.f32.mrb[0].mxu0
      %v1498 = vadd.f32 0.0, %v1497
      %v1499 = vpop.f32.mrb[0].mxu0
      %v1500 = vadd.f32 0.0, %v1499
      %1501 = vmatprep.mubr.f32.mxu0 0.0
      %v1502 = vand.u32 %v510, 4294901760
      %v1503 = vsub.f32 %v510, %v1502
      %v1504 = vand.u32 %v1503, 4294901760
      %v1505 = vsub.f32 %v1503, %v1504
      %v1506 = vand.u32 %v1505, 4294901760
      %1507 = vmatmul.mubr.f32.gmra.mrb[0].mxu0 %v1506
      %v1508 = vpop.f32.mrb[0].mxu0
      %v1509 = vadd.f32 0.0, %v1508
      %v1510 = vpop.f32.mrb[0].mxu0
      %v1511 = vadd.f32 0.0, %v1510
      %1512 = vmatprep.mubr.f32.mxu0 0.0
      %v1513 = vand.u32 %v513, 4294901760
      %v1514 = vsub.f32 %v513, %v1513
      %v1515 = vand.u32 %v1514, 4294901760
      %v1516 = vsub.f32 %v1514, %v1515
      %v1517 = vand.u32 %v1516, 4294901760
      %1518 = vmatmul.mubr.f32.gmra.mrb[0].mxu0 %v1517
      %v1519 = vpop.f32.mrb[0].mxu0
      %v1520 = vadd.f32 0.0, %v1519
      %v1521 = vpop.f32.mrb[0].mxu0
      %v1522 = vadd.f32 0.0, %v1521
      %1523 = vmatprep.mubr.f32.mxu0 0.0
      %v1524 = vand.u32 %v516, 4294901760
      %v1525 = vsub.f32 %v516, %v1524
      %v1526 = vand.u32 %v1525, 4294901760
      %v1527 = vsub.f32 %v1525, %v1526
      %v1528 = vand.u32 %v1527, 4294901760
      %1529 = vmatmul.mubr.f32.gmra.mrb[0].mxu0 %v1528
      %v1530 = vpop.f32.mrb[0].mxu0
      %v1531 = vadd.f32 0.0, %v1530
      %v1532 = vpop.f32.mrb[0].mxu0
      %v1533 = vadd.f32 0.0, %v1532
      %1534 = vmatprep.mubr.f32.mxu0 0.0
      %v1535 = vand.u32 %v519, 4294901760
      %v1536 = vsub.f32 %v519, %v1535
      %v1537 = vand.u32 %v1536, 4294901760
      %v1538 = vsub.f32 %v1536, %v1537
      %v1539 = vand.u32 %v1538, 4294901760
      %1540 = vmatmul.mubr.f32.gmra.mrb[0].mxu0 %v1539
      %v1541 = vpop.f32.mrb[0].mxu0
      %v1542 = vadd.f32 0.0, %v1541
      %v1543 = vpop.f32.mrb[0].mxu0
      %v1544 = vadd.f32 0.0, %v1543
      %1545 = vmatprep.mubr.f32.mxu0 0.0
      %v1546 = vand.u32 %v522, 4294901760
      %v1547 = vsub.f32 %v522, %v1546
      %v1548 = vand.u32 %v1547, 4294901760
      %v1549 = vsub.f32 %v1547, %v1548
      %v1550 = vand.u32 %v1549, 4294901760
      %1551 = vmatmul.mubr.f32.gmra.mrb[0].mxu0 %v1550
      %v1552 = vpop.f32.mrb[0].mxu0
      %v1553 = vadd.f32 0.0, %v1552
      %v1554 = vpop.f32.mrb[0].mxu0
      %v1555 = vadd.f32 0.0, %v1554
      %1556 = vmatprep.mubr.f32.mxu0 0.0
      %v1557 = vand.u32 %v525, 4294901760
      %v1558 = vsub.f32 %v525, %v1557
      %v1559 = vand.u32 %v1558, 4294901760
      %v1560 = vsub.f32 %v1558, %v1559
      %v1561 = vand.u32 %v1560, 4294901760
      %1562 = vmatmul.mubr.f32.gmra.mrb[0].mxu0 %v1561
      %v1563 = vpop.f32.mrb[0].mxu0
      %v1564 = vadd.f32 0.0, %v1563
      %v1565 = vpop.f32.mrb[0].mxu0
      %v1566 = vadd.f32 0.0, %v1565
      %1567 = vmatprep.mubr.f32.mxu0 0.0
      %v1568 = vand.u32 %v528, 4294901760
      %v1569 = vsub.f32 %v528, %v1568
      %v1570 = vand.u32 %v1569, 4294901760
      %v1571 = vsub.f32 %v1569, %v1570
      %v1572 = vand.u32 %v1571, 4294901760
      %1573 = vmatmul.mubr.f32.gmra.mrb[0].mxu0 %v1572
      %v1574 = vpop.f32.mrb[0].mxu0
      %v1575 = vadd.f32 0.0, %v1574
      %v1576 = vpop.f32.mrb[0].mxu0
      %v1577 = vadd.f32 0.0, %v1576
      %1578 = vmatprep.mubr.f32.mxu0 0.0
      %v1579 = vand.u32 %v531, 4294901760
      %v1580 = vsub.f32 %v531, %v1579
      %v1581 = vand.u32 %v1580, 4294901760
      %v1582 = vsub.f32 %v1580, %v1581
      %v1583 = vand.u32 %v1582, 4294901760
      %1584 = vmatmul.mubr.f32.gmra.mrb[0].mxu0 %v1583
      %v1585 = vpop.f32.mrb[0].mxu0
      %v1586 = vadd.f32 0.0, %v1585
      %v1587 = vpop.f32.mrb[0].mxu0
      %v1588 = vadd.f32 0.0, %v1587
      %1589 = vmatprep.mubr.f32.mxu0 0.0
      %v1590 = vand.u32 %v534, 4294901760
      %v1591 = vsub.f32 %v534, %v1590
      %v1592 = vand.u32 %v1591, 4294901760
      %v1593 = vsub.f32 %v1591, %v1592
      %v1594 = vand.u32 %v1593, 4294901760
      %1595 = vmatmul.mubr.f32.gmra.mrb[0].mxu0 %v1594
      %v1596 = vpop.f32.mrb[0].mxu0
      %v1597 = vadd.f32 0.0, %v1596
      %v1598 = vpop.f32.mrb[0].mxu0
      %v1599 = vadd.f32 0.0, %v1598
      %1600 = vmatprep.mubr.f32.mxu0 0.0
      %v1601 = vand.u32 %v537, 4294901760
      %v1602 = vsub.f32 %v537, %v1601
      %v1603 = vand.u32 %v1602, 4294901760
      %v1604 = vsub.f32 %v1602, %v1603
      %v1605 = vand.u32 %v1604, 4294901760
      %1606 = vmatmul.mubr.f32.gmra.mrb[0].mxu0 %v1605
      %v1607 = vpop.f32.mrb[0].mxu0
      %v1608 = vadd.f32 0.0, %v1607
      %v1609 = vpop.f32.mrb[0].mxu0
      %v1610 = vadd.f32 0.0, %v1609
      %1611 = vmatprep.mubr.f32.mxu0 0.0
      %v1612 = vand.u32 %v540, 4294901760
      %v1613 = vsub.f32 %v540, %v1612
      %v1614 = vand.u32 %v1613, 4294901760
      %v1615 = vsub.f32 %v1613, %v1614
      %v1616 = vand.u32 %v1615, 4294901760
      %1617 = vmatmul.mubr.f32.gmra.mrb[0].mxu0 %v1616
      %v1618 = vpop.f32.mrb[0].mxu0
      %v1619 = vadd.f32 0.0, %v1618
      %v1620 = vpop.f32.mrb[0].mxu0
      %v1621 = vadd.f32 0.0, %v1620
      %1622 = vmatprep.mubr.f32.mxu0 0.0
      %v1623 = vand.u32 %v543, 4294901760
      %v1624 = vsub.f32 %v543, %v1623
      %v1625 = vand.u32 %v1624, 4294901760
      %v1626 = vsub.f32 %v1624, %v1625
      %v1627 = vand.u32 %v1626, 4294901760
      %1628 = vmatmul.mubr.f32.gmra.mrb[0].mxu0 %v1627
      %v1629 = vpop.f32.mrb[0].mxu0
      %v1630 = vadd.f32 0.0, %v1629
      %v1631 = vpop.f32.mrb[0].mxu0
      %v1632 = vadd.f32 0.0, %v1631
      %1633 = vmatprep.mubr.f32.mxu0 0.0
      %v1634 = vand.u32 %v546, 4294901760
      %v1635 = vsub.f32 %v546, %v1634
      %v1636 = vand.u32 %v1635, 4294901760
      %v1637 = vsub.f32 %v1635, %v1636
      %v1638 = vand.u32 %v1637, 4294901760
      %1639 = vmatmul.mubr.f32.gmra.mrb[0].mxu0 %v1638
      %v1640 = vpop.f32.mrb[0].mxu0
      %v1641 = vadd.f32 0.0, %v1640
      %v1642 = vpop.f32.mrb[0].mxu0
      %v1643 = vadd.f32 0.0, %v1642
      %1644 = vmatprep.mubr.f32.mxu0 0.0
      %v1645 = vand.u32 %v549, 4294901760
      %v1646 = vsub.f32 %v549, %v1645
      %v1647 = vand.u32 %v1646, 4294901760
      %v1648 = vsub.f32 %v1646, %v1647
      %v1649 = vand.u32 %v1648, 4294901760
      %1650 = vmatmul.mubr.f32.gmra.mrb[0].mxu0 %v1649
      %v1651 = vpop.f32.mrb[0].mxu0
      %v1652 = vadd.f32 0.0, %v1651
      %v1653 = vpop.f32.mrb[0].mxu0
      %v1654 = vadd.f32 0.0, %v1653
      %1655 = vmatprep.mubr.f32.mxu0 0.0
      %v1656 = vand.u32 %v552, 4294901760
      %v1657 = vsub.f32 %v552, %v1656
      %v1658 = vand.u32 %v1657, 4294901760
      %v1659 = vsub.f32 %v1657, %v1658
      %v1660 = vand.u32 %v1659, 4294901760
      %1661 = vmatmul.mubr.f32.gmra.mrb[0].mxu0 %v1660
      %v1662 = vpop.f32.mrb[0].mxu0
      %v1663 = vadd.f32 0.0, %v1662
      %v1664 = vpop.f32.mrb[0].mxu0
      %v1665 = vadd.f32 0.0, %v1664
      %1666 = vmatprep.mubr.f32.mxu0 0.0
      %v1667 = vand.u32 %v555, 4294901760
      %v1668 = vsub.f32 %v555, %v1667
      %v1669 = vand.u32 %v1668, 4294901760
      %v1670 = vsub.f32 %v1668, %v1669
      %v1671 = vand.u32 %v1670, 4294901760
      %1672 = vmatmul.mubr.f32.gmra.mrb[0].mxu0 %v1671
      %v1673 = vpop.f32.mrb[0].mxu0
      %v1674 = vadd.f32 0.0, %v1673
      %v1675 = vpop.f32.mrb[0].mxu0
      %v1676 = vadd.f32 0.0, %v1675
      %1677 = vmatprep.mubr.f32.mxu0 0.0
      %v1678 = vand.u32 %v558, 4294901760
      %v1679 = vsub.f32 %v558, %v1678
      %v1680 = vand.u32 %v1679, 4294901760
      %v1681 = vsub.f32 %v1679, %v1680
      %v1682 = vand.u32 %v1681, 4294901760
      %1683 = vmatmul.mubr.f32.gmra.mrb[0].mxu0 %v1682
      %v1684 = vpop.f32.mrb[0].mxu0
      %v1685 = vadd.f32 0.0, %v1684
      %v1686 = vpop.f32.mrb[0].mxu0
      %v1687 = vadd.f32 0.0, %v1686
      %1688 = vmatprep.mubr.f32.mxu0 0.0
      %v1689 = vand.u32 %v561, 4294901760
      %v1690 = vsub.f32 %v561, %v1689
      %v1691 = vand.u32 %v1690, 4294901760
      %v1692 = vsub.f32 %v1690, %v1691
      %v1693 = vand.u32 %v1692, 4294901760
      %1694 = vmatmul.mubr.f32.gmra.mrb[0].mxu0 %v1693
      %v1695 = vpop.f32.mrb[0].mxu0
      %v1696 = vadd.f32 0.0, %v1695
      %v1697 = vpop.f32.mrb[0].mxu0
      %v1698 = vadd.f32 0.0, %v1697
      %1699 = vmatprep.mubr.f32.mxu0 0.0
      %v1700 = vand.u32 %v564, 4294901760
      %v1701 = vsub.f32 %v564, %v1700
      %v1702 = vand.u32 %v1701, 4294901760
      %v1703 = vsub.f32 %v1701, %v1702
      %v1704 = vand.u32 %v1703, 4294901760
      %1705 = vmatmul.mubr.f32.gmra.mrb[0].mxu0 %v1704
      %v1706 = vpop.f32.mrb[0].mxu0
      %v1707 = vadd.f32 0.0, %v1706
      %v1708 = vpop.f32.mrb[0].mxu0
      %v1709 = vadd.f32 0.0, %v1708
      %1710 = vmatprep.mubr.f32.mxu0 0.0
      %v1711 = vand.u32 %v567, 4294901760
      %v1712 = vsub.f32 %v567, %v1711
      %v1713 = vand.u32 %v1712, 4294901760
      %v1714 = vsub.f32 %v1712, %v1713
      %v1715 = vand.u32 %v1714, 4294901760
      %1716 = vmatmul.mubr.f32.gmra.mrb[0].mxu0 %v1715
      %v1717 = vpop.f32.mrb[0].mxu0
      %v1718 = vadd.f32 0.0, %v1717
      %v1719 = vpop.f32.mrb[0].mxu0
      %v1720 = vadd.f32 0.0, %v1719
      %1721 = vmatprep.mubr.f32.mxu0 0.0
      %v1722 = vand.u32 %v570, 4294901760
      %v1723 = vsub.f32 %v570, %v1722
      %v1724 = vand.u32 %v1723, 4294901760
      %v1725 = vsub.f32 %v1723, %v1724
      %v1726 = vand.u32 %v1725, 4294901760
      %1727 = vmatmul.mubr.f32.gmra.mrb[0].mxu0 %v1726
      %v1728 = vpop.f32.mrb[0].mxu0
      %v1729 = vadd.f32 0.0, %v1728
      %v1730 = vpop.f32.mrb[0].mxu0
      %v1731 = vadd.f32 0.0, %v1730
      %1732 = vmatprep.mubr.f32.mxu0 0.0
      %v1733 = vand.u32 %v573, 4294901760
      %v1734 = vsub.f32 %v573, %v1733
      %v1735 = vand.u32 %v1734, 4294901760
      %v1736 = vsub.f32 %v1734, %v1735
      %v1737 = vand.u32 %v1736, 4294901760
      %1738 = vmatmul.mubr.f32.gmra.mrb[0].mxu0 %v1737
      %v1739 = vpop.f32.mrb[0].mxu0
      %v1740 = vadd.f32 0.0, %v1739
      %v1741 = vpop.f32.mrb[0].mxu0
      %v1742 = vadd.f32 0.0, %v1741
      %1743 = vmatprep.mubr.f32.mxu0 0.0
      %v1744 = vand.u32 %v576, 4294901760
      %v1745 = vsub.f32 %v576, %v1744
      %v1746 = vand.u32 %v1745, 4294901760
      %v1747 = vsub.f32 %v1745, %v1746
      %v1748 = vand.u32 %v1747, 4294901760
      %1749 = vmatmul.mubr.f32.gmra.mrb[0].mxu0 %v1748
      %v1750 = vpop.f32.mrb[0].mxu0
      %v1751 = vadd.f32 0.0, %v1750
      %v1752 = vpop.f32.mrb[0].mxu0
      %v1753 = vadd.f32 0.0, %v1752
      %1754 = vmatprep.mubr.f32.mxu0 0.0
      %v1755 = vand.u32 %v579, 4294901760
      %v1756 = vsub.f32 %v579, %v1755
      %v1757 = vand.u32 %v1756, 4294901760
      %v1758 = vsub.f32 %v1756, %v1757
      %v1759 = vand.u32 %v1758, 4294901760
      %1760 = vmatmul.mubr.f32.gmra.mrb[0].mxu0 %v1759
      %v1761 = vpop.f32.mrb[0].mxu0
      %v1762 = vadd.f32 0.0, %v1761
      %v1763 = vpop.f32.mrb[0].mxu0
      %v1764 = vadd.f32 0.0, %v1763
      %1765 = vmatprep.mubr.f32.mxu0 0.0
      %v1766 = vand.u32 %v582, 4294901760
      %v1767 = vsub.f32 %v582, %v1766
      %v1768 = vand.u32 %v1767, 4294901760
      %v1769 = vsub.f32 %v1767, %v1768
      %v1770 = vand.u32 %v1769, 4294901760
      %1771 = vmatmul.mubr.f32.gmra.mrb[0].mxu0 %v1770
      %v1772 = vpop.f32.mrb[0].mxu0
      %v1773 = vadd.f32 0.0, %v1772
      %v1774 = vpop.f32.mrb[0].mxu0
      %v1775 = vadd.f32 0.0, %v1774
      %1776 = vmatprep.mubr.f32.mxu0 0.0
      %v1777 = vand.u32 %v585, 4294901760
      %v1778 = vsub.f32 %v585, %v1777
      %v1779 = vand.u32 %v1778, 4294901760
      %v1780 = vsub.f32 %v1778, %v1779
      %v1781 = vand.u32 %v1780, 4294901760
      %1782 = vmatmul.mubr.f32.gmra.mrb[0].mxu0 %v1781
      %v1783 = vpop.f32.mrb[0].mxu0
      %v1784 = vadd.f32 0.0, %v1783
      %v1785 = vpop.f32.mrb[0].mxu0
      %v1786 = vadd.f32 0.0, %v1785
      %1787 = vmatprep.mubr.f32.mxu0 0.0
      %v1788 = vand.u32 %v588, 4294901760
      %v1789 = vsub.f32 %v588, %v1788
      %v1790 = vand.u32 %v1789, 4294901760
      %v1791 = vsub.f32 %v1789, %v1790
      %v1792 = vand.u32 %v1791, 4294901760
      %1793 = vmatmul.mubr.f32.gmra.mrb[0].mxu0 %v1792
      %v1794 = vpop.f32.mrb[0].mxu0
      %v1795 = vadd.f32 0.0, %v1794
      %v1796 = vpop.f32.mrb[0].mxu0
      %v1797 = vadd.f32 0.0, %v1796
      %1798 = vmatprep.mubr.f32.mxu0 0.0
      %v1799 = vand.u32 %v591, 4294901760
      %v1800 = vsub.f32 %v591, %v1799
      %v1801 = vand.u32 %v1800, 4294901760
      %v1802 = vsub.f32 %v1800, %v1801
      %v1803 = vand.u32 %v1802, 4294901760
      %1804 = vmatmul.mubr.f32.gmra.mrb[0].mxu0 %v1803
      %v1805 = vpop.f32.mrb[0].mxu0
      %v1806 = vadd.f32 0.0, %v1805
      %v1807 = vpop.f32.mrb[0].mxu0
      %v1808 = vadd.f32 0.0, %v1807
      %1809 = vmatprep.mubr.f32.mxu0 0.0
      %v1810 = vand.u32 %v594, 4294901760
      %v1811 = vsub.f32 %v594, %v1810
      %v1812 = vand.u32 %v1811, 4294901760
      %v1813 = vsub.f32 %v1811, %v1812
      %v1814 = vand.u32 %v1813, 4294901760
      %1815 = vmatmul.mubr.f32.gmra.mrb[0].mxu0 %v1814
      %v1816 = vpop.f32.mrb[0].mxu0
      %v1817 = vadd.f32 0.0, %v1816
      %v1818 = vpop.f32.mrb[0].mxu0
      %v1819 = vadd.f32 0.0, %v1818
      %1820 = vmatprep.mubr.f32.mxu0 0.0
      %v1821 = vand.u32 %v597, 4294901760
      %v1822 = vsub.f32 %v597, %v1821
      %v1823 = vand.u32 %v1822, 4294901760
      %v1824 = vsub.f32 %v1822, %v1823
      %v1825 = vand.u32 %v1824, 4294901760
      %1826 = vmatmul.mubr.f32.gmra.mrb[0].mxu0 %v1825
      %v1827 = vpop.f32.mrb[0].mxu0
      %v1828 = vadd.f32 0.0, %v1827
      %v1829 = vpop.f32.mrb[0].mxu0
      %v1830 = vadd.f32 0.0, %v1829
      %1831 = vmatprep.mubr.f32.mxu0 0.0
      %v1832 = vand.u32 %v600, 4294901760
      %v1833 = vsub.f32 %v600, %v1832
      %v1834 = vand.u32 %v1833, 4294901760
      %v1835 = vsub.f32 %v1833, %v1834
      %v1836 = vand.u32 %v1835, 4294901760
      %1837 = vmatmul.mubr.f32.gmra.mrb[0].mxu0 %v1836
      %v1838 = vpop.f32.mrb[0].mxu0
      %v1839 = vadd.f32 0.0, %v1838
      %v1840 = vpop.f32.mrb[0].mxu0
      %v1841 = vadd.f32 0.0, %v1840
      %1842 = vmatprep.mubr.f32.mxu0 0.0
      %v1843 = vand.u32 %v603, 4294901760
      %v1844 = vsub.f32 %v603, %v1843
      %v1845 = vand.u32 %v1844, 4294901760
      %v1846 = vsub.f32 %v1844, %v1845
      %v1847 = vand.u32 %v1846, 4294901760
      %1848 = vmatmul.mubr.f32.gmra.mrb[0].mxu0 %v1847
      %v1849 = vpop.f32.mrb[0].mxu0
      %v1850 = vadd.f32 0.0, %v1849
      %v1851 = vpop.f32.mrb[0].mxu0
      %v1852 = vadd.f32 0.0, %v1851
      %1853 = vmatprep.mubr.f32.mxu0 0.0
      %v1854 = vand.u32 %v606, 4294901760
      %v1855 = vsub.f32 %v606, %v1854
      %v1856 = vand.u32 %v1855, 4294901760
      %v1857 = vsub.f32 %v1855, %v1856
      %v1858 = vand.u32 %v1857, 4294901760
      %1859 = vmatmul.mubr.f32.gmra.mrb[0].mxu0 %v1858
      %v1860 = vpop.f32.mrb[0].mxu0
      %v1861 = vadd.f32 0.0, %v1860
      %v1862 = vpop.f32.mrb[0].mxu0
      %v1863 = vadd.f32 0.0, %v1862
      %1864 = vmatprep.mubr.f32.mxu0 0.0
      %v1865 = vand.u32 %v609, 4294901760
      %v1866 = vsub.f32 %v609, %v1865
      %v1867 = vand.u32 %v1866, 4294901760
      %v1868 = vsub.f32 %v1866, %v1867
      %v1869 = vand.u32 %v1868, 4294901760
      %1870 = vmatmul.mubr.f32.gmra.mrb[0].mxu0 %v1869
      %v1871 = vpop.f32.mrb[0].mxu0
      %v1872 = vadd.f32 0.0, %v1871
      %v1873 = vpop.f32.mrb[0].mxu0
      %v1874 = vadd.f32 0.0, %v1873
      %1875 = vmatprep.mubr.f32.mxu0 0.0
      %v1876 = vand.u32 %v612, 4294901760
      %v1877 = vsub.f32 %v612, %v1876
      %v1878 = vand.u32 %v1877, 4294901760
      %v1879 = vsub.f32 %v1877, %v1878
      %v1880 = vand.u32 %v1879, 4294901760
      %1881 = vmatmul.mubr.f32.gmra.mrb[0].mxu0 %v1880
      %v1882 = vpop.f32.mrb[0].mxu0
      %v1883 = vadd.f32 0.0, %v1882
      %v1884 = vpop.f32.mrb[0].mxu0
      %v1885 = vadd.f32 0.0, %v1884
      %1886 = vmatprep.mubr.f32.mxu0 0.0
      %v1887 = vand.u32 %v615, 4294901760
      %v1888 = vsub.f32 %v615, %v1887
      %v1889 = vand.u32 %v1888, 4294901760
      %v1890 = vsub.f32 %v1888, %v1889
      %v1891 = vand.u32 %v1890, 4294901760
      %1892 = vmatmul.mubr.f32.gmra.mrb[0].mxu0 %v1891
      %v1893 = vpop.f32.mrb[0].mxu0
      %v1894 = vadd.f32 0.0, %v1893
      %v1895 = vpop.f32.mrb[0].mxu0
      %v1896 = vadd.f32 0.0, %v1895
      %1897 = vmatprep.mubr.f32.mxu0 0.0
      %v1898 = vand.u32 %v618, 4294901760
      %v1899 = vsub.f32 %v618, %v1898
      %v1900 = vand.u32 %v1899, 4294901760
      %v1901 = vsub.f32 %v1899, %v1900
      %v1902 = vand.u32 %v1901, 4294901760
      %1903 = vmatmul.mubr.f32.gmra.mrb[0].mxu0 %v1902
      %v1904 = vpop.f32.mrb[0].mxu0
      %v1905 = vadd.f32 0.0, %v1904
      %v1906 = vpop.f32.mrb[0].mxu0
      %v1907 = vadd.f32 0.0, %v1906
      %1908 = vmatprep.mubr.f32.mxu0 0.0
      %v1909 = vand.u32 %v621, 4294901760
      %v1910 = vsub.f32 %v621, %v1909
      %v1911 = vand.u32 %v1910, 4294901760
      %v1912 = vsub.f32 %v1910, %v1911
      %v1913 = vand.u32 %v1912, 4294901760
      %1914 = vmatmul.mubr.f32.gmra.mrb[0].mxu0 %v1913
      %v1915 = vpop.f32.mrb[0].mxu0
      %v1916 = vadd.f32 0.0, %v1915
      %v1917 = vpop.f32.mrb[0].mxu0
      %v1918 = vadd.f32 0.0, %v1917
      %1919 = vmatprep.mubr.f32.mxu0 0.0
      %v1920 = vand.u32 %v624, 4294901760
      %v1921 = vsub.f32 %v624, %v1920
      %v1922 = vand.u32 %v1921, 4294901760
      %v1923 = vsub.f32 %v1921, %v1922
      %v1924 = vand.u32 %v1923, 4294901760
      %1925 = vmatmul.mubr.f32.gmra.mrb[0].mxu0 %v1924
      %v1926 = vpop.f32.mrb[0].mxu0
      %v1927 = vadd.f32 0.0, %v1926
      %v1928 = vpop.f32.mrb[0].mxu0
      %v1929 = vadd.f32 0.0, %v1928
      %1930 = vmatprep.mubr.f32.mxu0 0.0
      %v1931 = vand.u32 %v627, 4294901760
      %v1932 = vsub.f32 %v627, %v1931
      %v1933 = vand.u32 %v1932, 4294901760
      %v1934 = vsub.f32 %v1932, %v1933
      %v1935 = vand.u32 %v1934, 4294901760
      %1936 = vmatmul.mubr.f32.gmra.mrb[0].mxu0 %v1935
      %v1937 = vpop.f32.mrb[0].mxu0
      %v1938 = vadd.f32 0.0, %v1937
      %v1939 = vpop.f32.mrb[0].mxu0
      %v1940 = vadd.f32 0.0, %v1939
      %1941 = vmatprep.mubr.f32.mxu0 0.0
      %v1942 = vand.u32 %v630, 4294901760
      %v1943 = vsub.f32 %v630, %v1942
      %v1944 = vand.u32 %v1943, 4294901760
      %v1945 = vsub.f32 %v1943, %v1944
      %v1946 = vand.u32 %v1945, 4294901760
      %1947 = vmatmul.mubr.f32.gmra.mrb[0].mxu0 %v1946
      %v1948 = vpop.f32.mrb[0].mxu0
      %v1949 = vadd.f32 0.0, %v1948
      %v1950 = vpop.f32.mrb[0].mxu0
      %v1951 = vadd.f32 0.0, %v1950
      %1952 = vmatprep.mubr.f32.mxu0 0.0
      %v1953 = vand.u32 %v633, 4294901760
      %v1954 = vsub.f32 %v633, %v1953
      %v1955 = vand.u32 %v1954, 4294901760
      %v1956 = vsub.f32 %v1954, %v1955
      %v1957 = vand.u32 %v1956, 4294901760
      %1958 = vmatmul.mubr.f32.gmra.mrb[0].mxu0 %v1957
      %v1959 = vpop.f32.mrb[0].mxu0
      %v1960 = vadd.f32 0.0, %v1959
      %v1961 = vpop.f32.mrb[0].mxu0
      %v1962 = vadd.f32 0.0, %v1961
      %1963 = vmatprep.mubr.f32.mxu0 0.0
      %v1964 = vand.u32 %v636, 4294901760
      %v1965 = vsub.f32 %v636, %v1964
      %v1966 = vand.u32 %v1965, 4294901760
      %v1967 = vsub.f32 %v1965, %v1966
      %v1968 = vand.u32 %v1967, 4294901760
      %1969 = vmatmul.mubr.f32.gmra.mrb[0].mxu0 %v1968
      %v1970 = vpop.f32.mrb[0].mxu0
      %v1971 = vadd.f32 0.0, %v1970
      %v1972 = vpop.f32.mrb[0].mxu0
      %v1973 = vadd.f32 0.0, %v1972
      %1974 = vmatprep.mubr.f32.mxu0 0.0
      %v1975 = vand.u32 %v639, 4294901760
      %v1976 = vsub.f32 %v639, %v1975
      %v1977 = vand.u32 %v1976, 4294901760
      %v1978 = vsub.f32 %v1976, %v1977
      %v1979 = vand.u32 %v1978, 4294901760
      %1980 = vmatmul.mubr.f32.gmra.mrb[0].mxu0 %v1979
      %v1981 = vpop.f32.mrb[0].mxu0
      %v1982 = vadd.f32 0.0, %v1981
      %v1983 = vpop.f32.mrb[0].mxu0
      %v1984 = vadd.f32 0.0, %v1983
      %1985 = vmatprep.mubr.f32.mxu0 0.0
      %v1986 = vand.u32 %v642, 4294901760
      %v1987 = vsub.f32 %v642, %v1986
      %v1988 = vand.u32 %v1987, 4294901760
      %v1989 = vsub.f32 %v1987, %v1988
      %v1990 = vand.u32 %v1989, 4294901760
      %1991 = vmatmul.mubr.f32.gmra.mrb[0].mxu0 %v1990
      %v1992 = vpop.f32.mrb[0].mxu0
      %v1993 = vadd.f32 0.0, %v1992
      %v1994 = vpop.f32.mrb[0].mxu0
      %v1995 = vadd.f32 0.0, %v1994
      %1996 = vmatprep.mubr.f32.mxu0 0.0
      %v1997 = vand.u32 %v645, 4294901760
      %v1998 = vsub.f32 %v645, %v1997
      %v1999 = vand.u32 %v1998, 4294901760
      %v2000 = vsub.f32 %v1998, %v1999
      %v2001 = vand.u32 %v2000, 4294901760
      %2002 = vmatmul.mubr.f32.gmra.mrb[0].mxu0 %v2001
      %v2003 = vpop.f32.mrb[0].mxu0
      %v2004 = vadd.f32 0.0, %v2003
      %v2005 = vpop.f32.mrb[0].mxu0
      %v2006 = vadd.f32 0.0, %v2005
      %2007 = vmatprep.mubr.f32.mxu0 0.0
      %v2008 = vand.u32 %v648, 4294901760
      %v2009 = vsub.f32 %v648, %v2008
      %v2010 = vand.u32 %v2009, 4294901760
      %v2011 = vsub.f32 %v2009, %v2010
      %v2012 = vand.u32 %v2011, 4294901760
      %2013 = vmatmul.mubr.f32.gmra.mrb[0].mxu0 %v2012
      %v2014 = vpop.f32.mrb[0].mxu0
      %v2015 = vadd.f32 0.0, %v2014
      %v2016 = vpop.f32.mrb[0].mxu0
      %v2017 = vadd.f32 0.0, %v2016
      %2018 = vmatprep.mubr.f32.mxu0 0.0
      %v2019 = vand.u32 %v651, 4294901760
      %v2020 = vsub.f32 %v651, %v2019
      %v2021 = vand.u32 %v2020, 4294901760
      %v2022 = vsub.f32 %v2020, %v2021
      %v2023 = vand.u32 %v2022, 4294901760
      %2024 = vmatmul.mubr.f32.gmra.mrb[0].mxu0 %v2023
      %v2025 = vpop.f32.mrb[0].mxu0
      %v2026 = vadd.f32 0.0, %v2025
      %v2027 = vpop.f32.mrb[0].mxu0
      %v2028 = vadd.f32 0.0, %v2027
      %2029 = vmatprep.mubr.f32.mxu0 0.0
      %v2030 = vand.u32 %v654, 4294901760
      %v2031 = vsub.f32 %v654, %v2030
      %v2032 = vand.u32 %v2031, 4294901760
      %v2033 = vsub.f32 %v2031, %v2032
      %v2034 = vand.u32 %v2033, 4294901760
      %2035 = vmatmul.mubr.f32.gmra.mrb[0].mxu0 %v2034
      %v2036 = vpop.f32.mrb[0].mxu0
      %v2037 = vadd.f32 0.0, %v2036
      %v2038 = vpop.f32.mrb[0].mxu0
      %v2039 = vadd.f32 0.0, %v2038
      %2040 = vmatprep.mubr.f32.mxu0 0.0
      %v2041 = vand.u32 %v657, 4294901760
      %v2042 = vsub.f32 %v657, %v2041
      %v2043 = vand.u32 %v2042, 4294901760
      %v2044 = vsub.f32 %v2042, %v2043
      %v2045 = vand.u32 %v2044, 4294901760
      %2046 = vmatmul.mubr.f32.gmra.mrb[0].mxu0 %v2045
      %v2047 = vpop.f32.mrb[0].mxu0
      %v2048 = vadd.f32 0.0, %v2047
      %v2049 = vpop.f32.mrb[0].mxu0
      %v2050 = vadd.f32 0.0, %v2049
      %2051 = vmatprep.mubr.f32.mxu0 0.0
      %v2052 = vand.u32 %v660, 4294901760
      %v2053 = vsub.f32 %v660, %v2052
      %v2054 = vand.u32 %v2053, 4294901760
      %v2055 = vsub.f32 %v2053, %v2054
      %v2056 = vand.u32 %v2055, 4294901760
      %2057 = vmatmul.mubr.f32.gmra.mrb[0].mxu0 %v2056
      %v2058 = vpop.f32.mrb[0].mxu0
      %v2059 = vadd.f32 0.0, %v2058
      %v2060 = vpop.f32.mrb[0].mxu0
      %v2061 = vadd.f32 0.0, %v2060
      %2062 = vmatprep.mubr.f32.mxu0 0.0
      %v2063 = vand.u32 %v663, 4294901760
      %v2064 = vsub.f32 %v663, %v2063
      %v2065 = vand.u32 %v2064, 4294901760
      %v2066 = vsub.f32 %v2064, %v2065
      %v2067 = vand.u32 %v2066, 4294901760
      %2068 = vmatmul.mubr.f32.gmra.mrb[0].mxu0 %v2067
      %v2069 = vpop.f32.mrb[0].mxu0
      %v2070 = vadd.f32 0.0, %v2069
      %v2071 = vpop.f32.mrb[0].mxu0
      %v2072 = vadd.f32 0.0, %v2071
      %2073 = vmatprep.mubr.f32.mxu0 0.0
      %v2074 = vand.u32 %v666, 4294901760
      %v2075 = vsub.f32 %v666, %v2074
      %v2076 = vand.u32 %v2075, 4294901760
      %v2077 = vsub.f32 %v2075, %v2076
      %v2078 = vand.u32 %v2077, 4294901760
      %2079 = vmatmul.mubr.f32.gmra.mrb[0].mxu0 %v2078
      %v2080 = vpop.f32.mrb[0].mxu0
      %v2081 = vadd.f32 0.0, %v2080
      %v2082 = vpop.f32.mrb[0].mxu0
      %v2083 = vadd.f32 0.0, %v2082
      %2084 = vmatprep.mubr.f32.mxu0 0.0
      %v2085 = vand.u32 %v669, 4294901760
      %v2086 = vsub.f32 %v669, %v2085
      %v2087 = vand.u32 %v2086, 4294901760
      %v2088 = vsub.f32 %v2086, %v2087
      %v2089 = vand.u32 %v2088, 4294901760
      %2090 = vmatmul.mubr.f32.gmra.mrb[0].mxu0 %v2089
      %v2091 = vpop.f32.mrb[0].mxu0
      %v2092 = vadd.f32 0.0, %v2091
      %v2093 = vpop.f32.mrb[0].mxu0
      %v2094 = vadd.f32 0.0, %v2093
      %2095 = vmatprep.mubr.f32.mxu0 0.0
      %v2096 = vand.u32 %v672, 4294901760
      %v2097 = vsub.f32 %v672, %v2096
      %v2098 = vand.u32 %v2097, 4294901760
      %v2099 = vsub.f32 %v2097, %v2098
      %v2100 = vand.u32 %v2099, 4294901760
      %2101 = vmatmul.mubr.f32.gmra.mrb[0].mxu0 %v2100
      %v2102 = vpop.f32.mrb[0].mxu0
      %v2103 = vadd.f32 0.0, %v2102
      %v2104 = vpop.f32.mrb[0].mxu0
      %v2105 = vadd.f32 0.0, %v2104
      %2106 = vmatprep.mubr.f32.mxu0 0.0
      %v2107 = vand.u32 %v675, 4294901760
      %v2108 = vsub.f32 %v675, %v2107
      %v2109 = vand.u32 %v2108, 4294901760
      %v2110 = vsub.f32 %v2108, %v2109
      %v2111 = vand.u32 %v2110, 4294901760
      %2112 = vmatmul.mubr.f32.gmra.mrb[0].mxu0 %v2111
      %v2113 = vpop.f32.mrb[0].mxu0
      %v2114 = vadd.f32 0.0, %v2113
      %v2115 = vpop.f32.mrb[0].mxu0
      %v2116 = vadd.f32 0.0, %v2115
      %2117 = vmatprep.mubr.f32.mxu0 0.0
      %v2118 = vand.u32 %v678, 4294901760
      %v2119 = vsub.f32 %v678, %v2118
      %v2120 = vand.u32 %v2119, 4294901760
      %v2121 = vsub.f32 %v2119, %v2120
      %v2122 = vand.u32 %v2121, 4294901760
      %2123 = vmatmul.mubr.f32.gmra.mrb[0].mxu0 %v2122
      %v2124 = vpop.f32.mrb[0].mxu0
      %v2125 = vadd.f32 0.0, %v2124
      %v2126 = vpop.f32.mrb[0].mxu0
      %v2127 = vadd.f32 0.0, %v2126
      %2128 = vmatprep.mubr.f32.mxu0 0.0
      %v2129 = vand.u32 %v681, 4294901760
      %v2130 = vsub.f32 %v681, %v2129
      %v2131 = vand.u32 %v2130, 4294901760
      %v2132 = vsub.f32 %v2130, %v2131
      %v2133 = vand.u32 %v2132, 4294901760
      %2134 = vmatmul.mubr.f32.gmra.mrb[0].mxu0 %v2133
      %v2135 = vpop.f32.mrb[0].mxu0
      %v2136 = vadd.f32 0.0, %v2135
      %v2137 = vpop.f32.mrb[0].mxu0
      %v2138 = vadd.f32 0.0, %v2137
      %2139 = vmatprep.mubr.f32.mxu0 0.0
      %v2140 = vand.u32 %v684, 4294901760
      %v2141 = vsub.f32 %v684, %v2140
      %v2142 = vand.u32 %v2141, 4294901760
      %v2143 = vsub.f32 %v2141, %v2142
      %v2144 = vand.u32 %v2143, 4294901760
      %2145 = vmatmul.mubr.f32.gmra.mrb[0].mxu0 %v2144
      %v2146 = vpop.f32.mrb[0].mxu0
      %v2147 = vadd.f32 0.0, %v2146
      %v2148 = vpop.f32.mrb[0].mxu0
      %v2149 = vadd.f32 0.0, %v2148
      %2150 = vmatprep.mubr.f32.mxu0 0.0
      %v2151 = vand.u32 %v687, 4294901760
      %v2152 = vsub.f32 %v687, %v2151
      %v2153 = vand.u32 %v2152, 4294901760
      %v2154 = vsub.f32 %v2152, %v2153
      %v2155 = vand.u32 %v2154, 4294901760
      %2156 = vmatmul.mubr.f32.gmra.mrb[0].mxu0 %v2155
      %v2157 = vpop.f32.mrb[0].mxu0
      %v2158 = vadd.f32 0.0, %v2157
      %v2159 = vpop.f32.mrb[0].mxu0
      %v2160 = vadd.f32 0.0, %v2159
      %2161 = vmatprep.mubr.f32.mxu0 0.0
      %v2162 = vand.u32 %v690, 4294901760
      %v2163 = vsub.f32 %v690, %v2162
      %v2164 = vand.u32 %v2163, 4294901760
      %v2165 = vsub.f32 %v2163, %v2164
      %v2166 = vand.u32 %v2165, 4294901760
      %2167 = vmatmul.mubr.f32.gmra.mrb[0].mxu0 %v2166
      %v2168 = vpop.f32.mrb[0].mxu0
      %v2169 = vadd.f32 0.0, %v2168
      %v2170 = vpop.f32.mrb[0].mxu0
      %v2171 = vadd.f32 0.0, %v2170
      %2172 = vdwg.mxu0
      %v2173 = vand.u32 %v300, 4294901760
      %v2174 = vsub.f32 %v300, %v2173
      %v2175 = vand.u32 %v2174, 4294901760
      %v2176 = vsub.f32 %v2174, %v2175
      %v2177 = vand.u32 %v2176, 4294901760
      %2178 = vmatprep.subr.mxu0 %v2177
      %v2179 = vand.u32 %v299, 4294901760
      %v2180 = vsub.f32 %v299, %v2179
      %v2181 = vand.u32 %v2180, 4294901760
      %v2182 = vsub.f32 %v2180, %v2181
      %v2183 = vand.u32 %v2182, 4294901760
      %2184 = vmatpush1.msra.mxu0 %v2183
      %v2185 = vand.u32 %v302, 4294901760
      %v2186 = vsub.f32 %v302, %v2185
      %v2187 = vand.u32 %v2186, 4294901760
      %v2188 = vsub.f32 %v2186, %v2187
      %v2189 = vand.u32 %v2188, 4294901760
      %2190 = vmatprep.subr.mxu0 %v2189
      %v2191 = vand.u32 %v301, 4294901760
      %v2192 = vsub.f32 %v301, %v2191
      %v2193 = vand.u32 %v2192, 4294901760
      %v2194 = vsub.f32 %v2192, %v2193
      %v2195 = vand.u32 %v2194, 4294901760
      %2196 = vmatpush1.msra.mxu0 %v2195
      %v2197 = vand.u32 %v304, 4294901760
      %v2198 = vsub.f32 %v304, %v2197
      %v2199 = vand.u32 %v2198, 4294901760
      %v2200 = vsub.f32 %v2198, %v2199
      %v2201 = vand.u32 %v2200, 4294901760
      %2202 = vmatprep.subr.mxu0 %v2201
      %v2203 = vand.u32 %v303, 4294901760
      %v2204 = vsub.f32 %v303, %v2203
      %v2205 = vand.u32 %v2204, 4294901760
      %v2206 = vsub.f32 %v2204, %v2205
      %v2207 = vand.u32 %v2206, 4294901760
      %2208 = vmatpush1.msra.mxu0 %v2207
      %v2209 = vand.u32 %v306, 4294901760
      %v2210 = vsub.f32 %v306, %v2209
      %v2211 = vand.u32 %v2210, 4294901760
      %v2212 = vsub.f32 %v2210, %v2211
      %v2213 = vand.u32 %v2212, 4294901760
      %2214 = vmatprep.subr.mxu0 %v2213
      %v2215 = vand.u32 %v305, 4294901760
      %v2216 = vsub.f32 %v305, %v2215
      %v2217 = vand.u32 %v2216, 4294901760
      %v2218 = vsub.f32 %v2216, %v2217
      %v2219 = vand.u32 %v2218, 4294901760
      %2220 = vmatpush1.msra.mxu0 %v2219
      %2221 = vmatprep.subr.mxu0 0.0
      %2222 = vmatpush1.msra.mxu0 0.0
      %2223 = vmatprep.subr.mxu0 0.0
      %2224 = vmatpush1.msra.mxu0 0.0
      %2225 = vmatprep.subr.mxu0 0.0
      %2226 = vmatpush1.msra.mxu0 0.0
      %2227 = vmatprep.subr.mxu0 0.0
      %2228 = vmatpush1.msra.mxu0 0.0
      %2229 = vmatprep.subr.mxu0 0.0
      %2230 = vmatpush1.msra.mxu0 0.0
      %2231 = vmatprep.subr.mxu0 0.0
      %2232 = vmatpush1.msra.mxu0 0.0
      %2233 = vmatprep.subr.mxu0 0.0
      %2234 = vmatpush1.msra.mxu0 0.0
      %2235 = vmatprep.subr.mxu0 0.0
      %2236 = vmatpush1.msra.mxu0 0.0
      %2237 = vmatprep.subr.mxu0 0.0
      %2238 = vmatpush1.msra.mxu0 0.0
      %2239 = vmatprep.subr.mxu0 0.0
      %2240 = vmatpush1.msra.mxu0 0.0
      %2241 = vmatprep.subr.mxu0 0.0
      %2242 = vmatpush1.msra.mxu0 0.0
      %2243 = vmatprep.subr.mxu0 0.0
      %2244 = vmatpush1.msra.mxu0 0.0
      %2245 = vmatprep.subr.mxu0 0.0
      %2246 = vmatpush1.msra.mxu0 0.0
      %2247 = vmatprep.subr.mxu0 0.0
      %2248 = vmatpush1.msra.mxu0 0.0
      %2249 = vmatprep.subr.mxu0 0.0
      %2250 = vmatpush1.msra.mxu0 0.0
      %2251 = vmatprep.subr.mxu0 0.0
      %2252 = vmatpush1.msra.mxu0 0.0
      %2253 = vmatprep.subr.mxu0 0.0
      %2254 = vmatpush1.msra.mxu0 0.0
      %2255 = vmatprep.subr.mxu0 0.0
      %2256 = vmatpush1.msra.mxu0 0.0
      %2257 = vmatprep.subr.mxu0 0.0
      %2258 = vmatpush1.msra.mxu0 0.0
      %2259 = vmatprep.subr.mxu0 0.0
      %2260 = vmatpush1.msra.mxu0 0.0
      %2261 = vmatprep.subr.mxu0 0.0
      %2262 = vmatpush1.msra.mxu0 0.0
      %2263 = vmatprep.subr.mxu0 0.0
      %2264 = vmatpush1.msra.mxu0 0.0
      %2265 = vmatprep.subr.mxu0 0.0
      %2266 = vmatpush1.msra.mxu0 0.0
      %2267 = vmatprep.subr.mxu0 0.0
      %2268 = vmatpush1.msra.mxu0 0.0
      %2269 = vmatprep.subr.mxu0 0.0
      %2270 = vmatpush1.msra.mxu0 0.0
      %2271 = vmatprep.subr.mxu0 0.0
      %2272 = vmatpush1.msra.mxu0 0.0
      %2273 = vmatprep.subr.mxu0 0.0
      %2274 = vmatpush1.msra.mxu0 0.0
      %2275 = vmatprep.subr.mxu0 0.0
      %2276 = vmatpush1.msra.mxu0 0.0
      %2277 = vmatprep.mubr.f32.mxu0 0.0
      %v2278 = vand.u32 %v309, 4294901760
      %2279 = vmatmul.mubr.f32.gmra.mrb[0].mxu0 %v2278
      %v2280 = vpop.f32.mrb[0].mxu0
      %v2281 = vadd.f32 %v772, %v2280
      %v2282 = vpop.f32.mrb[0].mxu0
      %v2283 = vadd.f32 %v774, %v2282
      %2284 = vmatprep.mubr.f32.mxu0 0.0
      %v2285 = vand.u32 %v312, 4294901760
      %2286 = vmatmul.mubr.f32.gmra.mrb[0].mxu0 %v2285
      %v2287 = vpop.f32.mrb[0].mxu0
      %v2288 = vadd.f32 %v783, %v2287
      %v2289 = vpop.f32.mrb[0].mxu0
      %v2290 = vadd.f32 %v785, %v2289
      %2291 = vmatprep.mubr.f32.mxu0 0.0
      %v2292 = vand.u32 %v315, 4294901760
      %2293 = vmatmul.mubr.f32.gmra.mrb[0].mxu0 %v2292
      %v2294 = vpop.f32.mrb[0].mxu0
      %v2295 = vadd.f32 %v794, %v2294
      %v2296 = vpop.f32.mrb[0].mxu0
      %v2297 = vadd.f32 %v796, %v2296
      %2298 = vmatprep.mubr.f32.mxu0 0.0
      %v2299 = vand.u32 %v318, 4294901760
      %2300 = vmatmul.mubr.f32.gmra.mrb[0].mxu0 %v2299
      %v2301 = vpop.f32.mrb[0].mxu0
      %v2302 = vadd.f32 %v805, %v2301
      %v2303 = vpop.f32.mrb[0].mxu0
      %v2304 = vadd.f32 %v807, %v2303
      %2305 = vmatprep.mubr.f32.mxu0 0.0
      %v2306 = vand.u32 %v321, 4294901760
      %2307 = vmatmul.mubr.f32.gmra.mrb[0].mxu0 %v2306
      %v2308 = vpop.f32.mrb[0].mxu0
      %v2309 = vadd.f32 %v816, %v2308
      %v2310 = vpop.f32.mrb[0].mxu0
      %v2311 = vadd.f32 %v818, %v2310
      %2312 = vmatprep.mubr.f32.mxu0 0.0
      %v2313 = vand.u32 %v324, 4294901760
      %2314 = vmatmul.mubr.f32.gmra.mrb[0].mxu0 %v2313
      %v2315 = vpop.f32.mrb[0].mxu0
      %v2316 = vadd.f32 %v827, %v2315
      %v2317 = vpop.f32.mrb[0].mxu0
      %v2318 = vadd.f32 %v829, %v2317
      %2319 = vmatprep.mubr.f32.mxu0 0.0
      %v2320 = vand.u32 %v327, 4294901760
      %2321 = vmatmul.mubr.f32.gmra.mrb[0].mxu0 %v2320
      %v2322 = vpop.f32.mrb[0].mxu0
      %v2323 = vadd.f32 %v838, %v2322
      %v2324 = vpop.f32.mrb[0].mxu0
      %v2325 = vadd.f32 %v840, %v2324
      %2326 = vmatprep.mubr.f32.mxu0 0.0
      %v2327 = vand.u32 %v330, 4294901760
      %2328 = vmatmul.mubr.f32.gmra.mrb[0].mxu0 %v2327
      %v2329 = vpop.f32.mrb[0].mxu0
      %v2330 = vadd.f32 %v849, %v2329
      %v2331 = vpop.f32.mrb[0].mxu0
      %v2332 = vadd.f32 %v851, %v2331
      %2333 = vmatprep.mubr.f32.mxu0 0.0
      %v2334 = vand.u32 %v333, 4294901760
      %2335 = vmatmul.mubr.f32.gmra.mrb[0].mxu0 %v2334
      %v2336 = vpop.f32.mrb[0].mxu0
      %v2337 = vadd.f32 %v860, %v2336
      %v2338 = vpop.f32.mrb[0].mxu0
      %v2339 = vadd.f32 %v862, %v2338
      %2340 = vmatprep.mubr.f32.mxu0 0.0
      %v2341 = vand.u32 %v336, 4294901760
      %2342 = vmatmul.mubr.f32.gmra.mrb[0].mxu0 %v2341
      %v2343 = vpop.f32.mrb[0].mxu0
      %v2344 = vadd.f32 %v871, %v2343
      %v2345 = vpop.f32.mrb[0].mxu0
      %v2346 = vadd.f32 %v873, %v2345
      %2347 = vmatprep.mubr.f32.mxu0 0.0
      %v2348 = vand.u32 %v339, 4294901760
      %2349 = vmatmul.mubr.f32.gmra.mrb[0].mxu0 %v2348
      %v2350 = vpop.f32.mrb[0].mxu0
      %v2351 = vadd.f32 %v882, %v2350
      %v2352 = vpop.f32.mrb[0].mxu0
      %v2353 = vadd.f32 %v884, %v2352
      %2354 = vmatprep.mubr.f32.mxu0 0.0
      %v2355 = vand.u32 %v342, 4294901760
      %2356 = vmatmul.mubr.f32.gmra.mrb[0].mxu0 %v2355
      %v2357 = vpop.f32.mrb[0].mxu0
      %v2358 = vadd.f32 %v893, %v2357
      %v2359 = vpop.f32.mrb[0].mxu0
      %v2360 = vadd.f32 %v895, %v2359
      %2361 = vmatprep.mubr.f32.mxu0 0.0
      %v2362 = vand.u32 %v345, 4294901760
      %2363 = vmatmul.mubr.f32.gmra.mrb[0].mxu0 %v2362
      %v2364 = vpop.f32.mrb[0].mxu0
      %v2365 = vadd.f32 %v904, %v2364
      %v2366 = vpop.f32.mrb[0].mxu0
      %v2367 = vadd.f32 %v906, %v2366
      %2368 = vmatprep.mubr.f32.mxu0 0.0
      %v2369 = vand.u32 %v348, 4294901760
      %2370 = vmatmul.mubr.f32.gmra.mrb[0].mxu0 %v2369
      %v2371 = vpop.f32.mrb[0].mxu0
      %v2372 = vadd.f32 %v915, %v2371
      %v2373 = vpop.f32.mrb[0].mxu0
      %v2374 = vadd.f32 %v917, %v2373
      %2375 = vmatprep.mubr.f32.mxu0 0.0
      %v2376 = vand.u32 %v351, 4294901760
      %2377 = vmatmul.mubr.f32.gmra.mrb[0].mxu0 %v2376
      %v2378 = vpop.f32.mrb[0].mxu0
      %v2379 = vadd.f32 %v926, %v2378
      %v2380 = vpop.f32.mrb[0].mxu0
      %v2381 = vadd.f32 %v928, %v2380
      %2382 = vmatprep.mubr.f32.mxu0 0.0
      %v2383 = vand.u32 %v354, 4294901760
      %2384 = vmatmul.mubr.f32.gmra.mrb[0].mxu0 %v2383
      %v2385 = vpop.f32.mrb[0].mxu0
      %v2386 = vadd.f32 %v937, %v2385
      %v2387 = vpop.f32.mrb[0].mxu0
      %v2388 = vadd.f32 %v939, %v2387
      %2389 = vmatprep.mubr.f32.mxu0 0.0
      %v2390 = vand.u32 %v357, 4294901760
      %2391 = vmatmul.mubr.f32.gmra.mrb[0].mxu0 %v2390
      %v2392 = vpop.f32.mrb[0].mxu0
      %v2393 = vadd.f32 %v948, %v2392
      %v2394 = vpop.f32.mrb[0].mxu0
      %v2395 = vadd.f32 %v950, %v2394
      %2396 = vmatprep.mubr.f32.mxu0 0.0
      %v2397 = vand.u32 %v360, 4294901760
      %2398 = vmatmul.mubr.f32.gmra.mrb[0].mxu0 %v2397
      %v2399 = vpop.f32.mrb[0].mxu0
      %v2400 = vadd.f32 %v959, %v2399
      %v2401 = vpop.f32.mrb[0].mxu0
      %v2402 = vadd.f32 %v961, %v2401
      %2403 = vmatprep.mubr.f32.mxu0 0.0
      %v2404 = vand.u32 %v363, 4294901760
      %2405 = vmatmul.mubr.f32.gmra.mrb[0].mxu0 %v2404
      %v2406 = vpop.f32.mrb[0].mxu0
      %v2407 = vadd.f32 %v970, %v2406
      %v2408 = vpop.f32.mrb[0].mxu0
      %v2409 = vadd.f32 %v972, %v2408
      %2410 = vmatprep.mubr.f32.mxu0 0.0
      %v2411 = vand.u32 %v366, 4294901760
      %2412 = vmatmul.mubr.f32.gmra.mrb[0].mxu0 %v2411
      %v2413 = vpop.f32.mrb[0].mxu0
      %v2414 = vadd.f32 %v981, %v2413
      %v2415 = vpop.f32.mrb[0].mxu0
      %v2416 = vadd.f32 %v983, %v2415
      %2417 = vmatprep.mubr.f32.mxu0 0.0
      %v2418 = vand.u32 %v369, 4294901760
      %2419 = vmatmul.mubr.f32.gmra.mrb[0].mxu0 %v2418
      %v2420 = vpop.f32.mrb[0].mxu0
      %v2421 = vadd.f32 %v992, %v2420
      %v2422 = vpop.f32.mrb[0].mxu0
      %v2423 = vadd.f32 %v994, %v2422
      %2424 = vmatprep.mubr.f32.mxu0 0.0
      %v2425 = vand.u32 %v372, 4294901760
      %2426 = vmatmul.mubr.f32.gmra.mrb[0].mxu0 %v2425
      %v2427 = vpop.f32.mrb[0].mxu0
      %v2428 = vadd.f32 %v1003, %v2427
      %v2429 = vpop.f32.mrb[0].mxu0
      %v2430 = vadd.f32 %v1005, %v2429
      %2431 = vmatprep.mubr.f32.mxu0 0.0
      %v2432 = vand.u32 %v375, 4294901760
      %2433 = vmatmul.mubr.f32.gmra.mrb[0].mxu0 %v2432
      %v2434 = vpop.f32.mrb[0].mxu0
      %v2435 = vadd.f32 %v1014, %v2434
      %v2436 = vpop.f32.mrb[0].mxu0
      %v2437 = vadd.f32 %v1016, %v2436
      %2438 = vmatprep.mubr.f32.mxu0 0.0
      %v2439 = vand.u32 %v378, 4294901760
      %2440 = vmatmul.mubr.f32.gmra.mrb[0].mxu0 %v2439
      %v2441 = vpop.f32.mrb[0].mxu0
      %v2442 = vadd.f32 %v1025, %v2441
      %v2443 = vpop.f32.mrb[0].mxu0
      %v2444 = vadd.f32 %v1027, %v2443
      %2445 = vmatprep.mubr.f32.mxu0 0.0
      %v2446 = vand.u32 %v381, 4294901760
      %2447 = vmatmul.mubr.f32.gmra.mrb[0].mxu0 %v2446
      %v2448 = vpop.f32.mrb[0].mxu0
      %v2449 = vadd.f32 %v1036, %v2448
      %v2450 = vpop.f32.mrb[0].mxu0
      %v2451 = vadd.f32 %v1038, %v2450
      %2452 = vmatprep.mubr.f32.mxu0 0.0
      %v2453 = vand.u32 %v384, 4294901760
      %2454 = vmatmul.mubr.f32.gmra.mrb[0].mxu0 %v2453
      %v2455 = vpop.f32.mrb[0].mxu0
      %v2456 = vadd.f32 %v1047, %v2455
      %v2457 = vpop.f32.mrb[0].mxu0
      %v2458 = vadd.f32 %v1049, %v2457
      %2459 = vmatprep.mubr.f32.mxu0 0.0
      %v2460 = vand.u32 %v387, 4294901760
      %2461 = vmatmul.mubr.f32.gmra.mrb[0].mxu0 %v2460
      %v2462 = vpop.f32.mrb[0].mxu0
      %v2463 = vadd.f32 %v1058, %v2462
      %v2464 = vpop.f32.mrb[0].mxu0
      %v2465 = vadd.f32 %v1060, %v2464
      %2466 = vmatprep.mubr.f32.mxu0 0.0
      %v2467 = vand.u32 %v390, 4294901760
      %2468 = vmatmul.mubr.f32.gmra.mrb[0].mxu0 %v2467
      %v2469 = vpop.f32.mrb[0].mxu0
      %v2470 = vadd.f32 %v1069, %v2469
      %v2471 = vpop.f32.mrb[0].mxu0
      %v2472 = vadd.f32 %v1071, %v2471
      %2473 = vmatprep.mubr.f32.mxu0 0.0
      %v2474 = vand.u32 %v393, 4294901760
      %2475 = vmatmul.mubr.f32.gmra.mrb[0].mxu0 %v2474
      %v2476 = vpop.f32.mrb[0].mxu0
      %v2477 = vadd.f32 %v1080, %v2476
      %v2478 = vpop.f32.mrb[0].mxu0
      %v2479 = vadd.f32 %v1082, %v2478
      %2480 = vmatprep.mubr.f32.mxu0 0.0
      %v2481 = vand.u32 %v396, 4294901760
      %2482 = vmatmul.mubr.f32.gmra.mrb[0].mxu0 %v2481
      %v2483 = vpop.f32.mrb[0].mxu0
      %v2484 = vadd.f32 %v1091, %v2483
      %v2485 = vpop.f32.mrb[0].mxu0
      %v2486 = vadd.f32 %v1093, %v2485
      %2487 = vmatprep.mubr.f32.mxu0 0.0
      %v2488 = vand.u32 %v399, 4294901760
      %2489 = vmatmul.mubr.f32.gmra.mrb[0].mxu0 %v2488
      %v2490 = vpop.f32.mrb[0].mxu0
      %v2491 = vadd.f32 %v1102, %v2490
      %v2492 = vpop.f32.mrb[0].mxu0
      %v2493 = vadd.f32 %v1104, %v2492
      %2494 = vmatprep.mubr.f32.mxu0 0.0
      %v2495 = vand.u32 %v402, 4294901760
      %2496 = vmatmul.mubr.f32.gmra.mrb[0].mxu0 %v2495
      %v2497 = vpop.f32.mrb[0].mxu0
      %v2498 = vadd.f32 %v1113, %v2497
      %v2499 = vpop.f32.mrb[0].mxu0
      %v2500 = vadd.f32 %v1115, %v2499
      %2501 = vmatprep.mubr.f32.mxu0 0.0
      %v2502 = vand.u32 %v405, 4294901760
      %2503 = vmatmul.mubr.f32.gmra.mrb[0].mxu0 %v2502
      %v2504 = vpop.f32.mrb[0].mxu0
      %v2505 = vadd.f32 %v1124, %v2504
      %v2506 = vpop.f32.mrb[0].mxu0
      %v2507 = vadd.f32 %v1126, %v2506
      %2508 = vmatprep.mubr.f32.mxu0 0.0
      %v2509 = vand.u32 %v408, 4294901760
      %2510 = vmatmul.mubr.f32.gmra.mrb[0].mxu0 %v2509
      %v2511 = vpop.f32.mrb[0].mxu0
      %v2512 = vadd.f32 %v1135, %v2511
      %v2513 = vpop.f32.mrb[0].mxu0
      %v2514 = vadd.f32 %v1137, %v2513
      %2515 = vmatprep.mubr.f32.mxu0 0.0
      %v2516 = vand.u32 %v411, 4294901760
      %2517 = vmatmul.mubr.f32.gmra.mrb[0].mxu0 %v2516
      %v2518 = vpop.f32.mrb[0].mxu0
      %v2519 = vadd.f32 %v1146, %v2518
      %v2520 = vpop.f32.mrb[0].mxu0
      %v2521 = vadd.f32 %v1148, %v2520
      %2522 = vmatprep.mubr.f32.mxu0 0.0
      %v2523 = vand.u32 %v414, 4294901760
      %2524 = vmatmul.mubr.f32.gmra.mrb[0].mxu0 %v2523
      %v2525 = vpop.f32.mrb[0].mxu0
      %v2526 = vadd.f32 %v1157, %v2525
      %v2527 = vpop.f32.mrb[0].mxu0
      %v2528 = vadd.f32 %v1159, %v2527
      %2529 = vmatprep.mubr.f32.mxu0 0.0
      %v2530 = vand.u32 %v417, 4294901760
      %2531 = vmatmul.mubr.f32.gmra.mrb[0].mxu0 %v2530
      %v2532 = vpop.f32.mrb[0].mxu0
      %v2533 = vadd.f32 %v1168, %v2532
      %v2534 = vpop.f32.mrb[0].mxu0
      %v2535 = vadd.f32 %v1170, %v2534
      %2536 = vmatprep.mubr.f32.mxu0 0.0
      %v2537 = vand.u32 %v420, 4294901760
      %2538 = vmatmul.mubr.f32.gmra.mrb[0].mxu0 %v2537
      %v2539 = vpop.f32.mrb[0].mxu0
      %v2540 = vadd.f32 %v1179, %v2539
      %v2541 = vpop.f32.mrb[0].mxu0
      %v2542 = vadd.f32 %v1181, %v2541
      %2543 = vmatprep.mubr.f32.mxu0 0.0
      %v2544 = vand.u32 %v423, 4294901760
      %2545 = vmatmul.mubr.f32.gmra.mrb[0].mxu0 %v2544
      %v2546 = vpop.f32.mrb[0].mxu0
      %v2547 = vadd.f32 %v1190, %v2546
      %v2548 = vpop.f32.mrb[0].mxu0
      %v2549 = vadd.f32 %v1192, %v2548
      %2550 = vmatprep.mubr.f32.mxu0 0.0
      %v2551 = vand.u32 %v426, 4294901760
      %2552 = vmatmul.mubr.f32.gmra.mrb[0].mxu0 %v2551
      %v2553 = vpop.f32.mrb[0].mxu0
      %v2554 = vadd.f32 %v1201, %v2553
      %v2555 = vpop.f32.mrb[0].mxu0
      %v2556 = vadd.f32 %v1203, %v2555
      %2557 = vmatprep.mubr.f32.mxu0 0.0
      %v2558 = vand.u32 %v429, 4294901760
      %2559 = vmatmul.mubr.f32.gmra.mrb[0].mxu0 %v2558
      %v2560 = vpop.f32.mrb[0].mxu0
      %v2561 = vadd.f32 %v1212, %v2560
      %v2562 = vpop.f32.mrb[0].mxu0
      %v2563 = vadd.f32 %v1214, %v2562
      %2564 = vmatprep.mubr.f32.mxu0 0.0
      %v2565 = vand.u32 %v432, 4294901760
      %2566 = vmatmul.mubr.f32.gmra.mrb[0].mxu0 %v2565
      %v2567 = vpop.f32.mrb[0].mxu0
      %v2568 = vadd.f32 %v1223, %v2567
      %v2569 = vpop.f32.mrb[0].mxu0
      %v2570 = vadd.f32 %v1225, %v2569
      %2571 = vmatprep.mubr.f32.mxu0 0.0
      %v2572 = vand.u32 %v435, 4294901760
      %2573 = vmatmul.mubr.f32.gmra.mrb[0].mxu0 %v2572
      %v2574 = vpop.f32.mrb[0].mxu0
      %v2575 = vadd.f32 %v1234, %v2574
      %v2576 = vpop.f32.mrb[0].mxu0
      %v2577 = vadd.f32 %v1236, %v2576
      %2578 = vmatprep.mubr.f32.mxu0 0.0
      %v2579 = vand.u32 %v438, 4294901760
      %2580 = vmatmul.mubr.f32.gmra.mrb[0].mxu0 %v2579
      %v2581 = vpop.f32.mrb[0].mxu0
      %v2582 = vadd.f32 %v1245, %v2581
      %v2583 = vpop.f32.mrb[0].mxu0
      %v2584 = vadd.f32 %v1247, %v2583
      %2585 = vmatprep.mubr.f32.mxu0 0.0
      %v2586 = vand.u32 %v441, 4294901760
      %2587 = vmatmul.mubr.f32.gmra.mrb[0].mxu0 %v2586
      %v2588 = vpop.f32.mrb[0].mxu0
      %v2589 = vadd.f32 %v1256, %v2588
      %v2590 = vpop.f32.mrb[0].mxu0
      %v2591 = vadd.f32 %v1258, %v2590
      %2592 = vmatprep.mubr.f32.mxu0 0.0
      %v2593 = vand.u32 %v444, 4294901760
      %2594 = vmatmul.mubr.f32.gmra.mrb[0].mxu0 %v2593
      %v2595 = vpop.f32.mrb[0].mxu0
      %v2596 = vadd.f32 %v1267, %v2595
      %v2597 = vpop.f32.mrb[0].mxu0
      %v2598 = vadd.f32 %v1269, %v2597
      %2599 = vmatprep.mubr.f32.mxu0 0.0
      %v2600 = vand.u32 %v447, 4294901760
      %2601 = vmatmul.mubr.f32.gmra.mrb[0].mxu0 %v2600
      %v2602 = vpop.f32.mrb[0].mxu0
      %v2603 = vadd.f32 %v1278, %v2602
      %v2604 = vpop.f32.mrb[0].mxu0
      %v2605 = vadd.f32 %v1280, %v2604
      %2606 = vmatprep.mubr.f32.mxu0 0.0
      %v2607 = vand.u32 %v450, 4294901760
      %2608 = vmatmul.mubr.f32.gmra.mrb[0].mxu0 %v2607
      %v2609 = vpop.f32.mrb[0].mxu0
      %v2610 = vadd.f32 %v1289, %v2609
      %v2611 = vpop.f32.mrb[0].mxu0
      %v2612 = vadd.f32 %v1291, %v2611
      %2613 = vmatprep.mubr.f32.mxu0 0.0
      %v2614 = vand.u32 %v453, 4294901760
      %2615 = vmatmul.mubr.f32.gmra.mrb[0].mxu0 %v2614
      %v2616 = vpop.f32.mrb[0].mxu0
      %v2617 = vadd.f32 %v1300, %v2616
      %v2618 = vpop.f32.mrb[0].mxu0
      %v2619 = vadd.f32 %v1302, %v2618
      %2620 = vmatprep.mubr.f32.mxu0 0.0
      %v2621 = vand.u32 %v456, 4294901760
      %2622 = vmatmul.mubr.f32.gmra.mrb[0].mxu0 %v2621
      %v2623 = vpop.f32.mrb[0].mxu0
      %v2624 = vadd.f32 %v1311, %v2623
      %v2625 = vpop.f32.mrb[0].mxu0
      %v2626 = vadd.f32 %v1313, %v2625
      %2627 = vmatprep.mubr.f32.mxu0 0.0
      %v2628 = vand.u32 %v459, 4294901760
      %2629 = vmatmul.mubr.f32.gmra.mrb[0].mxu0 %v2628
      %v2630 = vpop.f32.mrb[0].mxu0
      %v2631 = vadd.f32 %v1322, %v2630
      %v2632 = vpop.f32.mrb[0].mxu0
      %v2633 = vadd.f32 %v1324, %v2632
      %2634 = vmatprep.mubr.f32.mxu0 0.0
      %v2635 = vand.u32 %v462, 4294901760
      %2636 = vmatmul.mubr.f32.gmra.mrb[0].mxu0 %v2635
      %v2637 = vpop.f32.mrb[0].mxu0
      %v2638 = vadd.f32 %v1333, %v2637
      %v2639 = vpop.f32.mrb[0].mxu0
      %v2640 = vadd.f32 %v1335, %v2639
      %2641 = vmatprep.mubr.f32.mxu0 0.0
      %v2642 = vand.u32 %v465, 4294901760
      %2643 = vmatmul.mubr.f32.gmra.mrb[0].mxu0 %v2642
      %v2644 = vpop.f32.mrb[0].mxu0
      %v2645 = vadd.f32 %v1344, %v2644
      %v2646 = vpop.f32.mrb[0].mxu0
      %v2647 = vadd.f32 %v1346, %v2646
      %2648 = vmatprep.mubr.f32.mxu0 0.0
      %v2649 = vand.u32 %v468, 4294901760
      %2650 = vmatmul.mubr.f32.gmra.mrb[0].mxu0 %v2649
      %v2651 = vpop.f32.mrb[0].mxu0
      %v2652 = vadd.f32 %v1355, %v2651
      %v2653 = vpop.f32.mrb[0].mxu0
      %v2654 = vadd.f32 %v1357, %v2653
      %2655 = vmatprep.mubr.f32.mxu0 0.0
      %v2656 = vand.u32 %v471, 4294901760
      %2657 = vmatmul.mubr.f32.gmra.mrb[0].mxu0 %v2656
      %v2658 = vpop.f32.mrb[0].mxu0
      %v2659 = vadd.f32 %v1366, %v2658
      %v2660 = vpop.f32.mrb[0].mxu0
      %v2661 = vadd.f32 %v1368, %v2660
      %2662 = vmatprep.mubr.f32.mxu0 0.0
      %v2663 = vand.u32 %v474, 4294901760
      %2664 = vmatmul.mubr.f32.gmra.mrb[0].mxu0 %v2663
      %v2665 = vpop.f32.mrb[0].mxu0
      %v2666 = vadd.f32 %v1377, %v2665
      %v2667 = vpop.f32.mrb[0].mxu0
      %v2668 = vadd.f32 %v1379, %v2667
      %2669 = vmatprep.mubr.f32.mxu0 0.0
      %v2670 = vand.u32 %v477, 4294901760
      %2671 = vmatmul.mubr.f32.gmra.mrb[0].mxu0 %v2670
      %v2672 = vpop.f32.mrb[0].mxu0
      %v2673 = vadd.f32 %v1388, %v2672
      %v2674 = vpop.f32.mrb[0].mxu0
      %v2675 = vadd.f32 %v1390, %v2674
      %2676 = vmatprep.mubr.f32.mxu0 0.0
      %v2677 = vand.u32 %v480, 4294901760
      %2678 = vmatmul.mubr.f32.gmra.mrb[0].mxu0 %v2677
      %v2679 = vpop.f32.mrb[0].mxu0
      %v2680 = vadd.f32 %v1399, %v2679
      %v2681 = vpop.f32.mrb[0].mxu0
      %v2682 = vadd.f32 %v1401, %v2681
      %2683 = vmatprep.mubr.f32.mxu0 0.0
      %v2684 = vand.u32 %v483, 4294901760
      %2685 = vmatmul.mubr.f32.gmra.mrb[0].mxu0 %v2684
      %v2686 = vpop.f32.mrb[0].mxu0
      %v2687 = vadd.f32 %v1410, %v2686
      %v2688 = vpop.f32.mrb[0].mxu0
      %v2689 = vadd.f32 %v1412, %v2688
      %2690 = vmatprep.mubr.f32.mxu0 0.0
      %v2691 = vand.u32 %v486, 4294901760
      %2692 = vmatmul.mubr.f32.gmra.mrb[0].mxu0 %v2691
      %v2693 = vpop.f32.mrb[0].mxu0
      %v2694 = vadd.f32 %v1421, %v2693
      %v2695 = vpop.f32.mrb[0].mxu0
      %v2696 = vadd.f32 %v1423, %v2695
      %2697 = vmatprep.mubr.f32.mxu0 0.0
      %v2698 = vand.u32 %v489, 4294901760
      %2699 = vmatmul.mubr.f32.gmra.mrb[0].mxu0 %v2698
      %v2700 = vpop.f32.mrb[0].mxu0
      %v2701 = vadd.f32 %v1432, %v2700
      %v2702 = vpop.f32.mrb[0].mxu0
      %v2703 = vadd.f32 %v1434, %v2702
      %2704 = vmatprep.mubr.f32.mxu0 0.0
      %v2705 = vand.u32 %v492, 4294901760
      %2706 = vmatmul.mubr.f32.gmra.mrb[0].mxu0 %v2705
      %v2707 = vpop.f32.mrb[0].mxu0
      %v2708 = vadd.f32 %v1443, %v2707
      %v2709 = vpop.f32.mrb[0].mxu0
      %v2710 = vadd.f32 %v1445, %v2709
      %2711 = vmatprep.mubr.f32.mxu0 0.0
      %v2712 = vand.u32 %v495, 4294901760
      %2713 = vmatmul.mubr.f32.gmra.mrb[0].mxu0 %v2712
      %v2714 = vpop.f32.mrb[0].mxu0
      %v2715 = vadd.f32 %v1454, %v2714
      %v2716 = vpop.f32.mrb[0].mxu0
      %v2717 = vadd.f32 %v1456, %v2716
      %2718 = vmatprep.mubr.f32.mxu0 0.0
      %v2719 = vand.u32 %v498, 4294901760
      %2720 = vmatmul.mubr.f32.gmra.mrb[0].mxu0 %v2719
      %v2721 = vpop.f32.mrb[0].mxu0
      %v2722 = vadd.f32 %v1465, %v2721
      %v2723 = vpop.f32.mrb[0].mxu0
      %v2724 = vadd.f32 %v1467, %v2723
      %2725 = vmatprep.mubr.f32.mxu0 0.0
      %v2726 = vand.u32 %v501, 4294901760
      %2727 = vmatmul.mubr.f32.gmra.mrb[0].mxu0 %v2726
      %v2728 = vpop.f32.mrb[0].mxu0
      %v2729 = vadd.f32 %v1476, %v2728
      %v2730 = vpop.f32.mrb[0].mxu0
      %v2731 = vadd.f32 %v1478, %v2730
      %2732 = vmatprep.mubr.f32.mxu0 0.0
      %v2733 = vand.u32 %v504, 4294901760
      %2734 = vmatmul.mubr.f32.gmra.mrb[0].mxu0 %v2733
      %v2735 = vpop.f32.mrb[0].mxu0
      %v2736 = vadd.f32 %v1487, %v2735
      %v2737 = vpop.f32.mrb[0].mxu0
      %v2738 = vadd.f32 %v1489, %v2737
      %2739 = vmatprep.mubr.f32.mxu0 0.0
      %v2740 = vand.u32 %v507, 4294901760
      %2741 = vmatmul.mubr.f32.gmra.mrb[0].mxu0 %v2740
      %v2742 = vpop.f32.mrb[0].mxu0
      %v2743 = vadd.f32 %v1498, %v2742
      %v2744 = vpop.f32.mrb[0].mxu0
      %v2745 = vadd.f32 %v1500, %v2744
      %2746 = vmatprep.mubr.f32.mxu0 0.0
      %v2747 = vand.u32 %v510, 4294901760
      %2748 = vmatmul.mubr.f32.gmra.mrb[0].mxu0 %v2747
      %v2749 = vpop.f32.mrb[0].mxu0
      %v2750 = vadd.f32 %v1509, %v2749
      %v2751 = vpop.f32.mrb[0].mxu0
      %v2752 = vadd.f32 %v1511, %v2751
      %2753 = vmatprep.mubr.f32.mxu0 0.0
      %v2754 = vand.u32 %v513, 4294901760
      %2755 = vmatmul.mubr.f32.gmra.mrb[0].mxu0 %v2754
      %v2756 = vpop.f32.mrb[0].mxu0
      %v2757 = vadd.f32 %v1520, %v2756
      %v2758 = vpop.f32.mrb[0].mxu0
      %v2759 = vadd.f32 %v1522, %v2758
      %2760 = vmatprep.mubr.f32.mxu0 0.0
      %v2761 = vand.u32 %v516, 4294901760
      %2762 = vmatmul.mubr.f32.gmra.mrb[0].mxu0 %v2761
      %v2763 = vpop.f32.mrb[0].mxu0
      %v2764 = vadd.f32 %v1531, %v2763
      %v2765 = vpop.f32.mrb[0].mxu0
      %v2766 = vadd.f32 %v1533, %v2765
      %2767 = vmatprep.mubr.f32.mxu0 0.0
      %v2768 = vand.u32 %v519, 4294901760
      %2769 = vmatmul.mubr.f32.gmra.mrb[0].mxu0 %v2768
      %v2770 = vpop.f32.mrb[0].mxu0
      %v2771 = vadd.f32 %v1542, %v2770
      %v2772 = vpop.f32.mrb[0].mxu0
      %v2773 = vadd.f32 %v1544, %v2772
      %2774 = vmatprep.mubr.f32.mxu0 0.0
      %v2775 = vand.u32 %v522, 4294901760
      %2776 = vmatmul.mubr.f32.gmra.mrb[0].mxu0 %v2775
      %v2777 = vpop.f32.mrb[0].mxu0
      %v2778 = vadd.f32 %v1553, %v2777
      %v2779 = vpop.f32.mrb[0].mxu0
      %v2780 = vadd.f32 %v1555, %v2779
      %2781 = vmatprep.mubr.f32.mxu0 0.0
      %v2782 = vand.u32 %v525, 4294901760
      %2783 = vmatmul.mubr.f32.gmra.mrb[0].mxu0 %v2782
      %v2784 = vpop.f32.mrb[0].mxu0
      %v2785 = vadd.f32 %v1564, %v2784
      %v2786 = vpop.f32.mrb[0].mxu0
      %v2787 = vadd.f32 %v1566, %v2786
      %2788 = vmatprep.mubr.f32.mxu0 0.0
      %v2789 = vand.u32 %v528, 4294901760
      %2790 = vmatmul.mubr.f32.gmra.mrb[0].mxu0 %v2789
      %v2791 = vpop.f32.mrb[0].mxu0
      %v2792 = vadd.f32 %v1575, %v2791
      %v2793 = vpop.f32.mrb[0].mxu0
      %v2794 = vadd.f32 %v1577, %v2793
      %2795 = vmatprep.mubr.f32.mxu0 0.0
      %v2796 = vand.u32 %v531, 4294901760
      %2797 = vmatmul.mubr.f32.gmra.mrb[0].mxu0 %v2796
      %v2798 = vpop.f32.mrb[0].mxu0
      %v2799 = vadd.f32 %v1586, %v2798
      %v2800 = vpop.f32.mrb[0].mxu0
      %v2801 = vadd.f32 %v1588, %v2800
      %2802 = vmatprep.mubr.f32.mxu0 0.0
      %v2803 = vand.u32 %v534, 4294901760
      %2804 = vmatmul.mubr.f32.gmra.mrb[0].mxu0 %v2803
      %v2805 = vpop.f32.mrb[0].mxu0
      %v2806 = vadd.f32 %v1597, %v2805
      %v2807 = vpop.f32.mrb[0].mxu0
      %v2808 = vadd.f32 %v1599, %v2807
      %2809 = vmatprep.mubr.f32.mxu0 0.0
      %v2810 = vand.u32 %v537, 4294901760
      %2811 = vmatmul.mubr.f32.gmra.mrb[0].mxu0 %v2810
      %v2812 = vpop.f32.mrb[0].mxu0
      %v2813 = vadd.f32 %v1608, %v2812
      %v2814 = vpop.f32.mrb[0].mxu0
      %v2815 = vadd.f32 %v1610, %v2814
      %2816 = vmatprep.mubr.f32.mxu0 0.0
      %v2817 = vand.u32 %v540, 4294901760
      %2818 = vmatmul.mubr.f32.gmra.mrb[0].mxu0 %v2817
      %v2819 = vpop.f32.mrb[0].mxu0
      %v2820 = vadd.f32 %v1619, %v2819
      %v2821 = vpop.f32.mrb[0].mxu0
      %v2822 = vadd.f32 %v1621, %v2821
      %2823 = vmatprep.mubr.f32.mxu0 0.0
      %v2824 = vand.u32 %v543, 4294901760
      %2825 = vmatmul.mubr.f32.gmra.mrb[0].mxu0 %v2824
      %v2826 = vpop.f32.mrb[0].mxu0
      %v2827 = vadd.f32 %v1630, %v2826
      %v2828 = vpop.f32.mrb[0].mxu0
      %v2829 = vadd.f32 %v1632, %v2828
      %2830 = vmatprep.mubr.f32.mxu0 0.0
      %v2831 = vand.u32 %v546, 4294901760
      %2832 = vmatmul.mubr.f32.gmra.mrb[0].mxu0 %v2831
      %v2833 = vpop.f32.mrb[0].mxu0
      %v2834 = vadd.f32 %v1641, %v2833
      %v2835 = vpop.f32.mrb[0].mxu0
      %v2836 = vadd.f32 %v1643, %v2835
      %2837 = vmatprep.mubr.f32.mxu0 0.0
      %v2838 = vand.u32 %v549, 4294901760
      %2839 = vmatmul.mubr.f32.gmra.mrb[0].mxu0 %v2838
      %v2840 = vpop.f32.mrb[0].mxu0
      %v2841 = vadd.f32 %v1652, %v2840
      %v2842 = vpop.f32.mrb[0].mxu0
      %v2843 = vadd.f32 %v1654, %v2842
      %2844 = vmatprep.mubr.f32.mxu0 0.0
      %v2845 = vand.u32 %v552, 4294901760
      %2846 = vmatmul.mubr.f32.gmra.mrb[0].mxu0 %v2845
      %v2847 = vpop.f32.mrb[0].mxu0
      %v2848 = vadd.f32 %v1663, %v2847
      %v2849 = vpop.f32.mrb[0].mxu0
      %v2850 = vadd.f32 %v1665, %v2849
      %2851 = vmatprep.mubr.f32.mxu0 0.0
      %v2852 = vand.u32 %v555, 4294901760
      %2853 = vmatmul.mubr.f32.gmra.mrb[0].mxu0 %v2852
      %v2854 = vpop.f32.mrb[0].mxu0
      %v2855 = vadd.f32 %v1674, %v2854
      %v2856 = vpop.f32.mrb[0].mxu0
      %v2857 = vadd.f32 %v1676, %v2856
      %2858 = vmatprep.mubr.f32.mxu0 0.0
      %v2859 = vand.u32 %v558, 4294901760
      %2860 = vmatmul.mubr.f32.gmra.mrb[0].mxu0 %v2859
      %v2861 = vpop.f32.mrb[0].mxu0
      %v2862 = vadd.f32 %v1685, %v2861
      %v2863 = vpop.f32.mrb[0].mxu0
      %v2864 = vadd.f32 %v1687, %v2863
      %2865 = vmatprep.mubr.f32.mxu0 0.0
      %v2866 = vand.u32 %v561, 4294901760
      %2867 = vmatmul.mubr.f32.gmra.mrb[0].mxu0 %v2866
      %v2868 = vpop.f32.mrb[0].mxu0
      %v2869 = vadd.f32 %v1696, %v2868
      %v2870 = vpop.f32.mrb[0].mxu0
      %v2871 = vadd.f32 %v1698, %v2870
      %2872 = vmatprep.mubr.f32.mxu0 0.0
      %v2873 = vand.u32 %v564, 4294901760
      %2874 = vmatmul.mubr.f32.gmra.mrb[0].mxu0 %v2873
      %v2875 = vpop.f32.mrb[0].mxu0
      %v2876 = vadd.f32 %v1707, %v2875
      %v2877 = vpop.f32.mrb[0].mxu0
      %v2878 = vadd.f32 %v1709, %v2877
      %2879 = vmatprep.mubr.f32.mxu0 0.0
      %v2880 = vand.u32 %v567, 4294901760
      %2881 = vmatmul.mubr.f32.gmra.mrb[0].mxu0 %v2880
      %v2882 = vpop.f32.mrb[0].mxu0
      %v2883 = vadd.f32 %v1718, %v2882
      %v2884 = vpop.f32.mrb[0].mxu0
      %v2885 = vadd.f32 %v1720, %v2884
      %2886 = vmatprep.mubr.f32.mxu0 0.0
      %v2887 = vand.u32 %v570, 4294901760
      %2888 = vmatmul.mubr.f32.gmra.mrb[0].mxu0 %v2887
      %v2889 = vpop.f32.mrb[0].mxu0
      %v2890 = vadd.f32 %v1729, %v2889
      %v2891 = vpop.f32.mrb[0].mxu0
      %v2892 = vadd.f32 %v1731, %v2891
      %2893 = vmatprep.mubr.f32.mxu0 0.0
      %v2894 = vand.u32 %v573, 4294901760
      %2895 = vmatmul.mubr.f32.gmra.mrb[0].mxu0 %v2894
      %v2896 = vpop.f32.mrb[0].mxu0
      %v2897 = vadd.f32 %v1740, %v2896
      %v2898 = vpop.f32.mrb[0].mxu0
      %v2899 = vadd.f32 %v1742, %v2898
      %2900 = vmatprep.mubr.f32.mxu0 0.0
      %v2901 = vand.u32 %v576, 4294901760
      %2902 = vmatmul.mubr.f32.gmra.mrb[0].mxu0 %v2901
      %v2903 = vpop.f32.mrb[0].mxu0
      %v2904 = vadd.f32 %v1751, %v2903
      %v2905 = vpop.f32.mrb[0].mxu0
      %v2906 = vadd.f32 %v1753, %v2905
      %2907 = vmatprep.mubr.f32.mxu0 0.0
      %v2908 = vand.u32 %v579, 4294901760
      %2909 = vmatmul.mubr.f32.gmra.mrb[0].mxu0 %v2908
      %v2910 = vpop.f32.mrb[0].mxu0
      %v2911 = vadd.f32 %v1762, %v2910
      %v2912 = vpop.f32.mrb[0].mxu0
      %v2913 = vadd.f32 %v1764, %v2912
      %2914 = vmatprep.mubr.f32.mxu0 0.0
      %v2915 = vand.u32 %v582, 4294901760
      %2916 = vmatmul.mubr.f32.gmra.mrb[0].mxu0 %v2915
      %v2917 = vpop.f32.mrb[0].mxu0
      %v2918 = vadd.f32 %v1773, %v2917
      %v2919 = vpop.f32.mrb[0].mxu0
      %v2920 = vadd.f32 %v1775, %v2919
      %2921 = vmatprep.mubr.f32.mxu0 0.0
      %v2922 = vand.u32 %v585, 4294901760
      %2923 = vmatmul.mubr.f32.gmra.mrb[0].mxu0 %v2922
      %v2924 = vpop.f32.mrb[0].mxu0
      %v2925 = vadd.f32 %v1784, %v2924
      %v2926 = vpop.f32.mrb[0].mxu0
      %v2927 = vadd.f32 %v1786, %v2926
      %2928 = vmatprep.mubr.f32.mxu0 0.0
      %v2929 = vand.u32 %v588, 4294901760
      %2930 = vmatmul.mubr.f32.gmra.mrb[0].mxu0 %v2929
      %v2931 = vpop.f32.mrb[0].mxu0
      %v2932 = vadd.f32 %v1795, %v2931
      %v2933 = vpop.f32.mrb[0].mxu0
      %v2934 = vadd.f32 %v1797, %v2933
      %2935 = vmatprep.mubr.f32.mxu0 0.0
      %v2936 = vand.u32 %v591, 4294901760
      %2937 = vmatmul.mubr.f32.gmra.mrb[0].mxu0 %v2936
      %v2938 = vpop.f32.mrb[0].mxu0
      %v2939 = vadd.f32 %v1806, %v2938
      %v2940 = vpop.f32.mrb[0].mxu0
      %v2941 = vadd.f32 %v1808, %v2940
      %2942 = vmatprep.mubr.f32.mxu0 0.0
      %v2943 = vand.u32 %v594, 4294901760
      %2944 = vmatmul.mubr.f32.gmra.mrb[0].mxu0 %v2943
      %v2945 = vpop.f32.mrb[0].mxu0
      %v2946 = vadd.f32 %v1817, %v2945
      %v2947 = vpop.f32.mrb[0].mxu0
      %v2948 = vadd.f32 %v1819, %v2947
      %2949 = vmatprep.mubr.f32.mxu0 0.0
      %v2950 = vand.u32 %v597, 4294901760
      %2951 = vmatmul.mubr.f32.gmra.mrb[0].mxu0 %v2950
      %v2952 = vpop.f32.mrb[0].mxu0
      %v2953 = vadd.f32 %v1828, %v2952
      %v2954 = vpop.f32.mrb[0].mxu0
      %v2955 = vadd.f32 %v1830, %v2954
      %2956 = vmatprep.mubr.f32.mxu0 0.0
      %v2957 = vand.u32 %v600, 4294901760
      %2958 = vmatmul.mubr.f32.gmra.mrb[0].mxu0 %v2957
      %v2959 = vpop.f32.mrb[0].mxu0
      %v2960 = vadd.f32 %v1839, %v2959
      %v2961 = vpop.f32.mrb[0].mxu0
      %v2962 = vadd.f32 %v1841, %v2961
      %2963 = vmatprep.mubr.f32.mxu0 0.0
      %v2964 = vand.u32 %v603, 4294901760
      %2965 = vmatmul.mubr.f32.gmra.mrb[0].mxu0 %v2964
      %v2966 = vpop.f32.mrb[0].mxu0
      %v2967 = vadd.f32 %v1850, %v2966
      %v2968 = vpop.f32.mrb[0].mxu0
      %v2969 = vadd.f32 %v1852, %v2968
      %2970 = vmatprep.mubr.f32.mxu0 0.0
      %v2971 = vand.u32 %v606, 4294901760
      %2972 = vmatmul.mubr.f32.gmra.mrb[0].mxu0 %v2971
      %v2973 = vpop.f32.mrb[0].mxu0
      %v2974 = vadd.f32 %v1861, %v2973
      %v2975 = vpop.f32.mrb[0].mxu0
      %v2976 = vadd.f32 %v1863, %v2975
      %2977 = vmatprep.mubr.f32.mxu0 0.0
      %v2978 = vand.u32 %v609, 4294901760
      %2979 = vmatmul.mubr.f32.gmra.mrb[0].mxu0 %v2978
      %v2980 = vpop.f32.mrb[0].mxu0
      %v2981 = vadd.f32 %v1872, %v2980
      %v2982 = vpop.f32.mrb[0].mxu0
      %v2983 = vadd.f32 %v1874, %v2982
      %2984 = vmatprep.mubr.f32.mxu0 0.0
      %v2985 = vand.u32 %v612, 4294901760
      %2986 = vmatmul.mubr.f32.gmra.mrb[0].mxu0 %v2985
      %v2987 = vpop.f32.mrb[0].mxu0
      %v2988 = vadd.f32 %v1883, %v2987
      %v2989 = vpop.f32.mrb[0].mxu0
      %v2990 = vadd.f32 %v1885, %v2989
      %2991 = vmatprep.mubr.f32.mxu0 0.0
      %v2992 = vand.u32 %v615, 4294901760
      %2993 = vmatmul.mubr.f32.gmra.mrb[0].mxu0 %v2992
      %v2994 = vpop.f32.mrb[0].mxu0
      %v2995 = vadd.f32 %v1894, %v2994
      %v2996 = vpop.f32.mrb[0].mxu0
      %v2997 = vadd.f32 %v1896, %v2996
      %2998 = vmatprep.mubr.f32.mxu0 0.0
      %v2999 = vand.u32 %v618, 4294901760
      %3000 = vmatmul.mubr.f32.gmra.mrb[0].mxu0 %v2999
      %v3001 = vpop.f32.mrb[0].mxu0
      %v3002 = vadd.f32 %v1905, %v3001
      %v3003 = vpop.f32.mrb[0].mxu0
      %v3004 = vadd.f32 %v1907, %v3003
      %3005 = vmatprep.mubr.f32.mxu0 0.0
      %v3006 = vand.u32 %v621, 4294901760
      %3007 = vmatmul.mubr.f32.gmra.mrb[0].mxu0 %v3006
      %v3008 = vpop.f32.mrb[0].mxu0
      %v3009 = vadd.f32 %v1916, %v3008
      %v3010 = vpop.f32.mrb[0].mxu0
      %v3011 = vadd.f32 %v1918, %v3010
      %3012 = vmatprep.mubr.f32.mxu0 0.0
      %v3013 = vand.u32 %v624, 4294901760
      %3014 = vmatmul.mubr.f32.gmra.mrb[0].mxu0 %v3013
      %v3015 = vpop.f32.mrb[0].mxu0
      %v3016 = vadd.f32 %v1927, %v3015
      %v3017 = vpop.f32.mrb[0].mxu0
      %v3018 = vadd.f32 %v1929, %v3017
      %3019 = vmatprep.mubr.f32.mxu0 0.0
      %v3020 = vand.u32 %v627, 4294901760
      %3021 = vmatmul.mubr.f32.gmra.mrb[0].mxu0 %v3020
      %v3022 = vpop.f32.mrb[0].mxu0
      %v3023 = vadd.f32 %v1938, %v3022
      %v3024 = vpop.f32.mrb[0].mxu0
      %v3025 = vadd.f32 %v1940, %v3024
      %3026 = vmatprep.mubr.f32.mxu0 0.0
      %v3027 = vand.u32 %v630, 4294901760
      %3028 = vmatmul.mubr.f32.gmra.mrb[0].mxu0 %v3027
      %v3029 = vpop.f32.mrb[0].mxu0
      %v3030 = vadd.f32 %v1949, %v3029
      %v3031 = vpop.f32.mrb[0].mxu0
      %v3032 = vadd.f32 %v1951, %v3031
      %3033 = vmatprep.mubr.f32.mxu0 0.0
      %v3034 = vand.u32 %v633, 4294901760
      %3035 = vmatmul.mubr.f32.gmra.mrb[0].mxu0 %v3034
      %v3036 = vpop.f32.mrb[0].mxu0
      %v3037 = vadd.f32 %v1960, %v3036
      %v3038 = vpop.f32.mrb[0].mxu0
      %v3039 = vadd.f32 %v1962, %v3038
      %3040 = vmatprep.mubr.f32.mxu0 0.0
      %v3041 = vand.u32 %v636, 4294901760
      %3042 = vmatmul.mubr.f32.gmra.mrb[0].mxu0 %v3041
      %v3043 = vpop.f32.mrb[0].mxu0
      %v3044 = vadd.f32 %v1971, %v3043
      %v3045 = vpop.f32.mrb[0].mxu0
      %v3046 = vadd.f32 %v1973, %v3045
      %3047 = vmatprep.mubr.f32.mxu0 0.0
      %v3048 = vand.u32 %v639, 4294901760
      %3049 = vmatmul.mubr.f32.gmra.mrb[0].mxu0 %v3048
      %v3050 = vpop.f32.mrb[0].mxu0
      %v3051 = vadd.f32 %v1982, %v3050
      %v3052 = vpop.f32.mrb[0].mxu0
      %v3053 = vadd.f32 %v1984, %v3052
      %3054 = vmatprep.mubr.f32.mxu0 0.0
      %v3055 = vand.u32 %v642, 4294901760
      %3056 = vmatmul.mubr.f32.gmra.mrb[0].mxu0 %v3055
      %v3057 = vpop.f32.mrb[0].mxu0
      %v3058 = vadd.f32 %v1993, %v3057
      %v3059 = vpop.f32.mrb[0].mxu0
      %v3060 = vadd.f32 %v1995, %v3059
      %3061 = vmatprep.mubr.f32.mxu0 0.0
      %v3062 = vand.u32 %v645, 4294901760
      %3063 = vmatmul.mubr.f32.gmra.mrb[0].mxu0 %v3062
      %v3064 = vpop.f32.mrb[0].mxu0
      %v3065 = vadd.f32 %v2004, %v3064
      %v3066 = vpop.f32.mrb[0].mxu0
      %v3067 = vadd.f32 %v2006, %v3066
      %3068 = vmatprep.mubr.f32.mxu0 0.0
      %v3069 = vand.u32 %v648, 4294901760
      %3070 = vmatmul.mubr.f32.gmra.mrb[0].mxu0 %v3069
      %v3071 = vpop.f32.mrb[0].mxu0
      %v3072 = vadd.f32 %v2015, %v3071
      %v3073 = vpop.f32.mrb[0].mxu0
      %v3074 = vadd.f32 %v2017, %v3073
      %3075 = vmatprep.mubr.f32.mxu0 0.0
      %v3076 = vand.u32 %v651, 4294901760
      %3077 = vmatmul.mubr.f32.gmra.mrb[0].mxu0 %v3076
      %v3078 = vpop.f32.mrb[0].mxu0
      %v3079 = vadd.f32 %v2026, %v3078
      %v3080 = vpop.f32.mrb[0].mxu0
      %v3081 = vadd.f32 %v2028, %v3080
      %3082 = vmatprep.mubr.f32.mxu0 0.0
      %v3083 = vand.u32 %v654, 4294901760
      %3084 = vmatmul.mubr.f32.gmra.mrb[0].mxu0 %v3083
      %v3085 = vpop.f32.mrb[0].mxu0
      %v3086 = vadd.f32 %v2037, %v3085
      %v3087 = vpop.f32.mrb[0].mxu0
      %v3088 = vadd.f32 %v2039, %v3087
      %3089 = vmatprep.mubr.f32.mxu0 0.0
      %v3090 = vand.u32 %v657, 4294901760
      %3091 = vmatmul.mubr.f32.gmra.mrb[0].mxu0 %v3090
      %v3092 = vpop.f32.mrb[0].mxu0
      %v3093 = vadd.f32 %v2048, %v3092
      %v3094 = vpop.f32.mrb[0].mxu0
      %v3095 = vadd.f32 %v2050, %v3094
      %3096 = vmatprep.mubr.f32.mxu0 0.0
      %v3097 = vand.u32 %v660, 4294901760
      %3098 = vmatmul.mubr.f32.gmra.mrb[0].mxu0 %v3097
      %v3099 = vpop.f32.mrb[0].mxu0
      %v3100 = vadd.f32 %v2059, %v3099
      %v3101 = vpop.f32.mrb[0].mxu0
      %v3102 = vadd.f32 %v2061, %v3101
      %3103 = vmatprep.mubr.f32.mxu0 0.0
      %v3104 = vand.u32 %v663, 4294901760
      %3105 = vmatmul.mubr.f32.gmra.mrb[0].mxu0 %v3104
      %v3106 = vpop.f32.mrb[0].mxu0
      %v3107 = vadd.f32 %v2070, %v3106
      %v3108 = vpop.f32.mrb[0].mxu0
      %v3109 = vadd.f32 %v2072, %v3108
      %3110 = vmatprep.mubr.f32.mxu0 0.0
      %v3111 = vand.u32 %v666, 4294901760
      %3112 = vmatmul.mubr.f32.gmra.mrb[0].mxu0 %v3111
      %v3113 = vpop.f32.mrb[0].mxu0
      %v3114 = vadd.f32 %v2081, %v3113
      %v3115 = vpop.f32.mrb[0].mxu0
      %v3116 = vadd.f32 %v2083, %v3115
      %3117 = vmatprep.mubr.f32.mxu0 0.0
      %v3118 = vand.u32 %v669, 4294901760
      %3119 = vmatmul.mubr.f32.gmra.mrb[0].mxu0 %v3118
      %v3120 = vpop.f32.mrb[0].mxu0
      %v3121 = vadd.f32 %v2092, %v3120
      %v3122 = vpop.f32.mrb[0].mxu0
      %v3123 = vadd.f32 %v2094, %v3122
      %3124 = vmatprep.mubr.f32.mxu0 0.0
      %v3125 = vand.u32 %v672, 4294901760
      %3126 = vmatmul.mubr.f32.gmra.mrb[0].mxu0 %v3125
      %v3127 = vpop.f32.mrb[0].mxu0
      %v3128 = vadd.f32 %v2103, %v3127
      %v3129 = vpop.f32.mrb[0].mxu0
      %v3130 = vadd.f32 %v2105, %v3129
      %3131 = vmatprep.mubr.f32.mxu0 0.0
      %v3132 = vand.u32 %v675, 4294901760
      %3133 = vmatmul.mubr.f32.gmra.mrb[0].mxu0 %v3132
      %v3134 = vpop.f32.mrb[0].mxu0
      %v3135 = vadd.f32 %v2114, %v3134
      %v3136 = vpop.f32.mrb[0].mxu0
      %v3137 = vadd.f32 %v2116, %v3136
      %3138 = vmatprep.mubr.f32.mxu0 0.0
      %v3139 = vand.u32 %v678, 4294901760
      %3140 = vmatmul.mubr.f32.gmra.mrb[0].mxu0 %v3139
      %v3141 = vpop.f32.mrb[0].mxu0
      %v3142 = vadd.f32 %v2125, %v3141
      %v3143 = vpop.f32.mrb[0].mxu0
      %v3144 = vadd.f32 %v2127, %v3143
      %3145 = vmatprep.mubr.f32.mxu0 0.0
      %v3146 = vand.u32 %v681, 4294901760
      %3147 = vmatmul.mubr.f32.gmra.mrb[0].mxu0 %v3146
      %v3148 = vpop.f32.mrb[0].mxu0
      %v3149 = vadd.f32 %v2136, %v3148
      %v3150 = vpop.f32.mrb[0].mxu0
      %v3151 = vadd.f32 %v2138, %v3150
      %3152 = vmatprep.mubr.f32.mxu0 0.0
      %v3153 = vand.u32 %v684, 4294901760
      %3154 = vmatmul.mubr.f32.gmra.mrb[0].mxu0 %v3153
      %v3155 = vpop.f32.mrb[0].mxu0
      %v3156 = vadd.f32 %v2147, %v3155
      %v3157 = vpop.f32.mrb[0].mxu0
      %v3158 = vadd.f32 %v2149, %v3157
      %3159 = vmatprep.mubr.f32.mxu0 0.0
      %v3160 = vand.u32 %v687, 4294901760
      %3161 = vmatmul.mubr.f32.gmra.mrb[0].mxu0 %v3160
      %v3162 = vpop.f32.mrb[0].mxu0
      %v3163 = vadd.f32 %v2158, %v3162
      %v3164 = vpop.f32.mrb[0].mxu0
      %v3165 = vadd.f32 %v2160, %v3164
      %3166 = vmatprep.mubr.f32.mxu0 0.0
      %v3167 = vand.u32 %v690, 4294901760
      %3168 = vmatmul.mubr.f32.gmra.mrb[0].mxu0 %v3167
      %v3169 = vpop.f32.mrb[0].mxu0
      %v3170 = vadd.f32 %v2169, %v3169
      %v3171 = vpop.f32.mrb[0].mxu0
      %v3172 = vadd.f32 %v2171, %v3171
      %3173 = vdwg.mxu0
      %v3174 = vand.u32 %v300, 4294901760
      %v3175 = vsub.f32 %v300, %v3174
      %3176 = vmatprep.subr.mxu0 %v3175
      %v3177 = vand.u32 %v299, 4294901760
      %v3178 = vsub.f32 %v299, %v3177
      %3179 = vmatpush1.msra.mxu0 %v3178
      %v3180 = vand.u32 %v302, 4294901760
      %v3181 = vsub.f32 %v302, %v3180
      %3182 = vmatprep.subr.mxu0 %v3181
      %v3183 = vand.u32 %v301, 4294901760
      %v3184 = vsub.f32 %v301, %v3183
      %3185 = vmatpush1.msra.mxu0 %v3184
      %v3186 = vand.u32 %v304, 4294901760
      %v3187 = vsub.f32 %v304, %v3186
      %3188 = vmatprep.subr.mxu0 %v3187
      %v3189 = vand.u32 %v303, 4294901760
      %v3190 = vsub.f32 %v303, %v3189
      %3191 = vmatpush1.msra.mxu0 %v3190
      %v3192 = vand.u32 %v306, 4294901760
      %v3193 = vsub.f32 %v306, %v3192
      %3194 = vmatprep.subr.mxu0 %v3193
      %v3195 = vand.u32 %v305, 4294901760
      %v3196 = vsub.f32 %v305, %v3195
      %3197 = vmatpush1.msra.mxu0 %v3196
      %3198 = vmatprep.subr.mxu0 0.0
      %3199 = vmatpush1.msra.mxu0 0.0
      %3200 = vmatprep.subr.mxu0 0.0
      %3201 = vmatpush1.msra.mxu0 0.0
      %3202 = vmatprep.subr.mxu0 0.0
      %3203 = vmatpush1.msra.mxu0 0.0
      %3204 = vmatprep.subr.mxu0 0.0
      %3205 = vmatpush1.msra.mxu0 0.0
      %3206 = vmatprep.subr.mxu0 0.0
      %3207 = vmatpush1.msra.mxu0 0.0
      %3208 = vmatprep.subr.mxu0 0.0
      %3209 = vmatpush1.msra.mxu0 0.0
      %3210 = vmatprep.subr.mxu0 0.0
      %3211 = vmatpush1.msra.mxu0 0.0
      %3212 = vmatprep.subr.mxu0 0.0
      %3213 = vmatpush1.msra.mxu0 0.0
      %3214 = vmatprep.subr.mxu0 0.0
      %3215 = vmatpush1.msra.mxu0 0.0
      %3216 = vmatprep.subr.mxu0 0.0
      %3217 = vmatpush1.msra.mxu0 0.0
      %3218 = vmatprep.subr.mxu0 0.0
      %3219 = vmatpush1.msra.mxu0 0.0
      %3220 = vmatprep.subr.mxu0 0.0
      %3221 = vmatpush1.msra.mxu0 0.0
      %3222 = vmatprep.subr.mxu0 0.0
      %3223 = vmatpush1.msra.mxu0 0.0
      %3224 = vmatprep.subr.mxu0 0.0
      %3225 = vmatpush1.msra.mxu0 0.0
      %3226 = vmatprep.subr.mxu0 0.0
      %3227 = vmatpush1.msra.mxu0 0.0
      %3228 = vmatprep.subr.mxu0 0.0
      %3229 = vmatpush1.msra.mxu0 0.0
      %3230 = vmatprep.subr.mxu0 0.0
      %3231 = vmatpush1.msra.mxu0 0.0
      %3232 = vmatprep.subr.mxu0 0.0
      %3233 = vmatpush1.msra.mxu0 0.0
      %3234 = vmatprep.subr.mxu0 0.0
      %3235 = vmatpush1.msra.mxu0 0.0
      %3236 = vmatprep.subr.mxu0 0.0
      %3237 = vmatpush1.msra.mxu0 0.0
      %3238 = vmatprep.subr.mxu0 0.0
      %3239 = vmatpush1.msra.mxu0 0.0
      %3240 = vmatprep.subr.mxu0 0.0
      %3241 = vmatpush1.msra.mxu0 0.0
      %3242 = vmatprep.subr.mxu0 0.0
      %3243 = vmatpush1.msra.mxu0 0.0
      %3244 = vmatprep.subr.mxu0 0.0
      %3245 = vmatpush1.msra.mxu0 0.0
      %3246 = vmatprep.subr.mxu0 0.0
      %3247 = vmatpush1.msra.mxu0 0.0
      %3248 = vmatprep.subr.mxu0 0.0
      %3249 = vmatpush1.msra.mxu0 0.0
      %3250 = vmatprep.subr.mxu0 0.0
      %3251 = vmatpush1.msra.mxu0 0.0
      %3252 = vmatprep.subr.mxu0 0.0
      %3253 = vmatpush1.msra.mxu0 0.0
      %3254 = vmatprep.mubr.f32.mxu0 0.0
      %v3255 = vand.u32 %v309, 4294901760
      %v3256 = vsub.f32 %v309, %v3255
      %3257 = vmatmul.mubr.f32.gmra.mrb[0].mxu0 %v3256
      %v3258 = vpop.f32.mrb[0].mxu0
      %v3259 = vadd.f32 %v2281, %v3258
      %v3260 = vpop.f32.mrb[0].mxu0
      %v3261 = vadd.f32 %v2283, %v3260
      %3262 = vmatprep.mubr.f32.mxu0 0.0
      %v3263 = vand.u32 %v312, 4294901760
      %v3264 = vsub.f32 %v312, %v3263
      %3265 = vmatmul.mubr.f32.gmra.mrb[0].mxu0 %v3264
      %v3266 = vpop.f32.mrb[0].mxu0
      %v3267 = vadd.f32 %v2288, %v3266
      %v3268 = vpop.f32.mrb[0].mxu0
      %v3269 = vadd.f32 %v2290, %v3268
      %3270 = vmatprep.mubr.f32.mxu0 0.0
      %v3271 = vand.u32 %v315, 4294901760
      %v3272 = vsub.f32 %v315, %v3271
      %3273 = vmatmul.mubr.f32.gmra.mrb[0].mxu0 %v3272
      %v3274 = vpop.f32.mrb[0].mxu0
      %v3275 = vadd.f32 %v2295, %v3274
      %v3276 = vpop.f32.mrb[0].mxu0
      %v3277 = vadd.f32 %v2297, %v3276
      %3278 = vmatprep.mubr.f32.mxu0 0.0
      %v3279 = vand.u32 %v318, 4294901760
      %v3280 = vsub.f32 %v318, %v3279
      %3281 = vmatmul.mubr.f32.gmra.mrb[0].mxu0 %v3280
      %v3282 = vpop.f32.mrb[0].mxu0
      %v3283 = vadd.f32 %v2302, %v3282
      %v3284 = vpop.f32.mrb[0].mxu0
      %v3285 = vadd.f32 %v2304, %v3284
      %3286 = vmatprep.mubr.f32.mxu0 0.0
      %v3287 = vand.u32 %v321, 4294901760
      %v3288 = vsub.f32 %v321, %v3287
      %3289 = vmatmul.mubr.f32.gmra.mrb[0].mxu0 %v3288
      %v3290 = vpop.f32.mrb[0].mxu0
      %v3291 = vadd.f32 %v2309, %v3290
      %v3292 = vpop.f32.mrb[0].mxu0
      %v3293 = vadd.f32 %v2311, %v3292
      %3294 = vmatprep.mubr.f32.mxu0 0.0
      %v3295 = vand.u32 %v324, 4294901760
      %v3296 = vsub.f32 %v324, %v3295
      %3297 = vmatmul.mubr.f32.gmra.mrb[0].mxu0 %v3296
      %v3298 = vpop.f32.mrb[0].mxu0
      %v3299 = vadd.f32 %v2316, %v3298
      %v3300 = vpop.f32.mrb[0].mxu0
      %v3301 = vadd.f32 %v2318, %v3300
      %3302 = vmatprep.mubr.f32.mxu0 0.0
      %v3303 = vand.u32 %v327, 4294901760
      %v3304 = vsub.f32 %v327, %v3303
      %3305 = vmatmul.mubr.f32.gmra.mrb[0].mxu0 %v3304
      %v3306 = vpop.f32.mrb[0].mxu0
      %v3307 = vadd.f32 %v2323, %v3306
      %v3308 = vpop.f32.mrb[0].mxu0
      %v3309 = vadd.f32 %v2325, %v3308
      %3310 = vmatprep.mubr.f32.mxu0 0.0
      %v3311 = vand.u32 %v330, 4294901760
      %v3312 = vsub.f32 %v330, %v3311
      %3313 = vmatmul.mubr.f32.gmra.mrb[0].mxu0 %v3312
      %v3314 = vpop.f32.mrb[0].mxu0
      %v3315 = vadd.f32 %v2330, %v3314
      %v3316 = vpop.f32.mrb[0].mxu0
      %v3317 = vadd.f32 %v2332, %v3316
      %3318 = vmatprep.mubr.f32.mxu0 0.0
      %v3319 = vand.u32 %v333, 4294901760
      %v3320 = vsub.f32 %v333, %v3319
      %3321 = vmatmul.mubr.f32.gmra.mrb[0].mxu0 %v3320
      %v3322 = vpop.f32.mrb[0].mxu0
      %v3323 = vadd.f32 %v2337, %v3322
      %v3324 = vpop.f32.mrb[0].mxu0
      %v3325 = vadd.f32 %v2339, %v3324
      %3326 = vmatprep.mubr.f32.mxu0 0.0
      %v3327 = vand.u32 %v336, 4294901760
      %v3328 = vsub.f32 %v336, %v3327
      %3329 = vmatmul.mubr.f32.gmra.mrb[0].mxu0 %v3328
      %v3330 = vpop.f32.mrb[0].mxu0
      %v3331 = vadd.f32 %v2344, %v3330
      %v3332 = vpop.f32.mrb[0].mxu0
      %v3333 = vadd.f32 %v2346, %v3332
      %3334 = vmatprep.mubr.f32.mxu0 0.0
      %v3335 = vand.u32 %v339, 4294901760
      %v3336 = vsub.f32 %v339, %v3335
      %3337 = vmatmul.mubr.f32.gmra.mrb[0].mxu0 %v3336
      %v3338 = vpop.f32.mrb[0].mxu0
      %v3339 = vadd.f32 %v2351, %v3338
      %v3340 = vpop.f32.mrb[0].mxu0
      %v3341 = vadd.f32 %v2353, %v3340
      %3342 = vmatprep.mubr.f32.mxu0 0.0
      %v3343 = vand.u32 %v342, 4294901760
      %v3344 = vsub.f32 %v342, %v3343
      %3345 = vmatmul.mubr.f32.gmra.mrb[0].mxu0 %v3344
      %v3346 = vpop.f32.mrb[0].mxu0
      %v3347 = vadd.f32 %v2358, %v3346
      %v3348 = vpop.f32.mrb[0].mxu0
      %v3349 = vadd.f32 %v2360, %v3348
      %3350 = vmatprep.mubr.f32.mxu0 0.0
      %v3351 = vand.u32 %v345, 4294901760
      %v3352 = vsub.f32 %v345, %v3351
      %3353 = vmatmul.mubr.f32.gmra.mrb[0].mxu0 %v3352
      %v3354 = vpop.f32.mrb[0].mxu0
      %v3355 = vadd.f32 %v2365, %v3354
      %v3356 = vpop.f32.mrb[0].mxu0
      %v3357 = vadd.f32 %v2367, %v3356
      %3358 = vmatprep.mubr.f32.mxu0 0.0
      %v3359 = vand.u32 %v348, 4294901760
      %v3360 = vsub.f32 %v348, %v3359
      %3361 = vmatmul.mubr.f32.gmra.mrb[0].mxu0 %v3360
      %v3362 = vpop.f32.mrb[0].mxu0
      %v3363 = vadd.f32 %v2372, %v3362
      %v3364 = vpop.f32.mrb[0].mxu0
      %v3365 = vadd.f32 %v2374, %v3364
      %3366 = vmatprep.mubr.f32.mxu0 0.0
      %v3367 = vand.u32 %v351, 4294901760
      %v3368 = vsub.f32 %v351, %v3367
      %3369 = vmatmul.mubr.f32.gmra.mrb[0].mxu0 %v3368
      %v3370 = vpop.f32.mrb[0].mxu0
      %v3371 = vadd.f32 %v2379, %v3370
      %v3372 = vpop.f32.mrb[0].mxu0
      %v3373 = vadd.f32 %v2381, %v3372
      %3374 = vmatprep.mubr.f32.mxu0 0.0
      %v3375 = vand.u32 %v354, 4294901760
      %v3376 = vsub.f32 %v354, %v3375
      %3377 = vmatmul.mubr.f32.gmra.mrb[0].mxu0 %v3376
      %v3378 = vpop.f32.mrb[0].mxu0
      %v3379 = vadd.f32 %v2386, %v3378
      %v3380 = vpop.f32.mrb[0].mxu0
      %v3381 = vadd.f32 %v2388, %v3380
      %3382 = vmatprep.mubr.f32.mxu0 0.0
      %v3383 = vand.u32 %v357, 4294901760
      %v3384 = vsub.f32 %v357, %v3383
      %3385 = vmatmul.mubr.f32.gmra.mrb[0].mxu0 %v3384
      %v3386 = vpop.f32.mrb[0].mxu0
      %v3387 = vadd.f32 %v2393, %v3386
      %v3388 = vpop.f32.mrb[0].mxu0
      %v3389 = vadd.f32 %v2395, %v3388
      %3390 = vmatprep.mubr.f32.mxu0 0.0
      %v3391 = vand.u32 %v360, 4294901760
      %v3392 = vsub.f32 %v360, %v3391
      %3393 = vmatmul.mubr.f32.gmra.mrb[0].mxu0 %v3392
      %v3394 = vpop.f32.mrb[0].mxu0
      %v3395 = vadd.f32 %v2400, %v3394
      %v3396 = vpop.f32.mrb[0].mxu0
      %v3397 = vadd.f32 %v2402, %v3396
      %3398 = vmatprep.mubr.f32.mxu0 0.0
      %v3399 = vand.u32 %v363, 4294901760
      %v3400 = vsub.f32 %v363, %v3399
      %3401 = vmatmul.mubr.f32.gmra.mrb[0].mxu0 %v3400
      %v3402 = vpop.f32.mrb[0].mxu0
      %v3403 = vadd.f32 %v2407, %v3402
      %v3404 = vpop.f32.mrb[0].mxu0
      %v3405 = vadd.f32 %v2409, %v3404
      %3406 = vmatprep.mubr.f32.mxu0 0.0
      %v3407 = vand.u32 %v366, 4294901760
      %v3408 = vsub.f32 %v366, %v3407
      %3409 = vmatmul.mubr.f32.gmra.mrb[0].mxu0 %v3408
      %v3410 = vpop.f32.mrb[0].mxu0
      %v3411 = vadd.f32 %v2414, %v3410
      %v3412 = vpop.f32.mrb[0].mxu0
      %v3413 = vadd.f32 %v2416, %v3412
      %3414 = vmatprep.mubr.f32.mxu0 0.0
      %v3415 = vand.u32 %v369, 4294901760
      %v3416 = vsub.f32 %v369, %v3415
      %3417 = vmatmul.mubr.f32.gmra.mrb[0].mxu0 %v3416
      %v3418 = vpop.f32.mrb[0].mxu0
      %v3419 = vadd.f32 %v2421, %v3418
      %v3420 = vpop.f32.mrb[0].mxu0
      %v3421 = vadd.f32 %v2423, %v3420
      %3422 = vmatprep.mubr.f32.mxu0 0.0
      %v3423 = vand.u32 %v372, 4294901760
      %v3424 = vsub.f32 %v372, %v3423
      %3425 = vmatmul.mubr.f32.gmra.mrb[0].mxu0 %v3424
      %v3426 = vpop.f32.mrb[0].mxu0
      %v3427 = vadd.f32 %v2428, %v3426
      %v3428 = vpop.f32.mrb[0].mxu0
      %v3429 = vadd.f32 %v2430, %v3428
      %3430 = vmatprep.mubr.f32.mxu0 0.0
      %v3431 = vand.u32 %v375, 4294901760
      %v3432 = vsub.f32 %v375, %v3431
      %3433 = vmatmul.mubr.f32.gmra.mrb[0].mxu0 %v3432
      %v3434 = vpop.f32.mrb[0].mxu0
      %v3435 = vadd.f32 %v2435, %v3434
      %v3436 = vpop.f32.mrb[0].mxu0
      %v3437 = vadd.f32 %v2437, %v3436
      %3438 = vmatprep.mubr.f32.mxu0 0.0
      %v3439 = vand.u32 %v378, 4294901760
      %v3440 = vsub.f32 %v378, %v3439
      %3441 = vmatmul.mubr.f32.gmra.mrb[0].mxu0 %v3440
      %v3442 = vpop.f32.mrb[0].mxu0
      %v3443 = vadd.f32 %v2442, %v3442
      %v3444 = vpop.f32.mrb[0].mxu0
      %v3445 = vadd.f32 %v2444, %v3444
      %3446 = vmatprep.mubr.f32.mxu0 0.0
      %v3447 = vand.u32 %v381, 4294901760
      %v3448 = vsub.f32 %v381, %v3447
      %3449 = vmatmul.mubr.f32.gmra.mrb[0].mxu0 %v3448
      %v3450 = vpop.f32.mrb[0].mxu0
      %v3451 = vadd.f32 %v2449, %v3450
      %v3452 = vpop.f32.mrb[0].mxu0
      %v3453 = vadd.f32 %v2451, %v3452
      %3454 = vmatprep.mubr.f32.mxu0 0.0
      %v3455 = vand.u32 %v384, 4294901760
      %v3456 = vsub.f32 %v384, %v3455
      %3457 = vmatmul.mubr.f32.gmra.mrb[0].mxu0 %v3456
      %v3458 = vpop.f32.mrb[0].mxu0
      %v3459 = vadd.f32 %v2456, %v3458
      %v3460 = vpop.f32.mrb[0].mxu0
      %v3461 = vadd.f32 %v2458, %v3460
      %3462 = vmatprep.mubr.f32.mxu0 0.0
      %v3463 = vand.u32 %v387, 4294901760
      %v3464 = vsub.f32 %v387, %v3463
      %3465 = vmatmul.mubr.f32.gmra.mrb[0].mxu0 %v3464
      %v3466 = vpop.f32.mrb[0].mxu0
      %v3467 = vadd.f32 %v2463, %v3466
      %v3468 = vpop.f32.mrb[0].mxu0
      %v3469 = vadd.f32 %v2465, %v3468
      %3470 = vmatprep.mubr.f32.mxu0 0.0
      %v3471 = vand.u32 %v390, 4294901760
      %v3472 = vsub.f32 %v390, %v3471
      %3473 = vmatmul.mubr.f32.gmra.mrb[0].mxu0 %v3472
      %v3474 = vpop.f32.mrb[0].mxu0
      %v3475 = vadd.f32 %v2470, %v3474
      %v3476 = vpop.f32.mrb[0].mxu0
      %v3477 = vadd.f32 %v2472, %v3476
      %3478 = vmatprep.mubr.f32.mxu0 0.0
      %v3479 = vand.u32 %v393, 4294901760
      %v3480 = vsub.f32 %v393, %v3479
      %3481 = vmatmul.mubr.f32.gmra.mrb[0].mxu0 %v3480
      %v3482 = vpop.f32.mrb[0].mxu0
      %v3483 = vadd.f32 %v2477, %v3482
      %v3484 = vpop.f32.mrb[0].mxu0
      %v3485 = vadd.f32 %v2479, %v3484
      %3486 = vmatprep.mubr.f32.mxu0 0.0
      %v3487 = vand.u32 %v396, 4294901760
      %v3488 = vsub.f32 %v396, %v3487
      %3489 = vmatmul.mubr.f32.gmra.mrb[0].mxu0 %v3488
      %v3490 = vpop.f32.mrb[0].mxu0
      %v3491 = vadd.f32 %v2484, %v3490
      %v3492 = vpop.f32.mrb[0].mxu0
      %v3493 = vadd.f32 %v2486, %v3492
      %3494 = vmatprep.mubr.f32.mxu0 0.0
      %v3495 = vand.u32 %v399, 4294901760
      %v3496 = vsub.f32 %v399, %v3495
      %3497 = vmatmul.mubr.f32.gmra.mrb[0].mxu0 %v3496
      %v3498 = vpop.f32.mrb[0].mxu0
      %v3499 = vadd.f32 %v2491, %v3498
      %v3500 = vpop.f32.mrb[0].mxu0
      %v3501 = vadd.f32 %v2493, %v3500
      %3502 = vmatprep.mubr.f32.mxu0 0.0
      %v3503 = vand.u32 %v402, 4294901760
      %v3504 = vsub.f32 %v402, %v3503
      %3505 = vmatmul.mubr.f32.gmra.mrb[0].mxu0 %v3504
      %v3506 = vpop.f32.mrb[0].mxu0
      %v3507 = vadd.f32 %v2498, %v3506
      %v3508 = vpop.f32.mrb[0].mxu0
      %v3509 = vadd.f32 %v2500, %v3508
      %3510 = vmatprep.mubr.f32.mxu0 0.0
      %v3511 = vand.u32 %v405, 4294901760
      %v3512 = vsub.f32 %v405, %v3511
      %3513 = vmatmul.mubr.f32.gmra.mrb[0].mxu0 %v3512
      %v3514 = vpop.f32.mrb[0].mxu0
      %v3515 = vadd.f32 %v2505, %v3514
      %v3516 = vpop.f32.mrb[0].mxu0
      %v3517 = vadd.f32 %v2507, %v3516
      %3518 = vmatprep.mubr.f32.mxu0 0.0
      %v3519 = vand.u32 %v408, 4294901760
      %v3520 = vsub.f32 %v408, %v3519
      %3521 = vmatmul.mubr.f32.gmra.mrb[0].mxu0 %v3520
      %v3522 = vpop.f32.mrb[0].mxu0
      %v3523 = vadd.f32 %v2512, %v3522
      %v3524 = vpop.f32.mrb[0].mxu0
      %v3525 = vadd.f32 %v2514, %v3524
      %3526 = vmatprep.mubr.f32.mxu0 0.0
      %v3527 = vand.u32 %v411, 4294901760
      %v3528 = vsub.f32 %v411, %v3527
      %3529 = vmatmul.mubr.f32.gmra.mrb[0].mxu0 %v3528
      %v3530 = vpop.f32.mrb[0].mxu0
      %v3531 = vadd.f32 %v2519, %v3530
      %v3532 = vpop.f32.mrb[0].mxu0
      %v3533 = vadd.f32 %v2521, %v3532
      %3534 = vmatprep.mubr.f32.mxu0 0.0
      %v3535 = vand.u32 %v414, 4294901760
      %v3536 = vsub.f32 %v414, %v3535
      %3537 = vmatmul.mubr.f32.gmra.mrb[0].mxu0 %v3536
      %v3538 = vpop.f32.mrb[0].mxu0
      %v3539 = vadd.f32 %v2526, %v3538
      %v3540 = vpop.f32.mrb[0].mxu0
      %v3541 = vadd.f32 %v2528, %v3540
      %3542 = vmatprep.mubr.f32.mxu0 0.0
      %v3543 = vand.u32 %v417, 4294901760
      %v3544 = vsub.f32 %v417, %v3543
      %3545 = vmatmul.mubr.f32.gmra.mrb[0].mxu0 %v3544
      %v3546 = vpop.f32.mrb[0].mxu0
      %v3547 = vadd.f32 %v2533, %v3546
      %v3548 = vpop.f32.mrb[0].mxu0
      %v3549 = vadd.f32 %v2535, %v3548
      %3550 = vmatprep.mubr.f32.mxu0 0.0
      %v3551 = vand.u32 %v420, 4294901760
      %v3552 = vsub.f32 %v420, %v3551
      %3553 = vmatmul.mubr.f32.gmra.mrb[0].mxu0 %v3552
      %v3554 = vpop.f32.mrb[0].mxu0
      %v3555 = vadd.f32 %v2540, %v3554
      %v3556 = vpop.f32.mrb[0].mxu0
      %v3557 = vadd.f32 %v2542, %v3556
      %3558 = vmatprep.mubr.f32.mxu0 0.0
      %v3559 = vand.u32 %v423, 4294901760
      %v3560 = vsub.f32 %v423, %v3559
      %3561 = vmatmul.mubr.f32.gmra.mrb[0].mxu0 %v3560
      %v3562 = vpop.f32.mrb[0].mxu0
      %v3563 = vadd.f32 %v2547, %v3562
      %v3564 = vpop.f32.mrb[0].mxu0
      %v3565 = vadd.f32 %v2549, %v3564
      %3566 = vmatprep.mubr.f32.mxu0 0.0
      %v3567 = vand.u32 %v426, 4294901760
      %v3568 = vsub.f32 %v426, %v3567
      %3569 = vmatmul.mubr.f32.gmra.mrb[0].mxu0 %v3568
      %v3570 = vpop.f32.mrb[0].mxu0
      %v3571 = vadd.f32 %v2554, %v3570
      %v3572 = vpop.f32.mrb[0].mxu0
      %v3573 = vadd.f32 %v2556, %v3572
      %3574 = vmatprep.mubr.f32.mxu0 0.0
      %v3575 = vand.u32 %v429, 4294901760
      %v3576 = vsub.f32 %v429, %v3575
      %3577 = vmatmul.mubr.f32.gmra.mrb[0].mxu0 %v3576
      %v3578 = vpop.f32.mrb[0].mxu0
      %v3579 = vadd.f32 %v2561, %v3578
      %v3580 = vpop.f32.mrb[0].mxu0
      %v3581 = vadd.f32 %v2563, %v3580
      %3582 = vmatprep.mubr.f32.mxu0 0.0
      %v3583 = vand.u32 %v432, 4294901760
      %v3584 = vsub.f32 %v432, %v3583
      %3585 = vmatmul.mubr.f32.gmra.mrb[0].mxu0 %v3584
      %v3586 = vpop.f32.mrb[0].mxu0
      %v3587 = vadd.f32 %v2568, %v3586
      %v3588 = vpop.f32.mrb[0].mxu0
      %v3589 = vadd.f32 %v2570, %v3588
      %3590 = vmatprep.mubr.f32.mxu0 0.0
      %v3591 = vand.u32 %v435, 4294901760
      %v3592 = vsub.f32 %v435, %v3591
      %3593 = vmatmul.mubr.f32.gmra.mrb[0].mxu0 %v3592
      %v3594 = vpop.f32.mrb[0].mxu0
      %v3595 = vadd.f32 %v2575, %v3594
      %v3596 = vpop.f32.mrb[0].mxu0
      %v3597 = vadd.f32 %v2577, %v3596
      %3598 = vmatprep.mubr.f32.mxu0 0.0
      %v3599 = vand.u32 %v438, 4294901760
      %v3600 = vsub.f32 %v438, %v3599
      %3601 = vmatmul.mubr.f32.gmra.mrb[0].mxu0 %v3600
      %v3602 = vpop.f32.mrb[0].mxu0
      %v3603 = vadd.f32 %v2582, %v3602
      %v3604 = vpop.f32.mrb[0].mxu0
      %v3605 = vadd.f32 %v2584, %v3604
      %3606 = vmatprep.mubr.f32.mxu0 0.0
      %v3607 = vand.u32 %v441, 4294901760
      %v3608 = vsub.f32 %v441, %v3607
      %3609 = vmatmul.mubr.f32.gmra.mrb[0].mxu0 %v3608
      %v3610 = vpop.f32.mrb[0].mxu0
      %v3611 = vadd.f32 %v2589, %v3610
      %v3612 = vpop.f32.mrb[0].mxu0
      %v3613 = vadd.f32 %v2591, %v3612
      %3614 = vmatprep.mubr.f32.mxu0 0.0
      %v3615 = vand.u32 %v444, 4294901760
      %v3616 = vsub.f32 %v444, %v3615
      %3617 = vmatmul.mubr.f32.gmra.mrb[0].mxu0 %v3616
      %v3618 = vpop.f32.mrb[0].mxu0
      %v3619 = vadd.f32 %v2596, %v3618
      %v3620 = vpop.f32.mrb[0].mxu0
      %v3621 = vadd.f32 %v2598, %v3620
      %3622 = vmatprep.mubr.f32.mxu0 0.0
      %v3623 = vand.u32 %v447, 4294901760
      %v3624 = vsub.f32 %v447, %v3623
      %3625 = vmatmul.mubr.f32.gmra.mrb[0].mxu0 %v3624
      %v3626 = vpop.f32.mrb[0].mxu0
      %v3627 = vadd.f32 %v2603, %v3626
      %v3628 = vpop.f32.mrb[0].mxu0
      %v3629 = vadd.f32 %v2605, %v3628
      %3630 = vmatprep.mubr.f32.mxu0 0.0
      %v3631 = vand.u32 %v450, 4294901760
      %v3632 = vsub.f32 %v450, %v3631
      %3633 = vmatmul.mubr.f32.gmra.mrb[0].mxu0 %v3632
      %v3634 = vpop.f32.mrb[0].mxu0
      %v3635 = vadd.f32 %v2610, %v3634
      %v3636 = vpop.f32.mrb[0].mxu0
      %v3637 = vadd.f32 %v2612, %v3636
      %3638 = vmatprep.mubr.f32.mxu0 0.0
      %v3639 = vand.u32 %v453, 4294901760
      %v3640 = vsub.f32 %v453, %v3639
      %3641 = vmatmul.mubr.f32.gmra.mrb[0].mxu0 %v3640
      %v3642 = vpop.f32.mrb[0].mxu0
      %v3643 = vadd.f32 %v2617, %v3642
      %v3644 = vpop.f32.mrb[0].mxu0
      %v3645 = vadd.f32 %v2619, %v3644
      %3646 = vmatprep.mubr.f32.mxu0 0.0
      %v3647 = vand.u32 %v456, 4294901760
      %v3648 = vsub.f32 %v456, %v3647
      %3649 = vmatmul.mubr.f32.gmra.mrb[0].mxu0 %v3648
      %v3650 = vpop.f32.mrb[0].mxu0
      %v3651 = vadd.f32 %v2624, %v3650
      %v3652 = vpop.f32.mrb[0].mxu0
      %v3653 = vadd.f32 %v2626, %v3652
      %3654 = vmatprep.mubr.f32.mxu0 0.0
      %v3655 = vand.u32 %v459, 4294901760
      %v3656 = vsub.f32 %v459, %v3655
      %3657 = vmatmul.mubr.f32.gmra.mrb[0].mxu0 %v3656
      %v3658 = vpop.f32.mrb[0].mxu0
      %v3659 = vadd.f32 %v2631, %v3658
      %v3660 = vpop.f32.mrb[0].mxu0
      %v3661 = vadd.f32 %v2633, %v3660
      %3662 = vmatprep.mubr.f32.mxu0 0.0
      %v3663 = vand.u32 %v462, 4294901760
      %v3664 = vsub.f32 %v462, %v3663
      %3665 = vmatmul.mubr.f32.gmra.mrb[0].mxu0 %v3664
      %v3666 = vpop.f32.mrb[0].mxu0
      %v3667 = vadd.f32 %v2638, %v3666
      %v3668 = vpop.f32.mrb[0].mxu0
      %v3669 = vadd.f32 %v2640, %v3668
      %3670 = vmatprep.mubr.f32.mxu0 0.0
      %v3671 = vand.u32 %v465, 4294901760
      %v3672 = vsub.f32 %v465, %v3671
      %3673 = vmatmul.mubr.f32.gmra.mrb[0].mxu0 %v3672
      %v3674 = vpop.f32.mrb[0].mxu0
      %v3675 = vadd.f32 %v2645, %v3674
      %v3676 = vpop.f32.mrb[0].mxu0
      %v3677 = vadd.f32 %v2647, %v3676
      %3678 = vmatprep.mubr.f32.mxu0 0.0
      %v3679 = vand.u32 %v468, 4294901760
      %v3680 = vsub.f32 %v468, %v3679
      %3681 = vmatmul.mubr.f32.gmra.mrb[0].mxu0 %v3680
      %v3682 = vpop.f32.mrb[0].mxu0
      %v3683 = vadd.f32 %v2652, %v3682
      %v3684 = vpop.f32.mrb[0].mxu0
      %v3685 = vadd.f32 %v2654, %v3684
      %3686 = vmatprep.mubr.f32.mxu0 0.0
      %v3687 = vand.u32 %v471, 4294901760
      %v3688 = vsub.f32 %v471, %v3687
      %3689 = vmatmul.mubr.f32.gmra.mrb[0].mxu0 %v3688
      %v3690 = vpop.f32.mrb[0].mxu0
      %v3691 = vadd.f32 %v2659, %v3690
      %v3692 = vpop.f32.mrb[0].mxu0
      %v3693 = vadd.f32 %v2661, %v3692
      %3694 = vmatprep.mubr.f32.mxu0 0.0
      %v3695 = vand.u32 %v474, 4294901760
      %v3696 = vsub.f32 %v474, %v3695
      %3697 = vmatmul.mubr.f32.gmra.mrb[0].mxu0 %v3696
      %v3698 = vpop.f32.mrb[0].mxu0
      %v3699 = vadd.f32 %v2666, %v3698
      %v3700 = vpop.f32.mrb[0].mxu0
      %v3701 = vadd.f32 %v2668, %v3700
      %3702 = vmatprep.mubr.f32.mxu0 0.0
      %v3703 = vand.u32 %v477, 4294901760
      %v3704 = vsub.f32 %v477, %v3703
      %3705 = vmatmul.mubr.f32.gmra.mrb[0].mxu0 %v3704
      %v3706 = vpop.f32.mrb[0].mxu0
      %v3707 = vadd.f32 %v2673, %v3706
      %v3708 = vpop.f32.mrb[0].mxu0
      %v3709 = vadd.f32 %v2675, %v3708
      %3710 = vmatprep.mubr.f32.mxu0 0.0
      %v3711 = vand.u32 %v480, 4294901760
      %v3712 = vsub.f32 %v480, %v3711
      %3713 = vmatmul.mubr.f32.gmra.mrb[0].mxu0 %v3712
      %v3714 = vpop.f32.mrb[0].mxu0
      %v3715 = vadd.f32 %v2680, %v3714
      %v3716 = vpop.f32.mrb[0].mxu0
      %v3717 = vadd.f32 %v2682, %v3716
      %3718 = vmatprep.mubr.f32.mxu0 0.0
      %v3719 = vand.u32 %v483, 4294901760
      %v3720 = vsub.f32 %v483, %v3719
      %3721 = vmatmul.mubr.f32.gmra.mrb[0].mxu0 %v3720
      %v3722 = vpop.f32.mrb[0].mxu0
      %v3723 = vadd.f32 %v2687, %v3722
      %v3724 = vpop.f32.mrb[0].mxu0
      %v3725 = vadd.f32 %v2689, %v3724
      %3726 = vmatprep.mubr.f32.mxu0 0.0
      %v3727 = vand.u32 %v486, 4294901760
      %v3728 = vsub.f32 %v486, %v3727
      %3729 = vmatmul.mubr.f32.gmra.mrb[0].mxu0 %v3728
      %v3730 = vpop.f32.mrb[0].mxu0
      %v3731 = vadd.f32 %v2694, %v3730
      %v3732 = vpop.f32.mrb[0].mxu0
      %v3733 = vadd.f32 %v2696, %v3732
      %3734 = vmatprep.mubr.f32.mxu0 0.0
      %v3735 = vand.u32 %v489, 4294901760
      %v3736 = vsub.f32 %v489, %v3735
      %3737 = vmatmul.mubr.f32.gmra.mrb[0].mxu0 %v3736
      %v3738 = vpop.f32.mrb[0].mxu0
      %v3739 = vadd.f32 %v2701, %v3738
      %v3740 = vpop.f32.mrb[0].mxu0
      %v3741 = vadd.f32 %v2703, %v3740
      %3742 = vmatprep.mubr.f32.mxu0 0.0
      %v3743 = vand.u32 %v492, 4294901760
      %v3744 = vsub.f32 %v492, %v3743
      %3745 = vmatmul.mubr.f32.gmra.mrb[0].mxu0 %v3744
      %v3746 = vpop.f32.mrb[0].mxu0
      %v3747 = vadd.f32 %v2708, %v3746
      %v3748 = vpop.f32.mrb[0].mxu0
      %v3749 = vadd.f32 %v2710, %v3748
      %3750 = vmatprep.mubr.f32.mxu0 0.0
      %v3751 = vand.u32 %v495, 4294901760
      %v3752 = vsub.f32 %v495, %v3751
      %3753 = vmatmul.mubr.f32.gmra.mrb[0].mxu0 %v3752
      %v3754 = vpop.f32.mrb[0].mxu0
      %v3755 = vadd.f32 %v2715, %v3754
      %v3756 = vpop.f32.mrb[0].mxu0
      %v3757 = vadd.f32 %v2717, %v3756
      %3758 = vmatprep.mubr.f32.mxu0 0.0
      %v3759 = vand.u32 %v498, 4294901760
      %v3760 = vsub.f32 %v498, %v3759
      %3761 = vmatmul.mubr.f32.gmra.mrb[0].mxu0 %v3760
      %v3762 = vpop.f32.mrb[0].mxu0
      %v3763 = vadd.f32 %v2722, %v3762
      %v3764 = vpop.f32.mrb[0].mxu0
      %v3765 = vadd.f32 %v2724, %v3764
      %3766 = vmatprep.mubr.f32.mxu0 0.0
      %v3767 = vand.u32 %v501, 4294901760
      %v3768 = vsub.f32 %v501, %v3767
      %3769 = vmatmul.mubr.f32.gmra.mrb[0].mxu0 %v3768
      %v3770 = vpop.f32.mrb[0].mxu0
      %v3771 = vadd.f32 %v2729, %v3770
      %v3772 = vpop.f32.mrb[0].mxu0
      %v3773 = vadd.f32 %v2731, %v3772
      %3774 = vmatprep.mubr.f32.mxu0 0.0
      %v3775 = vand.u32 %v504, 4294901760
      %v3776 = vsub.f32 %v504, %v3775
      %3777 = vmatmul.mubr.f32.gmra.mrb[0].mxu0 %v3776
      %v3778 = vpop.f32.mrb[0].mxu0
      %v3779 = vadd.f32 %v2736, %v3778
      %v3780 = vpop.f32.mrb[0].mxu0
      %v3781 = vadd.f32 %v2738, %v3780
      %3782 = vmatprep.mubr.f32.mxu0 0.0
      %v3783 = vand.u32 %v507, 4294901760
      %v3784 = vsub.f32 %v507, %v3783
      %3785 = vmatmul.mubr.f32.gmra.mrb[0].mxu0 %v3784
      %v3786 = vpop.f32.mrb[0].mxu0
      %v3787 = vadd.f32 %v2743, %v3786
      %v3788 = vpop.f32.mrb[0].mxu0
      %v3789 = vadd.f32 %v2745, %v3788
      %3790 = vmatprep.mubr.f32.mxu0 0.0
      %v3791 = vand.u32 %v510, 4294901760
      %v3792 = vsub.f32 %v510, %v3791
      %3793 = vmatmul.mubr.f32.gmra.mrb[0].mxu0 %v3792
      %v3794 = vpop.f32.mrb[0].mxu0
      %v3795 = vadd.f32 %v2750, %v3794
      %v3796 = vpop.f32.mrb[0].mxu0
      %v3797 = vadd.f32 %v2752, %v3796
      %3798 = vmatprep.mubr.f32.mxu0 0.0
      %v3799 = vand.u32 %v513, 4294901760
      %v3800 = vsub.f32 %v513, %v3799
      %3801 = vmatmul.mubr.f32.gmra.mrb[0].mxu0 %v3800
      %v3802 = vpop.f32.mrb[0].mxu0
      %v3803 = vadd.f32 %v2757, %v3802
      %v3804 = vpop.f32.mrb[0].mxu0
      %v3805 = vadd.f32 %v2759, %v3804
      %3806 = vmatprep.mubr.f32.mxu0 0.0
      %v3807 = vand.u32 %v516, 4294901760
      %v3808 = vsub.f32 %v516, %v3807
      %3809 = vmatmul.mubr.f32.gmra.mrb[0].mxu0 %v3808
      %v3810 = vpop.f32.mrb[0].mxu0
      %v3811 = vadd.f32 %v2764, %v3810
      %v3812 = vpop.f32.mrb[0].mxu0
      %v3813 = vadd.f32 %v2766, %v3812
      %3814 = vmatprep.mubr.f32.mxu0 0.0
      %v3815 = vand.u32 %v519, 4294901760
      %v3816 = vsub.f32 %v519, %v3815
      %3817 = vmatmul.mubr.f32.gmra.mrb[0].mxu0 %v3816
      %v3818 = vpop.f32.mrb[0].mxu0
      %v3819 = vadd.f32 %v2771, %v3818
      %v3820 = vpop.f32.mrb[0].mxu0
      %v3821 = vadd.f32 %v2773, %v3820
      %3822 = vmatprep.mubr.f32.mxu0 0.0
      %v3823 = vand.u32 %v522, 4294901760
      %v3824 = vsub.f32 %v522, %v3823
      %3825 = vmatmul.mubr.f32.gmra.mrb[0].mxu0 %v3824
      %v3826 = vpop.f32.mrb[0].mxu0
      %v3827 = vadd.f32 %v2778, %v3826
      %v3828 = vpop.f32.mrb[0].mxu0
      %v3829 = vadd.f32 %v2780, %v3828
      %3830 = vmatprep.mubr.f32.mxu0 0.0
      %v3831 = vand.u32 %v525, 4294901760
      %v3832 = vsub.f32 %v525, %v3831
      %3833 = vmatmul.mubr.f32.gmra.mrb[0].mxu0 %v3832
      %v3834 = vpop.f32.mrb[0].mxu0
      %v3835 = vadd.f32 %v2785, %v3834
      %v3836 = vpop.f32.mrb[0].mxu0
      %v3837 = vadd.f32 %v2787, %v3836
      %3838 = vmatprep.mubr.f32.mxu0 0.0
      %v3839 = vand.u32 %v528, 4294901760
      %v3840 = vsub.f32 %v528, %v3839
      %3841 = vmatmul.mubr.f32.gmra.mrb[0].mxu0 %v3840
      %v3842 = vpop.f32.mrb[0].mxu0
      %v3843 = vadd.f32 %v2792, %v3842
      %v3844 = vpop.f32.mrb[0].mxu0
      %v3845 = vadd.f32 %v2794, %v3844
      %3846 = vmatprep.mubr.f32.mxu0 0.0
      %v3847 = vand.u32 %v531, 4294901760
      %v3848 = vsub.f32 %v531, %v3847
      %3849 = vmatmul.mubr.f32.gmra.mrb[0].mxu0 %v3848
      %v3850 = vpop.f32.mrb[0].mxu0
      %v3851 = vadd.f32 %v2799, %v3850
      %v3852 = vpop.f32.mrb[0].mxu0
      %v3853 = vadd.f32 %v2801, %v3852
      %3854 = vmatprep.mubr.f32.mxu0 0.0
      %v3855 = vand.u32 %v534, 4294901760
      %v3856 = vsub.f32 %v534, %v3855
      %3857 = vmatmul.mubr.f32.gmra.mrb[0].mxu0 %v3856
      %v3858 = vpop.f32.mrb[0].mxu0
      %v3859 = vadd.f32 %v2806, %v3858
      %v3860 = vpop.f32.mrb[0].mxu0
      %v3861 = vadd.f32 %v2808, %v3860
      %3862 = vmatprep.mubr.f32.mxu0 0.0
      %v3863 = vand.u32 %v537, 4294901760
      %v3864 = vsub.f32 %v537, %v3863
      %3865 = vmatmul.mubr.f32.gmra.mrb[0].mxu0 %v3864
      %v3866 = vpop.f32.mrb[0].mxu0
      %v3867 = vadd.f32 %v2813, %v3866
      %v3868 = vpop.f32.mrb[0].mxu0
      %v3869 = vadd.f32 %v2815, %v3868
      %3870 = vmatprep.mubr.f32.mxu0 0.0
      %v3871 = vand.u32 %v540, 4294901760
      %v3872 = vsub.f32 %v540, %v3871
      %3873 = vmatmul.mubr.f32.gmra.mrb[0].mxu0 %v3872
      %v3874 = vpop.f32.mrb[0].mxu0
      %v3875 = vadd.f32 %v2820, %v3874
      %v3876 = vpop.f32.mrb[0].mxu0
      %v3877 = vadd.f32 %v2822, %v3876
      %3878 = vmatprep.mubr.f32.mxu0 0.0
      %v3879 = vand.u32 %v543, 4294901760
      %v3880 = vsub.f32 %v543, %v3879
      %3881 = vmatmul.mubr.f32.gmra.mrb[0].mxu0 %v3880
      %v3882 = vpop.f32.mrb[0].mxu0
      %v3883 = vadd.f32 %v2827, %v3882
      %v3884 = vpop.f32.mrb[0].mxu0
      %v3885 = vadd.f32 %v2829, %v3884
      %3886 = vmatprep.mubr.f32.mxu0 0.0
      %v3887 = vand.u32 %v546, 4294901760
      %v3888 = vsub.f32 %v546, %v3887
      %3889 = vmatmul.mubr.f32.gmra.mrb[0].mxu0 %v3888
      %v3890 = vpop.f32.mrb[0].mxu0
      %v3891 = vadd.f32 %v2834, %v3890
      %v3892 = vpop.f32.mrb[0].mxu0
      %v3893 = vadd.f32 %v2836, %v3892
      %3894 = vmatprep.mubr.f32.mxu0 0.0
      %v3895 = vand.u32 %v549, 4294901760
      %v3896 = vsub.f32 %v549, %v3895
      %3897 = vmatmul.mubr.f32.gmra.mrb[0].mxu0 %v3896
      %v3898 = vpop.f32.mrb[0].mxu0
      %v3899 = vadd.f32 %v2841, %v3898
      %v3900 = vpop.f32.mrb[0].mxu0
      %v3901 = vadd.f32 %v2843, %v3900
      %3902 = vmatprep.mubr.f32.mxu0 0.0
      %v3903 = vand.u32 %v552, 4294901760
      %v3904 = vsub.f32 %v552, %v3903
      %3905 = vmatmul.mubr.f32.gmra.mrb[0].mxu0 %v3904
      %v3906 = vpop.f32.mrb[0].mxu0
      %v3907 = vadd.f32 %v2848, %v3906
      %v3908 = vpop.f32.mrb[0].mxu0
      %v3909 = vadd.f32 %v2850, %v3908
      %3910 = vmatprep.mubr.f32.mxu0 0.0
      %v3911 = vand.u32 %v555, 4294901760
      %v3912 = vsub.f32 %v555, %v3911
      %3913 = vmatmul.mubr.f32.gmra.mrb[0].mxu0 %v3912
      %v3914 = vpop.f32.mrb[0].mxu0
      %v3915 = vadd.f32 %v2855, %v3914
      %v3916 = vpop.f32.mrb[0].mxu0
      %v3917 = vadd.f32 %v2857, %v3916
      %3918 = vmatprep.mubr.f32.mxu0 0.0
      %v3919 = vand.u32 %v558, 4294901760
      %v3920 = vsub.f32 %v558, %v3919
      %3921 = vmatmul.mubr.f32.gmra.mrb[0].mxu0 %v3920
      %v3922 = vpop.f32.mrb[0].mxu0
      %v3923 = vadd.f32 %v2862, %v3922
      %v3924 = vpop.f32.mrb[0].mxu0
      %v3925 = vadd.f32 %v2864, %v3924
      %3926 = vmatprep.mubr.f32.mxu0 0.0
      %v3927 = vand.u32 %v561, 4294901760
      %v3928 = vsub.f32 %v561, %v3927
      %3929 = vmatmul.mubr.f32.gmra.mrb[0].mxu0 %v3928
      %v3930 = vpop.f32.mrb[0].mxu0
      %v3931 = vadd.f32 %v2869, %v3930
      %v3932 = vpop.f32.mrb[0].mxu0
      %v3933 = vadd.f32 %v2871, %v3932
      %3934 = vmatprep.mubr.f32.mxu0 0.0
      %v3935 = vand.u32 %v564, 4294901760
      %v3936 = vsub.f32 %v564, %v3935
      %3937 = vmatmul.mubr.f32.gmra.mrb[0].mxu0 %v3936
      %v3938 = vpop.f32.mrb[0].mxu0
      %v3939 = vadd.f32 %v2876, %v3938
      %v3940 = vpop.f32.mrb[0].mxu0
      %v3941 = vadd.f32 %v2878, %v3940
      %3942 = vmatprep.mubr.f32.mxu0 0.0
      %v3943 = vand.u32 %v567, 4294901760
      %v3944 = vsub.f32 %v567, %v3943
      %3945 = vmatmul.mubr.f32.gmra.mrb[0].mxu0 %v3944
      %v3946 = vpop.f32.mrb[0].mxu0
      %v3947 = vadd.f32 %v2883, %v3946
      %v3948 = vpop.f32.mrb[0].mxu0
      %v3949 = vadd.f32 %v2885, %v3948
      %3950 = vmatprep.mubr.f32.mxu0 0.0
      %v3951 = vand.u32 %v570, 4294901760
      %v3952 = vsub.f32 %v570, %v3951
      %3953 = vmatmul.mubr.f32.gmra.mrb[0].mxu0 %v3952
      %v3954 = vpop.f32.mrb[0].mxu0
      %v3955 = vadd.f32 %v2890, %v3954
      %v3956 = vpop.f32.mrb[0].mxu0
      %v3957 = vadd.f32 %v2892, %v3956
      %3958 = vmatprep.mubr.f32.mxu0 0.0
      %v3959 = vand.u32 %v573, 4294901760
      %v3960 = vsub.f32 %v573, %v3959
      %3961 = vmatmul.mubr.f32.gmra.mrb[0].mxu0 %v3960
      %v3962 = vpop.f32.mrb[0].mxu0
      %v3963 = vadd.f32 %v2897, %v3962
      %v3964 = vpop.f32.mrb[0].mxu0
      %v3965 = vadd.f32 %v2899, %v3964
      %3966 = vmatprep.mubr.f32.mxu0 0.0
      %v3967 = vand.u32 %v576, 4294901760
      %v3968 = vsub.f32 %v576, %v3967
      %3969 = vmatmul.mubr.f32.gmra.mrb[0].mxu0 %v3968
      %v3970 = vpop.f32.mrb[0].mxu0
      %v3971 = vadd.f32 %v2904, %v3970
      %v3972 = vpop.f32.mrb[0].mxu0
      %v3973 = vadd.f32 %v2906, %v3972
      %3974 = vmatprep.mubr.f32.mxu0 0.0
      %v3975 = vand.u32 %v579, 4294901760
      %v3976 = vsub.f32 %v579, %v3975
      %3977 = vmatmul.mubr.f32.gmra.mrb[0].mxu0 %v3976
      %v3978 = vpop.f32.mrb[0].mxu0
      %v3979 = vadd.f32 %v2911, %v3978
      %v3980 = vpop.f32.mrb[0].mxu0
      %v3981 = vadd.f32 %v2913, %v3980
      %3982 = vmatprep.mubr.f32.mxu0 0.0
      %v3983 = vand.u32 %v582, 4294901760
      %v3984 = vsub.f32 %v582, %v3983
      %3985 = vmatmul.mubr.f32.gmra.mrb[0].mxu0 %v3984
      %v3986 = vpop.f32.mrb[0].mxu0
      %v3987 = vadd.f32 %v2918, %v3986
      %v3988 = vpop.f32.mrb[0].mxu0
      %v3989 = vadd.f32 %v2920, %v3988
      %3990 = vmatprep.mubr.f32.mxu0 0.0
      %v3991 = vand.u32 %v585, 4294901760
      %v3992 = vsub.f32 %v585, %v3991
      %3993 = vmatmul.mubr.f32.gmra.mrb[0].mxu0 %v3992
      %v3994 = vpop.f32.mrb[0].mxu0
      %v3995 = vadd.f32 %v2925, %v3994
      %v3996 = vpop.f32.mrb[0].mxu0
      %v3997 = vadd.f32 %v2927, %v3996
      %3998 = vmatprep.mubr.f32.mxu0 0.0
      %v3999 = vand.u32 %v588, 4294901760
      %v4000 = vsub.f32 %v588, %v3999
      %4001 = vmatmul.mubr.f32.gmra.mrb[0].mxu0 %v4000
      %v4002 = vpop.f32.mrb[0].mxu0
      %v4003 = vadd.f32 %v2932, %v4002
      %v4004 = vpop.f32.mrb[0].mxu0
      %v4005 = vadd.f32 %v2934, %v4004
      %4006 = vmatprep.mubr.f32.mxu0 0.0
      %v4007 = vand.u32 %v591, 4294901760
      %v4008 = vsub.f32 %v591, %v4007
      %4009 = vmatmul.mubr.f32.gmra.mrb[0].mxu0 %v4008
      %v4010 = vpop.f32.mrb[0].mxu0
      %v4011 = vadd.f32 %v2939, %v4010
      %v4012 = vpop.f32.mrb[0].mxu0
      %v4013 = vadd.f32 %v2941, %v4012
      %4014 = vmatprep.mubr.f32.mxu0 0.0
      %v4015 = vand.u32 %v594, 4294901760
      %v4016 = vsub.f32 %v594, %v4015
      %4017 = vmatmul.mubr.f32.gmra.mrb[0].mxu0 %v4016
      %v4018 = vpop.f32.mrb[0].mxu0
      %v4019 = vadd.f32 %v2946, %v4018
      %v4020 = vpop.f32.mrb[0].mxu0
      %v4021 = vadd.f32 %v2948, %v4020
      %4022 = vmatprep.mubr.f32.mxu0 0.0
      %v4023 = vand.u32 %v597, 4294901760
      %v4024 = vsub.f32 %v597, %v4023
      %4025 = vmatmul.mubr.f32.gmra.mrb[0].mxu0 %v4024
      %v4026 = vpop.f32.mrb[0].mxu0
      %v4027 = vadd.f32 %v2953, %v4026
      %v4028 = vpop.f32.mrb[0].mxu0
      %v4029 = vadd.f32 %v2955, %v4028
      %4030 = vmatprep.mubr.f32.mxu0 0.0
      %v4031 = vand.u32 %v600, 4294901760
      %v4032 = vsub.f32 %v600, %v4031
      %4033 = vmatmul.mubr.f32.gmra.mrb[0].mxu0 %v4032
      %v4034 = vpop.f32.mrb[0].mxu0
      %v4035 = vadd.f32 %v2960, %v4034
      %v4036 = vpop.f32.mrb[0].mxu0
      %v4037 = vadd.f32 %v2962, %v4036
      %4038 = vmatprep.mubr.f32.mxu0 0.0
      %v4039 = vand.u32 %v603, 4294901760
      %v4040 = vsub.f32 %v603, %v4039
      %4041 = vmatmul.mubr.f32.gmra.mrb[0].mxu0 %v4040
      %v4042 = vpop.f32.mrb[0].mxu0
      %v4043 = vadd.f32 %v2967, %v4042
      %v4044 = vpop.f32.mrb[0].mxu0
      %v4045 = vadd.f32 %v2969, %v4044
      %4046 = vmatprep.mubr.f32.mxu0 0.0
      %v4047 = vand.u32 %v606, 4294901760
      %v4048 = vsub.f32 %v606, %v4047
      %4049 = vmatmul.mubr.f32.gmra.mrb[0].mxu0 %v4048
      %v4050 = vpop.f32.mrb[0].mxu0
      %v4051 = vadd.f32 %v2974, %v4050
      %v4052 = vpop.f32.mrb[0].mxu0
      %v4053 = vadd.f32 %v2976, %v4052
      %4054 = vmatprep.mubr.f32.mxu0 0.0
      %v4055 = vand.u32 %v609, 4294901760
      %v4056 = vsub.f32 %v609, %v4055
      %4057 = vmatmul.mubr.f32.gmra.mrb[0].mxu0 %v4056
      %v4058 = vpop.f32.mrb[0].mxu0
      %v4059 = vadd.f32 %v2981, %v4058
      %v4060 = vpop.f32.mrb[0].mxu0
      %v4061 = vadd.f32 %v2983, %v4060
      %4062 = vmatprep.mubr.f32.mxu0 0.0
      %v4063 = vand.u32 %v612, 4294901760
      %v4064 = vsub.f32 %v612, %v4063
      %4065 = vmatmul.mubr.f32.gmra.mrb[0].mxu0 %v4064
      %v4066 = vpop.f32.mrb[0].mxu0
      %v4067 = vadd.f32 %v2988, %v4066
      %v4068 = vpop.f32.mrb[0].mxu0
      %v4069 = vadd.f32 %v2990, %v4068
      %4070 = vmatprep.mubr.f32.mxu0 0.0
      %v4071 = vand.u32 %v615, 4294901760
      %v4072 = vsub.f32 %v615, %v4071
      %4073 = vmatmul.mubr.f32.gmra.mrb[0].mxu0 %v4072
      %v4074 = vpop.f32.mrb[0].mxu0
      %v4075 = vadd.f32 %v2995, %v4074
      %v4076 = vpop.f32.mrb[0].mxu0
      %v4077 = vadd.f32 %v2997, %v4076
      %4078 = vmatprep.mubr.f32.mxu0 0.0
      %v4079 = vand.u32 %v618, 4294901760
      %v4080 = vsub.f32 %v618, %v4079
      %4081 = vmatmul.mubr.f32.gmra.mrb[0].mxu0 %v4080
      %v4082 = vpop.f32.mrb[0].mxu0
      %v4083 = vadd.f32 %v3002, %v4082
      %v4084 = vpop.f32.mrb[0].mxu0
      %v4085 = vadd.f32 %v3004, %v4084
      %4086 = vmatprep.mubr.f32.mxu0 0.0
      %v4087 = vand.u32 %v621, 4294901760
      %v4088 = vsub.f32 %v621, %v4087
      %4089 = vmatmul.mubr.f32.gmra.mrb[0].mxu0 %v4088
      %v4090 = vpop.f32.mrb[0].mxu0
      %v4091 = vadd.f32 %v3009, %v4090
      %v4092 = vpop.f32.mrb[0].mxu0
      %v4093 = vadd.f32 %v3011, %v4092
      %4094 = vmatprep.mubr.f32.mxu0 0.0
      %v4095 = vand.u32 %v624, 4294901760
      %v4096 = vsub.f32 %v624, %v4095
      %4097 = vmatmul.mubr.f32.gmra.mrb[0].mxu0 %v4096
      %v4098 = vpop.f32.mrb[0].mxu0
      %v4099 = vadd.f32 %v3016, %v4098
      %v4100 = vpop.f32.mrb[0].mxu0
      %v4101 = vadd.f32 %v3018, %v4100
      %4102 = vmatprep.mubr.f32.mxu0 0.0
      %v4103 = vand.u32 %v627, 4294901760
      %v4104 = vsub.f32 %v627, %v4103
      %4105 = vmatmul.mubr.f32.gmra.mrb[0].mxu0 %v4104
      %v4106 = vpop.f32.mrb[0].mxu0
      %v4107 = vadd.f32 %v3023, %v4106
      %v4108 = vpop.f32.mrb[0].mxu0
      %v4109 = vadd.f32 %v3025, %v4108
      %4110 = vmatprep.mubr.f32.mxu0 0.0
      %v4111 = vand.u32 %v630, 4294901760
      %v4112 = vsub.f32 %v630, %v4111
      %4113 = vmatmul.mubr.f32.gmra.mrb[0].mxu0 %v4112
      %v4114 = vpop.f32.mrb[0].mxu0
      %v4115 = vadd.f32 %v3030, %v4114
      %v4116 = vpop.f32.mrb[0].mxu0
      %v4117 = vadd.f32 %v3032, %v4116
      %4118 = vmatprep.mubr.f32.mxu0 0.0
      %v4119 = vand.u32 %v633, 4294901760
      %v4120 = vsub.f32 %v633, %v4119
      %4121 = vmatmul.mubr.f32.gmra.mrb[0].mxu0 %v4120
      %v4122 = vpop.f32.mrb[0].mxu0
      %v4123 = vadd.f32 %v3037, %v4122
      %v4124 = vpop.f32.mrb[0].mxu0
      %v4125 = vadd.f32 %v3039, %v4124
      %4126 = vmatprep.mubr.f32.mxu0 0.0
      %v4127 = vand.u32 %v636, 4294901760
      %v4128 = vsub.f32 %v636, %v4127
      %4129 = vmatmul.mubr.f32.gmra.mrb[0].mxu0 %v4128
      %v4130 = vpop.f32.mrb[0].mxu0
      %v4131 = vadd.f32 %v3044, %v4130
      %v4132 = vpop.f32.mrb[0].mxu0
      %v4133 = vadd.f32 %v3046, %v4132
      %4134 = vmatprep.mubr.f32.mxu0 0.0
      %v4135 = vand.u32 %v639, 4294901760
      %v4136 = vsub.f32 %v639, %v4135
      %4137 = vmatmul.mubr.f32.gmra.mrb[0].mxu0 %v4136
      %v4138 = vpop.f32.mrb[0].mxu0
      %v4139 = vadd.f32 %v3051, %v4138
      %v4140 = vpop.f32.mrb[0].mxu0
      %v4141 = vadd.f32 %v3053, %v4140
      %4142 = vmatprep.mubr.f32.mxu0 0.0
      %v4143 = vand.u32 %v642, 4294901760
      %v4144 = vsub.f32 %v642, %v4143
      %4145 = vmatmul.mubr.f32.gmra.mrb[0].mxu0 %v4144
      %v4146 = vpop.f32.mrb[0].mxu0
      %v4147 = vadd.f32 %v3058, %v4146
      %v4148 = vpop.f32.mrb[0].mxu0
      %v4149 = vadd.f32 %v3060, %v4148
      %4150 = vmatprep.mubr.f32.mxu0 0.0
      %v4151 = vand.u32 %v645, 4294901760
      %v4152 = vsub.f32 %v645, %v4151
      %4153 = vmatmul.mubr.f32.gmra.mrb[0].mxu0 %v4152
      %v4154 = vpop.f32.mrb[0].mxu0
      %v4155 = vadd.f32 %v3065, %v4154
      %v4156 = vpop.f32.mrb[0].mxu0
      %v4157 = vadd.f32 %v3067, %v4156
      %4158 = vmatprep.mubr.f32.mxu0 0.0
      %v4159 = vand.u32 %v648, 4294901760
      %v4160 = vsub.f32 %v648, %v4159
      %4161 = vmatmul.mubr.f32.gmra.mrb[0].mxu0 %v4160
      %v4162 = vpop.f32.mrb[0].mxu0
      %v4163 = vadd.f32 %v3072, %v4162
      %v4164 = vpop.f32.mrb[0].mxu0
      %v4165 = vadd.f32 %v3074, %v4164
      %4166 = vmatprep.mubr.f32.mxu0 0.0
      %v4167 = vand.u32 %v651, 4294901760
      %v4168 = vsub.f32 %v651, %v4167
      %4169 = vmatmul.mubr.f32.gmra.mrb[0].mxu0 %v4168
      %v4170 = vpop.f32.mrb[0].mxu0
      %v4171 = vadd.f32 %v3079, %v4170
      %v4172 = vpop.f32.mrb[0].mxu0
      %v4173 = vadd.f32 %v3081, %v4172
      %4174 = vmatprep.mubr.f32.mxu0 0.0
      %v4175 = vand.u32 %v654, 4294901760
      %v4176 = vsub.f32 %v654, %v4175
      %4177 = vmatmul.mubr.f32.gmra.mrb[0].mxu0 %v4176
      %v4178 = vpop.f32.mrb[0].mxu0
      %v4179 = vadd.f32 %v3086, %v4178
      %v4180 = vpop.f32.mrb[0].mxu0
      %v4181 = vadd.f32 %v3088, %v4180
      %4182 = vmatprep.mubr.f32.mxu0 0.0
      %v4183 = vand.u32 %v657, 4294901760
      %v4184 = vsub.f32 %v657, %v4183
      %4185 = vmatmul.mubr.f32.gmra.mrb[0].mxu0 %v4184
      %v4186 = vpop.f32.mrb[0].mxu0
      %v4187 = vadd.f32 %v3093, %v4186
      %v4188 = vpop.f32.mrb[0].mxu0
      %v4189 = vadd.f32 %v3095, %v4188
      %4190 = vmatprep.mubr.f32.mxu0 0.0
      %v4191 = vand.u32 %v660, 4294901760
      %v4192 = vsub.f32 %v660, %v4191
      %4193 = vmatmul.mubr.f32.gmra.mrb[0].mxu0 %v4192
      %v4194 = vpop.f32.mrb[0].mxu0
      %v4195 = vadd.f32 %v3100, %v4194
      %v4196 = vpop.f32.mrb[0].mxu0
      %v4197 = vadd.f32 %v3102, %v4196
      %4198 = vmatprep.mubr.f32.mxu0 0.0
      %v4199 = vand.u32 %v663, 4294901760
      %v4200 = vsub.f32 %v663, %v4199
      %4201 = vmatmul.mubr.f32.gmra.mrb[0].mxu0 %v4200
      %v4202 = vpop.f32.mrb[0].mxu0
      %v4203 = vadd.f32 %v3107, %v4202
      %v4204 = vpop.f32.mrb[0].mxu0
      %v4205 = vadd.f32 %v3109, %v4204
      %4206 = vmatprep.mubr.f32.mxu0 0.0
      %v4207 = vand.u32 %v666, 4294901760
      %v4208 = vsub.f32 %v666, %v4207
      %4209 = vmatmul.mubr.f32.gmra.mrb[0].mxu0 %v4208
      %v4210 = vpop.f32.mrb[0].mxu0
      %v4211 = vadd.f32 %v3114, %v4210
      %v4212 = vpop.f32.mrb[0].mxu0
      %v4213 = vadd.f32 %v3116, %v4212
      %4214 = vmatprep.mubr.f32.mxu0 0.0
      %v4215 = vand.u32 %v669, 4294901760
      %v4216 = vsub.f32 %v669, %v4215
      %4217 = vmatmul.mubr.f32.gmra.mrb[0].mxu0 %v4216
      %v4218 = vpop.f32.mrb[0].mxu0
      %v4219 = vadd.f32 %v3121, %v4218
      %v4220 = vpop.f32.mrb[0].mxu0
      %v4221 = vadd.f32 %v3123, %v4220
      %4222 = vmatprep.mubr.f32.mxu0 0.0
      %v4223 = vand.u32 %v672, 4294901760
      %v4224 = vsub.f32 %v672, %v4223
      %4225 = vmatmul.mubr.f32.gmra.mrb[0].mxu0 %v4224
      %v4226 = vpop.f32.mrb[0].mxu0
      %v4227 = vadd.f32 %v3128, %v4226
      %v4228 = vpop.f32.mrb[0].mxu0
      %v4229 = vadd.f32 %v3130, %v4228
      %4230 = vmatprep.mubr.f32.mxu0 0.0
      %v4231 = vand.u32 %v675, 4294901760
      %v4232 = vsub.f32 %v675, %v4231
      %4233 = vmatmul.mubr.f32.gmra.mrb[0].mxu0 %v4232
      %v4234 = vpop.f32.mrb[0].mxu0
      %v4235 = vadd.f32 %v3135, %v4234
      %v4236 = vpop.f32.mrb[0].mxu0
      %v4237 = vadd.f32 %v3137, %v4236
      %4238 = vmatprep.mubr.f32.mxu0 0.0
      %v4239 = vand.u32 %v678, 4294901760
      %v4240 = vsub.f32 %v678, %v4239
      %4241 = vmatmul.mubr.f32.gmra.mrb[0].mxu0 %v4240
      %v4242 = vpop.f32.mrb[0].mxu0
      %v4243 = vadd.f32 %v3142, %v4242
      %v4244 = vpop.f32.mrb[0].mxu0
      %v4245 = vadd.f32 %v3144, %v4244
      %4246 = vmatprep.mubr.f32.mxu0 0.0
      %v4247 = vand.u32 %v681, 4294901760
      %v4248 = vsub.f32 %v681, %v4247
      %4249 = vmatmul.mubr.f32.gmra.mrb[0].mxu0 %v4248
      %v4250 = vpop.f32.mrb[0].mxu0
      %v4251 = vadd.f32 %v3149, %v4250
      %v4252 = vpop.f32.mrb[0].mxu0
      %v4253 = vadd.f32 %v3151, %v4252
      %4254 = vmatprep.mubr.f32.mxu0 0.0
      %v4255 = vand.u32 %v684, 4294901760
      %v4256 = vsub.f32 %v684, %v4255
      %4257 = vmatmul.mubr.f32.gmra.mrb[0].mxu0 %v4256
      %v4258 = vpop.f32.mrb[0].mxu0
      %v4259 = vadd.f32 %v3156, %v4258
      %v4260 = vpop.f32.mrb[0].mxu0
      %v4261 = vadd.f32 %v3158, %v4260
      %4262 = vmatprep.mubr.f32.mxu0 0.0
      %v4263 = vand.u32 %v687, 4294901760
      %v4264 = vsub.f32 %v687, %v4263
      %4265 = vmatmul.mubr.f32.gmra.mrb[0].mxu0 %v4264
      %v4266 = vpop.f32.mrb[0].mxu0
      %v4267 = vadd.f32 %v3163, %v4266
      %v4268 = vpop.f32.mrb[0].mxu0
      %v4269 = vadd.f32 %v3165, %v4268
      %4270 = vmatprep.mubr.f32.mxu0 0.0
      %v4271 = vand.u32 %v690, 4294901760
      %v4272 = vsub.f32 %v690, %v4271
      %4273 = vmatmul.mubr.f32.gmra.mrb[0].mxu0 %v4272
      %v4274 = vpop.f32.mrb[0].mxu0
      %v4275 = vadd.f32 %v3170, %v4274
      %v4276 = vpop.f32.mrb[0].mxu0
      %v4277 = vadd.f32 %v3172, %v4276
      %4278 = vdwg.mxu0
      %v4279 = vand.u32 %v300, 4294901760
      %4280 = vmatprep.subr.mxu0 %v4279
      %v4281 = vand.u32 %v299, 4294901760
      %4282 = vmatpush1.msra.mxu0 %v4281
      %v4283 = vand.u32 %v302, 4294901760
      %4284 = vmatprep.subr.mxu0 %v4283
      %v4285 = vand.u32 %v301, 4294901760
      %4286 = vmatpush1.msra.mxu0 %v4285
      %v4287 = vand.u32 %v304, 4294901760
      %4288 = vmatprep.subr.mxu0 %v4287
      %v4289 = vand.u32 %v303, 4294901760
      %4290 = vmatpush1.msra.mxu0 %v4289
      %v4291 = vand.u32 %v306, 4294901760
      %4292 = vmatprep.subr.mxu0 %v4291
      %v4293 = vand.u32 %v305, 4294901760
      %4294 = vmatpush1.msra.mxu0 %v4293
      %4295 = vmatprep.subr.mxu0 0.0
      %4296 = vmatpush1.msra.mxu0 0.0
      %4297 = vmatprep.subr.mxu0 0.0
      %4298 = vmatpush1.msra.mxu0 0.0
      %4299 = vmatprep.subr.mxu0 0.0
      %4300 = vmatpush1.msra.mxu0 0.0
      %4301 = vmatprep.subr.mxu0 0.0
      %4302 = vmatpush1.msra.mxu0 0.0
      %4303 = vmatprep.subr.mxu0 0.0
      %4304 = vmatpush1.msra.mxu0 0.0
      %4305 = vmatprep.subr.mxu0 0.0
      %4306 = vmatpush1.msra.mxu0 0.0
      %4307 = vmatprep.subr.mxu0 0.0
      %4308 = vmatpush1.msra.mxu0 0.0
      %4309 = vmatprep.subr.mxu0 0.0
      %4310 = vmatpush1.msra.mxu0 0.0
      %4311 = vmatprep.subr.mxu0 0.0
      %4312 = vmatpush1.msra.mxu0 0.0
      %4313 = vmatprep.subr.mxu0 0.0
      %4314 = vmatpush1.msra.mxu0 0.0
      %4315 = vmatprep.subr.mxu0 0.0
      %4316 = vmatpush1.msra.mxu0 0.0
      %4317 = vmatprep.subr.mxu0 0.0
      %4318 = vmatpush1.msra.mxu0 0.0
      %4319 = vmatprep.subr.mxu0 0.0
      %4320 = vmatpush1.msra.mxu0 0.0
      %4321 = vmatprep.subr.mxu0 0.0
      %4322 = vmatpush1.msra.mxu0 0.0
      %4323 = vmatprep.subr.mxu0 0.0
      %4324 = vmatpush1.msra.mxu0 0.0
      %4325 = vmatprep.subr.mxu0 0.0
      %4326 = vmatpush1.msra.mxu0 0.0
      %4327 = vmatprep.subr.mxu0 0.0
      %4328 = vmatpush1.msra.mxu0 0.0
      %4329 = vmatprep.subr.mxu0 0.0
      %4330 = vmatpush1.msra.mxu0 0.0
      %4331 = vmatprep.subr.mxu0 0.0
      %4332 = vmatpush1.msra.mxu0 0.0
      %4333 = vmatprep.subr.mxu0 0.0
      %4334 = vmatpush1.msra.mxu0 0.0
      %4335 = vmatprep.subr.mxu0 0.0
      %4336 = vmatpush1.msra.mxu0 0.0
      %4337 = vmatprep.subr.mxu0 0.0
      %4338 = vmatpush1.msra.mxu0 0.0
      %4339 = vmatprep.subr.mxu0 0.0
      %4340 = vmatpush1.msra.mxu0 0.0
      %4341 = vmatprep.subr.mxu0 0.0
      %4342 = vmatpush1.msra.mxu0 0.0
      %4343 = vmatprep.subr.mxu0 0.0
      %4344 = vmatpush1.msra.mxu0 0.0
      %4345 = vmatprep.subr.mxu0 0.0
      %4346 = vmatpush1.msra.mxu0 0.0
      %4347 = vmatprep.subr.mxu0 0.0
      %4348 = vmatpush1.msra.mxu0 0.0
      %4349 = vmatprep.subr.mxu0 0.0
      %4350 = vmatpush1.msra.mxu0 0.0
      %4351 = vmatprep.mubr.f32.mxu0 0.0
      %v4352 = vand.u32 %v309, 4294901760
      %v4353 = vsub.f32 %v309, %v4352
      %v4354 = vand.u32 %v4353, 4294901760
      %4355 = vmatmul.mubr.f32.gmra.mrb[0].mxu0 %v4354
      %v4356 = vpop.f32.mrb[0].mxu0
      %v4357 = vadd.f32 %v3259, %v4356
      %v4358 = vpop.f32.mrb[0].mxu0
      %v4359 = vadd.f32 %v3261, %v4358
      %4360 = vmatprep.mubr.f32.mxu0 0.0
      %v4361 = vand.u32 %v312, 4294901760
      %v4362 = vsub.f32 %v312, %v4361
      %v4363 = vand.u32 %v4362, 4294901760
      %4364 = vmatmul.mubr.f32.gmra.mrb[0].mxu0 %v4363
      %v4365 = vpop.f32.mrb[0].mxu0
      %v4366 = vadd.f32 %v3267, %v4365
      %v4367 = vpop.f32.mrb[0].mxu0
      %v4368 = vadd.f32 %v3269, %v4367
      %4369 = vmatprep.mubr.f32.mxu0 0.0
      %v4370 = vand.u32 %v315, 4294901760
      %v4371 = vsub.f32 %v315, %v4370
      %v4372 = vand.u32 %v4371, 4294901760
      %4373 = vmatmul.mubr.f32.gmra.mrb[0].mxu0 %v4372
      %v4374 = vpop.f32.mrb[0].mxu0
      %v4375 = vadd.f32 %v3275, %v4374
      %v4376 = vpop.f32.mrb[0].mxu0
      %v4377 = vadd.f32 %v3277, %v4376
      %4378 = vmatprep.mubr.f32.mxu0 0.0
      %v4379 = vand.u32 %v318, 4294901760
      %v4380 = vsub.f32 %v318, %v4379
      %v4381 = vand.u32 %v4380, 4294901760
      %4382 = vmatmul.mubr.f32.gmra.mrb[0].mxu0 %v4381
      %v4383 = vpop.f32.mrb[0].mxu0
      %v4384 = vadd.f32 %v3283, %v4383
      %v4385 = vpop.f32.mrb[0].mxu0
      %v4386 = vadd.f32 %v3285, %v4385
      %4387 = vmatprep.mubr.f32.mxu0 0.0
      %v4388 = vand.u32 %v321, 4294901760
      %v4389 = vsub.f32 %v321, %v4388
      %v4390 = vand.u32 %v4389, 4294901760
      %4391 = vmatmul.mubr.f32.gmra.mrb[0].mxu0 %v4390
      %v4392 = vpop.f32.mrb[0].mxu0
      %v4393 = vadd.f32 %v3291, %v4392
      %v4394 = vpop.f32.mrb[0].mxu0
      %v4395 = vadd.f32 %v3293, %v4394
      %4396 = vmatprep.mubr.f32.mxu0 0.0
      %v4397 = vand.u32 %v324, 4294901760
      %v4398 = vsub.f32 %v324, %v4397
      %v4399 = vand.u32 %v4398, 4294901760
      %4400 = vmatmul.mubr.f32.gmra.mrb[0].mxu0 %v4399
      %v4401 = vpop.f32.mrb[0].mxu0
      %v4402 = vadd.f32 %v3299, %v4401
      %v4403 = vpop.f32.mrb[0].mxu0
      %v4404 = vadd.f32 %v3301, %v4403
      %4405 = vmatprep.mubr.f32.mxu0 0.0
      %v4406 = vand.u32 %v327, 4294901760
      %v4407 = vsub.f32 %v327, %v4406
      %v4408 = vand.u32 %v4407, 4294901760
      %4409 = vmatmul.mubr.f32.gmra.mrb[0].mxu0 %v4408
      %v4410 = vpop.f32.mrb[0].mxu0
      %v4411 = vadd.f32 %v3307, %v4410
      %v4412 = vpop.f32.mrb[0].mxu0
      %v4413 = vadd.f32 %v3309, %v4412
      %4414 = vmatprep.mubr.f32.mxu0 0.0
      %v4415 = vand.u32 %v330, 4294901760
      %v4416 = vsub.f32 %v330, %v4415
      %v4417 = vand.u32 %v4416, 4294901760
      %4418 = vmatmul.mubr.f32.gmra.mrb[0].mxu0 %v4417
      %v4419 = vpop.f32.mrb[0].mxu0
      %v4420 = vadd.f32 %v3315, %v4419
      %v4421 = vpop.f32.mrb[0].mxu0
      %v4422 = vadd.f32 %v3317, %v4421
      %4423 = vmatprep.mubr.f32.mxu0 0.0
      %v4424 = vand.u32 %v333, 4294901760
      %v4425 = vsub.f32 %v333, %v4424
      %v4426 = vand.u32 %v4425, 4294901760
      %4427 = vmatmul.mubr.f32.gmra.mrb[0].mxu0 %v4426
      %v4428 = vpop.f32.mrb[0].mxu0
      %v4429 = vadd.f32 %v3323, %v4428
      %v4430 = vpop.f32.mrb[0].mxu0
      %v4431 = vadd.f32 %v3325, %v4430
      %4432 = vmatprep.mubr.f32.mxu0 0.0
      %v4433 = vand.u32 %v336, 4294901760
      %v4434 = vsub.f32 %v336, %v4433
      %v4435 = vand.u32 %v4434, 4294901760
      %4436 = vmatmul.mubr.f32.gmra.mrb[0].mxu0 %v4435
      %v4437 = vpop.f32.mrb[0].mxu0
      %v4438 = vadd.f32 %v3331, %v4437
      %v4439 = vpop.f32.mrb[0].mxu0
      %v4440 = vadd.f32 %v3333, %v4439
      %4441 = vmatprep.mubr.f32.mxu0 0.0
      %v4442 = vand.u32 %v339, 4294901760
      %v4443 = vsub.f32 %v339, %v4442
      %v4444 = vand.u32 %v4443, 4294901760
      %4445 = vmatmul.mubr.f32.gmra.mrb[0].mxu0 %v4444
      %v4446 = vpop.f32.mrb[0].mxu0
      %v4447 = vadd.f32 %v3339, %v4446
      %v4448 = vpop.f32.mrb[0].mxu0
      %v4449 = vadd.f32 %v3341, %v4448
      %4450 = vmatprep.mubr.f32.mxu0 0.0
      %v4451 = vand.u32 %v342, 4294901760
      %v4452 = vsub.f32 %v342, %v4451
      %v4453 = vand.u32 %v4452, 4294901760
      %4454 = vmatmul.mubr.f32.gmra.mrb[0].mxu0 %v4453
      %v4455 = vpop.f32.mrb[0].mxu0
      %v4456 = vadd.f32 %v3347, %v4455
      %v4457 = vpop.f32.mrb[0].mxu0
      %v4458 = vadd.f32 %v3349, %v4457
      %4459 = vmatprep.mubr.f32.mxu0 0.0
      %v4460 = vand.u32 %v345, 4294901760
      %v4461 = vsub.f32 %v345, %v4460
      %v4462 = vand.u32 %v4461, 4294901760
      %4463 = vmatmul.mubr.f32.gmra.mrb[0].mxu0 %v4462
      %v4464 = vpop.f32.mrb[0].mxu0
      %v4465 = vadd.f32 %v3355, %v4464
      %v4466 = vpop.f32.mrb[0].mxu0
      %v4467 = vadd.f32 %v3357, %v4466
      %4468 = vmatprep.mubr.f32.mxu0 0.0
      %v4469 = vand.u32 %v348, 4294901760
      %v4470 = vsub.f32 %v348, %v4469
      %v4471 = vand.u32 %v4470, 4294901760
      %4472 = vmatmul.mubr.f32.gmra.mrb[0].mxu0 %v4471
      %v4473 = vpop.f32.mrb[0].mxu0
      %v4474 = vadd.f32 %v3363, %v4473
      %v4475 = vpop.f32.mrb[0].mxu0
      %v4476 = vadd.f32 %v3365, %v4475
      %4477 = vmatprep.mubr.f32.mxu0 0.0
      %v4478 = vand.u32 %v351, 4294901760
      %v4479 = vsub.f32 %v351, %v4478
      %v4480 = vand.u32 %v4479, 4294901760
      %4481 = vmatmul.mubr.f32.gmra.mrb[0].mxu0 %v4480
      %v4482 = vpop.f32.mrb[0].mxu0
      %v4483 = vadd.f32 %v3371, %v4482
      %v4484 = vpop.f32.mrb[0].mxu0
      %v4485 = vadd.f32 %v3373, %v4484
      %4486 = vmatprep.mubr.f32.mxu0 0.0
      %v4487 = vand.u32 %v354, 4294901760
      %v4488 = vsub.f32 %v354, %v4487
      %v4489 = vand.u32 %v4488, 4294901760
      %4490 = vmatmul.mubr.f32.gmra.mrb[0].mxu0 %v4489
      %v4491 = vpop.f32.mrb[0].mxu0
      %v4492 = vadd.f32 %v3379, %v4491
      %v4493 = vpop.f32.mrb[0].mxu0
      %v4494 = vadd.f32 %v3381, %v4493
      %4495 = vmatprep.mubr.f32.mxu0 0.0
      %v4496 = vand.u32 %v357, 4294901760
      %v4497 = vsub.f32 %v357, %v4496
      %v4498 = vand.u32 %v4497, 4294901760
      %4499 = vmatmul.mubr.f32.gmra.mrb[0].mxu0 %v4498
      %v4500 = vpop.f32.mrb[0].mxu0
      %v4501 = vadd.f32 %v3387, %v4500
      %v4502 = vpop.f32.mrb[0].mxu0
      %v4503 = vadd.f32 %v3389, %v4502
      %4504 = vmatprep.mubr.f32.mxu0 0.0
      %v4505 = vand.u32 %v360, 4294901760
      %v4506 = vsub.f32 %v360, %v4505
      %v4507 = vand.u32 %v4506, 4294901760
      %4508 = vmatmul.mubr.f32.gmra.mrb[0].mxu0 %v4507
      %v4509 = vpop.f32.mrb[0].mxu0
      %v4510 = vadd.f32 %v3395, %v4509
      %v4511 = vpop.f32.mrb[0].mxu0
      %v4512 = vadd.f32 %v3397, %v4511
      %4513 = vmatprep.mubr.f32.mxu0 0.0
      %v4514 = vand.u32 %v363, 4294901760
      %v4515 = vsub.f32 %v363, %v4514
      %v4516 = vand.u32 %v4515, 4294901760
      %4517 = vmatmul.mubr.f32.gmra.mrb[0].mxu0 %v4516
      %v4518 = vpop.f32.mrb[0].mxu0
      %v4519 = vadd.f32 %v3403, %v4518
      %v4520 = vpop.f32.mrb[0].mxu0
      %v4521 = vadd.f32 %v3405, %v4520
      %4522 = vmatprep.mubr.f32.mxu0 0.0
      %v4523 = vand.u32 %v366, 4294901760
      %v4524 = vsub.f32 %v366, %v4523
      %v4525 = vand.u32 %v4524, 4294901760
      %4526 = vmatmul.mubr.f32.gmra.mrb[0].mxu0 %v4525
      %v4527 = vpop.f32.mrb[0].mxu0
      %v4528 = vadd.f32 %v3411, %v4527
      %v4529 = vpop.f32.mrb[0].mxu0
      %v4530 = vadd.f32 %v3413, %v4529
      %4531 = vmatprep.mubr.f32.mxu0 0.0
      %v4532 = vand.u32 %v369, 4294901760
      %v4533 = vsub.f32 %v369, %v4532
      %v4534 = vand.u32 %v4533, 4294901760
      %4535 = vmatmul.mubr.f32.gmra.mrb[0].mxu0 %v4534
      %v4536 = vpop.f32.mrb[0].mxu0
      %v4537 = vadd.f32 %v3419, %v4536
      %v4538 = vpop.f32.mrb[0].mxu0
      %v4539 = vadd.f32 %v3421, %v4538
      %4540 = vmatprep.mubr.f32.mxu0 0.0
      %v4541 = vand.u32 %v372, 4294901760
      %v4542 = vsub.f32 %v372, %v4541
      %v4543 = vand.u32 %v4542, 4294901760
      %4544 = vmatmul.mubr.f32.gmra.mrb[0].mxu0 %v4543
      %v4545 = vpop.f32.mrb[0].mxu0
      %v4546 = vadd.f32 %v3427, %v4545
      %v4547 = vpop.f32.mrb[0].mxu0
      %v4548 = vadd.f32 %v3429, %v4547
      %4549 = vmatprep.mubr.f32.mxu0 0.0
      %v4550 = vand.u32 %v375, 4294901760
      %v4551 = vsub.f32 %v375, %v4550
      %v4552 = vand.u32 %v4551, 4294901760
      %4553 = vmatmul.mubr.f32.gmra.mrb[0].mxu0 %v4552
      %v4554 = vpop.f32.mrb[0].mxu0
      %v4555 = vadd.f32 %v3435, %v4554
      %v4556 = vpop.f32.mrb[0].mxu0
      %v4557 = vadd.f32 %v3437, %v4556
      %4558 = vmatprep.mubr.f32.mxu0 0.0
      %v4559 = vand.u32 %v378, 4294901760
      %v4560 = vsub.f32 %v378, %v4559
      %v4561 = vand.u32 %v4560, 4294901760
      %4562 = vmatmul.mubr.f32.gmra.mrb[0].mxu0 %v4561
      %v4563 = vpop.f32.mrb[0].mxu0
      %v4564 = vadd.f32 %v3443, %v4563
      %v4565 = vpop.f32.mrb[0].mxu0
      %v4566 = vadd.f32 %v3445, %v4565
      %4567 = vmatprep.mubr.f32.mxu0 0.0
      %v4568 = vand.u32 %v381, 4294901760
      %v4569 = vsub.f32 %v381, %v4568
      %v4570 = vand.u32 %v4569, 4294901760
      %4571 = vmatmul.mubr.f32.gmra.mrb[0].mxu0 %v4570
      %v4572 = vpop.f32.mrb[0].mxu0
      %v4573 = vadd.f32 %v3451, %v4572
      %v4574 = vpop.f32.mrb[0].mxu0
      %v4575 = vadd.f32 %v3453, %v4574
      %4576 = vmatprep.mubr.f32.mxu0 0.0
      %v4577 = vand.u32 %v384, 4294901760
      %v4578 = vsub.f32 %v384, %v4577
      %v4579 = vand.u32 %v4578, 4294901760
      %4580 = vmatmul.mubr.f32.gmra.mrb[0].mxu0 %v4579
      %v4581 = vpop.f32.mrb[0].mxu0
      %v4582 = vadd.f32 %v3459, %v4581
      %v4583 = vpop.f32.mrb[0].mxu0
      %v4584 = vadd.f32 %v3461, %v4583
      %4585 = vmatprep.mubr.f32.mxu0 0.0
      %v4586 = vand.u32 %v387, 4294901760
      %v4587 = vsub.f32 %v387, %v4586
      %v4588 = vand.u32 %v4587, 4294901760
      %4589 = vmatmul.mubr.f32.gmra.mrb[0].mxu0 %v4588
      %v4590 = vpop.f32.mrb[0].mxu0
      %v4591 = vadd.f32 %v3467, %v4590
      %v4592 = vpop.f32.mrb[0].mxu0
      %v4593 = vadd.f32 %v3469, %v4592
      %4594 = vmatprep.mubr.f32.mxu0 0.0
      %v4595 = vand.u32 %v390, 4294901760
      %v4596 = vsub.f32 %v390, %v4595
      %v4597 = vand.u32 %v4596, 4294901760
      %4598 = vmatmul.mubr.f32.gmra.mrb[0].mxu0 %v4597
      %v4599 = vpop.f32.mrb[0].mxu0
      %v4600 = vadd.f32 %v3475, %v4599
      %v4601 = vpop.f32.mrb[0].mxu0
      %v4602 = vadd.f32 %v3477, %v4601
      %4603 = vmatprep.mubr.f32.mxu0 0.0
      %v4604 = vand.u32 %v393, 4294901760
      %v4605 = vsub.f32 %v393, %v4604
      %v4606 = vand.u32 %v4605, 4294901760
      %4607 = vmatmul.mubr.f32.gmra.mrb[0].mxu0 %v4606
      %v4608 = vpop.f32.mrb[0].mxu0
      %v4609 = vadd.f32 %v3483, %v4608
      %v4610 = vpop.f32.mrb[0].mxu0
      %v4611 = vadd.f32 %v3485, %v4610
      %4612 = vmatprep.mubr.f32.mxu0 0.0
      %v4613 = vand.u32 %v396, 4294901760
      %v4614 = vsub.f32 %v396, %v4613
      %v4615 = vand.u32 %v4614, 4294901760
      %4616 = vmatmul.mubr.f32.gmra.mrb[0].mxu0 %v4615
      %v4617 = vpop.f32.mrb[0].mxu0
      %v4618 = vadd.f32 %v3491, %v4617
      %v4619 = vpop.f32.mrb[0].mxu0
      %v4620 = vadd.f32 %v3493, %v4619
      %4621 = vmatprep.mubr.f32.mxu0 0.0
      %v4622 = vand.u32 %v399, 4294901760
      %v4623 = vsub.f32 %v399, %v4622
      %v4624 = vand.u32 %v4623, 4294901760
      %4625 = vmatmul.mubr.f32.gmra.mrb[0].mxu0 %v4624
      %v4626 = vpop.f32.mrb[0].mxu0
      %v4627 = vadd.f32 %v3499, %v4626
      %v4628 = vpop.f32.mrb[0].mxu0
      %v4629 = vadd.f32 %v3501, %v4628
      %4630 = vmatprep.mubr.f32.mxu0 0.0
      %v4631 = vand.u32 %v402, 4294901760
      %v4632 = vsub.f32 %v402, %v4631
      %v4633 = vand.u32 %v4632, 4294901760
      %4634 = vmatmul.mubr.f32.gmra.mrb[0].mxu0 %v4633
      %v4635 = vpop.f32.mrb[0].mxu0
      %v4636 = vadd.f32 %v3507, %v4635
      %v4637 = vpop.f32.mrb[0].mxu0
      %v4638 = vadd.f32 %v3509, %v4637
      %4639 = vmatprep.mubr.f32.mxu0 0.0
      %v4640 = vand.u32 %v405, 4294901760
      %v4641 = vsub.f32 %v405, %v4640
      %v4642 = vand.u32 %v4641, 4294901760
      %4643 = vmatmul.mubr.f32.gmra.mrb[0].mxu0 %v4642
      %v4644 = vpop.f32.mrb[0].mxu0
      %v4645 = vadd.f32 %v3515, %v4644
      %v4646 = vpop.f32.mrb[0].mxu0
      %v4647 = vadd.f32 %v3517, %v4646
      %4648 = vmatprep.mubr.f32.mxu0 0.0
      %v4649 = vand.u32 %v408, 4294901760
      %v4650 = vsub.f32 %v408, %v4649
      %v4651 = vand.u32 %v4650, 4294901760
      %4652 = vmatmul.mubr.f32.gmra.mrb[0].mxu0 %v4651
      %v4653 = vpop.f32.mrb[0].mxu0
      %v4654 = vadd.f32 %v3523, %v4653
      %v4655 = vpop.f32.mrb[0].mxu0
      %v4656 = vadd.f32 %v3525, %v4655
      %4657 = vmatprep.mubr.f32.mxu0 0.0
      %v4658 = vand.u32 %v411, 4294901760
      %v4659 = vsub.f32 %v411, %v4658
      %v4660 = vand.u32 %v4659, 4294901760
      %4661 = vmatmul.mubr.f32.gmra.mrb[0].mxu0 %v4660
      %v4662 = vpop.f32.mrb[0].mxu0
      %v4663 = vadd.f32 %v3531, %v4662
      %v4664 = vpop.f32.mrb[0].mxu0
      %v4665 = vadd.f32 %v3533, %v4664
      %4666 = vmatprep.mubr.f32.mxu0 0.0
      %v4667 = vand.u32 %v414, 4294901760
      %v4668 = vsub.f32 %v414, %v4667
      %v4669 = vand.u32 %v4668, 4294901760
      %4670 = vmatmul.mubr.f32.gmra.mrb[0].mxu0 %v4669
      %v4671 = vpop.f32.mrb[0].mxu0
      %v4672 = vadd.f32 %v3539, %v4671
      %v4673 = vpop.f32.mrb[0].mxu0
      %v4674 = vadd.f32 %v3541, %v4673
      %4675 = vmatprep.mubr.f32.mxu0 0.0
      %v4676 = vand.u32 %v417, 4294901760
      %v4677 = vsub.f32 %v417, %v4676
      %v4678 = vand.u32 %v4677, 4294901760
      %4679 = vmatmul.mubr.f32.gmra.mrb[0].mxu0 %v4678
      %v4680 = vpop.f32.mrb[0].mxu0
      %v4681 = vadd.f32 %v3547, %v4680
      %v4682 = vpop.f32.mrb[0].mxu0
      %v4683 = vadd.f32 %v3549, %v4682
      %4684 = vmatprep.mubr.f32.mxu0 0.0
      %v4685 = vand.u32 %v420, 4294901760
      %v4686 = vsub.f32 %v420, %v4685
      %v4687 = vand.u32 %v4686, 4294901760
      %4688 = vmatmul.mubr.f32.gmra.mrb[0].mxu0 %v4687
      %v4689 = vpop.f32.mrb[0].mxu0
      %v4690 = vadd.f32 %v3555, %v4689
      %v4691 = vpop.f32.mrb[0].mxu0
      %v4692 = vadd.f32 %v3557, %v4691
      %4693 = vmatprep.mubr.f32.mxu0 0.0
      %v4694 = vand.u32 %v423, 4294901760
      %v4695 = vsub.f32 %v423, %v4694
      %v4696 = vand.u32 %v4695, 4294901760
      %4697 = vmatmul.mubr.f32.gmra.mrb[0].mxu0 %v4696
      %v4698 = vpop.f32.mrb[0].mxu0
      %v4699 = vadd.f32 %v3563, %v4698
      %v4700 = vpop.f32.mrb[0].mxu0
      %v4701 = vadd.f32 %v3565, %v4700
      %4702 = vmatprep.mubr.f32.mxu0 0.0
      %v4703 = vand.u32 %v426, 4294901760
      %v4704 = vsub.f32 %v426, %v4703
      %v4705 = vand.u32 %v4704, 4294901760
      %4706 = vmatmul.mubr.f32.gmra.mrb[0].mxu0 %v4705
      %v4707 = vpop.f32.mrb[0].mxu0
      %v4708 = vadd.f32 %v3571, %v4707
      %v4709 = vpop.f32.mrb[0].mxu0
      %v4710 = vadd.f32 %v3573, %v4709
      %4711 = vmatprep.mubr.f32.mxu0 0.0
      %v4712 = vand.u32 %v429, 4294901760
      %v4713 = vsub.f32 %v429, %v4712
      %v4714 = vand.u32 %v4713, 4294901760
      %4715 = vmatmul.mubr.f32.gmra.mrb[0].mxu0 %v4714
      %v4716 = vpop.f32.mrb[0].mxu0
      %v4717 = vadd.f32 %v3579, %v4716
      %v4718 = vpop.f32.mrb[0].mxu0
      %v4719 = vadd.f32 %v3581, %v4718
      %4720 = vmatprep.mubr.f32.mxu0 0.0
      %v4721 = vand.u32 %v432, 4294901760
      %v4722 = vsub.f32 %v432, %v4721
      %v4723 = vand.u32 %v4722, 4294901760
      %4724 = vmatmul.mubr.f32.gmra.mrb[0].mxu0 %v4723
      %v4725 = vpop.f32.mrb[0].mxu0
      %v4726 = vadd.f32 %v3587, %v4725
      %v4727 = vpop.f32.mrb[0].mxu0
      %v4728 = vadd.f32 %v3589, %v4727
      %4729 = vmatprep.mubr.f32.mxu0 0.0
      %v4730 = vand.u32 %v435, 4294901760
      %v4731 = vsub.f32 %v435, %v4730
      %v4732 = vand.u32 %v4731, 4294901760
      %4733 = vmatmul.mubr.f32.gmra.mrb[0].mxu0 %v4732
      %v4734 = vpop.f32.mrb[0].mxu0
      %v4735 = vadd.f32 %v3595, %v4734
      %v4736 = vpop.f32.mrb[0].mxu0
      %v4737 = vadd.f32 %v3597, %v4736
      %4738 = vmatprep.mubr.f32.mxu0 0.0
      %v4739 = vand.u32 %v438, 4294901760
      %v4740 = vsub.f32 %v438, %v4739
      %v4741 = vand.u32 %v4740, 4294901760
      %4742 = vmatmul.mubr.f32.gmra.mrb[0].mxu0 %v4741
      %v4743 = vpop.f32.mrb[0].mxu0
      %v4744 = vadd.f32 %v3603, %v4743
      %v4745 = vpop.f32.mrb[0].mxu0
      %v4746 = vadd.f32 %v3605, %v4745
      %4747 = vmatprep.mubr.f32.mxu0 0.0
      %v4748 = vand.u32 %v441, 4294901760
      %v4749 = vsub.f32 %v441, %v4748
      %v4750 = vand.u32 %v4749, 4294901760
      %4751 = vmatmul.mubr.f32.gmra.mrb[0].mxu0 %v4750
      %v4752 = vpop.f32.mrb[0].mxu0
      %v4753 = vadd.f32 %v3611, %v4752
      %v4754 = vpop.f32.mrb[0].mxu0
      %v4755 = vadd.f32 %v3613, %v4754
      %4756 = vmatprep.mubr.f32.mxu0 0.0
      %v4757 = vand.u32 %v444, 4294901760
      %v4758 = vsub.f32 %v444, %v4757
      %v4759 = vand.u32 %v4758, 4294901760
      %4760 = vmatmul.mubr.f32.gmra.mrb[0].mxu0 %v4759
      %v4761 = vpop.f32.mrb[0].mxu0
      %v4762 = vadd.f32 %v3619, %v4761
      %v4763 = vpop.f32.mrb[0].mxu0
      %v4764 = vadd.f32 %v3621, %v4763
      %4765 = vmatprep.mubr.f32.mxu0 0.0
      %v4766 = vand.u32 %v447, 4294901760
      %v4767 = vsub.f32 %v447, %v4766
      %v4768 = vand.u32 %v4767, 4294901760
      %4769 = vmatmul.mubr.f32.gmra.mrb[0].mxu0 %v4768
      %v4770 = vpop.f32.mrb[0].mxu0
      %v4771 = vadd.f32 %v3627, %v4770
      %v4772 = vpop.f32.mrb[0].mxu0
      %v4773 = vadd.f32 %v3629, %v4772
      %4774 = vmatprep.mubr.f32.mxu0 0.0
      %v4775 = vand.u32 %v450, 4294901760
      %v4776 = vsub.f32 %v450, %v4775
      %v4777 = vand.u32 %v4776, 4294901760
      %4778 = vmatmul.mubr.f32.gmra.mrb[0].mxu0 %v4777
      %v4779 = vpop.f32.mrb[0].mxu0
      %v4780 = vadd.f32 %v3635, %v4779
      %v4781 = vpop.f32.mrb[0].mxu0
      %v4782 = vadd.f32 %v3637, %v4781
      %4783 = vmatprep.mubr.f32.mxu0 0.0
      %v4784 = vand.u32 %v453, 4294901760
      %v4785 = vsub.f32 %v453, %v4784
      %v4786 = vand.u32 %v4785, 4294901760
      %4787 = vmatmul.mubr.f32.gmra.mrb[0].mxu0 %v4786
      %v4788 = vpop.f32.mrb[0].mxu0
      %v4789 = vadd.f32 %v3643, %v4788
      %v4790 = vpop.f32.mrb[0].mxu0
      %v4791 = vadd.f32 %v3645, %v4790
      %4792 = vmatprep.mubr.f32.mxu0 0.0
      %v4793 = vand.u32 %v456, 4294901760
      %v4794 = vsub.f32 %v456, %v4793
      %v4795 = vand.u32 %v4794, 4294901760
      %4796 = vmatmul.mubr.f32.gmra.mrb[0].mxu0 %v4795
      %v4797 = vpop.f32.mrb[0].mxu0
      %v4798 = vadd.f32 %v3651, %v4797
      %v4799 = vpop.f32.mrb[0].mxu0
      %v4800 = vadd.f32 %v3653, %v4799
      %4801 = vmatprep.mubr.f32.mxu0 0.0
      %v4802 = vand.u32 %v459, 4294901760
      %v4803 = vsub.f32 %v459, %v4802
      %v4804 = vand.u32 %v4803, 4294901760
      %4805 = vmatmul.mubr.f32.gmra.mrb[0].mxu0 %v4804
      %v4806 = vpop.f32.mrb[0].mxu0
      %v4807 = vadd.f32 %v3659, %v4806
      %v4808 = vpop.f32.mrb[0].mxu0
      %v4809 = vadd.f32 %v3661, %v4808
      %4810 = vmatprep.mubr.f32.mxu0 0.0
      %v4811 = vand.u32 %v462, 4294901760
      %v4812 = vsub.f32 %v462, %v4811
      %v4813 = vand.u32 %v4812, 4294901760
      %4814 = vmatmul.mubr.f32.gmra.mrb[0].mxu0 %v4813
      %v4815 = vpop.f32.mrb[0].mxu0
      %v4816 = vadd.f32 %v3667, %v4815
      %v4817 = vpop.f32.mrb[0].mxu0
      %v4818 = vadd.f32 %v3669, %v4817
      %4819 = vmatprep.mubr.f32.mxu0 0.0
      %v4820 = vand.u32 %v465, 4294901760
      %v4821 = vsub.f32 %v465, %v4820
      %v4822 = vand.u32 %v4821, 4294901760
      %4823 = vmatmul.mubr.f32.gmra.mrb[0].mxu0 %v4822
      %v4824 = vpop.f32.mrb[0].mxu0
      %v4825 = vadd.f32 %v3675, %v4824
      %v4826 = vpop.f32.mrb[0].mxu0
      %v4827 = vadd.f32 %v3677, %v4826
      %4828 = vmatprep.mubr.f32.mxu0 0.0
      %v4829 = vand.u32 %v468, 4294901760
      %v4830 = vsub.f32 %v468, %v4829
      %v4831 = vand.u32 %v4830, 4294901760
      %4832 = vmatmul.mubr.f32.gmra.mrb[0].mxu0 %v4831
      %v4833 = vpop.f32.mrb[0].mxu0
      %v4834 = vadd.f32 %v3683, %v4833
      %v4835 = vpop.f32.mrb[0].mxu0
      %v4836 = vadd.f32 %v3685, %v4835
      %4837 = vmatprep.mubr.f32.mxu0 0.0
      %v4838 = vand.u32 %v471, 4294901760
      %v4839 = vsub.f32 %v471, %v4838
      %v4840 = vand.u32 %v4839, 4294901760
      %4841 = vmatmul.mubr.f32.gmra.mrb[0].mxu0 %v4840
      %v4842 = vpop.f32.mrb[0].mxu0
      %v4843 = vadd.f32 %v3691, %v4842
      %v4844 = vpop.f32.mrb[0].mxu0
      %v4845 = vadd.f32 %v3693, %v4844
      %4846 = vmatprep.mubr.f32.mxu0 0.0
      %v4847 = vand.u32 %v474, 4294901760
      %v4848 = vsub.f32 %v474, %v4847
      %v4849 = vand.u32 %v4848, 4294901760
      %4850 = vmatmul.mubr.f32.gmra.mrb[0].mxu0 %v4849
      %v4851 = vpop.f32.mrb[0].mxu0
      %v4852 = vadd.f32 %v3699, %v4851
      %v4853 = vpop.f32.mrb[0].mxu0
      %v4854 = vadd.f32 %v3701, %v4853
      %4855 = vmatprep.mubr.f32.mxu0 0.0
      %v4856 = vand.u32 %v477, 4294901760
      %v4857 = vsub.f32 %v477, %v4856
      %v4858 = vand.u32 %v4857, 4294901760
      %4859 = vmatmul.mubr.f32.gmra.mrb[0].mxu0 %v4858
      %v4860 = vpop.f32.mrb[0].mxu0
      %v4861 = vadd.f32 %v3707, %v4860
      %v4862 = vpop.f32.mrb[0].mxu0
      %v4863 = vadd.f32 %v3709, %v4862
      %4864 = vmatprep.mubr.f32.mxu0 0.0
      %v4865 = vand.u32 %v480, 4294901760
      %v4866 = vsub.f32 %v480, %v4865
      %v4867 = vand.u32 %v4866, 4294901760
      %4868 = vmatmul.mubr.f32.gmra.mrb[0].mxu0 %v4867
      %v4869 = vpop.f32.mrb[0].mxu0
      %v4870 = vadd.f32 %v3715, %v4869
      %v4871 = vpop.f32.mrb[0].mxu0
      %v4872 = vadd.f32 %v3717, %v4871
      %4873 = vmatprep.mubr.f32.mxu0 0.0
      %v4874 = vand.u32 %v483, 4294901760
      %v4875 = vsub.f32 %v483, %v4874
      %v4876 = vand.u32 %v4875, 4294901760
      %4877 = vmatmul.mubr.f32.gmra.mrb[0].mxu0 %v4876
      %v4878 = vpop.f32.mrb[0].mxu0
      %v4879 = vadd.f32 %v3723, %v4878
      %v4880 = vpop.f32.mrb[0].mxu0
      %v4881 = vadd.f32 %v3725, %v4880
      %4882 = vmatprep.mubr.f32.mxu0 0.0
      %v4883 = vand.u32 %v486, 4294901760
      %v4884 = vsub.f32 %v486, %v4883
      %v4885 = vand.u32 %v4884, 4294901760
      %4886 = vmatmul.mubr.f32.gmra.mrb[0].mxu0 %v4885
      %v4887 = vpop.f32.mrb[0].mxu0
      %v4888 = vadd.f32 %v3731, %v4887
      %v4889 = vpop.f32.mrb[0].mxu0
      %v4890 = vadd.f32 %v3733, %v4889
      %4891 = vmatprep.mubr.f32.mxu0 0.0
      %v4892 = vand.u32 %v489, 4294901760
      %v4893 = vsub.f32 %v489, %v4892
      %v4894 = vand.u32 %v4893, 4294901760
      %4895 = vmatmul.mubr.f32.gmra.mrb[0].mxu0 %v4894
      %v4896 = vpop.f32.mrb[0].mxu0
      %v4897 = vadd.f32 %v3739, %v4896
      %v4898 = vpop.f32.mrb[0].mxu0
      %v4899 = vadd.f32 %v3741, %v4898
      %4900 = vmatprep.mubr.f32.mxu0 0.0
      %v4901 = vand.u32 %v492, 4294901760
      %v4902 = vsub.f32 %v492, %v4901
      %v4903 = vand.u32 %v4902, 4294901760
      %4904 = vmatmul.mubr.f32.gmra.mrb[0].mxu0 %v4903
      %v4905 = vpop.f32.mrb[0].mxu0
      %v4906 = vadd.f32 %v3747, %v4905
      %v4907 = vpop.f32.mrb[0].mxu0
      %v4908 = vadd.f32 %v3749, %v4907
      %4909 = vmatprep.mubr.f32.mxu0 0.0
      %v4910 = vand.u32 %v495, 4294901760
      %v4911 = vsub.f32 %v495, %v4910
      %v4912 = vand.u32 %v4911, 4294901760
      %4913 = vmatmul.mubr.f32.gmra.mrb[0].mxu0 %v4912
      %v4914 = vpop.f32.mrb[0].mxu0
      %v4915 = vadd.f32 %v3755, %v4914
      %v4916 = vpop.f32.mrb[0].mxu0
      %v4917 = vadd.f32 %v3757, %v4916
      %4918 = vmatprep.mubr.f32.mxu0 0.0
      %v4919 = vand.u32 %v498, 4294901760
      %v4920 = vsub.f32 %v498, %v4919
      %v4921 = vand.u32 %v4920, 4294901760
      %4922 = vmatmul.mubr.f32.gmra.mrb[0].mxu0 %v4921
      %v4923 = vpop.f32.mrb[0].mxu0
      %v4924 = vadd.f32 %v3763, %v4923
      %v4925 = vpop.f32.mrb[0].mxu0
      %v4926 = vadd.f32 %v3765, %v4925
      %4927 = vmatprep.mubr.f32.mxu0 0.0
      %v4928 = vand.u32 %v501, 4294901760
      %v4929 = vsub.f32 %v501, %v4928
      %v4930 = vand.u32 %v4929, 4294901760
      %4931 = vmatmul.mubr.f32.gmra.mrb[0].mxu0 %v4930
      %v4932 = vpop.f32.mrb[0].mxu0
      %v4933 = vadd.f32 %v3771, %v4932
      %v4934 = vpop.f32.mrb[0].mxu0
      %v4935 = vadd.f32 %v3773, %v4934
      %4936 = vmatprep.mubr.f32.mxu0 0.0
      %v4937 = vand.u32 %v504, 4294901760
      %v4938 = vsub.f32 %v504, %v4937
      %v4939 = vand.u32 %v4938, 4294901760
      %4940 = vmatmul.mubr.f32.gmra.mrb[0].mxu0 %v4939
      %v4941 = vpop.f32.mrb[0].mxu0
      %v4942 = vadd.f32 %v3779, %v4941
      %v4943 = vpop.f32.mrb[0].mxu0
      %v4944 = vadd.f32 %v3781, %v4943
      %4945 = vmatprep.mubr.f32.mxu0 0.0
      %v4946 = vand.u32 %v507, 4294901760
      %v4947 = vsub.f32 %v507, %v4946
      %v4948 = vand.u32 %v4947, 4294901760
      %4949 = vmatmul.mubr.f32.gmra.mrb[0].mxu0 %v4948
      %v4950 = vpop.f32.mrb[0].mxu0
      %v4951 = vadd.f32 %v3787, %v4950
      %v4952 = vpop.f32.mrb[0].mxu0
      %v4953 = vadd.f32 %v3789, %v4952
      %4954 = vmatprep.mubr.f32.mxu0 0.0
      %v4955 = vand.u32 %v510, 4294901760
      %v4956 = vsub.f32 %v510, %v4955
      %v4957 = vand.u32 %v4956, 4294901760
      %4958 = vmatmul.mubr.f32.gmra.mrb[0].mxu0 %v4957
      %v4959 = vpop.f32.mrb[0].mxu0
      %v4960 = vadd.f32 %v3795, %v4959
      %v4961 = vpop.f32.mrb[0].mxu0
      %v4962 = vadd.f32 %v3797, %v4961
      %4963 = vmatprep.mubr.f32.mxu0 0.0
      %v4964 = vand.u32 %v513, 4294901760
      %v4965 = vsub.f32 %v513, %v4964
      %v4966 = vand.u32 %v4965, 4294901760
      %4967 = vmatmul.mubr.f32.gmra.mrb[0].mxu0 %v4966
      %v4968 = vpop.f32.mrb[0].mxu0
      %v4969 = vadd.f32 %v3803, %v4968
      %v4970 = vpop.f32.mrb[0].mxu0
      %v4971 = vadd.f32 %v3805, %v4970
      %4972 = vmatprep.mubr.f32.mxu0 0.0
      %v4973 = vand.u32 %v516, 4294901760
      %v4974 = vsub.f32 %v516, %v4973
      %v4975 = vand.u32 %v4974, 4294901760
      %4976 = vmatmul.mubr.f32.gmra.mrb[0].mxu0 %v4975
      %v4977 = vpop.f32.mrb[0].mxu0
      %v4978 = vadd.f32 %v3811, %v4977
      %v4979 = vpop.f32.mrb[0].mxu0
      %v4980 = vadd.f32 %v3813, %v4979
      %4981 = vmatprep.mubr.f32.mxu0 0.0
      %v4982 = vand.u32 %v519, 4294901760
      %v4983 = vsub.f32 %v519, %v4982
      %v4984 = vand.u32 %v4983, 4294901760
      %4985 = vmatmul.mubr.f32.gmra.mrb[0].mxu0 %v4984
      %v4986 = vpop.f32.mrb[0].mxu0
      %v4987 = vadd.f32 %v3819, %v4986
      %v4988 = vpop.f32.mrb[0].mxu0
      %v4989 = vadd.f32 %v3821, %v4988
      %4990 = vmatprep.mubr.f32.mxu0 0.0
      %v4991 = vand.u32 %v522, 4294901760
      %v4992 = vsub.f32 %v522, %v4991
      %v4993 = vand.u32 %v4992, 4294901760
      %4994 = vmatmul.mubr.f32.gmra.mrb[0].mxu0 %v4993
      %v4995 = vpop.f32.mrb[0].mxu0
      %v4996 = vadd.f32 %v3827, %v4995
      %v4997 = vpop.f32.mrb[0].mxu0
      %v4998 = vadd.f32 %v3829, %v4997
      %4999 = vmatprep.mubr.f32.mxu0 0.0
      %v5000 = vand.u32 %v525, 4294901760
      %v5001 = vsub.f32 %v525, %v5000
      %v5002 = vand.u32 %v5001, 4294901760
      %5003 = vmatmul.mubr.f32.gmra.mrb[0].mxu0 %v5002
      %v5004 = vpop.f32.mrb[0].mxu0
      %v5005 = vadd.f32 %v3835, %v5004
      %v5006 = vpop.f32.mrb[0].mxu0
      %v5007 = vadd.f32 %v3837, %v5006
      %5008 = vmatprep.mubr.f32.mxu0 0.0
      %v5009 = vand.u32 %v528, 4294901760
      %v5010 = vsub.f32 %v528, %v5009
      %v5011 = vand.u32 %v5010, 4294901760
      %5012 = vmatmul.mubr.f32.gmra.mrb[0].mxu0 %v5011
      %v5013 = vpop.f32.mrb[0].mxu0
      %v5014 = vadd.f32 %v3843, %v5013
      %v5015 = vpop.f32.mrb[0].mxu0
      %v5016 = vadd.f32 %v3845, %v5015
      %5017 = vmatprep.mubr.f32.mxu0 0.0
      %v5018 = vand.u32 %v531, 4294901760
      %v5019 = vsub.f32 %v531, %v5018
      %v5020 = vand.u32 %v5019, 4294901760
      %5021 = vmatmul.mubr.f32.gmra.mrb[0].mxu0 %v5020
      %v5022 = vpop.f32.mrb[0].mxu0
      %v5023 = vadd.f32 %v3851, %v5022
      %v5024 = vpop.f32.mrb[0].mxu0
      %v5025 = vadd.f32 %v3853, %v5024
      %5026 = vmatprep.mubr.f32.mxu0 0.0
      %v5027 = vand.u32 %v534, 4294901760
      %v5028 = vsub.f32 %v534, %v5027
      %v5029 = vand.u32 %v5028, 4294901760
      %5030 = vmatmul.mubr.f32.gmra.mrb[0].mxu0 %v5029
      %v5031 = vpop.f32.mrb[0].mxu0
      %v5032 = vadd.f32 %v3859, %v5031
      %v5033 = vpop.f32.mrb[0].mxu0
      %v5034 = vadd.f32 %v3861, %v5033
      %5035 = vmatprep.mubr.f32.mxu0 0.0
      %v5036 = vand.u32 %v537, 4294901760
      %v5037 = vsub.f32 %v537, %v5036
      %v5038 = vand.u32 %v5037, 4294901760
      %5039 = vmatmul.mubr.f32.gmra.mrb[0].mxu0 %v5038
      %v5040 = vpop.f32.mrb[0].mxu0
      %v5041 = vadd.f32 %v3867, %v5040
      %v5042 = vpop.f32.mrb[0].mxu0
      %v5043 = vadd.f32 %v3869, %v5042
      %5044 = vmatprep.mubr.f32.mxu0 0.0
      %v5045 = vand.u32 %v540, 4294901760
      %v5046 = vsub.f32 %v540, %v5045
      %v5047 = vand.u32 %v5046, 4294901760
      %5048 = vmatmul.mubr.f32.gmra.mrb[0].mxu0 %v5047
      %v5049 = vpop.f32.mrb[0].mxu0
      %v5050 = vadd.f32 %v3875, %v5049
      %v5051 = vpop.f32.mrb[0].mxu0
      %v5052 = vadd.f32 %v3877, %v5051
      %5053 = vmatprep.mubr.f32.mxu0 0.0
      %v5054 = vand.u32 %v543, 4294901760
      %v5055 = vsub.f32 %v543, %v5054
      %v5056 = vand.u32 %v5055, 4294901760
      %5057 = vmatmul.mubr.f32.gmra.mrb[0].mxu0 %v5056
      %v5058 = vpop.f32.mrb[0].mxu0
      %v5059 = vadd.f32 %v3883, %v5058
      %v5060 = vpop.f32.mrb[0].mxu0
      %v5061 = vadd.f32 %v3885, %v5060
      %5062 = vmatprep.mubr.f32.mxu0 0.0
      %v5063 = vand.u32 %v546, 4294901760
      %v5064 = vsub.f32 %v546, %v5063
      %v5065 = vand.u32 %v5064, 4294901760
      %5066 = vmatmul.mubr.f32.gmra.mrb[0].mxu0 %v5065
      %v5067 = vpop.f32.mrb[0].mxu0
      %v5068 = vadd.f32 %v3891, %v5067
      %v5069 = vpop.f32.mrb[0].mxu0
      %v5070 = vadd.f32 %v3893, %v5069
      %5071 = vmatprep.mubr.f32.mxu0 0.0
      %v5072 = vand.u32 %v549, 4294901760
      %v5073 = vsub.f32 %v549, %v5072
      %v5074 = vand.u32 %v5073, 4294901760
      %5075 = vmatmul.mubr.f32.gmra.mrb[0].mxu0 %v5074
      %v5076 = vpop.f32.mrb[0].mxu0
      %v5077 = vadd.f32 %v3899, %v5076
      %v5078 = vpop.f32.mrb[0].mxu0
      %v5079 = vadd.f32 %v3901, %v5078
      %5080 = vmatprep.mubr.f32.mxu0 0.0
      %v5081 = vand.u32 %v552, 4294901760
      %v5082 = vsub.f32 %v552, %v5081
      %v5083 = vand.u32 %v5082, 4294901760
      %5084 = vmatmul.mubr.f32.gmra.mrb[0].mxu0 %v5083
      %v5085 = vpop.f32.mrb[0].mxu0
      %v5086 = vadd.f32 %v3907, %v5085
      %v5087 = vpop.f32.mrb[0].mxu0
      %v5088 = vadd.f32 %v3909, %v5087
      %5089 = vmatprep.mubr.f32.mxu0 0.0
      %v5090 = vand.u32 %v555, 4294901760
      %v5091 = vsub.f32 %v555, %v5090
      %v5092 = vand.u32 %v5091, 4294901760
      %5093 = vmatmul.mubr.f32.gmra.mrb[0].mxu0 %v5092
      %v5094 = vpop.f32.mrb[0].mxu0
      %v5095 = vadd.f32 %v3915, %v5094
      %v5096 = vpop.f32.mrb[0].mxu0
      %v5097 = vadd.f32 %v3917, %v5096
      %5098 = vmatprep.mubr.f32.mxu0 0.0
      %v5099 = vand.u32 %v558, 4294901760
      %v5100 = vsub.f32 %v558, %v5099
      %v5101 = vand.u32 %v5100, 4294901760
      %5102 = vmatmul.mubr.f32.gmra.mrb[0].mxu0 %v5101
      %v5103 = vpop.f32.mrb[0].mxu0
      %v5104 = vadd.f32 %v3923, %v5103
      %v5105 = vpop.f32.mrb[0].mxu0
      %v5106 = vadd.f32 %v3925, %v5105
      %5107 = vmatprep.mubr.f32.mxu0 0.0
      %v5108 = vand.u32 %v561, 4294901760
      %v5109 = vsub.f32 %v561, %v5108
      %v5110 = vand.u32 %v5109, 4294901760
      %5111 = vmatmul.mubr.f32.gmra.mrb[0].mxu0 %v5110
      %v5112 = vpop.f32.mrb[0].mxu0
      %v5113 = vadd.f32 %v3931, %v5112
      %v5114 = vpop.f32.mrb[0].mxu0
      %v5115 = vadd.f32 %v3933, %v5114
      %5116 = vmatprep.mubr.f32.mxu0 0.0
      %v5117 = vand.u32 %v564, 4294901760
      %v5118 = vsub.f32 %v564, %v5117
      %v5119 = vand.u32 %v5118, 4294901760
      %5120 = vmatmul.mubr.f32.gmra.mrb[0].mxu0 %v5119
      %v5121 = vpop.f32.mrb[0].mxu0
      %v5122 = vadd.f32 %v3939, %v5121
      %v5123 = vpop.f32.mrb[0].mxu0
      %v5124 = vadd.f32 %v3941, %v5123
      %5125 = vmatprep.mubr.f32.mxu0 0.0
      %v5126 = vand.u32 %v567, 4294901760
      %v5127 = vsub.f32 %v567, %v5126
      %v5128 = vand.u32 %v5127, 4294901760
      %5129 = vmatmul.mubr.f32.gmra.mrb[0].mxu0 %v5128
      %v5130 = vpop.f32.mrb[0].mxu0
      %v5131 = vadd.f32 %v3947, %v5130
      %v5132 = vpop.f32.mrb[0].mxu0
      %v5133 = vadd.f32 %v3949, %v5132
      %5134 = vmatprep.mubr.f32.mxu0 0.0
      %v5135 = vand.u32 %v570, 4294901760
      %v5136 = vsub.f32 %v570, %v5135
      %v5137 = vand.u32 %v5136, 4294901760
      %5138 = vmatmul.mubr.f32.gmra.mrb[0].mxu0 %v5137
      %v5139 = vpop.f32.mrb[0].mxu0
      %v5140 = vadd.f32 %v3955, %v5139
      %v5141 = vpop.f32.mrb[0].mxu0
      %v5142 = vadd.f32 %v3957, %v5141
      %5143 = vmatprep.mubr.f32.mxu0 0.0
      %v5144 = vand.u32 %v573, 4294901760
      %v5145 = vsub.f32 %v573, %v5144
      %v5146 = vand.u32 %v5145, 4294901760
      %5147 = vmatmul.mubr.f32.gmra.mrb[0].mxu0 %v5146
      %v5148 = vpop.f32.mrb[0].mxu0
      %v5149 = vadd.f32 %v3963, %v5148
      %v5150 = vpop.f32.mrb[0].mxu0
      %v5151 = vadd.f32 %v3965, %v5150
      %5152 = vmatprep.mubr.f32.mxu0 0.0
      %v5153 = vand.u32 %v576, 4294901760
      %v5154 = vsub.f32 %v576, %v5153
      %v5155 = vand.u32 %v5154, 4294901760
      %5156 = vmatmul.mubr.f32.gmra.mrb[0].mxu0 %v5155
      %v5157 = vpop.f32.mrb[0].mxu0
      %v5158 = vadd.f32 %v3971, %v5157
      %v5159 = vpop.f32.mrb[0].mxu0
      %v5160 = vadd.f32 %v3973, %v5159
      %5161 = vmatprep.mubr.f32.mxu0 0.0
      %v5162 = vand.u32 %v579, 4294901760
      %v5163 = vsub.f32 %v579, %v5162
      %v5164 = vand.u32 %v5163, 4294901760
      %5165 = vmatmul.mubr.f32.gmra.mrb[0].mxu0 %v5164
      %v5166 = vpop.f32.mrb[0].mxu0
      %v5167 = vadd.f32 %v3979, %v5166
      %v5168 = vpop.f32.mrb[0].mxu0
      %v5169 = vadd.f32 %v3981, %v5168
      %5170 = vmatprep.mubr.f32.mxu0 0.0
      %v5171 = vand.u32 %v582, 4294901760
      %v5172 = vsub.f32 %v582, %v5171
      %v5173 = vand.u32 %v5172, 4294901760
      %5174 = vmatmul.mubr.f32.gmra.mrb[0].mxu0 %v5173
      %v5175 = vpop.f32.mrb[0].mxu0
      %v5176 = vadd.f32 %v3987, %v5175
      %v5177 = vpop.f32.mrb[0].mxu0
      %v5178 = vadd.f32 %v3989, %v5177
      %5179 = vmatprep.mubr.f32.mxu0 0.0
      %v5180 = vand.u32 %v585, 4294901760
      %v5181 = vsub.f32 %v585, %v5180
      %v5182 = vand.u32 %v5181, 4294901760
      %5183 = vmatmul.mubr.f32.gmra.mrb[0].mxu0 %v5182
      %v5184 = vpop.f32.mrb[0].mxu0
      %v5185 = vadd.f32 %v3995, %v5184
      %v5186 = vpop.f32.mrb[0].mxu0
      %v5187 = vadd.f32 %v3997, %v5186
      %5188 = vmatprep.mubr.f32.mxu0 0.0
      %v5189 = vand.u32 %v588, 4294901760
      %v5190 = vsub.f32 %v588, %v5189
      %v5191 = vand.u32 %v5190, 4294901760
      %5192 = vmatmul.mubr.f32.gmra.mrb[0].mxu0 %v5191
      %v5193 = vpop.f32.mrb[0].mxu0
      %v5194 = vadd.f32 %v4003, %v5193
      %v5195 = vpop.f32.mrb[0].mxu0
      %v5196 = vadd.f32 %v4005, %v5195
      %5197 = vmatprep.mubr.f32.mxu0 0.0
      %v5198 = vand.u32 %v591, 4294901760
      %v5199 = vsub.f32 %v591, %v5198
      %v5200 = vand.u32 %v5199, 4294901760
      %5201 = vmatmul.mubr.f32.gmra.mrb[0].mxu0 %v5200
      %v5202 = vpop.f32.mrb[0].mxu0
      %v5203 = vadd.f32 %v4011, %v5202
      %v5204 = vpop.f32.mrb[0].mxu0
      %v5205 = vadd.f32 %v4013, %v5204
      %5206 = vmatprep.mubr.f32.mxu0 0.0
      %v5207 = vand.u32 %v594, 4294901760
      %v5208 = vsub.f32 %v594, %v5207
      %v5209 = vand.u32 %v5208, 4294901760
      %5210 = vmatmul.mubr.f32.gmra.mrb[0].mxu0 %v5209
      %v5211 = vpop.f32.mrb[0].mxu0
      %v5212 = vadd.f32 %v4019, %v5211
      %v5213 = vpop.f32.mrb[0].mxu0
      %v5214 = vadd.f32 %v4021, %v5213
      %5215 = vmatprep.mubr.f32.mxu0 0.0
      %v5216 = vand.u32 %v597, 4294901760
      %v5217 = vsub.f32 %v597, %v5216
      %v5218 = vand.u32 %v5217, 4294901760
      %5219 = vmatmul.mubr.f32.gmra.mrb[0].mxu0 %v5218
      %v5220 = vpop.f32.mrb[0].mxu0
      %v5221 = vadd.f32 %v4027, %v5220
      %v5222 = vpop.f32.mrb[0].mxu0
      %v5223 = vadd.f32 %v4029, %v5222
      %5224 = vmatprep.mubr.f32.mxu0 0.0
      %v5225 = vand.u32 %v600, 4294901760
      %v5226 = vsub.f32 %v600, %v5225
      %v5227 = vand.u32 %v5226, 4294901760
      %5228 = vmatmul.mubr.f32.gmra.mrb[0].mxu0 %v5227
      %v5229 = vpop.f32.mrb[0].mxu0
      %v5230 = vadd.f32 %v4035, %v5229
      %v5231 = vpop.f32.mrb[0].mxu0
      %v5232 = vadd.f32 %v4037, %v5231
      %5233 = vmatprep.mubr.f32.mxu0 0.0
      %v5234 = vand.u32 %v603, 4294901760
      %v5235 = vsub.f32 %v603, %v5234
      %v5236 = vand.u32 %v5235, 4294901760
      %5237 = vmatmul.mubr.f32.gmra.mrb[0].mxu0 %v5236
      %v5238 = vpop.f32.mrb[0].mxu0
      %v5239 = vadd.f32 %v4043, %v5238
      %v5240 = vpop.f32.mrb[0].mxu0
      %v5241 = vadd.f32 %v4045, %v5240
      %5242 = vmatprep.mubr.f32.mxu0 0.0
      %v5243 = vand.u32 %v606, 4294901760
      %v5244 = vsub.f32 %v606, %v5243
      %v5245 = vand.u32 %v5244, 4294901760
      %5246 = vmatmul.mubr.f32.gmra.mrb[0].mxu0 %v5245
      %v5247 = vpop.f32.mrb[0].mxu0
      %v5248 = vadd.f32 %v4051, %v5247
      %v5249 = vpop.f32.mrb[0].mxu0
      %v5250 = vadd.f32 %v4053, %v5249
      %5251 = vmatprep.mubr.f32.mxu0 0.0
      %v5252 = vand.u32 %v609, 4294901760
      %v5253 = vsub.f32 %v609, %v5252
      %v5254 = vand.u32 %v5253, 4294901760
      %5255 = vmatmul.mubr.f32.gmra.mrb[0].mxu0 %v5254
      %v5256 = vpop.f32.mrb[0].mxu0
      %v5257 = vadd.f32 %v4059, %v5256
      %v5258 = vpop.f32.mrb[0].mxu0
      %v5259 = vadd.f32 %v4061, %v5258
      %5260 = vmatprep.mubr.f32.mxu0 0.0
      %v5261 = vand.u32 %v612, 4294901760
      %v5262 = vsub.f32 %v612, %v5261
      %v5263 = vand.u32 %v5262, 4294901760
      %5264 = vmatmul.mubr.f32.gmra.mrb[0].mxu0 %v5263
      %v5265 = vpop.f32.mrb[0].mxu0
      %v5266 = vadd.f32 %v4067, %v5265
      %v5267 = vpop.f32.mrb[0].mxu0
      %v5268 = vadd.f32 %v4069, %v5267
      %5269 = vmatprep.mubr.f32.mxu0 0.0
      %v5270 = vand.u32 %v615, 4294901760
      %v5271 = vsub.f32 %v615, %v5270
      %v5272 = vand.u32 %v5271, 4294901760
      %5273 = vmatmul.mubr.f32.gmra.mrb[0].mxu0 %v5272
      %v5274 = vpop.f32.mrb[0].mxu0
      %v5275 = vadd.f32 %v4075, %v5274
      %v5276 = vpop.f32.mrb[0].mxu0
      %v5277 = vadd.f32 %v4077, %v5276
      %5278 = vmatprep.mubr.f32.mxu0 0.0
      %v5279 = vand.u32 %v618, 4294901760
      %v5280 = vsub.f32 %v618, %v5279
      %v5281 = vand.u32 %v5280, 4294901760
      %5282 = vmatmul.mubr.f32.gmra.mrb[0].mxu0 %v5281
      %v5283 = vpop.f32.mrb[0].mxu0
      %v5284 = vadd.f32 %v4083, %v5283
      %v5285 = vpop.f32.mrb[0].mxu0
      %v5286 = vadd.f32 %v4085, %v5285
      %5287 = vmatprep.mubr.f32.mxu0 0.0
      %v5288 = vand.u32 %v621, 4294901760
      %v5289 = vsub.f32 %v621, %v5288
      %v5290 = vand.u32 %v5289, 4294901760
      %5291 = vmatmul.mubr.f32.gmra.mrb[0].mxu0 %v5290
      %v5292 = vpop.f32.mrb[0].mxu0
      %v5293 = vadd.f32 %v4091, %v5292
      %v5294 = vpop.f32.mrb[0].mxu0
      %v5295 = vadd.f32 %v4093, %v5294
      %5296 = vmatprep.mubr.f32.mxu0 0.0
      %v5297 = vand.u32 %v624, 4294901760
      %v5298 = vsub.f32 %v624, %v5297
      %v5299 = vand.u32 %v5298, 4294901760
      %5300 = vmatmul.mubr.f32.gmra.mrb[0].mxu0 %v5299
      %v5301 = vpop.f32.mrb[0].mxu0
      %v5302 = vadd.f32 %v4099, %v5301
      %v5303 = vpop.f32.mrb[0].mxu0
      %v5304 = vadd.f32 %v4101, %v5303
      %5305 = vmatprep.mubr.f32.mxu0 0.0
      %v5306 = vand.u32 %v627, 4294901760
      %v5307 = vsub.f32 %v627, %v5306
      %v5308 = vand.u32 %v5307, 4294901760
      %5309 = vmatmul.mubr.f32.gmra.mrb[0].mxu0 %v5308
      %v5310 = vpop.f32.mrb[0].mxu0
      %v5311 = vadd.f32 %v4107, %v5310
      %v5312 = vpop.f32.mrb[0].mxu0
      %v5313 = vadd.f32 %v4109, %v5312
      %5314 = vmatprep.mubr.f32.mxu0 0.0
      %v5315 = vand.u32 %v630, 4294901760
      %v5316 = vsub.f32 %v630, %v5315
      %v5317 = vand.u32 %v5316, 4294901760
      %5318 = vmatmul.mubr.f32.gmra.mrb[0].mxu0 %v5317
      %v5319 = vpop.f32.mrb[0].mxu0
      %v5320 = vadd.f32 %v4115, %v5319
      %v5321 = vpop.f32.mrb[0].mxu0
      %v5322 = vadd.f32 %v4117, %v5321
      %5323 = vmatprep.mubr.f32.mxu0 0.0
      %v5324 = vand.u32 %v633, 4294901760
      %v5325 = vsub.f32 %v633, %v5324
      %v5326 = vand.u32 %v5325, 4294901760
      %5327 = vmatmul.mubr.f32.gmra.mrb[0].mxu0 %v5326
      %v5328 = vpop.f32.mrb[0].mxu0
      %v5329 = vadd.f32 %v4123, %v5328
      %v5330 = vpop.f32.mrb[0].mxu0
      %v5331 = vadd.f32 %v4125, %v5330
      %5332 = vmatprep.mubr.f32.mxu0 0.0
      %v5333 = vand.u32 %v636, 4294901760
      %v5334 = vsub.f32 %v636, %v5333
      %v5335 = vand.u32 %v5334, 4294901760
      %5336 = vmatmul.mubr.f32.gmra.mrb[0].mxu0 %v5335
      %v5337 = vpop.f32.mrb[0].mxu0
      %v5338 = vadd.f32 %v4131, %v5337
      %v5339 = vpop.f32.mrb[0].mxu0
      %v5340 = vadd.f32 %v4133, %v5339
      %5341 = vmatprep.mubr.f32.mxu0 0.0
      %v5342 = vand.u32 %v639, 4294901760
      %v5343 = vsub.f32 %v639, %v5342
      %v5344 = vand.u32 %v5343, 4294901760
      %5345 = vmatmul.mubr.f32.gmra.mrb[0].mxu0 %v5344
      %v5346 = vpop.f32.mrb[0].mxu0
      %v5347 = vadd.f32 %v4139, %v5346
      %v5348 = vpop.f32.mrb[0].mxu0
      %v5349 = vadd.f32 %v4141, %v5348
      %5350 = vmatprep.mubr.f32.mxu0 0.0
      %v5351 = vand.u32 %v642, 4294901760
      %v5352 = vsub.f32 %v642, %v5351
      %v5353 = vand.u32 %v5352, 4294901760
      %5354 = vmatmul.mubr.f32.gmra.mrb[0].mxu0 %v5353
      %v5355 = vpop.f32.mrb[0].mxu0
      %v5356 = vadd.f32 %v4147, %v5355
      %v5357 = vpop.f32.mrb[0].mxu0
      %v5358 = vadd.f32 %v4149, %v5357
      %5359 = vmatprep.mubr.f32.mxu0 0.0
      %v5360 = vand.u32 %v645, 4294901760
      %v5361 = vsub.f32 %v645, %v5360
      %v5362 = vand.u32 %v5361, 4294901760
      %5363 = vmatmul.mubr.f32.gmra.mrb[0].mxu0 %v5362
      %v5364 = vpop.f32.mrb[0].mxu0
      %v5365 = vadd.f32 %v4155, %v5364
      %v5366 = vpop.f32.mrb[0].mxu0
      %v5367 = vadd.f32 %v4157, %v5366
      %5368 = vmatprep.mubr.f32.mxu0 0.0
      %v5369 = vand.u32 %v648, 4294901760
      %v5370 = vsub.f32 %v648, %v5369
      %v5371 = vand.u32 %v5370, 4294901760
      %5372 = vmatmul.mubr.f32.gmra.mrb[0].mxu0 %v5371
      %v5373 = vpop.f32.mrb[0].mxu0
      %v5374 = vadd.f32 %v4163, %v5373
      %v5375 = vpop.f32.mrb[0].mxu0
      %v5376 = vadd.f32 %v4165, %v5375
      %5377 = vmatprep.mubr.f32.mxu0 0.0
      %v5378 = vand.u32 %v651, 4294901760
      %v5379 = vsub.f32 %v651, %v5378
      %v5380 = vand.u32 %v5379, 4294901760
      %5381 = vmatmul.mubr.f32.gmra.mrb[0].mxu0 %v5380
      %v5382 = vpop.f32.mrb[0].mxu0
      %v5383 = vadd.f32 %v4171, %v5382
      %v5384 = vpop.f32.mrb[0].mxu0
      %v5385 = vadd.f32 %v4173, %v5384
      %5386 = vmatprep.mubr.f32.mxu0 0.0
      %v5387 = vand.u32 %v654, 4294901760
      %v5388 = vsub.f32 %v654, %v5387
      %v5389 = vand.u32 %v5388, 4294901760
      %5390 = vmatmul.mubr.f32.gmra.mrb[0].mxu0 %v5389
      %v5391 = vpop.f32.mrb[0].mxu0
      %v5392 = vadd.f32 %v4179, %v5391
      %v5393 = vpop.f32.mrb[0].mxu0
      %v5394 = vadd.f32 %v4181, %v5393
      %5395 = vmatprep.mubr.f32.mxu0 0.0
      %v5396 = vand.u32 %v657, 4294901760
      %v5397 = vsub.f32 %v657, %v5396
      %v5398 = vand.u32 %v5397, 4294901760
      %5399 = vmatmul.mubr.f32.gmra.mrb[0].mxu0 %v5398
      %v5400 = vpop.f32.mrb[0].mxu0
      %v5401 = vadd.f32 %v4187, %v5400
      %v5402 = vpop.f32.mrb[0].mxu0
      %v5403 = vadd.f32 %v4189, %v5402
      %5404 = vmatprep.mubr.f32.mxu0 0.0
      %v5405 = vand.u32 %v660, 4294901760
      %v5406 = vsub.f32 %v660, %v5405
      %v5407 = vand.u32 %v5406, 4294901760
      %5408 = vmatmul.mubr.f32.gmra.mrb[0].mxu0 %v5407
      %v5409 = vpop.f32.mrb[0].mxu0
      %v5410 = vadd.f32 %v4195, %v5409
      %v5411 = vpop.f32.mrb[0].mxu0
      %v5412 = vadd.f32 %v4197, %v5411
      %5413 = vmatprep.mubr.f32.mxu0 0.0
      %v5414 = vand.u32 %v663, 4294901760
      %v5415 = vsub.f32 %v663, %v5414
      %v5416 = vand.u32 %v5415, 4294901760
      %5417 = vmatmul.mubr.f32.gmra.mrb[0].mxu0 %v5416
      %v5418 = vpop.f32.mrb[0].mxu0
      %v5419 = vadd.f32 %v4203, %v5418
      %v5420 = vpop.f32.mrb[0].mxu0
      %v5421 = vadd.f32 %v4205, %v5420
      %5422 = vmatprep.mubr.f32.mxu0 0.0
      %v5423 = vand.u32 %v666, 4294901760
      %v5424 = vsub.f32 %v666, %v5423
      %v5425 = vand.u32 %v5424, 4294901760
      %5426 = vmatmul.mubr.f32.gmra.mrb[0].mxu0 %v5425
      %v5427 = vpop.f32.mrb[0].mxu0
      %v5428 = vadd.f32 %v4211, %v5427
      %v5429 = vpop.f32.mrb[0].mxu0
      %v5430 = vadd.f32 %v4213, %v5429
      %5431 = vmatprep.mubr.f32.mxu0 0.0
      %v5432 = vand.u32 %v669, 4294901760
      %v5433 = vsub.f32 %v669, %v5432
      %v5434 = vand.u32 %v5433, 4294901760
      %5435 = vmatmul.mubr.f32.gmra.mrb[0].mxu0 %v5434
      %v5436 = vpop.f32.mrb[0].mxu0
      %v5437 = vadd.f32 %v4219, %v5436
      %v5438 = vpop.f32.mrb[0].mxu0
      %v5439 = vadd.f32 %v4221, %v5438
      %5440 = vmatprep.mubr.f32.mxu0 0.0
      %v5441 = vand.u32 %v672, 4294901760
      %v5442 = vsub.f32 %v672, %v5441
      %v5443 = vand.u32 %v5442, 4294901760
      %5444 = vmatmul.mubr.f32.gmra.mrb[0].mxu0 %v5443
      %v5445 = vpop.f32.mrb[0].mxu0
      %v5446 = vadd.f32 %v4227, %v5445
      %v5447 = vpop.f32.mrb[0].mxu0
      %v5448 = vadd.f32 %v4229, %v5447
      %5449 = vmatprep.mubr.f32.mxu0 0.0
      %v5450 = vand.u32 %v675, 4294901760
      %v5451 = vsub.f32 %v675, %v5450
      %v5452 = vand.u32 %v5451, 4294901760
      %5453 = vmatmul.mubr.f32.gmra.mrb[0].mxu0 %v5452
      %v5454 = vpop.f32.mrb[0].mxu0
      %v5455 = vadd.f32 %v4235, %v5454
      %v5456 = vpop.f32.mrb[0].mxu0
      %v5457 = vadd.f32 %v4237, %v5456
      %5458 = vmatprep.mubr.f32.mxu0 0.0
      %v5459 = vand.u32 %v678, 4294901760
      %v5460 = vsub.f32 %v678, %v5459
      %v5461 = vand.u32 %v5460, 4294901760
      %5462 = vmatmul.mubr.f32.gmra.mrb[0].mxu0 %v5461
      %v5463 = vpop.f32.mrb[0].mxu0
      %v5464 = vadd.f32 %v4243, %v5463
      %v5465 = vpop.f32.mrb[0].mxu0
      %v5466 = vadd.f32 %v4245, %v5465
      %5467 = vmatprep.mubr.f32.mxu0 0.0
      %v5468 = vand.u32 %v681, 4294901760
      %v5469 = vsub.f32 %v681, %v5468
      %v5470 = vand.u32 %v5469, 4294901760
      %5471 = vmatmul.mubr.f32.gmra.mrb[0].mxu0 %v5470
      %v5472 = vpop.f32.mrb[0].mxu0
      %v5473 = vadd.f32 %v4251, %v5472
      %v5474 = vpop.f32.mrb[0].mxu0
      %v5475 = vadd.f32 %v4253, %v5474
      %5476 = vmatprep.mubr.f32.mxu0 0.0
      %v5477 = vand.u32 %v684, 4294901760
      %v5478 = vsub.f32 %v684, %v5477
      %v5479 = vand.u32 %v5478, 4294901760
      %5480 = vmatmul.mubr.f32.gmra.mrb[0].mxu0 %v5479
      %v5481 = vpop.f32.mrb[0].mxu0
      %v5482 = vadd.f32 %v4259, %v5481
      %v5483 = vpop.f32.mrb[0].mxu0
      %v5484 = vadd.f32 %v4261, %v5483
      %5485 = vmatprep.mubr.f32.mxu0 0.0
      %v5486 = vand.u32 %v687, 4294901760
      %v5487 = vsub.f32 %v687, %v5486
      %v5488 = vand.u32 %v5487, 4294901760
      %5489 = vmatmul.mubr.f32.gmra.mrb[0].mxu0 %v5488
      %v5490 = vpop.f32.mrb[0].mxu0
      %v5491 = vadd.f32 %v4267, %v5490
      %v5492 = vpop.f32.mrb[0].mxu0
      %v5493 = vadd.f32 %v4269, %v5492
      %5494 = vmatprep.mubr.f32.mxu0 0.0
      %v5495 = vand.u32 %v690, 4294901760
      %v5496 = vsub.f32 %v690, %v5495
      %v5497 = vand.u32 %v5496, 4294901760
      %5498 = vmatmul.mubr.f32.gmra.mrb[0].mxu0 %v5497
      %v5499 = vpop.f32.mrb[0].mxu0
      %v5500 = vadd.f32 %v4275, %v5499
      %v5501 = vpop.f32.mrb[0].mxu0
      %v5502 = vadd.f32 %v4277, %v5501
      %5503 = vdwg.mxu0
      %v5504 = vand.u32 %v300, 4294901760
      %v5505 = vsub.f32 %v300, %v5504
      %v5506 = vand.u32 %v5505, 4294901760
      %5507 = vmatprep.subr.mxu0 %v5506
      %v5508 = vand.u32 %v299, 4294901760
      %v5509 = vsub.f32 %v299, %v5508
      %v5510 = vand.u32 %v5509, 4294901760
      %5511 = vmatpush1.msra.mxu0 %v5510
      %v5512 = vand.u32 %v302, 4294901760
      %v5513 = vsub.f32 %v302, %v5512
      %v5514 = vand.u32 %v5513, 4294901760
      %5515 = vmatprep.subr.mxu0 %v5514
      %v5516 = vand.u32 %v301, 4294901760
      %v5517 = vsub.f32 %v301, %v5516
      %v5518 = vand.u32 %v5517, 4294901760
      %5519 = vmatpush1.msra.mxu0 %v5518
      %v5520 = vand.u32 %v304, 4294901760
      %v5521 = vsub.f32 %v304, %v5520
      %v5522 = vand.u32 %v5521, 4294901760
      %5523 = vmatprep.subr.mxu0 %v5522
      %v5524 = vand.u32 %v303, 4294901760
      %v5525 = vsub.f32 %v303, %v5524
      %v5526 = vand.u32 %v5525, 4294901760
      %5527 = vmatpush1.msra.mxu0 %v5526
      %v5528 = vand.u32 %v306, 4294901760
      %v5529 = vsub.f32 %v306, %v5528
      %v5530 = vand.u32 %v5529, 4294901760
      %5531 = vmatprep.subr.mxu0 %v5530
      %v5532 = vand.u32 %v305, 4294901760
      %v5533 = vsub.f32 %v305, %v5532
      %v5534 = vand.u32 %v5533, 4294901760
      %5535 = vmatpush1.msra.mxu0 %v5534
      %5536 = vmatprep.subr.mxu0 0.0
      %5537 = vmatpush1.msra.mxu0 0.0
      %5538 = vmatprep.subr.mxu0 0.0
      %5539 = vmatpush1.msra.mxu0 0.0
      %5540 = vmatprep.subr.mxu0 0.0
      %5541 = vmatpush1.msra.mxu0 0.0
      %5542 = vmatprep.subr.mxu0 0.0
      %5543 = vmatpush1.msra.mxu0 0.0
      %5544 = vmatprep.subr.mxu0 0.0
      %5545 = vmatpush1.msra.mxu0 0.0
      %5546 = vmatprep.subr.mxu0 0.0
      %5547 = vmatpush1.msra.mxu0 0.0
      %5548 = vmatprep.subr.mxu0 0.0
      %5549 = vmatpush1.msra.mxu0 0.0
      %5550 = vmatprep.subr.mxu0 0.0
      %5551 = vmatpush1.msra.mxu0 0.0
      %5552 = vmatprep.subr.mxu0 0.0
      %5553 = vmatpush1.msra.mxu0 0.0
      %5554 = vmatprep.subr.mxu0 0.0
      %5555 = vmatpush1.msra.mxu0 0.0
      %5556 = vmatprep.subr.mxu0 0.0
      %5557 = vmatpush1.msra.mxu0 0.0
      %5558 = vmatprep.subr.mxu0 0.0
      %5559 = vmatpush1.msra.mxu0 0.0
      %5560 = vmatprep.subr.mxu0 0.0
      %5561 = vmatpush1.msra.mxu0 0.0
      %5562 = vmatprep.subr.mxu0 0.0
      %5563 = vmatpush1.msra.mxu0 0.0
      %5564 = vmatprep.subr.mxu0 0.0
      %5565 = vmatpush1.msra.mxu0 0.0
      %5566 = vmatprep.subr.mxu0 0.0
      %5567 = vmatpush1.msra.mxu0 0.0
      %5568 = vmatprep.subr.mxu0 0.0
      %5569 = vmatpush1.msra.mxu0 0.0
      %5570 = vmatprep.subr.mxu0 0.0
      %5571 = vmatpush1.msra.mxu0 0.0
      %5572 = vmatprep.subr.mxu0 0.0
      %5573 = vmatpush1.msra.mxu0 0.0
      %5574 = vmatprep.subr.mxu0 0.0
      %5575 = vmatpush1.msra.mxu0 0.0
      %5576 = vmatprep.subr.mxu0 0.0
      %5577 = vmatpush1.msra.mxu0 0.0
      %5578 = vmatprep.subr.mxu0 0.0
      %5579 = vmatpush1.msra.mxu0 0.0
      %5580 = vmatprep.subr.mxu0 0.0
      %5581 = vmatpush1.msra.mxu0 0.0
      %5582 = vmatprep.subr.mxu0 0.0
      %5583 = vmatpush1.msra.mxu0 0.0
      %5584 = vmatprep.subr.mxu0 0.0
      %5585 = vmatpush1.msra.mxu0 0.0
      %5586 = vmatprep.subr.mxu0 0.0
      %5587 = vmatpush1.msra.mxu0 0.0
      %5588 = vmatprep.subr.mxu0 0.0
      %5589 = vmatpush1.msra.mxu0 0.0
      %5590 = vmatprep.subr.mxu0 0.0
      %5591 = vmatpush1.msra.mxu0 0.0
      %5592 = vmatprep.mubr.f32.mxu0 0.0
      %v5593 = vand.u32 %v309, 4294901760
      %5594 = vmatmul.mubr.f32.gmra.mrb[0].mxu0 %v5593
      %v5595 = vpop.f32.mrb[0].mxu0
      %v5596 = vadd.f32 %v4357, %v5595
      %v5597 = vpop.f32.mrb[0].mxu0
      %v5598 = vadd.f32 %v4359, %v5597
      %5599 = vmatprep.mubr.f32.mxu0 0.0
      %v5600 = vand.u32 %v312, 4294901760
      %5601 = vmatmul.mubr.f32.gmra.mrb[0].mxu0 %v5600
      %v5602 = vpop.f32.mrb[0].mxu0
      %v5603 = vadd.f32 %v4366, %v5602
      %v5604 = vpop.f32.mrb[0].mxu0
      %v5605 = vadd.f32 %v4368, %v5604
      %5606 = vmatprep.mubr.f32.mxu0 0.0
      %v5607 = vand.u32 %v315, 4294901760
      %5608 = vmatmul.mubr.f32.gmra.mrb[0].mxu0 %v5607
      %v5609 = vpop.f32.mrb[0].mxu0
      %v5610 = vadd.f32 %v4375, %v5609
      %v5611 = vpop.f32.mrb[0].mxu0
      %v5612 = vadd.f32 %v4377, %v5611
      %5613 = vmatprep.mubr.f32.mxu0 0.0
      %v5614 = vand.u32 %v318, 4294901760
      %5615 = vmatmul.mubr.f32.gmra.mrb[0].mxu0 %v5614
      %v5616 = vpop.f32.mrb[0].mxu0
      %v5617 = vadd.f32 %v4384, %v5616
      %v5618 = vpop.f32.mrb[0].mxu0
      %v5619 = vadd.f32 %v4386, %v5618
      %5620 = vmatprep.mubr.f32.mxu0 0.0
      %v5621 = vand.u32 %v321, 4294901760
      %5622 = vmatmul.mubr.f32.gmra.mrb[0].mxu0 %v5621
      %v5623 = vpop.f32.mrb[0].mxu0
      %v5624 = vadd.f32 %v4393, %v5623
      %v5625 = vpop.f32.mrb[0].mxu0
      %v5626 = vadd.f32 %v4395, %v5625
      %5627 = vmatprep.mubr.f32.mxu0 0.0
      %v5628 = vand.u32 %v324, 4294901760
      %5629 = vmatmul.mubr.f32.gmra.mrb[0].mxu0 %v5628
      %v5630 = vpop.f32.mrb[0].mxu0
      %v5631 = vadd.f32 %v4402, %v5630
      %v5632 = vpop.f32.mrb[0].mxu0
      %v5633 = vadd.f32 %v4404, %v5632
      %5634 = vmatprep.mubr.f32.mxu0 0.0
      %v5635 = vand.u32 %v327, 4294901760
      %5636 = vmatmul.mubr.f32.gmra.mrb[0].mxu0 %v5635
      %v5637 = vpop.f32.mrb[0].mxu0
      %v5638 = vadd.f32 %v4411, %v5637
      %v5639 = vpop.f32.mrb[0].mxu0
      %v5640 = vadd.f32 %v4413, %v5639
      %5641 = vmatprep.mubr.f32.mxu0 0.0
      %v5642 = vand.u32 %v330, 4294901760
      %5643 = vmatmul.mubr.f32.gmra.mrb[0].mxu0 %v5642
      %v5644 = vpop.f32.mrb[0].mxu0
      %v5645 = vadd.f32 %v4420, %v5644
      %v5646 = vpop.f32.mrb[0].mxu0
      %v5647 = vadd.f32 %v4422, %v5646
      %5648 = vmatprep.mubr.f32.mxu0 0.0
      %v5649 = vand.u32 %v333, 4294901760
      %5650 = vmatmul.mubr.f32.gmra.mrb[0].mxu0 %v5649
      %v5651 = vpop.f32.mrb[0].mxu0
      %v5652 = vadd.f32 %v4429, %v5651
      %v5653 = vpop.f32.mrb[0].mxu0
      %v5654 = vadd.f32 %v4431, %v5653
      %5655 = vmatprep.mubr.f32.mxu0 0.0
      %v5656 = vand.u32 %v336, 4294901760
      %5657 = vmatmul.mubr.f32.gmra.mrb[0].mxu0 %v5656
      %v5658 = vpop.f32.mrb[0].mxu0
      %v5659 = vadd.f32 %v4438, %v5658
      %v5660 = vpop.f32.mrb[0].mxu0
      %v5661 = vadd.f32 %v4440, %v5660
      %5662 = vmatprep.mubr.f32.mxu0 0.0
      %v5663 = vand.u32 %v339, 4294901760
      %5664 = vmatmul.mubr.f32.gmra.mrb[0].mxu0 %v5663
      %v5665 = vpop.f32.mrb[0].mxu0
      %v5666 = vadd.f32 %v4447, %v5665
      %v5667 = vpop.f32.mrb[0].mxu0
      %v5668 = vadd.f32 %v4449, %v5667
      %5669 = vmatprep.mubr.f32.mxu0 0.0
      %v5670 = vand.u32 %v342, 4294901760
      %5671 = vmatmul.mubr.f32.gmra.mrb[0].mxu0 %v5670
      %v5672 = vpop.f32.mrb[0].mxu0
      %v5673 = vadd.f32 %v4456, %v5672
      %v5674 = vpop.f32.mrb[0].mxu0
      %v5675 = vadd.f32 %v4458, %v5674
      %5676 = vmatprep.mubr.f32.mxu0 0.0
      %v5677 = vand.u32 %v345, 4294901760
      %5678 = vmatmul.mubr.f32.gmra.mrb[0].mxu0 %v5677
      %v5679 = vpop.f32.mrb[0].mxu0
      %v5680 = vadd.f32 %v4465, %v5679
      %v5681 = vpop.f32.mrb[0].mxu0
      %v5682 = vadd.f32 %v4467, %v5681
      %5683 = vmatprep.mubr.f32.mxu0 0.0
      %v5684 = vand.u32 %v348, 4294901760
      %5685 = vmatmul.mubr.f32.gmra.mrb[0].mxu0 %v5684
      %v5686 = vpop.f32.mrb[0].mxu0
      %v5687 = vadd.f32 %v4474, %v5686
      %v5688 = vpop.f32.mrb[0].mxu0
      %v5689 = vadd.f32 %v4476, %v5688
      %5690 = vmatprep.mubr.f32.mxu0 0.0
      %v5691 = vand.u32 %v351, 4294901760
      %5692 = vmatmul.mubr.f32.gmra.mrb[0].mxu0 %v5691
      %v5693 = vpop.f32.mrb[0].mxu0
      %v5694 = vadd.f32 %v4483, %v5693
      %v5695 = vpop.f32.mrb[0].mxu0
      %v5696 = vadd.f32 %v4485, %v5695
      %5697 = vmatprep.mubr.f32.mxu0 0.0
      %v5698 = vand.u32 %v354, 4294901760
      %5699 = vmatmul.mubr.f32.gmra.mrb[0].mxu0 %v5698
      %v5700 = vpop.f32.mrb[0].mxu0
      %v5701 = vadd.f32 %v4492, %v5700
      %v5702 = vpop.f32.mrb[0].mxu0
      %v5703 = vadd.f32 %v4494, %v5702
      %5704 = vmatprep.mubr.f32.mxu0 0.0
      %v5705 = vand.u32 %v357, 4294901760
      %5706 = vmatmul.mubr.f32.gmra.mrb[0].mxu0 %v5705
      %v5707 = vpop.f32.mrb[0].mxu0
      %v5708 = vadd.f32 %v4501, %v5707
      %v5709 = vpop.f32.mrb[0].mxu0
      %v5710 = vadd.f32 %v4503, %v5709
      %5711 = vmatprep.mubr.f32.mxu0 0.0
      %v5712 = vand.u32 %v360, 4294901760
      %5713 = vmatmul.mubr.f32.gmra.mrb[0].mxu0 %v5712
      %v5714 = vpop.f32.mrb[0].mxu0
      %v5715 = vadd.f32 %v4510, %v5714
      %v5716 = vpop.f32.mrb[0].mxu0
      %v5717 = vadd.f32 %v4512, %v5716
      %5718 = vmatprep.mubr.f32.mxu0 0.0
      %v5719 = vand.u32 %v363, 4294901760
      %5720 = vmatmul.mubr.f32.gmra.mrb[0].mxu0 %v5719
      %v5721 = vpop.f32.mrb[0].mxu0
      %v5722 = vadd.f32 %v4519, %v5721
      %v5723 = vpop.f32.mrb[0].mxu0
      %v5724 = vadd.f32 %v4521, %v5723
      %5725 = vmatprep.mubr.f32.mxu0 0.0
      %v5726 = vand.u32 %v366, 4294901760
      %5727 = vmatmul.mubr.f32.gmra.mrb[0].mxu0 %v5726
      %v5728 = vpop.f32.mrb[0].mxu0
      %v5729 = vadd.f32 %v4528, %v5728
      %v5730 = vpop.f32.mrb[0].mxu0
      %v5731 = vadd.f32 %v4530, %v5730
      %5732 = vmatprep.mubr.f32.mxu0 0.0
      %v5733 = vand.u32 %v369, 4294901760
      %5734 = vmatmul.mubr.f32.gmra.mrb[0].mxu0 %v5733
      %v5735 = vpop.f32.mrb[0].mxu0
      %v5736 = vadd.f32 %v4537, %v5735
      %v5737 = vpop.f32.mrb[0].mxu0
      %v5738 = vadd.f32 %v4539, %v5737
      %5739 = vmatprep.mubr.f32.mxu0 0.0
      %v5740 = vand.u32 %v372, 4294901760
      %5741 = vmatmul.mubr.f32.gmra.mrb[0].mxu0 %v5740
      %v5742 = vpop.f32.mrb[0].mxu0
      %v5743 = vadd.f32 %v4546, %v5742
      %v5744 = vpop.f32.mrb[0].mxu0
      %v5745 = vadd.f32 %v4548, %v5744
      %5746 = vmatprep.mubr.f32.mxu0 0.0
      %v5747 = vand.u32 %v375, 4294901760
      %5748 = vmatmul.mubr.f32.gmra.mrb[0].mxu0 %v5747
      %v5749 = vpop.f32.mrb[0].mxu0
      %v5750 = vadd.f32 %v4555, %v5749
      %v5751 = vpop.f32.mrb[0].mxu0
      %v5752 = vadd.f32 %v4557, %v5751
      %5753 = vmatprep.mubr.f32.mxu0 0.0
      %v5754 = vand.u32 %v378, 4294901760
      %5755 = vmatmul.mubr.f32.gmra.mrb[0].mxu0 %v5754
      %v5756 = vpop.f32.mrb[0].mxu0
      %v5757 = vadd.f32 %v4564, %v5756
      %v5758 = vpop.f32.mrb[0].mxu0
      %v5759 = vadd.f32 %v4566, %v5758
      %5760 = vmatprep.mubr.f32.mxu0 0.0
      %v5761 = vand.u32 %v381, 4294901760
      %5762 = vmatmul.mubr.f32.gmra.mrb[0].mxu0 %v5761
      %v5763 = vpop.f32.mrb[0].mxu0
      %v5764 = vadd.f32 %v4573, %v5763
      %v5765 = vpop.f32.mrb[0].mxu0
      %v5766 = vadd.f32 %v4575, %v5765
      %5767 = vmatprep.mubr.f32.mxu0 0.0
      %v5768 = vand.u32 %v384, 4294901760
      %5769 = vmatmul.mubr.f32.gmra.mrb[0].mxu0 %v5768
      %v5770 = vpop.f32.mrb[0].mxu0
      %v5771 = vadd.f32 %v4582, %v5770
      %v5772 = vpop.f32.mrb[0].mxu0
      %v5773 = vadd.f32 %v4584, %v5772
      %5774 = vmatprep.mubr.f32.mxu0 0.0
      %v5775 = vand.u32 %v387, 4294901760
      %5776 = vmatmul.mubr.f32.gmra.mrb[0].mxu0 %v5775
      %v5777 = vpop.f32.mrb[0].mxu0
      %v5778 = vadd.f32 %v4591, %v5777
      %v5779 = vpop.f32.mrb[0].mxu0
      %v5780 = vadd.f32 %v4593, %v5779
      %5781 = vmatprep.mubr.f32.mxu0 0.0
      %v5782 = vand.u32 %v390, 4294901760
      %5783 = vmatmul.mubr.f32.gmra.mrb[0].mxu0 %v5782
      %v5784 = vpop.f32.mrb[0].mxu0
      %v5785 = vadd.f32 %v4600, %v5784
      %v5786 = vpop.f32.mrb[0].mxu0
      %v5787 = vadd.f32 %v4602, %v5786
      %5788 = vmatprep.mubr.f32.mxu0 0.0
      %v5789 = vand.u32 %v393, 4294901760
      %5790 = vmatmul.mubr.f32.gmra.mrb[0].mxu0 %v5789
      %v5791 = vpop.f32.mrb[0].mxu0
      %v5792 = vadd.f32 %v4609, %v5791
      %v5793 = vpop.f32.mrb[0].mxu0
      %v5794 = vadd.f32 %v4611, %v5793
      %5795 = vmatprep.mubr.f32.mxu0 0.0
      %v5796 = vand.u32 %v396, 4294901760
      %5797 = vmatmul.mubr.f32.gmra.mrb[0].mxu0 %v5796
      %v5798 = vpop.f32.mrb[0].mxu0
      %v5799 = vadd.f32 %v4618, %v5798
      %v5800 = vpop.f32.mrb[0].mxu0
      %v5801 = vadd.f32 %v4620, %v5800
      %5802 = vmatprep.mubr.f32.mxu0 0.0
      %v5803 = vand.u32 %v399, 4294901760
      %5804 = vmatmul.mubr.f32.gmra.mrb[0].mxu0 %v5803
      %v5805 = vpop.f32.mrb[0].mxu0
      %v5806 = vadd.f32 %v4627, %v5805
      %v5807 = vpop.f32.mrb[0].mxu0
      %v5808 = vadd.f32 %v4629, %v5807
      %5809 = vmatprep.mubr.f32.mxu0 0.0
      %v5810 = vand.u32 %v402, 4294901760
      %5811 = vmatmul.mubr.f32.gmra.mrb[0].mxu0 %v5810
      %v5812 = vpop.f32.mrb[0].mxu0
      %v5813 = vadd.f32 %v4636, %v5812
      %v5814 = vpop.f32.mrb[0].mxu0
      %v5815 = vadd.f32 %v4638, %v5814
      %5816 = vmatprep.mubr.f32.mxu0 0.0
      %v5817 = vand.u32 %v405, 4294901760
      %5818 = vmatmul.mubr.f32.gmra.mrb[0].mxu0 %v5817
      %v5819 = vpop.f32.mrb[0].mxu0
      %v5820 = vadd.f32 %v4645, %v5819
      %v5821 = vpop.f32.mrb[0].mxu0
      %v5822 = vadd.f32 %v4647, %v5821
      %5823 = vmatprep.mubr.f32.mxu0 0.0
      %v5824 = vand.u32 %v408, 4294901760
      %5825 = vmatmul.mubr.f32.gmra.mrb[0].mxu0 %v5824
      %v5826 = vpop.f32.mrb[0].mxu0
      %v5827 = vadd.f32 %v4654, %v5826
      %v5828 = vpop.f32.mrb[0].mxu0
      %v5829 = vadd.f32 %v4656, %v5828
      %5830 = vmatprep.mubr.f32.mxu0 0.0
      %v5831 = vand.u32 %v411, 4294901760
      %5832 = vmatmul.mubr.f32.gmra.mrb[0].mxu0 %v5831
      %v5833 = vpop.f32.mrb[0].mxu0
      %v5834 = vadd.f32 %v4663, %v5833
      %v5835 = vpop.f32.mrb[0].mxu0
      %v5836 = vadd.f32 %v4665, %v5835
      %5837 = vmatprep.mubr.f32.mxu0 0.0
      %v5838 = vand.u32 %v414, 4294901760
      %5839 = vmatmul.mubr.f32.gmra.mrb[0].mxu0 %v5838
      %v5840 = vpop.f32.mrb[0].mxu0
      %v5841 = vadd.f32 %v4672, %v5840
      %v5842 = vpop.f32.mrb[0].mxu0
      %v5843 = vadd.f32 %v4674, %v5842
      %5844 = vmatprep.mubr.f32.mxu0 0.0
      %v5845 = vand.u32 %v417, 4294901760
      %5846 = vmatmul.mubr.f32.gmra.mrb[0].mxu0 %v5845
      %v5847 = vpop.f32.mrb[0].mxu0
      %v5848 = vadd.f32 %v4681, %v5847
      %v5849 = vpop.f32.mrb[0].mxu0
      %v5850 = vadd.f32 %v4683, %v5849
      %5851 = vmatprep.mubr.f32.mxu0 0.0
      %v5852 = vand.u32 %v420, 4294901760
      %5853 = vmatmul.mubr.f32.gmra.mrb[0].mxu0 %v5852
      %v5854 = vpop.f32.mrb[0].mxu0
      %v5855 = vadd.f32 %v4690, %v5854
      %v5856 = vpop.f32.mrb[0].mxu0
      %v5857 = vadd.f32 %v4692, %v5856
      %5858 = vmatprep.mubr.f32.mxu0 0.0
      %v5859 = vand.u32 %v423, 4294901760
      %5860 = vmatmul.mubr.f32.gmra.mrb[0].mxu0 %v5859
      %v5861 = vpop.f32.mrb[0].mxu0
      %v5862 = vadd.f32 %v4699, %v5861
      %v5863 = vpop.f32.mrb[0].mxu0
      %v5864 = vadd.f32 %v4701, %v5863
      %5865 = vmatprep.mubr.f32.mxu0 0.0
      %v5866 = vand.u32 %v426, 4294901760
      %5867 = vmatmul.mubr.f32.gmra.mrb[0].mxu0 %v5866
      %v5868 = vpop.f32.mrb[0].mxu0
      %v5869 = vadd.f32 %v4708, %v5868
      %v5870 = vpop.f32.mrb[0].mxu0
      %v5871 = vadd.f32 %v4710, %v5870
      %5872 = vmatprep.mubr.f32.mxu0 0.0
      %v5873 = vand.u32 %v429, 4294901760
      %5874 = vmatmul.mubr.f32.gmra.mrb[0].mxu0 %v5873
      %v5875 = vpop.f32.mrb[0].mxu0
      %v5876 = vadd.f32 %v4717, %v5875
      %v5877 = vpop.f32.mrb[0].mxu0
      %v5878 = vadd.f32 %v4719, %v5877
      %5879 = vmatprep.mubr.f32.mxu0 0.0
      %v5880 = vand.u32 %v432, 4294901760
      %5881 = vmatmul.mubr.f32.gmra.mrb[0].mxu0 %v5880
      %v5882 = vpop.f32.mrb[0].mxu0
      %v5883 = vadd.f32 %v4726, %v5882
      %v5884 = vpop.f32.mrb[0].mxu0
      %v5885 = vadd.f32 %v4728, %v5884
      %5886 = vmatprep.mubr.f32.mxu0 0.0
      %v5887 = vand.u32 %v435, 4294901760
      %5888 = vmatmul.mubr.f32.gmra.mrb[0].mxu0 %v5887
      %v5889 = vpop.f32.mrb[0].mxu0
      %v5890 = vadd.f32 %v4735, %v5889
      %v5891 = vpop.f32.mrb[0].mxu0
      %v5892 = vadd.f32 %v4737, %v5891
      %5893 = vmatprep.mubr.f32.mxu0 0.0
      %v5894 = vand.u32 %v438, 4294901760
      %5895 = vmatmul.mubr.f32.gmra.mrb[0].mxu0 %v5894
      %v5896 = vpop.f32.mrb[0].mxu0
      %v5897 = vadd.f32 %v4744, %v5896
      %v5898 = vpop.f32.mrb[0].mxu0
      %v5899 = vadd.f32 %v4746, %v5898
      %5900 = vmatprep.mubr.f32.mxu0 0.0
      %v5901 = vand.u32 %v441, 4294901760
      %5902 = vmatmul.mubr.f32.gmra.mrb[0].mxu0 %v5901
      %v5903 = vpop.f32.mrb[0].mxu0
      %v5904 = vadd.f32 %v4753, %v5903
      %v5905 = vpop.f32.mrb[0].mxu0
      %v5906 = vadd.f32 %v4755, %v5905
      %5907 = vmatprep.mubr.f32.mxu0 0.0
      %v5908 = vand.u32 %v444, 4294901760
      %5909 = vmatmul.mubr.f32.gmra.mrb[0].mxu0 %v5908
      %v5910 = vpop.f32.mrb[0].mxu0
      %v5911 = vadd.f32 %v4762, %v5910
      %v5912 = vpop.f32.mrb[0].mxu0
      %v5913 = vadd.f32 %v4764, %v5912
      %5914 = vmatprep.mubr.f32.mxu0 0.0
      %v5915 = vand.u32 %v447, 4294901760
      %5916 = vmatmul.mubr.f32.gmra.mrb[0].mxu0 %v5915
      %v5917 = vpop.f32.mrb[0].mxu0
      %v5918 = vadd.f32 %v4771, %v5917
      %v5919 = vpop.f32.mrb[0].mxu0
      %v5920 = vadd.f32 %v4773, %v5919
      %5921 = vmatprep.mubr.f32.mxu0 0.0
      %v5922 = vand.u32 %v450, 4294901760
      %5923 = vmatmul.mubr.f32.gmra.mrb[0].mxu0 %v5922
      %v5924 = vpop.f32.mrb[0].mxu0
      %v5925 = vadd.f32 %v4780, %v5924
      %v5926 = vpop.f32.mrb[0].mxu0
      %v5927 = vadd.f32 %v4782, %v5926
      %5928 = vmatprep.mubr.f32.mxu0 0.0
      %v5929 = vand.u32 %v453, 4294901760
      %5930 = vmatmul.mubr.f32.gmra.mrb[0].mxu0 %v5929
      %v5931 = vpop.f32.mrb[0].mxu0
      %v5932 = vadd.f32 %v4789, %v5931
      %v5933 = vpop.f32.mrb[0].mxu0
      %v5934 = vadd.f32 %v4791, %v5933
      %5935 = vmatprep.mubr.f32.mxu0 0.0
      %v5936 = vand.u32 %v456, 4294901760
      %5937 = vmatmul.mubr.f32.gmra.mrb[0].mxu0 %v5936
      %v5938 = vpop.f32.mrb[0].mxu0
      %v5939 = vadd.f32 %v4798, %v5938
      %v5940 = vpop.f32.mrb[0].mxu0
      %v5941 = vadd.f32 %v4800, %v5940
      %5942 = vmatprep.mubr.f32.mxu0 0.0
      %v5943 = vand.u32 %v459, 4294901760
      %5944 = vmatmul.mubr.f32.gmra.mrb[0].mxu0 %v5943
      %v5945 = vpop.f32.mrb[0].mxu0
      %v5946 = vadd.f32 %v4807, %v5945
      %v5947 = vpop.f32.mrb[0].mxu0
      %v5948 = vadd.f32 %v4809, %v5947
      %5949 = vmatprep.mubr.f32.mxu0 0.0
      %v5950 = vand.u32 %v462, 4294901760
      %5951 = vmatmul.mubr.f32.gmra.mrb[0].mxu0 %v5950
      %v5952 = vpop.f32.mrb[0].mxu0
      %v5953 = vadd.f32 %v4816, %v5952
      %v5954 = vpop.f32.mrb[0].mxu0
      %v5955 = vadd.f32 %v4818, %v5954
      %5956 = vmatprep.mubr.f32.mxu0 0.0
      %v5957 = vand.u32 %v465, 4294901760
      %5958 = vmatmul.mubr.f32.gmra.mrb[0].mxu0 %v5957
      %v5959 = vpop.f32.mrb[0].mxu0
      %v5960 = vadd.f32 %v4825, %v5959
      %v5961 = vpop.f32.mrb[0].mxu0
      %v5962 = vadd.f32 %v4827, %v5961
      %5963 = vmatprep.mubr.f32.mxu0 0.0
      %v5964 = vand.u32 %v468, 4294901760
      %5965 = vmatmul.mubr.f32.gmra.mrb[0].mxu0 %v5964
      %v5966 = vpop.f32.mrb[0].mxu0
      %v5967 = vadd.f32 %v4834, %v5966
      %v5968 = vpop.f32.mrb[0].mxu0
      %v5969 = vadd.f32 %v4836, %v5968
      %5970 = vmatprep.mubr.f32.mxu0 0.0
      %v5971 = vand.u32 %v471, 4294901760
      %5972 = vmatmul.mubr.f32.gmra.mrb[0].mxu0 %v5971
      %v5973 = vpop.f32.mrb[0].mxu0
      %v5974 = vadd.f32 %v4843, %v5973
      %v5975 = vpop.f32.mrb[0].mxu0
      %v5976 = vadd.f32 %v4845, %v5975
      %5977 = vmatprep.mubr.f32.mxu0 0.0
      %v5978 = vand.u32 %v474, 4294901760
      %5979 = vmatmul.mubr.f32.gmra.mrb[0].mxu0 %v5978
      %v5980 = vpop.f32.mrb[0].mxu0
      %v5981 = vadd.f32 %v4852, %v5980
      %v5982 = vpop.f32.mrb[0].mxu0
      %v5983 = vadd.f32 %v4854, %v5982
      %5984 = vmatprep.mubr.f32.mxu0 0.0
      %v5985 = vand.u32 %v477, 4294901760
      %5986 = vmatmul.mubr.f32.gmra.mrb[0].mxu0 %v5985
      %v5987 = vpop.f32.mrb[0].mxu0
      %v5988 = vadd.f32 %v4861, %v5987
      %v5989 = vpop.f32.mrb[0].mxu0
      %v5990 = vadd.f32 %v4863, %v5989
      %5991 = vmatprep.mubr.f32.mxu0 0.0
      %v5992 = vand.u32 %v480, 4294901760
      %5993 = vmatmul.mubr.f32.gmra.mrb[0].mxu0 %v5992
      %v5994 = vpop.f32.mrb[0].mxu0
      %v5995 = vadd.f32 %v4870, %v5994
      %v5996 = vpop.f32.mrb[0].mxu0
      %v5997 = vadd.f32 %v4872, %v5996
      %5998 = vmatprep.mubr.f32.mxu0 0.0
      %v5999 = vand.u32 %v483, 4294901760
      %6000 = vmatmul.mubr.f32.gmra.mrb[0].mxu0 %v5999
      %v6001 = vpop.f32.mrb[0].mxu0
      %v6002 = vadd.f32 %v4879, %v6001
      %v6003 = vpop.f32.mrb[0].mxu0
      %v6004 = vadd.f32 %v4881, %v6003
      %6005 = vmatprep.mubr.f32.mxu0 0.0
      %v6006 = vand.u32 %v486, 4294901760
      %6007 = vmatmul.mubr.f32.gmra.mrb[0].mxu0 %v6006
      %v6008 = vpop.f32.mrb[0].mxu0
      %v6009 = vadd.f32 %v4888, %v6008
      %v6010 = vpop.f32.mrb[0].mxu0
      %v6011 = vadd.f32 %v4890, %v6010
      %6012 = vmatprep.mubr.f32.mxu0 0.0
      %v6013 = vand.u32 %v489, 4294901760
      %6014 = vmatmul.mubr.f32.gmra.mrb[0].mxu0 %v6013
      %v6015 = vpop.f32.mrb[0].mxu0
      %v6016 = vadd.f32 %v4897, %v6015
      %v6017 = vpop.f32.mrb[0].mxu0
      %v6018 = vadd.f32 %v4899, %v6017
      %6019 = vmatprep.mubr.f32.mxu0 0.0
      %v6020 = vand.u32 %v492, 4294901760
      %6021 = vmatmul.mubr.f32.gmra.mrb[0].mxu0 %v6020
      %v6022 = vpop.f32.mrb[0].mxu0
      %v6023 = vadd.f32 %v4906, %v6022
      %v6024 = vpop.f32.mrb[0].mxu0
      %v6025 = vadd.f32 %v4908, %v6024
      %6026 = vmatprep.mubr.f32.mxu0 0.0
      %v6027 = vand.u32 %v495, 4294901760
      %6028 = vmatmul.mubr.f32.gmra.mrb[0].mxu0 %v6027
      %v6029 = vpop.f32.mrb[0].mxu0
      %v6030 = vadd.f32 %v4915, %v6029
      %v6031 = vpop.f32.mrb[0].mxu0
      %v6032 = vadd.f32 %v4917, %v6031
      %6033 = vmatprep.mubr.f32.mxu0 0.0
      %v6034 = vand.u32 %v498, 4294901760
      %6035 = vmatmul.mubr.f32.gmra.mrb[0].mxu0 %v6034
      %v6036 = vpop.f32.mrb[0].mxu0
      %v6037 = vadd.f32 %v4924, %v6036
      %v6038 = vpop.f32.mrb[0].mxu0
      %v6039 = vadd.f32 %v4926, %v6038
      %6040 = vmatprep.mubr.f32.mxu0 0.0
      %v6041 = vand.u32 %v501, 4294901760
      %6042 = vmatmul.mubr.f32.gmra.mrb[0].mxu0 %v6041
      %v6043 = vpop.f32.mrb[0].mxu0
      %v6044 = vadd.f32 %v4933, %v6043
      %v6045 = vpop.f32.mrb[0].mxu0
      %v6046 = vadd.f32 %v4935, %v6045
      %6047 = vmatprep.mubr.f32.mxu0 0.0
      %v6048 = vand.u32 %v504, 4294901760
      %6049 = vmatmul.mubr.f32.gmra.mrb[0].mxu0 %v6048
      %v6050 = vpop.f32.mrb[0].mxu0
      %v6051 = vadd.f32 %v4942, %v6050
      %v6052 = vpop.f32.mrb[0].mxu0
      %v6053 = vadd.f32 %v4944, %v6052
      %6054 = vmatprep.mubr.f32.mxu0 0.0
      %v6055 = vand.u32 %v507, 4294901760
      %6056 = vmatmul.mubr.f32.gmra.mrb[0].mxu0 %v6055
      %v6057 = vpop.f32.mrb[0].mxu0
      %v6058 = vadd.f32 %v4951, %v6057
      %v6059 = vpop.f32.mrb[0].mxu0
      %v6060 = vadd.f32 %v4953, %v6059
      %6061 = vmatprep.mubr.f32.mxu0 0.0
      %v6062 = vand.u32 %v510, 4294901760
      %6063 = vmatmul.mubr.f32.gmra.mrb[0].mxu0 %v6062
      %v6064 = vpop.f32.mrb[0].mxu0
      %v6065 = vadd.f32 %v4960, %v6064
      %v6066 = vpop.f32.mrb[0].mxu0
      %v6067 = vadd.f32 %v4962, %v6066
      %6068 = vmatprep.mubr.f32.mxu0 0.0
      %v6069 = vand.u32 %v513, 4294901760
      %6070 = vmatmul.mubr.f32.gmra.mrb[0].mxu0 %v6069
      %v6071 = vpop.f32.mrb[0].mxu0
      %v6072 = vadd.f32 %v4969, %v6071
      %v6073 = vpop.f32.mrb[0].mxu0
      %v6074 = vadd.f32 %v4971, %v6073
      %6075 = vmatprep.mubr.f32.mxu0 0.0
      %v6076 = vand.u32 %v516, 4294901760
      %6077 = vmatmul.mubr.f32.gmra.mrb[0].mxu0 %v6076
      %v6078 = vpop.f32.mrb[0].mxu0
      %v6079 = vadd.f32 %v4978, %v6078
      %v6080 = vpop.f32.mrb[0].mxu0
      %v6081 = vadd.f32 %v4980, %v6080
      %6082 = vmatprep.mubr.f32.mxu0 0.0
      %v6083 = vand.u32 %v519, 4294901760
      %6084 = vmatmul.mubr.f32.gmra.mrb[0].mxu0 %v6083
      %v6085 = vpop.f32.mrb[0].mxu0
      %v6086 = vadd.f32 %v4987, %v6085
      %v6087 = vpop.f32.mrb[0].mxu0
      %v6088 = vadd.f32 %v4989, %v6087
      %6089 = vmatprep.mubr.f32.mxu0 0.0
      %v6090 = vand.u32 %v522, 4294901760
      %6091 = vmatmul.mubr.f32.gmra.mrb[0].mxu0 %v6090
      %v6092 = vpop.f32.mrb[0].mxu0
      %v6093 = vadd.f32 %v4996, %v6092
      %v6094 = vpop.f32.mrb[0].mxu0
      %v6095 = vadd.f32 %v4998, %v6094
      %6096 = vmatprep.mubr.f32.mxu0 0.0
      %v6097 = vand.u32 %v525, 4294901760
      %6098 = vmatmul.mubr.f32.gmra.mrb[0].mxu0 %v6097
      %v6099 = vpop.f32.mrb[0].mxu0
      %v6100 = vadd.f32 %v5005, %v6099
      %v6101 = vpop.f32.mrb[0].mxu0
      %v6102 = vadd.f32 %v5007, %v6101
      %6103 = vmatprep.mubr.f32.mxu0 0.0
      %v6104 = vand.u32 %v528, 4294901760
      %6105 = vmatmul.mubr.f32.gmra.mrb[0].mxu0 %v6104
      %v6106 = vpop.f32.mrb[0].mxu0
      %v6107 = vadd.f32 %v5014, %v6106
      %v6108 = vpop.f32.mrb[0].mxu0
      %v6109 = vadd.f32 %v5016, %v6108
      %6110 = vmatprep.mubr.f32.mxu0 0.0
      %v6111 = vand.u32 %v531, 4294901760
      %6112 = vmatmul.mubr.f32.gmra.mrb[0].mxu0 %v6111
      %v6113 = vpop.f32.mrb[0].mxu0
      %v6114 = vadd.f32 %v5023, %v6113
      %v6115 = vpop.f32.mrb[0].mxu0
      %v6116 = vadd.f32 %v5025, %v6115
      %6117 = vmatprep.mubr.f32.mxu0 0.0
      %v6118 = vand.u32 %v534, 4294901760
      %6119 = vmatmul.mubr.f32.gmra.mrb[0].mxu0 %v6118
      %v6120 = vpop.f32.mrb[0].mxu0
      %v6121 = vadd.f32 %v5032, %v6120
      %v6122 = vpop.f32.mrb[0].mxu0
      %v6123 = vadd.f32 %v5034, %v6122
      %6124 = vmatprep.mubr.f32.mxu0 0.0
      %v6125 = vand.u32 %v537, 4294901760
      %6126 = vmatmul.mubr.f32.gmra.mrb[0].mxu0 %v6125
      %v6127 = vpop.f32.mrb[0].mxu0
      %v6128 = vadd.f32 %v5041, %v6127
      %v6129 = vpop.f32.mrb[0].mxu0
      %v6130 = vadd.f32 %v5043, %v6129
      %6131 = vmatprep.mubr.f32.mxu0 0.0
      %v6132 = vand.u32 %v540, 4294901760
      %6133 = vmatmul.mubr.f32.gmra.mrb[0].mxu0 %v6132
      %v6134 = vpop.f32.mrb[0].mxu0
      %v6135 = vadd.f32 %v5050, %v6134
      %v6136 = vpop.f32.mrb[0].mxu0
      %v6137 = vadd.f32 %v5052, %v6136
      %6138 = vmatprep.mubr.f32.mxu0 0.0
      %v6139 = vand.u32 %v543, 4294901760
      %6140 = vmatmul.mubr.f32.gmra.mrb[0].mxu0 %v6139
      %v6141 = vpop.f32.mrb[0].mxu0
      %v6142 = vadd.f32 %v5059, %v6141
      %v6143 = vpop.f32.mrb[0].mxu0
      %v6144 = vadd.f32 %v5061, %v6143
      %6145 = vmatprep.mubr.f32.mxu0 0.0
      %v6146 = vand.u32 %v546, 4294901760
      %6147 = vmatmul.mubr.f32.gmra.mrb[0].mxu0 %v6146
      %v6148 = vpop.f32.mrb[0].mxu0
      %v6149 = vadd.f32 %v5068, %v6148
      %v6150 = vpop.f32.mrb[0].mxu0
      %v6151 = vadd.f32 %v5070, %v6150
      %6152 = vmatprep.mubr.f32.mxu0 0.0
      %v6153 = vand.u32 %v549, 4294901760
      %6154 = vmatmul.mubr.f32.gmra.mrb[0].mxu0 %v6153
      %v6155 = vpop.f32.mrb[0].mxu0
      %v6156 = vadd.f32 %v5077, %v6155
      %v6157 = vpop.f32.mrb[0].mxu0
      %v6158 = vadd.f32 %v5079, %v6157
      %6159 = vmatprep.mubr.f32.mxu0 0.0
      %v6160 = vand.u32 %v552, 4294901760
      %6161 = vmatmul.mubr.f32.gmra.mrb[0].mxu0 %v6160
      %v6162 = vpop.f32.mrb[0].mxu0
      %v6163 = vadd.f32 %v5086, %v6162
      %v6164 = vpop.f32.mrb[0].mxu0
      %v6165 = vadd.f32 %v5088, %v6164
      %6166 = vmatprep.mubr.f32.mxu0 0.0
      %v6167 = vand.u32 %v555, 4294901760
      %6168 = vmatmul.mubr.f32.gmra.mrb[0].mxu0 %v6167
      %v6169 = vpop.f32.mrb[0].mxu0
      %v6170 = vadd.f32 %v5095, %v6169
      %v6171 = vpop.f32.mrb[0].mxu0
      %v6172 = vadd.f32 %v5097, %v6171
      %6173 = vmatprep.mubr.f32.mxu0 0.0
      %v6174 = vand.u32 %v558, 4294901760
      %6175 = vmatmul.mubr.f32.gmra.mrb[0].mxu0 %v6174
      %v6176 = vpop.f32.mrb[0].mxu0
      %v6177 = vadd.f32 %v5104, %v6176
      %v6178 = vpop.f32.mrb[0].mxu0
      %v6179 = vadd.f32 %v5106, %v6178
      %6180 = vmatprep.mubr.f32.mxu0 0.0
      %v6181 = vand.u32 %v561, 4294901760
      %6182 = vmatmul.mubr.f32.gmra.mrb[0].mxu0 %v6181
      %v6183 = vpop.f32.mrb[0].mxu0
      %v6184 = vadd.f32 %v5113, %v6183
      %v6185 = vpop.f32.mrb[0].mxu0
      %v6186 = vadd.f32 %v5115, %v6185
      %6187 = vmatprep.mubr.f32.mxu0 0.0
      %v6188 = vand.u32 %v564, 4294901760
      %6189 = vmatmul.mubr.f32.gmra.mrb[0].mxu0 %v6188
      %v6190 = vpop.f32.mrb[0].mxu0
      %v6191 = vadd.f32 %v5122, %v6190
      %v6192 = vpop.f32.mrb[0].mxu0
      %v6193 = vadd.f32 %v5124, %v6192
      %6194 = vmatprep.mubr.f32.mxu0 0.0
      %v6195 = vand.u32 %v567, 4294901760
      %6196 = vmatmul.mubr.f32.gmra.mrb[0].mxu0 %v6195
      %v6197 = vpop.f32.mrb[0].mxu0
      %v6198 = vadd.f32 %v5131, %v6197
      %v6199 = vpop.f32.mrb[0].mxu0
      %v6200 = vadd.f32 %v5133, %v6199
      %6201 = vmatprep.mubr.f32.mxu0 0.0
      %v6202 = vand.u32 %v570, 4294901760
      %6203 = vmatmul.mubr.f32.gmra.mrb[0].mxu0 %v6202
      %v6204 = vpop.f32.mrb[0].mxu0
      %v6205 = vadd.f32 %v5140, %v6204
      %v6206 = vpop.f32.mrb[0].mxu0
      %v6207 = vadd.f32 %v5142, %v6206
      %6208 = vmatprep.mubr.f32.mxu0 0.0
      %v6209 = vand.u32 %v573, 4294901760
      %6210 = vmatmul.mubr.f32.gmra.mrb[0].mxu0 %v6209
      %v6211 = vpop.f32.mrb[0].mxu0
      %v6212 = vadd.f32 %v5149, %v6211
      %v6213 = vpop.f32.mrb[0].mxu0
      %v6214 = vadd.f32 %v5151, %v6213
      %6215 = vmatprep.mubr.f32.mxu0 0.0
      %v6216 = vand.u32 %v576, 4294901760
      %6217 = vmatmul.mubr.f32.gmra.mrb[0].mxu0 %v6216
      %v6218 = vpop.f32.mrb[0].mxu0
      %v6219 = vadd.f32 %v5158, %v6218
      %v6220 = vpop.f32.mrb[0].mxu0
      %v6221 = vadd.f32 %v5160, %v6220
      %6222 = vmatprep.mubr.f32.mxu0 0.0
      %v6223 = vand.u32 %v579, 4294901760
      %6224 = vmatmul.mubr.f32.gmra.mrb[0].mxu0 %v6223
      %v6225 = vpop.f32.mrb[0].mxu0
      %v6226 = vadd.f32 %v5167, %v6225
      %v6227 = vpop.f32.mrb[0].mxu0
      %v6228 = vadd.f32 %v5169, %v6227
      %6229 = vmatprep.mubr.f32.mxu0 0.0
      %v6230 = vand.u32 %v582, 4294901760
      %6231 = vmatmul.mubr.f32.gmra.mrb[0].mxu0 %v6230
      %v6232 = vpop.f32.mrb[0].mxu0
      %v6233 = vadd.f32 %v5176, %v6232
      %v6234 = vpop.f32.mrb[0].mxu0
      %v6235 = vadd.f32 %v5178, %v6234
      %6236 = vmatprep.mubr.f32.mxu0 0.0
      %v6237 = vand.u32 %v585, 4294901760
      %6238 = vmatmul.mubr.f32.gmra.mrb[0].mxu0 %v6237
      %v6239 = vpop.f32.mrb[0].mxu0
      %v6240 = vadd.f32 %v5185, %v6239
      %v6241 = vpop.f32.mrb[0].mxu0
      %v6242 = vadd.f32 %v5187, %v6241
      %6243 = vmatprep.mubr.f32.mxu0 0.0
      %v6244 = vand.u32 %v588, 4294901760
      %6245 = vmatmul.mubr.f32.gmra.mrb[0].mxu0 %v6244
      %v6246 = vpop.f32.mrb[0].mxu0
      %v6247 = vadd.f32 %v5194, %v6246
      %v6248 = vpop.f32.mrb[0].mxu0
      %v6249 = vadd.f32 %v5196, %v6248
      %6250 = vmatprep.mubr.f32.mxu0 0.0
      %v6251 = vand.u32 %v591, 4294901760
      %6252 = vmatmul.mubr.f32.gmra.mrb[0].mxu0 %v6251
      %v6253 = vpop.f32.mrb[0].mxu0
      %v6254 = vadd.f32 %v5203, %v6253
      %v6255 = vpop.f32.mrb[0].mxu0
      %v6256 = vadd.f32 %v5205, %v6255
      %6257 = vmatprep.mubr.f32.mxu0 0.0
      %v6258 = vand.u32 %v594, 4294901760
      %6259 = vmatmul.mubr.f32.gmra.mrb[0].mxu0 %v6258
      %v6260 = vpop.f32.mrb[0].mxu0
      %v6261 = vadd.f32 %v5212, %v6260
      %v6262 = vpop.f32.mrb[0].mxu0
      %v6263 = vadd.f32 %v5214, %v6262
      %6264 = vmatprep.mubr.f32.mxu0 0.0
      %v6265 = vand.u32 %v597, 4294901760
      %6266 = vmatmul.mubr.f32.gmra.mrb[0].mxu0 %v6265
      %v6267 = vpop.f32.mrb[0].mxu0
      %v6268 = vadd.f32 %v5221, %v6267
      %v6269 = vpop.f32.mrb[0].mxu0
      %v6270 = vadd.f32 %v5223, %v6269
      %6271 = vmatprep.mubr.f32.mxu0 0.0
      %v6272 = vand.u32 %v600, 4294901760
      %6273 = vmatmul.mubr.f32.gmra.mrb[0].mxu0 %v6272
      %v6274 = vpop.f32.mrb[0].mxu0
      %v6275 = vadd.f32 %v5230, %v6274
      %v6276 = vpop.f32.mrb[0].mxu0
      %v6277 = vadd.f32 %v5232, %v6276
      %6278 = vmatprep.mubr.f32.mxu0 0.0
      %v6279 = vand.u32 %v603, 4294901760
      %6280 = vmatmul.mubr.f32.gmra.mrb[0].mxu0 %v6279
      %v6281 = vpop.f32.mrb[0].mxu0
      %v6282 = vadd.f32 %v5239, %v6281
      %v6283 = vpop.f32.mrb[0].mxu0
      %v6284 = vadd.f32 %v5241, %v6283
      %6285 = vmatprep.mubr.f32.mxu0 0.0
      %v6286 = vand.u32 %v606, 4294901760
      %6287 = vmatmul.mubr.f32.gmra.mrb[0].mxu0 %v6286
      %v6288 = vpop.f32.mrb[0].mxu0
      %v6289 = vadd.f32 %v5248, %v6288
      %v6290 = vpop.f32.mrb[0].mxu0
      %v6291 = vadd.f32 %v5250, %v6290
      %6292 = vmatprep.mubr.f32.mxu0 0.0
      %v6293 = vand.u32 %v609, 4294901760
      %6294 = vmatmul.mubr.f32.gmra.mrb[0].mxu0 %v6293
      %v6295 = vpop.f32.mrb[0].mxu0
      %v6296 = vadd.f32 %v5257, %v6295
      %v6297 = vpop.f32.mrb[0].mxu0
      %v6298 = vadd.f32 %v5259, %v6297
      %6299 = vmatprep.mubr.f32.mxu0 0.0
      %v6300 = vand.u32 %v612, 4294901760
      %6301 = vmatmul.mubr.f32.gmra.mrb[0].mxu0 %v6300
      %v6302 = vpop.f32.mrb[0].mxu0
      %v6303 = vadd.f32 %v5266, %v6302
      %v6304 = vpop.f32.mrb[0].mxu0
      %v6305 = vadd.f32 %v5268, %v6304
      %6306 = vmatprep.mubr.f32.mxu0 0.0
      %v6307 = vand.u32 %v615, 4294901760
      %6308 = vmatmul.mubr.f32.gmra.mrb[0].mxu0 %v6307
      %v6309 = vpop.f32.mrb[0].mxu0
      %v6310 = vadd.f32 %v5275, %v6309
      %v6311 = vpop.f32.mrb[0].mxu0
      %v6312 = vadd.f32 %v5277, %v6311
      %6313 = vmatprep.mubr.f32.mxu0 0.0
      %v6314 = vand.u32 %v618, 4294901760
      %6315 = vmatmul.mubr.f32.gmra.mrb[0].mxu0 %v6314
      %v6316 = vpop.f32.mrb[0].mxu0
      %v6317 = vadd.f32 %v5284, %v6316
      %v6318 = vpop.f32.mrb[0].mxu0
      %v6319 = vadd.f32 %v5286, %v6318
      %6320 = vmatprep.mubr.f32.mxu0 0.0
      %v6321 = vand.u32 %v621, 4294901760
      %6322 = vmatmul.mubr.f32.gmra.mrb[0].mxu0 %v6321
      %v6323 = vpop.f32.mrb[0].mxu0
      %v6324 = vadd.f32 %v5293, %v6323
      %v6325 = vpop.f32.mrb[0].mxu0
      %v6326 = vadd.f32 %v5295, %v6325
      %6327 = vmatprep.mubr.f32.mxu0 0.0
      %v6328 = vand.u32 %v624, 4294901760
      %6329 = vmatmul.mubr.f32.gmra.mrb[0].mxu0 %v6328
      %v6330 = vpop.f32.mrb[0].mxu0
      %v6331 = vadd.f32 %v5302, %v6330
      %v6332 = vpop.f32.mrb[0].mxu0
      %v6333 = vadd.f32 %v5304, %v6332
      %6334 = vmatprep.mubr.f32.mxu0 0.0
      %v6335 = vand.u32 %v627, 4294901760
      %6336 = vmatmul.mubr.f32.gmra.mrb[0].mxu0 %v6335
      %v6337 = vpop.f32.mrb[0].mxu0
      %v6338 = vadd.f32 %v5311, %v6337
      %v6339 = vpop.f32.mrb[0].mxu0
      %v6340 = vadd.f32 %v5313, %v6339
      %6341 = vmatprep.mubr.f32.mxu0 0.0
      %v6342 = vand.u32 %v630, 4294901760
      %6343 = vmatmul.mubr.f32.gmra.mrb[0].mxu0 %v6342
      %v6344 = vpop.f32.mrb[0].mxu0
      %v6345 = vadd.f32 %v5320, %v6344
      %v6346 = vpop.f32.mrb[0].mxu0
      %v6347 = vadd.f32 %v5322, %v6346
      %6348 = vmatprep.mubr.f32.mxu0 0.0
      %v6349 = vand.u32 %v633, 4294901760
      %6350 = vmatmul.mubr.f32.gmra.mrb[0].mxu0 %v6349
      %v6351 = vpop.f32.mrb[0].mxu0
      %v6352 = vadd.f32 %v5329, %v6351
      %v6353 = vpop.f32.mrb[0].mxu0
      %v6354 = vadd.f32 %v5331, %v6353
      %6355 = vmatprep.mubr.f32.mxu0 0.0
      %v6356 = vand.u32 %v636, 4294901760
      %6357 = vmatmul.mubr.f32.gmra.mrb[0].mxu0 %v6356
      %v6358 = vpop.f32.mrb[0].mxu0
      %v6359 = vadd.f32 %v5338, %v6358
      %v6360 = vpop.f32.mrb[0].mxu0
      %v6361 = vadd.f32 %v5340, %v6360
      %6362 = vmatprep.mubr.f32.mxu0 0.0
      %v6363 = vand.u32 %v639, 4294901760
      %6364 = vmatmul.mubr.f32.gmra.mrb[0].mxu0 %v6363
      %v6365 = vpop.f32.mrb[0].mxu0
      %v6366 = vadd.f32 %v5347, %v6365
      %v6367 = vpop.f32.mrb[0].mxu0
      %v6368 = vadd.f32 %v5349, %v6367
      %6369 = vmatprep.mubr.f32.mxu0 0.0
      %v6370 = vand.u32 %v642, 4294901760
      %6371 = vmatmul.mubr.f32.gmra.mrb[0].mxu0 %v6370
      %v6372 = vpop.f32.mrb[0].mxu0
      %v6373 = vadd.f32 %v5356, %v6372
      %v6374 = vpop.f32.mrb[0].mxu0
      %v6375 = vadd.f32 %v5358, %v6374
      %6376 = vmatprep.mubr.f32.mxu0 0.0
      %v6377 = vand.u32 %v645, 4294901760
      %6378 = vmatmul.mubr.f32.gmra.mrb[0].mxu0 %v6377
      %v6379 = vpop.f32.mrb[0].mxu0
      %v6380 = vadd.f32 %v5365, %v6379
      %v6381 = vpop.f32.mrb[0].mxu0
      %v6382 = vadd.f32 %v5367, %v6381
      %6383 = vmatprep.mubr.f32.mxu0 0.0
      %v6384 = vand.u32 %v648, 4294901760
      %6385 = vmatmul.mubr.f32.gmra.mrb[0].mxu0 %v6384
      %v6386 = vpop.f32.mrb[0].mxu0
      %v6387 = vadd.f32 %v5374, %v6386
      %v6388 = vpop.f32.mrb[0].mxu0
      %v6389 = vadd.f32 %v5376, %v6388
      %6390 = vmatprep.mubr.f32.mxu0 0.0
      %v6391 = vand.u32 %v651, 4294901760
      %6392 = vmatmul.mubr.f32.gmra.mrb[0].mxu0 %v6391
      %v6393 = vpop.f32.mrb[0].mxu0
      %v6394 = vadd.f32 %v5383, %v6393
      %v6395 = vpop.f32.mrb[0].mxu0
      %v6396 = vadd.f32 %v5385, %v6395
      %6397 = vmatprep.mubr.f32.mxu0 0.0
      %v6398 = vand.u32 %v654, 4294901760
      %6399 = vmatmul.mubr.f32.gmra.mrb[0].mxu0 %v6398
      %v6400 = vpop.f32.mrb[0].mxu0
      %v6401 = vadd.f32 %v5392, %v6400
      %v6402 = vpop.f32.mrb[0].mxu0
      %v6403 = vadd.f32 %v5394, %v6402
      %6404 = vmatprep.mubr.f32.mxu0 0.0
      %v6405 = vand.u32 %v657, 4294901760
      %6406 = vmatmul.mubr.f32.gmra.mrb[0].mxu0 %v6405
      %v6407 = vpop.f32.mrb[0].mxu0
      %v6408 = vadd.f32 %v5401, %v6407
      %v6409 = vpop.f32.mrb[0].mxu0
      %v6410 = vadd.f32 %v5403, %v6409
      %6411 = vmatprep.mubr.f32.mxu0 0.0
      %v6412 = vand.u32 %v660, 4294901760
      %6413 = vmatmul.mubr.f32.gmra.mrb[0].mxu0 %v6412
      %v6414 = vpop.f32.mrb[0].mxu0
      %v6415 = vadd.f32 %v5410, %v6414
      %v6416 = vpop.f32.mrb[0].mxu0
      %v6417 = vadd.f32 %v5412, %v6416
      %6418 = vmatprep.mubr.f32.mxu0 0.0
      %v6419 = vand.u32 %v663, 4294901760
      %6420 = vmatmul.mubr.f32.gmra.mrb[0].mxu0 %v6419
      %v6421 = vpop.f32.mrb[0].mxu0
      %v6422 = vadd.f32 %v5419, %v6421
      %v6423 = vpop.f32.mrb[0].mxu0
      %v6424 = vadd.f32 %v5421, %v6423
      %6425 = vmatprep.mubr.f32.mxu0 0.0
      %v6426 = vand.u32 %v666, 4294901760
      %6427 = vmatmul.mubr.f32.gmra.mrb[0].mxu0 %v6426
      %v6428 = vpop.f32.mrb[0].mxu0
      %v6429 = vadd.f32 %v5428, %v6428
      %v6430 = vpop.f32.mrb[0].mxu0
      %v6431 = vadd.f32 %v5430, %v6430
      %6432 = vmatprep.mubr.f32.mxu0 0.0
      %v6433 = vand.u32 %v669, 4294901760
      %6434 = vmatmul.mubr.f32.gmra.mrb[0].mxu0 %v6433
      %v6435 = vpop.f32.mrb[0].mxu0
      %v6436 = vadd.f32 %v5437, %v6435
      %v6437 = vpop.f32.mrb[0].mxu0
      %v6438 = vadd.f32 %v5439, %v6437
      %6439 = vmatprep.mubr.f32.mxu0 0.0
      %v6440 = vand.u32 %v672, 4294901760
      %6441 = vmatmul.mubr.f32.gmra.mrb[0].mxu0 %v6440
      %v6442 = vpop.f32.mrb[0].mxu0
      %v6443 = vadd.f32 %v5446, %v6442
      %v6444 = vpop.f32.mrb[0].mxu0
      %v6445 = vadd.f32 %v5448, %v6444
      %6446 = vmatprep.mubr.f32.mxu0 0.0
      %v6447 = vand.u32 %v675, 4294901760
      %6448 = vmatmul.mubr.f32.gmra.mrb[0].mxu0 %v6447
      %v6449 = vpop.f32.mrb[0].mxu0
      %v6450 = vadd.f32 %v5455, %v6449
      %v6451 = vpop.f32.mrb[0].mxu0
      %v6452 = vadd.f32 %v5457, %v6451
      %6453 = vmatprep.mubr.f32.mxu0 0.0
      %v6454 = vand.u32 %v678, 4294901760
      %6455 = vmatmul.mubr.f32.gmra.mrb[0].mxu0 %v6454
      %v6456 = vpop.f32.mrb[0].mxu0
      %v6457 = vadd.f32 %v5464, %v6456
      %v6458 = vpop.f32.mrb[0].mxu0
      %v6459 = vadd.f32 %v5466, %v6458
      %6460 = vmatprep.mubr.f32.mxu0 0.0
      %v6461 = vand.u32 %v681, 4294901760
      %6462 = vmatmul.mubr.f32.gmra.mrb[0].mxu0 %v6461
      %v6463 = vpop.f32.mrb[0].mxu0
      %v6464 = vadd.f32 %v5473, %v6463
      %v6465 = vpop.f32.mrb[0].mxu0
      %v6466 = vadd.f32 %v5475, %v6465
      %6467 = vmatprep.mubr.f32.mxu0 0.0
      %v6468 = vand.u32 %v684, 4294901760
      %6469 = vmatmul.mubr.f32.gmra.mrb[0].mxu0 %v6468
      %v6470 = vpop.f32.mrb[0].mxu0
      %v6471 = vadd.f32 %v5482, %v6470
      %v6472 = vpop.f32.mrb[0].mxu0
      %v6473 = vadd.f32 %v5484, %v6472
      %6474 = vmatprep.mubr.f32.mxu0 0.0
      %v6475 = vand.u32 %v687, 4294901760
      %6476 = vmatmul.mubr.f32.gmra.mrb[0].mxu0 %v6475
      %v6477 = vpop.f32.mrb[0].mxu0
      %v6478 = vadd.f32 %v5491, %v6477
      %v6479 = vpop.f32.mrb[0].mxu0
      %v6480 = vadd.f32 %v5493, %v6479
      %6481 = vmatprep.mubr.f32.mxu0 0.0
      %v6482 = vand.u32 %v690, 4294901760
      %6483 = vmatmul.mubr.f32.gmra.mrb[0].mxu0 %v6482
      %v6484 = vpop.f32.mrb[0].mxu0
      %v6485 = vadd.f32 %v5500, %v6484
      %v6486 = vpop.f32.mrb[0].mxu0
      %v6487 = vadd.f32 %v5502, %v6486
      %6488 = vdwg.mxu0
      %v6489 = vand.u32 %v300, 4294901760
      %6490 = vmatprep.subr.mxu0 %v6489
      %v6491 = vand.u32 %v299, 4294901760
      %6492 = vmatpush1.msra.mxu0 %v6491
      %v6493 = vand.u32 %v302, 4294901760
      %6494 = vmatprep.subr.mxu0 %v6493
      %v6495 = vand.u32 %v301, 4294901760
      %6496 = vmatpush1.msra.mxu0 %v6495
      %v6497 = vand.u32 %v304, 4294901760
      %6498 = vmatprep.subr.mxu0 %v6497
      %v6499 = vand.u32 %v303, 4294901760
      %6500 = vmatpush1.msra.mxu0 %v6499
      %v6501 = vand.u32 %v306, 4294901760
      %6502 = vmatprep.subr.mxu0 %v6501
      %v6503 = vand.u32 %v305, 4294901760
      %6504 = vmatpush1.msra.mxu0 %v6503
      %6505 = vmatprep.subr.mxu0 0.0
      %6506 = vmatpush1.msra.mxu0 0.0
      %6507 = vmatprep.subr.mxu0 0.0
      %6508 = vmatpush1.msra.mxu0 0.0
      %6509 = vmatprep.subr.mxu0 0.0
      %6510 = vmatpush1.msra.mxu0 0.0
      %6511 = vmatprep.subr.mxu0 0.0
      %6512 = vmatpush1.msra.mxu0 0.0
      %6513 = vmatprep.subr.mxu0 0.0
      %6514 = vmatpush1.msra.mxu0 0.0
      %6515 = vmatprep.subr.mxu0 0.0
      %6516 = vmatpush1.msra.mxu0 0.0
      %6517 = vmatprep.subr.mxu0 0.0
      %6518 = vmatpush1.msra.mxu0 0.0
      %6519 = vmatprep.subr.mxu0 0.0
      %6520 = vmatpush1.msra.mxu0 0.0
      %6521 = vmatprep.subr.mxu0 0.0
      %6522 = vmatpush1.msra.mxu0 0.0
      %6523 = vmatprep.subr.mxu0 0.0
      %6524 = vmatpush1.msra.mxu0 0.0
      %6525 = vmatprep.subr.mxu0 0.0
      %6526 = vmatpush1.msra.mxu0 0.0
      %6527 = vmatprep.subr.mxu0 0.0
      %6528 = vmatpush1.msra.mxu0 0.0
      %6529 = vmatprep.subr.mxu0 0.0
      %6530 = vmatpush1.msra.mxu0 0.0
      %6531 = vmatprep.subr.mxu0 0.0
      %6532 = vmatpush1.msra.mxu0 0.0
      %6533 = vmatprep.subr.mxu0 0.0
      %6534 = vmatpush1.msra.mxu0 0.0
      %6535 = vmatprep.subr.mxu0 0.0
      %6536 = vmatpush1.msra.mxu0 0.0
      %6537 = vmatprep.subr.mxu0 0.0
      %6538 = vmatpush1.msra.mxu0 0.0
      %6539 = vmatprep.subr.mxu0 0.0
      %6540 = vmatpush1.msra.mxu0 0.0
      %6541 = vmatprep.subr.mxu0 0.0
      %6542 = vmatpush1.msra.mxu0 0.0
      %6543 = vmatprep.subr.mxu0 0.0
      %6544 = vmatpush1.msra.mxu0 0.0
      %6545 = vmatprep.subr.mxu0 0.0
      %6546 = vmatpush1.msra.mxu0 0.0
      %6547 = vmatprep.subr.mxu0 0.0
      %6548 = vmatpush1.msra.mxu0 0.0
      %6549 = vmatprep.subr.mxu0 0.0
      %6550 = vmatpush1.msra.mxu0 0.0
      %6551 = vmatprep.subr.mxu0 0.0
      %6552 = vmatpush1.msra.mxu0 0.0
      %6553 = vmatprep.subr.mxu0 0.0
      %6554 = vmatpush1.msra.mxu0 0.0
      %6555 = vmatprep.subr.mxu0 0.0
      %6556 = vmatpush1.msra.mxu0 0.0
      %6557 = vmatprep.subr.mxu0 0.0
      %6558 = vmatpush1.msra.mxu0 0.0
      %6559 = vmatprep.subr.mxu0 0.0
      %6560 = vmatpush1.msra.mxu0 0.0
      %6561 = vmatprep.mubr.f32.mxu0 0.0
      %v6562 = vand.u32 %v309, 4294901760
      %6563 = vmatmul.mubr.f32.gmra.mrb[0].mxu0 %v6562
      %v6564 = vpop.f32.mrb[0].mxu0
      %v6565 = vadd.f32 %v5596, %v6564
      %v6566 = vpop.f32.mrb[0].mxu0
      %v6567 = vadd.f32 %v5598, %v6566
      %6568 = vmatprep.mubr.f32.mxu0 0.0
      %v6569 = vand.u32 %v312, 4294901760
      %6570 = vmatmul.mubr.f32.gmra.mrb[0].mxu0 %v6569
      %v6571 = vpop.f32.mrb[0].mxu0
      %v6572 = vadd.f32 %v5603, %v6571
      %v6573 = vpop.f32.mrb[0].mxu0
      %v6574 = vadd.f32 %v5605, %v6573
      %6575 = vmatprep.mubr.f32.mxu0 0.0
      %v6576 = vand.u32 %v315, 4294901760
      %6577 = vmatmul.mubr.f32.gmra.mrb[0].mxu0 %v6576
      %v6578 = vpop.f32.mrb[0].mxu0
      %v6579 = vadd.f32 %v5610, %v6578
      %v6580 = vpop.f32.mrb[0].mxu0
      %v6581 = vadd.f32 %v5612, %v6580
      %6582 = vmatprep.mubr.f32.mxu0 0.0
      %v6583 = vand.u32 %v318, 4294901760
      %6584 = vmatmul.mubr.f32.gmra.mrb[0].mxu0 %v6583
      %v6585 = vpop.f32.mrb[0].mxu0
      %v6586 = vadd.f32 %v5617, %v6585
      %v6587 = vpop.f32.mrb[0].mxu0
      %v6588 = vadd.f32 %v5619, %v6587
      %6589 = vmatprep.mubr.f32.mxu0 0.0
      %v6590 = vand.u32 %v321, 4294901760
      %6591 = vmatmul.mubr.f32.gmra.mrb[0].mxu0 %v6590
      %v6592 = vpop.f32.mrb[0].mxu0
      %v6593 = vadd.f32 %v5624, %v6592
      %v6594 = vpop.f32.mrb[0].mxu0
      %v6595 = vadd.f32 %v5626, %v6594
      %6596 = vmatprep.mubr.f32.mxu0 0.0
      %v6597 = vand.u32 %v324, 4294901760
      %6598 = vmatmul.mubr.f32.gmra.mrb[0].mxu0 %v6597
      %v6599 = vpop.f32.mrb[0].mxu0
      %v6600 = vadd.f32 %v5631, %v6599
      %v6601 = vpop.f32.mrb[0].mxu0
      %v6602 = vadd.f32 %v5633, %v6601
      %6603 = vmatprep.mubr.f32.mxu0 0.0
      %v6604 = vand.u32 %v327, 4294901760
      %6605 = vmatmul.mubr.f32.gmra.mrb[0].mxu0 %v6604
      %v6606 = vpop.f32.mrb[0].mxu0
      %v6607 = vadd.f32 %v5638, %v6606
      %v6608 = vpop.f32.mrb[0].mxu0
      %v6609 = vadd.f32 %v5640, %v6608
      %6610 = vmatprep.mubr.f32.mxu0 0.0
      %v6611 = vand.u32 %v330, 4294901760
      %6612 = vmatmul.mubr.f32.gmra.mrb[0].mxu0 %v6611
      %v6613 = vpop.f32.mrb[0].mxu0
      %v6614 = vadd.f32 %v5645, %v6613
      %v6615 = vpop.f32.mrb[0].mxu0
      %v6616 = vadd.f32 %v5647, %v6615
      %6617 = vmatprep.mubr.f32.mxu0 0.0
      %v6618 = vand.u32 %v333, 4294901760
      %6619 = vmatmul.mubr.f32.gmra.mrb[0].mxu0 %v6618
      %v6620 = vpop.f32.mrb[0].mxu0
      %v6621 = vadd.f32 %v5652, %v6620
      %v6622 = vpop.f32.mrb[0].mxu0
      %v6623 = vadd.f32 %v5654, %v6622
      %6624 = vmatprep.mubr.f32.mxu0 0.0
      %v6625 = vand.u32 %v336, 4294901760
      %6626 = vmatmul.mubr.f32.gmra.mrb[0].mxu0 %v6625
      %v6627 = vpop.f32.mrb[0].mxu0
      %v6628 = vadd.f32 %v5659, %v6627
      %v6629 = vpop.f32.mrb[0].mxu0
      %v6630 = vadd.f32 %v5661, %v6629
      %6631 = vmatprep.mubr.f32.mxu0 0.0
      %v6632 = vand.u32 %v339, 4294901760
      %6633 = vmatmul.mubr.f32.gmra.mrb[0].mxu0 %v6632
      %v6634 = vpop.f32.mrb[0].mxu0
      %v6635 = vadd.f32 %v5666, %v6634
      %v6636 = vpop.f32.mrb[0].mxu0
      %v6637 = vadd.f32 %v5668, %v6636
      %6638 = vmatprep.mubr.f32.mxu0 0.0
      %v6639 = vand.u32 %v342, 4294901760
      %6640 = vmatmul.mubr.f32.gmra.mrb[0].mxu0 %v6639
      %v6641 = vpop.f32.mrb[0].mxu0
      %v6642 = vadd.f32 %v5673, %v6641
      %v6643 = vpop.f32.mrb[0].mxu0
      %v6644 = vadd.f32 %v5675, %v6643
      %6645 = vmatprep.mubr.f32.mxu0 0.0
      %v6646 = vand.u32 %v345, 4294901760
      %6647 = vmatmul.mubr.f32.gmra.mrb[0].mxu0 %v6646
      %v6648 = vpop.f32.mrb[0].mxu0
      %v6649 = vadd.f32 %v5680, %v6648
      %v6650 = vpop.f32.mrb[0].mxu0
      %v6651 = vadd.f32 %v5682, %v6650
      %6652 = vmatprep.mubr.f32.mxu0 0.0
      %v6653 = vand.u32 %v348, 4294901760
      %6654 = vmatmul.mubr.f32.gmra.mrb[0].mxu0 %v6653
      %v6655 = vpop.f32.mrb[0].mxu0
      %v6656 = vadd.f32 %v5687, %v6655
      %v6657 = vpop.f32.mrb[0].mxu0
      %v6658 = vadd.f32 %v5689, %v6657
      %6659 = vmatprep.mubr.f32.mxu0 0.0
      %v6660 = vand.u32 %v351, 4294901760
      %6661 = vmatmul.mubr.f32.gmra.mrb[0].mxu0 %v6660
      %v6662 = vpop.f32.mrb[0].mxu0
      %v6663 = vadd.f32 %v5694, %v6662
      %v6664 = vpop.f32.mrb[0].mxu0
      %v6665 = vadd.f32 %v5696, %v6664
      %6666 = vmatprep.mubr.f32.mxu0 0.0
      %v6667 = vand.u32 %v354, 4294901760
      %6668 = vmatmul.mubr.f32.gmra.mrb[0].mxu0 %v6667
      %v6669 = vpop.f32.mrb[0].mxu0
      %v6670 = vadd.f32 %v5701, %v6669
      %v6671 = vpop.f32.mrb[0].mxu0
      %v6672 = vadd.f32 %v5703, %v6671
      %6673 = vmatprep.mubr.f32.mxu0 0.0
      %v6674 = vand.u32 %v357, 4294901760
      %6675 = vmatmul.mubr.f32.gmra.mrb[0].mxu0 %v6674
      %v6676 = vpop.f32.mrb[0].mxu0
      %v6677 = vadd.f32 %v5708, %v6676
      %v6678 = vpop.f32.mrb[0].mxu0
      %v6679 = vadd.f32 %v5710, %v6678
      %6680 = vmatprep.mubr.f32.mxu0 0.0
      %v6681 = vand.u32 %v360, 4294901760
      %6682 = vmatmul.mubr.f32.gmra.mrb[0].mxu0 %v6681
      %v6683 = vpop.f32.mrb[0].mxu0
      %v6684 = vadd.f32 %v5715, %v6683
      %v6685 = vpop.f32.mrb[0].mxu0
      %v6686 = vadd.f32 %v5717, %v6685
      %6687 = vmatprep.mubr.f32.mxu0 0.0
      %v6688 = vand.u32 %v363, 4294901760
      %6689 = vmatmul.mubr.f32.gmra.mrb[0].mxu0 %v6688
      %v6690 = vpop.f32.mrb[0].mxu0
      %v6691 = vadd.f32 %v5722, %v6690
      %v6692 = vpop.f32.mrb[0].mxu0
      %v6693 = vadd.f32 %v5724, %v6692
      %6694 = vmatprep.mubr.f32.mxu0 0.0
      %v6695 = vand.u32 %v366, 4294901760
      %6696 = vmatmul.mubr.f32.gmra.mrb[0].mxu0 %v6695
      %v6697 = vpop.f32.mrb[0].mxu0
      %v6698 = vadd.f32 %v5729, %v6697
      %v6699 = vpop.f32.mrb[0].mxu0
      %v6700 = vadd.f32 %v5731, %v6699
      %6701 = vmatprep.mubr.f32.mxu0 0.0
      %v6702 = vand.u32 %v369, 4294901760
      %6703 = vmatmul.mubr.f32.gmra.mrb[0].mxu0 %v6702
      %v6704 = vpop.f32.mrb[0].mxu0
      %v6705 = vadd.f32 %v5736, %v6704
      %v6706 = vpop.f32.mrb[0].mxu0
      %v6707 = vadd.f32 %v5738, %v6706
      %6708 = vmatprep.mubr.f32.mxu0 0.0
      %v6709 = vand.u32 %v372, 4294901760
      %6710 = vmatmul.mubr.f32.gmra.mrb[0].mxu0 %v6709
      %v6711 = vpop.f32.mrb[0].mxu0
      %v6712 = vadd.f32 %v5743, %v6711
      %v6713 = vpop.f32.mrb[0].mxu0
      %v6714 = vadd.f32 %v5745, %v6713
      %6715 = vmatprep.mubr.f32.mxu0 0.0
      %v6716 = vand.u32 %v375, 4294901760
      %6717 = vmatmul.mubr.f32.gmra.mrb[0].mxu0 %v6716
      %v6718 = vpop.f32.mrb[0].mxu0
      %v6719 = vadd.f32 %v5750, %v6718
      %v6720 = vpop.f32.mrb[0].mxu0
      %v6721 = vadd.f32 %v5752, %v6720
      %6722 = vmatprep.mubr.f32.mxu0 0.0
      %v6723 = vand.u32 %v378, 4294901760
      %6724 = vmatmul.mubr.f32.gmra.mrb[0].mxu0 %v6723
      %v6725 = vpop.f32.mrb[0].mxu0
      %v6726 = vadd.f32 %v5757, %v6725
      %v6727 = vpop.f32.mrb[0].mxu0
      %v6728 = vadd.f32 %v5759, %v6727
      %6729 = vmatprep.mubr.f32.mxu0 0.0
      %v6730 = vand.u32 %v381, 4294901760
      %6731 = vmatmul.mubr.f32.gmra.mrb[0].mxu0 %v6730
      %v6732 = vpop.f32.mrb[0].mxu0
      %v6733 = vadd.f32 %v5764, %v6732
      %v6734 = vpop.f32.mrb[0].mxu0
      %v6735 = vadd.f32 %v5766, %v6734
      %6736 = vmatprep.mubr.f32.mxu0 0.0
      %v6737 = vand.u32 %v384, 4294901760
      %6738 = vmatmul.mubr.f32.gmra.mrb[0].mxu0 %v6737
      %v6739 = vpop.f32.mrb[0].mxu0
      %v6740 = vadd.f32 %v5771, %v6739
      %v6741 = vpop.f32.mrb[0].mxu0
      %v6742 = vadd.f32 %v5773, %v6741
      %6743 = vmatprep.mubr.f32.mxu0 0.0
      %v6744 = vand.u32 %v387, 4294901760
      %6745 = vmatmul.mubr.f32.gmra.mrb[0].mxu0 %v6744
      %v6746 = vpop.f32.mrb[0].mxu0
      %v6747 = vadd.f32 %v5778, %v6746
      %v6748 = vpop.f32.mrb[0].mxu0
      %v6749 = vadd.f32 %v5780, %v6748
      %6750 = vmatprep.mubr.f32.mxu0 0.0
      %v6751 = vand.u32 %v390, 4294901760
      %6752 = vmatmul.mubr.f32.gmra.mrb[0].mxu0 %v6751
      %v6753 = vpop.f32.mrb[0].mxu0
      %v6754 = vadd.f32 %v5785, %v6753
      %v6755 = vpop.f32.mrb[0].mxu0
      %v6756 = vadd.f32 %v5787, %v6755
      %6757 = vmatprep.mubr.f32.mxu0 0.0
      %v6758 = vand.u32 %v393, 4294901760
      %6759 = vmatmul.mubr.f32.gmra.mrb[0].mxu0 %v6758
      %v6760 = vpop.f32.mrb[0].mxu0
      %v6761 = vadd.f32 %v5792, %v6760
      %v6762 = vpop.f32.mrb[0].mxu0
      %v6763 = vadd.f32 %v5794, %v6762
      %6764 = vmatprep.mubr.f32.mxu0 0.0
      %v6765 = vand.u32 %v396, 4294901760
      %6766 = vmatmul.mubr.f32.gmra.mrb[0].mxu0 %v6765
      %v6767 = vpop.f32.mrb[0].mxu0
      %v6768 = vadd.f32 %v5799, %v6767
      %v6769 = vpop.f32.mrb[0].mxu0
      %v6770 = vadd.f32 %v5801, %v6769
      %6771 = vmatprep.mubr.f32.mxu0 0.0
      %v6772 = vand.u32 %v399, 4294901760
      %6773 = vmatmul.mubr.f32.gmra.mrb[0].mxu0 %v6772
      %v6774 = vpop.f32.mrb[0].mxu0
      %v6775 = vadd.f32 %v5806, %v6774
      %v6776 = vpop.f32.mrb[0].mxu0
      %v6777 = vadd.f32 %v5808, %v6776
      %6778 = vmatprep.mubr.f32.mxu0 0.0
      %v6779 = vand.u32 %v402, 4294901760
      %6780 = vmatmul.mubr.f32.gmra.mrb[0].mxu0 %v6779
      %v6781 = vpop.f32.mrb[0].mxu0
      %v6782 = vadd.f32 %v5813, %v6781
      %v6783 = vpop.f32.mrb[0].mxu0
      %v6784 = vadd.f32 %v5815, %v6783
      %6785 = vmatprep.mubr.f32.mxu0 0.0
      %v6786 = vand.u32 %v405, 4294901760
      %6787 = vmatmul.mubr.f32.gmra.mrb[0].mxu0 %v6786
      %v6788 = vpop.f32.mrb[0].mxu0
      %v6789 = vadd.f32 %v5820, %v6788
      %v6790 = vpop.f32.mrb[0].mxu0
      %v6791 = vadd.f32 %v5822, %v6790
      %6792 = vmatprep.mubr.f32.mxu0 0.0
      %v6793 = vand.u32 %v408, 4294901760
      %6794 = vmatmul.mubr.f32.gmra.mrb[0].mxu0 %v6793
      %v6795 = vpop.f32.mrb[0].mxu0
      %v6796 = vadd.f32 %v5827, %v6795
      %v6797 = vpop.f32.mrb[0].mxu0
      %v6798 = vadd.f32 %v5829, %v6797
      %6799 = vmatprep.mubr.f32.mxu0 0.0
      %v6800 = vand.u32 %v411, 4294901760
      %6801 = vmatmul.mubr.f32.gmra.mrb[0].mxu0 %v6800
      %v6802 = vpop.f32.mrb[0].mxu0
      %v6803 = vadd.f32 %v5834, %v6802
      %v6804 = vpop.f32.mrb[0].mxu0
      %v6805 = vadd.f32 %v5836, %v6804
      %6806 = vmatprep.mubr.f32.mxu0 0.0
      %v6807 = vand.u32 %v414, 4294901760
      %6808 = vmatmul.mubr.f32.gmra.mrb[0].mxu0 %v6807
      %v6809 = vpop.f32.mrb[0].mxu0
      %v6810 = vadd.f32 %v5841, %v6809
      %v6811 = vpop.f32.mrb[0].mxu0
      %v6812 = vadd.f32 %v5843, %v6811
      %6813 = vmatprep.mubr.f32.mxu0 0.0
      %v6814 = vand.u32 %v417, 4294901760
      %6815 = vmatmul.mubr.f32.gmra.mrb[0].mxu0 %v6814
      %v6816 = vpop.f32.mrb[0].mxu0
      %v6817 = vadd.f32 %v5848, %v6816
      %v6818 = vpop.f32.mrb[0].mxu0
      %v6819 = vadd.f32 %v5850, %v6818
      %6820 = vmatprep.mubr.f32.mxu0 0.0
      %v6821 = vand.u32 %v420, 4294901760
      %6822 = vmatmul.mubr.f32.gmra.mrb[0].mxu0 %v6821
      %v6823 = vpop.f32.mrb[0].mxu0
      %v6824 = vadd.f32 %v5855, %v6823
      %v6825 = vpop.f32.mrb[0].mxu0
      %v6826 = vadd.f32 %v5857, %v6825
      %6827 = vmatprep.mubr.f32.mxu0 0.0
      %v6828 = vand.u32 %v423, 4294901760
      %6829 = vmatmul.mubr.f32.gmra.mrb[0].mxu0 %v6828
      %v6830 = vpop.f32.mrb[0].mxu0
      %v6831 = vadd.f32 %v5862, %v6830
      %v6832 = vpop.f32.mrb[0].mxu0
      %v6833 = vadd.f32 %v5864, %v6832
      %6834 = vmatprep.mubr.f32.mxu0 0.0
      %v6835 = vand.u32 %v426, 4294901760
      %6836 = vmatmul.mubr.f32.gmra.mrb[0].mxu0 %v6835
      %v6837 = vpop.f32.mrb[0].mxu0
      %v6838 = vadd.f32 %v5869, %v6837
      %v6839 = vpop.f32.mrb[0].mxu0
      %v6840 = vadd.f32 %v5871, %v6839
      %6841 = vmatprep.mubr.f32.mxu0 0.0
      %v6842 = vand.u32 %v429, 4294901760
      %6843 = vmatmul.mubr.f32.gmra.mrb[0].mxu0 %v6842
      %v6844 = vpop.f32.mrb[0].mxu0
      %v6845 = vadd.f32 %v5876, %v6844
      %v6846 = vpop.f32.mrb[0].mxu0
      %v6847 = vadd.f32 %v5878, %v6846
      %6848 = vmatprep.mubr.f32.mxu0 0.0
      %v6849 = vand.u32 %v432, 4294901760
      %6850 = vmatmul.mubr.f32.gmra.mrb[0].mxu0 %v6849
      %v6851 = vpop.f32.mrb[0].mxu0
      %v6852 = vadd.f32 %v5883, %v6851
      %v6853 = vpop.f32.mrb[0].mxu0
      %v6854 = vadd.f32 %v5885, %v6853
      %6855 = vmatprep.mubr.f32.mxu0 0.0
      %v6856 = vand.u32 %v435, 4294901760
      %6857 = vmatmul.mubr.f32.gmra.mrb[0].mxu0 %v6856
      %v6858 = vpop.f32.mrb[0].mxu0
      %v6859 = vadd.f32 %v5890, %v6858
      %v6860 = vpop.f32.mrb[0].mxu0
      %v6861 = vadd.f32 %v5892, %v6860
      %6862 = vmatprep.mubr.f32.mxu0 0.0
      %v6863 = vand.u32 %v438, 4294901760
      %6864 = vmatmul.mubr.f32.gmra.mrb[0].mxu0 %v6863
      %v6865 = vpop.f32.mrb[0].mxu0
      %v6866 = vadd.f32 %v5897, %v6865
      %v6867 = vpop.f32.mrb[0].mxu0
      %v6868 = vadd.f32 %v5899, %v6867
      %6869 = vmatprep.mubr.f32.mxu0 0.0
      %v6870 = vand.u32 %v441, 4294901760
      %6871 = vmatmul.mubr.f32.gmra.mrb[0].mxu0 %v6870
      %v6872 = vpop.f32.mrb[0].mxu0
      %v6873 = vadd.f32 %v5904, %v6872
      %v6874 = vpop.f32.mrb[0].mxu0
      %v6875 = vadd.f32 %v5906, %v6874
      %6876 = vmatprep.mubr.f32.mxu0 0.0
      %v6877 = vand.u32 %v444, 4294901760
      %6878 = vmatmul.mubr.f32.gmra.mrb[0].mxu0 %v6877
      %v6879 = vpop.f32.mrb[0].mxu0
      %v6880 = vadd.f32 %v5911, %v6879
      %v6881 = vpop.f32.mrb[0].mxu0
      %v6882 = vadd.f32 %v5913, %v6881
      %6883 = vmatprep.mubr.f32.mxu0 0.0
      %v6884 = vand.u32 %v447, 4294901760
      %6885 = vmatmul.mubr.f32.gmra.mrb[0].mxu0 %v6884
      %v6886 = vpop.f32.mrb[0].mxu0
      %v6887 = vadd.f32 %v5918, %v6886
      %v6888 = vpop.f32.mrb[0].mxu0
      %v6889 = vadd.f32 %v5920, %v6888
      %6890 = vmatprep.mubr.f32.mxu0 0.0
      %v6891 = vand.u32 %v450, 4294901760
      %6892 = vmatmul.mubr.f32.gmra.mrb[0].mxu0 %v6891
      %v6893 = vpop.f32.mrb[0].mxu0
      %v6894 = vadd.f32 %v5925, %v6893
      %v6895 = vpop.f32.mrb[0].mxu0
      %v6896 = vadd.f32 %v5927, %v6895
      %6897 = vmatprep.mubr.f32.mxu0 0.0
      %v6898 = vand.u32 %v453, 4294901760
      %6899 = vmatmul.mubr.f32.gmra.mrb[0].mxu0 %v6898
      %v6900 = vpop.f32.mrb[0].mxu0
      %v6901 = vadd.f32 %v5932, %v6900
      %v6902 = vpop.f32.mrb[0].mxu0
      %v6903 = vadd.f32 %v5934, %v6902
      %6904 = vmatprep.mubr.f32.mxu0 0.0
      %v6905 = vand.u32 %v456, 4294901760
      %6906 = vmatmul.mubr.f32.gmra.mrb[0].mxu0 %v6905
      %v6907 = vpop.f32.mrb[0].mxu0
      %v6908 = vadd.f32 %v5939, %v6907
      %v6909 = vpop.f32.mrb[0].mxu0
      %v6910 = vadd.f32 %v5941, %v6909
      %6911 = vmatprep.mubr.f32.mxu0 0.0
      %v6912 = vand.u32 %v459, 4294901760
      %6913 = vmatmul.mubr.f32.gmra.mrb[0].mxu0 %v6912
      %v6914 = vpop.f32.mrb[0].mxu0
      %v6915 = vadd.f32 %v5946, %v6914
      %v6916 = vpop.f32.mrb[0].mxu0
      %v6917 = vadd.f32 %v5948, %v6916
      %6918 = vmatprep.mubr.f32.mxu0 0.0
      %v6919 = vand.u32 %v462, 4294901760
      %6920 = vmatmul.mubr.f32.gmra.mrb[0].mxu0 %v6919
      %v6921 = vpop.f32.mrb[0].mxu0
      %v6922 = vadd.f32 %v5953, %v6921
      %v6923 = vpop.f32.mrb[0].mxu0
      %v6924 = vadd.f32 %v5955, %v6923
      %6925 = vmatprep.mubr.f32.mxu0 0.0
      %v6926 = vand.u32 %v465, 4294901760
      %6927 = vmatmul.mubr.f32.gmra.mrb[0].mxu0 %v6926
      %v6928 = vpop.f32.mrb[0].mxu0
      %v6929 = vadd.f32 %v5960, %v6928
      %v6930 = vpop.f32.mrb[0].mxu0
      %v6931 = vadd.f32 %v5962, %v6930
      %6932 = vmatprep.mubr.f32.mxu0 0.0
      %v6933 = vand.u32 %v468, 4294901760
      %6934 = vmatmul.mubr.f32.gmra.mrb[0].mxu0 %v6933
      %v6935 = vpop.f32.mrb[0].mxu0
      %v6936 = vadd.f32 %v5967, %v6935
      %v6937 = vpop.f32.mrb[0].mxu0
      %v6938 = vadd.f32 %v5969, %v6937
      %6939 = vmatprep.mubr.f32.mxu0 0.0
      %v6940 = vand.u32 %v471, 4294901760
      %6941 = vmatmul.mubr.f32.gmra.mrb[0].mxu0 %v6940
      %v6942 = vpop.f32.mrb[0].mxu0
      %v6943 = vadd.f32 %v5974, %v6942
      %v6944 = vpop.f32.mrb[0].mxu0
      %v6945 = vadd.f32 %v5976, %v6944
      %6946 = vmatprep.mubr.f32.mxu0 0.0
      %v6947 = vand.u32 %v474, 4294901760
      %6948 = vmatmul.mubr.f32.gmra.mrb[0].mxu0 %v6947
      %v6949 = vpop.f32.mrb[0].mxu0
      %v6950 = vadd.f32 %v5981, %v6949
      %v6951 = vpop.f32.mrb[0].mxu0
      %v6952 = vadd.f32 %v5983, %v6951
      %6953 = vmatprep.mubr.f32.mxu0 0.0
      %v6954 = vand.u32 %v477, 4294901760
      %6955 = vmatmul.mubr.f32.gmra.mrb[0].mxu0 %v6954
      %v6956 = vpop.f32.mrb[0].mxu0
      %v6957 = vadd.f32 %v5988, %v6956
      %v6958 = vpop.f32.mrb[0].mxu0
      %v6959 = vadd.f32 %v5990, %v6958
      %6960 = vmatprep.mubr.f32.mxu0 0.0
      %v6961 = vand.u32 %v480, 4294901760
      %6962 = vmatmul.mubr.f32.gmra.mrb[0].mxu0 %v6961
      %v6963 = vpop.f32.mrb[0].mxu0
      %v6964 = vadd.f32 %v5995, %v6963
      %v6965 = vpop.f32.mrb[0].mxu0
      %v6966 = vadd.f32 %v5997, %v6965
      %6967 = vmatprep.mubr.f32.mxu0 0.0
      %v6968 = vand.u32 %v483, 4294901760
      %6969 = vmatmul.mubr.f32.gmra.mrb[0].mxu0 %v6968
      %v6970 = vpop.f32.mrb[0].mxu0
      %v6971 = vadd.f32 %v6002, %v6970
      %v6972 = vpop.f32.mrb[0].mxu0
      %v6973 = vadd.f32 %v6004, %v6972
      %6974 = vmatprep.mubr.f32.mxu0 0.0
      %v6975 = vand.u32 %v486, 4294901760
      %6976 = vmatmul.mubr.f32.gmra.mrb[0].mxu0 %v6975
      %v6977 = vpop.f32.mrb[0].mxu0
      %v6978 = vadd.f32 %v6009, %v6977
      %v6979 = vpop.f32.mrb[0].mxu0
      %v6980 = vadd.f32 %v6011, %v6979
      %6981 = vmatprep.mubr.f32.mxu0 0.0
      %v6982 = vand.u32 %v489, 4294901760
      %6983 = vmatmul.mubr.f32.gmra.mrb[0].mxu0 %v6982
      %v6984 = vpop.f32.mrb[0].mxu0
      %v6985 = vadd.f32 %v6016, %v6984
      %v6986 = vpop.f32.mrb[0].mxu0
      %v6987 = vadd.f32 %v6018, %v6986
      %6988 = vmatprep.mubr.f32.mxu0 0.0
      %v6989 = vand.u32 %v492, 4294901760
      %6990 = vmatmul.mubr.f32.gmra.mrb[0].mxu0 %v6989
      %v6991 = vpop.f32.mrb[0].mxu0
      %v6992 = vadd.f32 %v6023, %v6991
      %v6993 = vpop.f32.mrb[0].mxu0
      %v6994 = vadd.f32 %v6025, %v6993
      %6995 = vmatprep.mubr.f32.mxu0 0.0
      %v6996 = vand.u32 %v495, 4294901760
      %6997 = vmatmul.mubr.f32.gmra.mrb[0].mxu0 %v6996
      %v6998 = vpop.f32.mrb[0].mxu0
      %v6999 = vadd.f32 %v6030, %v6998
      %v7000 = vpop.f32.mrb[0].mxu0
      %v7001 = vadd.f32 %v6032, %v7000
      %7002 = vmatprep.mubr.f32.mxu0 0.0
      %v7003 = vand.u32 %v498, 4294901760
      %7004 = vmatmul.mubr.f32.gmra.mrb[0].mxu0 %v7003
      %v7005 = vpop.f32.mrb[0].mxu0
      %v7006 = vadd.f32 %v6037, %v7005
      %v7007 = vpop.f32.mrb[0].mxu0
      %v7008 = vadd.f32 %v6039, %v7007
      %7009 = vmatprep.mubr.f32.mxu0 0.0
      %v7010 = vand.u32 %v501, 4294901760
      %7011 = vmatmul.mubr.f32.gmra.mrb[0].mxu0 %v7010
      %v7012 = vpop.f32.mrb[0].mxu0
      %v7013 = vadd.f32 %v6044, %v7012
      %v7014 = vpop.f32.mrb[0].mxu0
      %v7015 = vadd.f32 %v6046, %v7014
      %7016 = vmatprep.mubr.f32.mxu0 0.0
      %v7017 = vand.u32 %v504, 4294901760
      %7018 = vmatmul.mubr.f32.gmra.mrb[0].mxu0 %v7017
      %v7019 = vpop.f32.mrb[0].mxu0
      %v7020 = vadd.f32 %v6051, %v7019
      %v7021 = vpop.f32.mrb[0].mxu0
      %v7022 = vadd.f32 %v6053, %v7021
      %7023 = vmatprep.mubr.f32.mxu0 0.0
      %v7024 = vand.u32 %v507, 4294901760
      %7025 = vmatmul.mubr.f32.gmra.mrb[0].mxu0 %v7024
      %v7026 = vpop.f32.mrb[0].mxu0
      %v7027 = vadd.f32 %v6058, %v7026
      %v7028 = vpop.f32.mrb[0].mxu0
      %v7029 = vadd.f32 %v6060, %v7028
      %7030 = vmatprep.mubr.f32.mxu0 0.0
      %v7031 = vand.u32 %v510, 4294901760
      %7032 = vmatmul.mubr.f32.gmra.mrb[0].mxu0 %v7031
      %v7033 = vpop.f32.mrb[0].mxu0
      %v7034 = vadd.f32 %v6065, %v7033
      %v7035 = vpop.f32.mrb[0].mxu0
      %v7036 = vadd.f32 %v6067, %v7035
      %7037 = vmatprep.mubr.f32.mxu0 0.0
      %v7038 = vand.u32 %v513, 4294901760
      %7039 = vmatmul.mubr.f32.gmra.mrb[0].mxu0 %v7038
      %v7040 = vpop.f32.mrb[0].mxu0
      %v7041 = vadd.f32 %v6072, %v7040
      %v7042 = vpop.f32.mrb[0].mxu0
      %v7043 = vadd.f32 %v6074, %v7042
      %7044 = vmatprep.mubr.f32.mxu0 0.0
      %v7045 = vand.u32 %v516, 4294901760
      %7046 = vmatmul.mubr.f32.gmra.mrb[0].mxu0 %v7045
      %v7047 = vpop.f32.mrb[0].mxu0
      %v7048 = vadd.f32 %v6079, %v7047
      %v7049 = vpop.f32.mrb[0].mxu0
      %v7050 = vadd.f32 %v6081, %v7049
      %7051 = vmatprep.mubr.f32.mxu0 0.0
      %v7052 = vand.u32 %v519, 4294901760
      %7053 = vmatmul.mubr.f32.gmra.mrb[0].mxu0 %v7052
      %v7054 = vpop.f32.mrb[0].mxu0
      %v7055 = vadd.f32 %v6086, %v7054
      %v7056 = vpop.f32.mrb[0].mxu0
      %v7057 = vadd.f32 %v6088, %v7056
      %7058 = vmatprep.mubr.f32.mxu0 0.0
      %v7059 = vand.u32 %v522, 4294901760
      %7060 = vmatmul.mubr.f32.gmra.mrb[0].mxu0 %v7059
      %v7061 = vpop.f32.mrb[0].mxu0
      %v7062 = vadd.f32 %v6093, %v7061
      %v7063 = vpop.f32.mrb[0].mxu0
      %v7064 = vadd.f32 %v6095, %v7063
      %7065 = vmatprep.mubr.f32.mxu0 0.0
      %v7066 = vand.u32 %v525, 4294901760
      %7067 = vmatmul.mubr.f32.gmra.mrb[0].mxu0 %v7066
      %v7068 = vpop.f32.mrb[0].mxu0
      %v7069 = vadd.f32 %v6100, %v7068
      %v7070 = vpop.f32.mrb[0].mxu0
      %v7071 = vadd.f32 %v6102, %v7070
      %7072 = vmatprep.mubr.f32.mxu0 0.0
      %v7073 = vand.u32 %v528, 4294901760
      %7074 = vmatmul.mubr.f32.gmra.mrb[0].mxu0 %v7073
      %v7075 = vpop.f32.mrb[0].mxu0
      %v7076 = vadd.f32 %v6107, %v7075
      %v7077 = vpop.f32.mrb[0].mxu0
      %v7078 = vadd.f32 %v6109, %v7077
      %7079 = vmatprep.mubr.f32.mxu0 0.0
      %v7080 = vand.u32 %v531, 4294901760
      %7081 = vmatmul.mubr.f32.gmra.mrb[0].mxu0 %v7080
      %v7082 = vpop.f32.mrb[0].mxu0
      %v7083 = vadd.f32 %v6114, %v7082
      %v7084 = vpop.f32.mrb[0].mxu0
      %v7085 = vadd.f32 %v6116, %v7084
      %7086 = vmatprep.mubr.f32.mxu0 0.0
      %v7087 = vand.u32 %v534, 4294901760
      %7088 = vmatmul.mubr.f32.gmra.mrb[0].mxu0 %v7087
      %v7089 = vpop.f32.mrb[0].mxu0
      %v7090 = vadd.f32 %v6121, %v7089
      %v7091 = vpop.f32.mrb[0].mxu0
      %v7092 = vadd.f32 %v6123, %v7091
      %7093 = vmatprep.mubr.f32.mxu0 0.0
      %v7094 = vand.u32 %v537, 4294901760
      %7095 = vmatmul.mubr.f32.gmra.mrb[0].mxu0 %v7094
      %v7096 = vpop.f32.mrb[0].mxu0
      %v7097 = vadd.f32 %v6128, %v7096
      %v7098 = vpop.f32.mrb[0].mxu0
      %v7099 = vadd.f32 %v6130, %v7098
      %7100 = vmatprep.mubr.f32.mxu0 0.0
      %v7101 = vand.u32 %v540, 4294901760
      %7102 = vmatmul.mubr.f32.gmra.mrb[0].mxu0 %v7101
      %v7103 = vpop.f32.mrb[0].mxu0
      %v7104 = vadd.f32 %v6135, %v7103
      %v7105 = vpop.f32.mrb[0].mxu0
      %v7106 = vadd.f32 %v6137, %v7105
      %7107 = vmatprep.mubr.f32.mxu0 0.0
      %v7108 = vand.u32 %v543, 4294901760
      %7109 = vmatmul.mubr.f32.gmra.mrb[0].mxu0 %v7108
      %v7110 = vpop.f32.mrb[0].mxu0
      %v7111 = vadd.f32 %v6142, %v7110
      %v7112 = vpop.f32.mrb[0].mxu0
      %v7113 = vadd.f32 %v6144, %v7112
      %7114 = vmatprep.mubr.f32.mxu0 0.0
      %v7115 = vand.u32 %v546, 4294901760
      %7116 = vmatmul.mubr.f32.gmra.mrb[0].mxu0 %v7115
      %v7117 = vpop.f32.mrb[0].mxu0
      %v7118 = vadd.f32 %v6149, %v7117
      %v7119 = vpop.f32.mrb[0].mxu0
      %v7120 = vadd.f32 %v6151, %v7119
      %7121 = vmatprep.mubr.f32.mxu0 0.0
      %v7122 = vand.u32 %v549, 4294901760
      %7123 = vmatmul.mubr.f32.gmra.mrb[0].mxu0 %v7122
      %v7124 = vpop.f32.mrb[0].mxu0
      %v7125 = vadd.f32 %v6156, %v7124
      %v7126 = vpop.f32.mrb[0].mxu0
      %v7127 = vadd.f32 %v6158, %v7126
      %7128 = vmatprep.mubr.f32.mxu0 0.0
      %v7129 = vand.u32 %v552, 4294901760
      %7130 = vmatmul.mubr.f32.gmra.mrb[0].mxu0 %v7129
      %v7131 = vpop.f32.mrb[0].mxu0
      %v7132 = vadd.f32 %v6163, %v7131
      %v7133 = vpop.f32.mrb[0].mxu0
      %v7134 = vadd.f32 %v6165, %v7133
      %7135 = vmatprep.mubr.f32.mxu0 0.0
      %v7136 = vand.u32 %v555, 4294901760
      %7137 = vmatmul.mubr.f32.gmra.mrb[0].mxu0 %v7136
      %v7138 = vpop.f32.mrb[0].mxu0
      %v7139 = vadd.f32 %v6170, %v7138
      %v7140 = vpop.f32.mrb[0].mxu0
      %v7141 = vadd.f32 %v6172, %v7140
      %7142 = vmatprep.mubr.f32.mxu0 0.0
      %v7143 = vand.u32 %v558, 4294901760
      %7144 = vmatmul.mubr.f32.gmra.mrb[0].mxu0 %v7143
      %v7145 = vpop.f32.mrb[0].mxu0
      %v7146 = vadd.f32 %v6177, %v7145
      %v7147 = vpop.f32.mrb[0].mxu0
      %v7148 = vadd.f32 %v6179, %v7147
      %7149 = vmatprep.mubr.f32.mxu0 0.0
      %v7150 = vand.u32 %v561, 4294901760
      %7151 = vmatmul.mubr.f32.gmra.mrb[0].mxu0 %v7150
      %v7152 = vpop.f32.mrb[0].mxu0
      %v7153 = vadd.f32 %v6184, %v7152
      %v7154 = vpop.f32.mrb[0].mxu0
      %v7155 = vadd.f32 %v6186, %v7154
      %7156 = vmatprep.mubr.f32.mxu0 0.0
      %v7157 = vand.u32 %v564, 4294901760
      %7158 = vmatmul.mubr.f32.gmra.mrb[0].mxu0 %v7157
      %v7159 = vpop.f32.mrb[0].mxu0
      %v7160 = vadd.f32 %v6191, %v7159
      %v7161 = vpop.f32.mrb[0].mxu0
      %v7162 = vadd.f32 %v6193, %v7161
      %7163 = vmatprep.mubr.f32.mxu0 0.0
      %v7164 = vand.u32 %v567, 4294901760
      %7165 = vmatmul.mubr.f32.gmra.mrb[0].mxu0 %v7164
      %v7166 = vpop.f32.mrb[0].mxu0
      %v7167 = vadd.f32 %v6198, %v7166
      %v7168 = vpop.f32.mrb[0].mxu0
      %v7169 = vadd.f32 %v6200, %v7168
      %7170 = vmatprep.mubr.f32.mxu0 0.0
      %v7171 = vand.u32 %v570, 4294901760
      %7172 = vmatmul.mubr.f32.gmra.mrb[0].mxu0 %v7171
      %v7173 = vpop.f32.mrb[0].mxu0
      %v7174 = vadd.f32 %v6205, %v7173
      %v7175 = vpop.f32.mrb[0].mxu0
      %v7176 = vadd.f32 %v6207, %v7175
      %7177 = vmatprep.mubr.f32.mxu0 0.0
      %v7178 = vand.u32 %v573, 4294901760
      %7179 = vmatmul.mubr.f32.gmra.mrb[0].mxu0 %v7178
      %v7180 = vpop.f32.mrb[0].mxu0
      %v7181 = vadd.f32 %v6212, %v7180
      %v7182 = vpop.f32.mrb[0].mxu0
      %v7183 = vadd.f32 %v6214, %v7182
      %7184 = vmatprep.mubr.f32.mxu0 0.0
      %v7185 = vand.u32 %v576, 4294901760
      %7186 = vmatmul.mubr.f32.gmra.mrb[0].mxu0 %v7185
      %v7187 = vpop.f32.mrb[0].mxu0
      %v7188 = vadd.f32 %v6219, %v7187
      %v7189 = vpop.f32.mrb[0].mxu0
      %v7190 = vadd.f32 %v6221, %v7189
      %7191 = vmatprep.mubr.f32.mxu0 0.0
      %v7192 = vand.u32 %v579, 4294901760
      %7193 = vmatmul.mubr.f32.gmra.mrb[0].mxu0 %v7192
      %v7194 = vpop.f32.mrb[0].mxu0
      %v7195 = vadd.f32 %v6226, %v7194
      %v7196 = vpop.f32.mrb[0].mxu0
      %v7197 = vadd.f32 %v6228, %v7196
      %7198 = vmatprep.mubr.f32.mxu0 0.0
      %v7199 = vand.u32 %v582, 4294901760
      %7200 = vmatmul.mubr.f32.gmra.mrb[0].mxu0 %v7199
      %v7201 = vpop.f32.mrb[0].mxu0
      %v7202 = vadd.f32 %v6233, %v7201
      %v7203 = vpop.f32.mrb[0].mxu0
      %v7204 = vadd.f32 %v6235, %v7203
      %7205 = vmatprep.mubr.f32.mxu0 0.0
      %v7206 = vand.u32 %v585, 4294901760
      %7207 = vmatmul.mubr.f32.gmra.mrb[0].mxu0 %v7206
      %v7208 = vpop.f32.mrb[0].mxu0
      %v7209 = vadd.f32 %v6240, %v7208
      %v7210 = vpop.f32.mrb[0].mxu0
      %v7211 = vadd.f32 %v6242, %v7210
      %7212 = vmatprep.mubr.f32.mxu0 0.0
      %v7213 = vand.u32 %v588, 4294901760
      %7214 = vmatmul.mubr.f32.gmra.mrb[0].mxu0 %v7213
      %v7215 = vpop.f32.mrb[0].mxu0
      %v7216 = vadd.f32 %v6247, %v7215
      %v7217 = vpop.f32.mrb[0].mxu0
      %v7218 = vadd.f32 %v6249, %v7217
      %7219 = vmatprep.mubr.f32.mxu0 0.0
      %v7220 = vand.u32 %v591, 4294901760
      %7221 = vmatmul.mubr.f32.gmra.mrb[0].mxu0 %v7220
      %v7222 = vpop.f32.mrb[0].mxu0
      %v7223 = vadd.f32 %v6254, %v7222
      %v7224 = vpop.f32.mrb[0].mxu0
      %v7225 = vadd.f32 %v6256, %v7224
      %7226 = vmatprep.mubr.f32.mxu0 0.0
      %v7227 = vand.u32 %v594, 4294901760
      %7228 = vmatmul.mubr.f32.gmra.mrb[0].mxu0 %v7227
      %v7229 = vpop.f32.mrb[0].mxu0
      %v7230 = vadd.f32 %v6261, %v7229
      %v7231 = vpop.f32.mrb[0].mxu0
      %v7232 = vadd.f32 %v6263, %v7231
      %7233 = vmatprep.mubr.f32.mxu0 0.0
      %v7234 = vand.u32 %v597, 4294901760
      %7235 = vmatmul.mubr.f32.gmra.mrb[0].mxu0 %v7234
      %v7236 = vpop.f32.mrb[0].mxu0
      %v7237 = vadd.f32 %v6268, %v7236
      %v7238 = vpop.f32.mrb[0].mxu0
      %v7239 = vadd.f32 %v6270, %v7238
      %7240 = vmatprep.mubr.f32.mxu0 0.0
      %v7241 = vand.u32 %v600, 4294901760
      %7242 = vmatmul.mubr.f32.gmra.mrb[0].mxu0 %v7241
      %v7243 = vpop.f32.mrb[0].mxu0
      %v7244 = vadd.f32 %v6275, %v7243
      %v7245 = vpop.f32.mrb[0].mxu0
      %v7246 = vadd.f32 %v6277, %v7245
      %7247 = vmatprep.mubr.f32.mxu0 0.0
      %v7248 = vand.u32 %v603, 4294901760
      %7249 = vmatmul.mubr.f32.gmra.mrb[0].mxu0 %v7248
      %v7250 = vpop.f32.mrb[0].mxu0
      %v7251 = vadd.f32 %v6282, %v7250
      %v7252 = vpop.f32.mrb[0].mxu0
      %v7253 = vadd.f32 %v6284, %v7252
      %7254 = vmatprep.mubr.f32.mxu0 0.0
      %v7255 = vand.u32 %v606, 4294901760
      %7256 = vmatmul.mubr.f32.gmra.mrb[0].mxu0 %v7255
      %v7257 = vpop.f32.mrb[0].mxu0
      %v7258 = vadd.f32 %v6289, %v7257
      %v7259 = vpop.f32.mrb[0].mxu0
      %v7260 = vadd.f32 %v6291, %v7259
      %7261 = vmatprep.mubr.f32.mxu0 0.0
      %v7262 = vand.u32 %v609, 4294901760
      %7263 = vmatmul.mubr.f32.gmra.mrb[0].mxu0 %v7262
      %v7264 = vpop.f32.mrb[0].mxu0
      %v7265 = vadd.f32 %v6296, %v7264
      %v7266 = vpop.f32.mrb[0].mxu0
      %v7267 = vadd.f32 %v6298, %v7266
      %7268 = vmatprep.mubr.f32.mxu0 0.0
      %v7269 = vand.u32 %v612, 4294901760
      %7270 = vmatmul.mubr.f32.gmra.mrb[0].mxu0 %v7269
      %v7271 = vpop.f32.mrb[0].mxu0
      %v7272 = vadd.f32 %v6303, %v7271
      %v7273 = vpop.f32.mrb[0].mxu0
      %v7274 = vadd.f32 %v6305, %v7273
      %7275 = vmatprep.mubr.f32.mxu0 0.0
      %v7276 = vand.u32 %v615, 4294901760
      %7277 = vmatmul.mubr.f32.gmra.mrb[0].mxu0 %v7276
      %v7278 = vpop.f32.mrb[0].mxu0
      %v7279 = vadd.f32 %v6310, %v7278
      %v7280 = vpop.f32.mrb[0].mxu0
      %v7281 = vadd.f32 %v6312, %v7280
      %7282 = vmatprep.mubr.f32.mxu0 0.0
      %v7283 = vand.u32 %v618, 4294901760
      %7284 = vmatmul.mubr.f32.gmra.mrb[0].mxu0 %v7283
      %v7285 = vpop.f32.mrb[0].mxu0
      %v7286 = vadd.f32 %v6317, %v7285
      %v7287 = vpop.f32.mrb[0].mxu0
      %v7288 = vadd.f32 %v6319, %v7287
      %7289 = vmatprep.mubr.f32.mxu0 0.0
      %v7290 = vand.u32 %v621, 4294901760
      %7291 = vmatmul.mubr.f32.gmra.mrb[0].mxu0 %v7290
      %v7292 = vpop.f32.mrb[0].mxu0
      %v7293 = vadd.f32 %v6324, %v7292
      %v7294 = vpop.f32.mrb[0].mxu0
      %v7295 = vadd.f32 %v6326, %v7294
      %7296 = vmatprep.mubr.f32.mxu0 0.0
      %v7297 = vand.u32 %v624, 4294901760
      %7298 = vmatmul.mubr.f32.gmra.mrb[0].mxu0 %v7297
      %v7299 = vpop.f32.mrb[0].mxu0
      %v7300 = vadd.f32 %v6331, %v7299
      %v7301 = vpop.f32.mrb[0].mxu0
      %v7302 = vadd.f32 %v6333, %v7301
      %7303 = vmatprep.mubr.f32.mxu0 0.0
      %v7304 = vand.u32 %v627, 4294901760
      %7305 = vmatmul.mubr.f32.gmra.mrb[0].mxu0 %v7304
      %v7306 = vpop.f32.mrb[0].mxu0
      %v7307 = vadd.f32 %v6338, %v7306
      %v7308 = vpop.f32.mrb[0].mxu0
      %v7309 = vadd.f32 %v6340, %v7308
      %7310 = vmatprep.mubr.f32.mxu0 0.0
      %v7311 = vand.u32 %v630, 4294901760
      %7312 = vmatmul.mubr.f32.gmra.mrb[0].mxu0 %v7311
      %v7313 = vpop.f32.mrb[0].mxu0
      %v7314 = vadd.f32 %v6345, %v7313
      %v7315 = vpop.f32.mrb[0].mxu0
      %v7316 = vadd.f32 %v6347, %v7315
      %7317 = vmatprep.mubr.f32.mxu0 0.0
      %v7318 = vand.u32 %v633, 4294901760
      %7319 = vmatmul.mubr.f32.gmra.mrb[0].mxu0 %v7318
      %v7320 = vpop.f32.mrb[0].mxu0
      %v7321 = vadd.f32 %v6352, %v7320
      %v7322 = vpop.f32.mrb[0].mxu0
      %v7323 = vadd.f32 %v6354, %v7322
      %7324 = vmatprep.mubr.f32.mxu0 0.0
      %v7325 = vand.u32 %v636, 4294901760
      %7326 = vmatmul.mubr.f32.gmra.mrb[0].mxu0 %v7325
      %v7327 = vpop.f32.mrb[0].mxu0
      %v7328 = vadd.f32 %v6359, %v7327
      %v7329 = vpop.f32.mrb[0].mxu0
      %v7330 = vadd.f32 %v6361, %v7329
      %7331 = vmatprep.mubr.f32.mxu0 0.0
      %v7332 = vand.u32 %v639, 4294901760
      %7333 = vmatmul.mubr.f32.gmra.mrb[0].mxu0 %v7332
      %v7334 = vpop.f32.mrb[0].mxu0
      %v7335 = vadd.f32 %v6366, %v7334
      %v7336 = vpop.f32.mrb[0].mxu0
      %v7337 = vadd.f32 %v6368, %v7336
      %7338 = vmatprep.mubr.f32.mxu0 0.0
      %v7339 = vand.u32 %v642, 4294901760
      %7340 = vmatmul.mubr.f32.gmra.mrb[0].mxu0 %v7339
      %v7341 = vpop.f32.mrb[0].mxu0
      %v7342 = vadd.f32 %v6373, %v7341
      %v7343 = vpop.f32.mrb[0].mxu0
      %v7344 = vadd.f32 %v6375, %v7343
      %7345 = vmatprep.mubr.f32.mxu0 0.0
      %v7346 = vand.u32 %v645, 4294901760
      %7347 = vmatmul.mubr.f32.gmra.mrb[0].mxu0 %v7346
      %v7348 = vpop.f32.mrb[0].mxu0
      %v7349 = vadd.f32 %v6380, %v7348
      %v7350 = vpop.f32.mrb[0].mxu0
      %v7351 = vadd.f32 %v6382, %v7350
      %7352 = vmatprep.mubr.f32.mxu0 0.0
      %v7353 = vand.u32 %v648, 4294901760
      %7354 = vmatmul.mubr.f32.gmra.mrb[0].mxu0 %v7353
      %v7355 = vpop.f32.mrb[0].mxu0
      %v7356 = vadd.f32 %v6387, %v7355
      %v7357 = vpop.f32.mrb[0].mxu0
      %v7358 = vadd.f32 %v6389, %v7357
      %7359 = vmatprep.mubr.f32.mxu0 0.0
      %v7360 = vand.u32 %v651, 4294901760
      %7361 = vmatmul.mubr.f32.gmra.mrb[0].mxu0 %v7360
      %v7362 = vpop.f32.mrb[0].mxu0
      %v7363 = vadd.f32 %v6394, %v7362
      %v7364 = vpop.f32.mrb[0].mxu0
      %v7365 = vadd.f32 %v6396, %v7364
      %7366 = vmatprep.mubr.f32.mxu0 0.0
      %v7367 = vand.u32 %v654, 4294901760
      %7368 = vmatmul.mubr.f32.gmra.mrb[0].mxu0 %v7367
      %v7369 = vpop.f32.mrb[0].mxu0
      %v7370 = vadd.f32 %v6401, %v7369
      %v7371 = vpop.f32.mrb[0].mxu0
      %v7372 = vadd.f32 %v6403, %v7371
      %7373 = vmatprep.mubr.f32.mxu0 0.0
      %v7374 = vand.u32 %v657, 4294901760
      %7375 = vmatmul.mubr.f32.gmra.mrb[0].mxu0 %v7374
      %v7376 = vpop.f32.mrb[0].mxu0
      %v7377 = vadd.f32 %v6408, %v7376
      %v7378 = vpop.f32.mrb[0].mxu0
      %v7379 = vadd.f32 %v6410, %v7378
      %7380 = vmatprep.mubr.f32.mxu0 0.0
      %v7381 = vand.u32 %v660, 4294901760
      %7382 = vmatmul.mubr.f32.gmra.mrb[0].mxu0 %v7381
      %v7383 = vpop.f32.mrb[0].mxu0
      %v7384 = vadd.f32 %v6415, %v7383
      %v7385 = vpop.f32.mrb[0].mxu0
      %v7386 = vadd.f32 %v6417, %v7385
      %7387 = vmatprep.mubr.f32.mxu0 0.0
      %v7388 = vand.u32 %v663, 4294901760
      %7389 = vmatmul.mubr.f32.gmra.mrb[0].mxu0 %v7388
      %v7390 = vpop.f32.mrb[0].mxu0
      %v7391 = vadd.f32 %v6422, %v7390
      %v7392 = vpop.f32.mrb[0].mxu0
      %v7393 = vadd.f32 %v6424, %v7392
      %7394 = vmatprep.mubr.f32.mxu0 0.0
      %v7395 = vand.u32 %v666, 4294901760
      %7396 = vmatmul.mubr.f32.gmra.mrb[0].mxu0 %v7395
      %v7397 = vpop.f32.mrb[0].mxu0
      %v7398 = vadd.f32 %v6429, %v7397
      %v7399 = vpop.f32.mrb[0].mxu0
      %v7400 = vadd.f32 %v6431, %v7399
      %7401 = vmatprep.mubr.f32.mxu0 0.0
      %v7402 = vand.u32 %v669, 4294901760
      %7403 = vmatmul.mubr.f32.gmra.mrb[0].mxu0 %v7402
      %v7404 = vpop.f32.mrb[0].mxu0
      %v7405 = vadd.f32 %v6436, %v7404
      %v7406 = vpop.f32.mrb[0].mxu0
      %v7407 = vadd.f32 %v6438, %v7406
      %7408 = vmatprep.mubr.f32.mxu0 0.0
      %v7409 = vand.u32 %v672, 4294901760
      %7410 = vmatmul.mubr.f32.gmra.mrb[0].mxu0 %v7409
      %v7411 = vpop.f32.mrb[0].mxu0
      %v7412 = vadd.f32 %v6443, %v7411
      %v7413 = vpop.f32.mrb[0].mxu0
      %v7414 = vadd.f32 %v6445, %v7413
      %7415 = vmatprep.mubr.f32.mxu0 0.0
      %v7416 = vand.u32 %v675, 4294901760
      %7417 = vmatmul.mubr.f32.gmra.mrb[0].mxu0 %v7416
      %v7418 = vpop.f32.mrb[0].mxu0
      %v7419 = vadd.f32 %v6450, %v7418
      %v7420 = vpop.f32.mrb[0].mxu0
      %v7421 = vadd.f32 %v6452, %v7420
      %7422 = vmatprep.mubr.f32.mxu0 0.0
      %v7423 = vand.u32 %v678, 4294901760
      %7424 = vmatmul.mubr.f32.gmra.mrb[0].mxu0 %v7423
      %v7425 = vpop.f32.mrb[0].mxu0
      %v7426 = vadd.f32 %v6457, %v7425
      %v7427 = vpop.f32.mrb[0].mxu0
      %v7428 = vadd.f32 %v6459, %v7427
      %7429 = vmatprep.mubr.f32.mxu0 0.0
      %v7430 = vand.u32 %v681, 4294901760
      %7431 = vmatmul.mubr.f32.gmra.mrb[0].mxu0 %v7430
      %v7432 = vpop.f32.mrb[0].mxu0
      %v7433 = vadd.f32 %v6464, %v7432
      %v7434 = vpop.f32.mrb[0].mxu0
      %v7435 = vadd.f32 %v6466, %v7434
      %7436 = vmatprep.mubr.f32.mxu0 0.0
      %v7437 = vand.u32 %v684, 4294901760
      %7438 = vmatmul.mubr.f32.gmra.mrb[0].mxu0 %v7437
      %v7439 = vpop.f32.mrb[0].mxu0
      %v7440 = vadd.f32 %v6471, %v7439
      %v7441 = vpop.f32.mrb[0].mxu0
      %v7442 = vadd.f32 %v6473, %v7441
      %7443 = vmatprep.mubr.f32.mxu0 0.0
      %v7444 = vand.u32 %v687, 4294901760
      %7445 = vmatmul.mubr.f32.gmra.mrb[0].mxu0 %v7444
      %v7446 = vpop.f32.mrb[0].mxu0
      %v7447 = vadd.f32 %v6478, %v7446
      %v7448 = vpop.f32.mrb[0].mxu0
      %v7449 = vadd.f32 %v6480, %v7448
      %7450 = vmatprep.mubr.f32.mxu0 0.0
      %v7451 = vand.u32 %v690, 4294901760
      %7452 = vmatmul.mubr.f32.gmra.mrb[0].mxu0 %v7451
      %v7453 = vpop.f32.mrb[0].mxu0
      %v7454 = vadd.f32 %v6485, %v7453
      %v7455 = vpop.f32.mrb[0].mxu0
      %v7456 = vadd.f32 %v6487, %v7455
      %7457 = vdwg.mxu0
      %v7458 = vtanh.pop %v6565
      %v7459 = vtanh.pop %v6572
      %v7460 = vtanh.pop %v6579
      %v7461 = vtanh.pop %v6586
      %v7462 = vtanh.pop %v6593
      %v7463 = vtanh.pop %v6600
      %v7464 = vtanh.pop %v6607
      %v7465 = vtanh.pop %v6614
      %v7466 = vtanh.pop %v6621
      %v7467 = vtanh.pop %v6628
      %v7468 = vtanh.pop %v6635
      %v7469 = vtanh.pop %v6642
      %v7470 = vtanh.pop %v6649
      %v7471 = vtanh.pop %v6656
      %v7472 = vtanh.pop %v6663
      %v7473 = vtanh.pop %v6670
      %v7474 = vtanh.pop %v6677
      %v7475 = vtanh.pop %v6684
      %v7476 = vtanh.pop %v6691
      %v7477 = vtanh.pop %v6698
      %v7478 = vtanh.pop %v6705
      %v7479 = vtanh.pop %v6712
      %v7480 = vtanh.pop %v6719
      %v7481 = vtanh.pop %v6726
      %v7482 = vtanh.pop %v6733
      %v7483 = vtanh.pop %v6740
      %v7484 = vtanh.pop %v6747
      %v7485 = vtanh.pop %v6754
      %v7486 = vtanh.pop %v6761
      %v7487 = vtanh.pop %v6768
      %v7488 = vtanh.pop %v6775
      %v7489 = vtanh.pop %v6782
      %v7490 = vtanh.pop %v6789
      %v7491 = vtanh.pop %v6796
      %v7492 = vtanh.pop %v6803
      %v7493 = vtanh.pop %v6810
      %v7494 = vtanh.pop %v6817
      %v7495 = vtanh.pop %v6824
      %v7496 = vtanh.pop %v6831
      %v7497 = vtanh.pop %v6838
      %v7498 = vtanh.pop %v6845
      %v7499 = vtanh.pop %v6852
      %v7500 = vtanh.pop %v6859
      %v7501 = vtanh.pop %v6866
      %v7502 = vtanh.pop %v6873
      %v7503 = vtanh.pop %v6880
      %v7504 = vtanh.pop %v6887
      %v7505 = vtanh.pop %v6894
      %v7506 = vtanh.pop %v6901
      %v7507 = vtanh.pop %v6908
      %v7508 = vtanh.pop %v6915
      %v7509 = vtanh.pop %v6922
      %v7510 = vtanh.pop %v6929
      %v7511 = vtanh.pop %v6936
      %v7512 = vtanh.pop %v6943
      %v7513 = vtanh.pop %v6950
      %v7514 = vtanh.pop %v6957
      %v7515 = vtanh.pop %v6964
      %v7516 = vtanh.pop %v6971
      %v7517 = vtanh.pop %v6978
      %v7518 = vtanh.pop %v6985
      %v7519 = vtanh.pop %v6992
      %v7520 = vtanh.pop %v6999
      %v7521 = vtanh.pop %v7006
      %v7522 = vtanh.pop %v7013
      %v7523 = vtanh.pop %v7020
      %v7524 = vtanh.pop %v7027
      %v7525 = vtanh.pop %v7034
      %v7526 = vtanh.pop %v7041
      %v7527 = vtanh.pop %v7048
      %v7528 = vtanh.pop %v7055
      %v7529 = vtanh.pop %v7062
      %v7530 = vtanh.pop %v7069
      %v7531 = vtanh.pop %v7076
      %v7532 = vtanh.pop %v7083
      %v7533 = vtanh.pop %v7090
      %v7534 = vtanh.pop %v7097
      %v7535 = vtanh.pop %v7104
      %v7536 = vtanh.pop %v7111
      %v7537 = vtanh.pop %v7118
      %v7538 = vtanh.pop %v7125
      %v7539 = vtanh.pop %v7132
      %v7540 = vtanh.pop %v7139
      %v7541 = vtanh.pop %v7146
      %v7542 = vtanh.pop %v7153
      %v7543 = vtanh.pop %v7160
      %v7544 = vtanh.pop %v7167
      %v7545 = vtanh.pop %v7174
      %v7546 = vtanh.pop %v7181
      %v7547 = vtanh.pop %v7188
      %v7548 = vtanh.pop %v7195
      %v7549 = vtanh.pop %v7202
      %v7550 = vtanh.pop %v7209
      %v7551 = vtanh.pop %v7216
      %v7552 = vtanh.pop %v7223
      %v7553 = vtanh.pop %v7230
      %v7554 = vtanh.pop %v7237
      %v7555 = vtanh.pop %v7244
      %v7556 = vtanh.pop %v7251
      %v7557 = vtanh.pop %v7258
      %v7558 = vtanh.pop %v7265
      %v7559 = vtanh.pop %v7272
      %v7560 = vtanh.pop %v7279
      %v7561 = vtanh.pop %v7286
      %v7562 = vtanh.pop %v7293
      %v7563 = vtanh.pop %v7300
      %v7564 = vtanh.pop %v7307
      %v7565 = vtanh.pop %v7314
      %v7566 = vtanh.pop %v7321
      %v7567 = vtanh.pop %v7328
      %v7568 = vtanh.pop %v7335
      %v7569 = vtanh.pop %v7342
      %v7570 = vtanh.pop %v7349
      %v7571 = vtanh.pop %v7356
      %v7572 = vtanh.pop %v7363
      %v7573 = vtanh.pop %v7370
      %v7574 = vtanh.pop %v7377
      %v7575 = vtanh.pop %v7384
      %v7576 = vtanh.pop %v7391
      %v7577 = vtanh.pop %v7398
      %v7578 = vtanh.pop %v7405
      %v7579 = vtanh.pop %v7412
      %v7580 = vtanh.pop %v7419
      %v7581 = vtanh.pop %v7426
      %v7582 = vtanh.pop %v7433
      %v7583 = vtanh.pop %v7440
      %v7584 = vtanh.pop %v7447
      %v7585 = vtanh.pop %v7454
      %v7586 = vxor.u32 %v6567, 2147483648
      %v7587 = vxor.u32 %v6574, 2147483648
      %v7588 = vxor.u32 %v6581, 2147483648
      %v7589 = vxor.u32 %v6588, 2147483648
      %v7590 = vxor.u32 %v6595, 2147483648
      %v7591 = vxor.u32 %v6602, 2147483648
      %v7592 = vxor.u32 %v6609, 2147483648
      %v7593 = vxor.u32 %v6616, 2147483648
      %v7594 = vxor.u32 %v6623, 2147483648
      %v7595 = vxor.u32 %v6630, 2147483648
      %v7596 = vxor.u32 %v6637, 2147483648
      %v7597 = vxor.u32 %v6644, 2147483648
      %v7598 = vxor.u32 %v6651, 2147483648
      %v7599 = vxor.u32 %v6658, 2147483648
      %v7600 = vxor.u32 %v6665, 2147483648
      %v7601 = vxor.u32 %v6672, 2147483648
      %v7602 = vxor.u32 %v6679, 2147483648
      %v7603 = vxor.u32 %v6686, 2147483648
      %v7604 = vxor.u32 %v6693, 2147483648
      %v7605 = vxor.u32 %v6700, 2147483648
      %v7606 = vxor.u32 %v6707, 2147483648
      %v7607 = vxor.u32 %v6714, 2147483648
      %v7608 = vxor.u32 %v6721, 2147483648
      %v7609 = vxor.u32 %v6728, 2147483648
      %v7610 = vxor.u32 %v6735, 2147483648
      %v7611 = vxor.u32 %v6742, 2147483648
      %v7612 = vxor.u32 %v6749, 2147483648
      %v7613 = vxor.u32 %v6756, 2147483648
      %v7614 = vxor.u32 %v6763, 2147483648
      %v7615 = vxor.u32 %v6770, 2147483648
      %v7616 = vxor.u32 %v6777, 2147483648
      %v7617 = vxor.u32 %v6784, 2147483648
      %v7618 = vxor.u32 %v6791, 2147483648
      %v7619 = vxor.u32 %v6798, 2147483648
      %v7620 = vxor.u32 %v6805, 2147483648
      %v7621 = vxor.u32 %v6812, 2147483648
      %v7622 = vxor.u32 %v6819, 2147483648
      %v7623 = vxor.u32 %v6826, 2147483648
      %v7624 = vxor.u32 %v6833, 2147483648
      %v7625 = vxor.u32 %v6840, 2147483648
      %v7626 = vxor.u32 %v6847, 2147483648
      %v7627 = vxor.u32 %v6854, 2147483648
      %v7628 = vxor.u32 %v6861, 2147483648
      %v7629 = vxor.u32 %v6868, 2147483648
      %v7630 = vxor.u32 %v6875, 2147483648
      %v7631 = vxor.u32 %v6882, 2147483648
      %v7632 = vxor.u32 %v6889, 2147483648
      %v7633 = vxor.u32 %v6896, 2147483648
      %v7634 = vxor.u32 %v6903, 2147483648
      %v7635 = vxor.u32 %v6910, 2147483648
      %v7636 = vxor.u32 %v6917, 2147483648
      %v7637 = vxor.u32 %v6924, 2147483648
      %v7638 = vxor.u32 %v6931, 2147483648
      %v7639 = vxor.u32 %v6938, 2147483648
      %v7640 = vxor.u32 %v6945, 2147483648
      %v7641 = vxor.u32 %v6952, 2147483648
      %v7642 = vxor.u32 %v6959, 2147483648
      %v7643 = vxor.u32 %v6966, 2147483648
      %v7644 = vxor.u32 %v6973, 2147483648
      %v7645 = vxor.u32 %v6980, 2147483648
      %v7646 = vxor.u32 %v6987, 2147483648
      %v7647 = vxor.u32 %v6994, 2147483648
      %v7648 = vxor.u32 %v7001, 2147483648
      %v7649 = vxor.u32 %v7008, 2147483648
      %v7650 = vxor.u32 %v7015, 2147483648
      %v7651 = vxor.u32 %v7022, 2147483648
      %v7652 = vxor.u32 %v7029, 2147483648
      %v7653 = vxor.u32 %v7036, 2147483648
      %v7654 = vxor.u32 %v7043, 2147483648
      %v7655 = vxor.u32 %v7050, 2147483648
      %v7656 = vxor.u32 %v7057, 2147483648
      %v7657 = vxor.u32 %v7064, 2147483648
      %v7658 = vxor.u32 %v7071, 2147483648
      %v7659 = vxor.u32 %v7078, 2147483648
      %v7660 = vxor.u32 %v7085, 2147483648
      %v7661 = vxor.u32 %v7092, 2147483648
      %v7662 = vxor.u32 %v7099, 2147483648
      %v7663 = vxor.u32 %v7106, 2147483648
      %v7664 = vxor.u32 %v7113, 2147483648
      %v7665 = vxor.u32 %v7120, 2147483648
      %v7666 = vxor.u32 %v7127, 2147483648
      %v7667 = vxor.u32 %v7134, 2147483648
      %v7668 = vxor.u32 %v7141, 2147483648
      %v7669 = vxor.u32 %v7148, 2147483648
      %v7670 = vxor.u32 %v7155, 2147483648
      %v7671 = vxor.u32 %v7162, 2147483648
      %v7672 = vxor.u32 %v7169, 2147483648
      %v7673 = vxor.u32 %v7176, 2147483648
      %v7674 = vxor.u32 %v7183, 2147483648
      %v7675 = vxor.u32 %v7190, 2147483648
      %v7676 = vxor.u32 %v7197, 2147483648
      %v7677 = vxor.u32 %v7204, 2147483648
      %v7678 = vxor.u32 %v7211, 2147483648
      %v7679 = vxor.u32 %v7218, 2147483648
      %v7680 = vxor.u32 %v7225, 2147483648
      %v7681 = vxor.u32 %v7232, 2147483648
      %v7682 = vxor.u32 %v7239, 2147483648
      %v7683 = vxor.u32 %v7246, 2147483648
      %v7684 = vxor.u32 %v7253, 2147483648
      %v7685 = vxor.u32 %v7260, 2147483648
      %v7686 = vxor.u32 %v7267, 2147483648
      %v7687 = vxor.u32 %v7274, 2147483648
      %v7688 = vxor.u32 %v7281, 2147483648
      %v7689 = vxor.u32 %v7288, 2147483648
      %v7690 = vxor.u32 %v7295, 2147483648
      %v7691 = vxor.u32 %v7302, 2147483648
      %v7692 = vxor.u32 %v7309, 2147483648
      %v7693 = vxor.u32 %v7316, 2147483648
      %v7694 = vxor.u32 %v7323, 2147483648
      %v7695 = vxor.u32 %v7330, 2147483648
      %v7696 = vxor.u32 %v7337, 2147483648
      %v7697 = vxor.u32 %v7344, 2147483648
      %v7698 = vxor.u32 %v7351, 2147483648
      %v7699 = vxor.u32 %v7358, 2147483648
      %v7700 = vxor.u32 %v7365, 2147483648
      %v7701 = vxor.u32 %v7372, 2147483648
      %v7702 = vxor.u32 %v7379, 2147483648
      %v7703 = vxor.u32 %v7386, 2147483648
      %v7704 = vxor.u32 %v7393, 2147483648
      %v7705 = vxor.u32 %v7400, 2147483648
      %v7706 = vxor.u32 %v7407, 2147483648
      %v7707 = vxor.u32 %v7414, 2147483648
      %v7708 = vxor.u32 %v7421, 2147483648
      %v7709 = vxor.u32 %v7428, 2147483648
      %v7710 = vxor.u32 %v7435, 2147483648
      %v7711 = vxor.u32 %v7442, 2147483648
      %v7712 = vxor.u32 %v7449, 2147483648
      %v7713 = vxor.u32 %v7456, 2147483648
      %v7714 = vmul.f32 %v7586, 1.442695
      %v7715 = vpow.pop %v7714
      %v7716 = vmul.f32 %v7587, 1.442695
      %v7717 = vpow.pop %v7716
      %v7718 = vmul.f32 %v7588, 1.442695
      %v7719 = vpow.pop %v7718
      %v7720 = vmul.f32 %v7589, 1.442695
      %v7721 = vpow.pop %v7720
      %v7722 = vmul.f32 %v7590, 1.442695
      %v7723 = vpow.pop %v7722
      %v7724 = vmul.f32 %v7591, 1.442695
      %v7725 = vpow.pop %v7724
      %v7726 = vmul.f32 %v7592, 1.442695
      %v7727 = vpow.pop %v7726
      %v7728 = vmul.f32 %v7593, 1.442695
      %v7729 = vpow.pop %v7728
      %v7730 = vmul.f32 %v7594, 1.442695
      %v7731 = vpow.pop %v7730
      %v7732 = vmul.f32 %v7595, 1.442695
      %v7733 = vpow.pop %v7732
      %v7734 = vmul.f32 %v7596, 1.442695
      %v7735 = vpow.pop %v7734
      %v7736 = vmul.f32 %v7597, 1.442695
      %v7737 = vpow.pop %v7736
      %v7738 = vmul.f32 %v7598, 1.442695
      %v7739 = vpow.pop %v7738
      %v7740 = vmul.f32 %v7599, 1.442695
      %v7741 = vpow.pop %v7740
      %v7742 = vmul.f32 %v7600, 1.442695
      %v7743 = vpow.pop %v7742
      %v7744 = vmul.f32 %v7601, 1.442695
      %v7745 = vpow.pop %v7744
      %v7746 = vmul.f32 %v7602, 1.442695
      %v7747 = vpow.pop %v7746
      %v7748 = vmul.f32 %v7603, 1.442695
      %v7749 = vpow.pop %v7748
      %v7750 = vmul.f32 %v7604, 1.442695
      %v7751 = vpow.pop %v7750
      %v7752 = vmul.f32 %v7605, 1.442695
      %v7753 = vpow.pop %v7752
      %v7754 = vmul.f32 %v7606, 1.442695
      %v7755 = vpow.pop %v7754
      %v7756 = vmul.f32 %v7607, 1.442695
      %v7757 = vpow.pop %v7756
      %v7758 = vmul.f32 %v7608, 1.442695
      %v7759 = vpow.pop %v7758
      %v7760 = vmul.f32 %v7609, 1.442695
      %v7761 = vpow.pop %v7760
      %v7762 = vmul.f32 %v7610, 1.442695
      %v7763 = vpow.pop %v7762
      %v7764 = vmul.f32 %v7611, 1.442695
      %v7765 = vpow.pop %v7764
      %v7766 = vmul.f32 %v7612, 1.442695
      %v7767 = vpow.pop %v7766
      %v7768 = vmul.f32 %v7613, 1.442695
      %v7769 = vpow.pop %v7768
      %v7770 = vmul.f32 %v7614, 1.442695
      %v7771 = vpow.pop %v7770
      %v7772 = vmul.f32 %v7615, 1.442695
      %v7773 = vpow.pop %v7772
      %v7774 = vmul.f32 %v7616, 1.442695
      %v7775 = vpow.pop %v7774
      %v7776 = vmul.f32 %v7617, 1.442695
      %v7777 = vpow.pop %v7776
      %v7778 = vmul.f32 %v7618, 1.442695
      %v7779 = vpow.pop %v7778
      %v7780 = vmul.f32 %v7619, 1.442695
      %v7781 = vpow.pop %v7780
      %v7782 = vmul.f32 %v7620, 1.442695
      %v7783 = vpow.pop %v7782
      %v7784 = vmul.f32 %v7621, 1.442695
      %v7785 = vpow.pop %v7784
      %v7786 = vmul.f32 %v7622, 1.442695
      %v7787 = vpow.pop %v7786
      %v7788 = vmul.f32 %v7623, 1.442695
      %v7789 = vpow.pop %v7788
      %v7790 = vmul.f32 %v7624, 1.442695
      %v7791 = vpow.pop %v7790
      %v7792 = vmul.f32 %v7625, 1.442695
      %v7793 = vpow.pop %v7792
      %v7794 = vmul.f32 %v7626, 1.442695
      %v7795 = vpow.pop %v7794
      %v7796 = vmul.f32 %v7627, 1.442695
      %v7797 = vpow.pop %v7796
      %v7798 = vmul.f32 %v7628, 1.442695
      %v7799 = vpow.pop %v7798
      %v7800 = vmul.f32 %v7629, 1.442695
      %v7801 = vpow.pop %v7800
      %v7802 = vmul.f32 %v7630, 1.442695
      %v7803 = vpow.pop %v7802
      %v7804 = vmul.f32 %v7631, 1.442695
      %v7805 = vpow.pop %v7804
      %v7806 = vmul.f32 %v7632, 1.442695
      %v7807 = vpow.pop %v7806
      %v7808 = vmul.f32 %v7633, 1.442695
      %v7809 = vpow.pop %v7808
      %v7810 = vmul.f32 %v7634, 1.442695
      %v7811 = vpow.pop %v7810
      %v7812 = vmul.f32 %v7635, 1.442695
      %v7813 = vpow.pop %v7812
      %v7814 = vmul.f32 %v7636, 1.442695
      %v7815 = vpow.pop %v7814
      %v7816 = vmul.f32 %v7637, 1.442695
      %v7817 = vpow.pop %v7816
      %v7818 = vmul.f32 %v7638, 1.442695
      %v7819 = vpow.pop %v7818
      %v7820 = vmul.f32 %v7639, 1.442695
      %v7821 = vpow.pop %v7820
      %v7822 = vmul.f32 %v7640, 1.442695
      %v7823 = vpow.pop %v7822
      %v7824 = vmul.f32 %v7641, 1.442695
      %v7825 = vpow.pop %v7824
      %v7826 = vmul.f32 %v7642, 1.442695
      %v7827 = vpow.pop %v7826
      %v7828 = vmul.f32 %v7643, 1.442695
      %v7829 = vpow.pop %v7828
      %v7830 = vmul.f32 %v7644, 1.442695
      %v7831 = vpow.pop %v7830
      %v7832 = vmul.f32 %v7645, 1.442695
      %v7833 = vpow.pop %v7832
      %v7834 = vmul.f32 %v7646, 1.442695
      %v7835 = vpow.pop %v7834
      %v7836 = vmul.f32 %v7647, 1.442695
      %v7837 = vpow.pop %v7836
      %v7838 = vmul.f32 %v7648, 1.442695
      %v7839 = vpow.pop %v7838
      %v7840 = vmul.f32 %v7649, 1.442695
      %v7841 = vpow.pop %v7840
      %v7842 = vmul.f32 %v7650, 1.442695
      %v7843 = vpow.pop %v7842
      %v7844 = vmul.f32 %v7651, 1.442695
      %v7845 = vpow.pop %v7844
      %v7846 = vmul.f32 %v7652, 1.442695
      %v7847 = vpow.pop %v7846
      %v7848 = vmul.f32 %v7653, 1.442695
      %v7849 = vpow.pop %v7848
      %v7850 = vmul.f32 %v7654, 1.442695
      %v7851 = vpow.pop %v7850
      %v7852 = vmul.f32 %v7655, 1.442695
      %v7853 = vpow.pop %v7852
      %v7854 = vmul.f32 %v7656, 1.442695
      %v7855 = vpow.pop %v7854
      %v7856 = vmul.f32 %v7657, 1.442695
      %v7857 = vpow.pop %v7856
      %v7858 = vmul.f32 %v7658, 1.442695
      %v7859 = vpow.pop %v7858
      %v7860 = vmul.f32 %v7659, 1.442695
      %v7861 = vpow.pop %v7860
      %v7862 = vmul.f32 %v7660, 1.442695
      %v7863 = vpow.pop %v7862
      %v7864 = vmul.f32 %v7661, 1.442695
      %v7865 = vpow.pop %v7864
      %v7866 = vmul.f32 %v7662, 1.442695
      %v7867 = vpow.pop %v7866
      %v7868 = vmul.f32 %v7663, 1.442695
      %v7869 = vpow.pop %v7868
      %v7870 = vmul.f32 %v7664, 1.442695
      %v7871 = vpow.pop %v7870
      %v7872 = vmul.f32 %v7665, 1.442695
      %v7873 = vpow.pop %v7872
      %v7874 = vmul.f32 %v7666, 1.442695
      %v7875 = vpow.pop %v7874
      %v7876 = vmul.f32 %v7667, 1.442695
      %v7877 = vpow.pop %v7876
      %v7878 = vmul.f32 %v7668, 1.442695
      %v7879 = vpow.pop %v7878
      %v7880 = vmul.f32 %v7669, 1.442695
      %v7881 = vpow.pop %v7880
      %v7882 = vmul.f32 %v7670, 1.442695
      %v7883 = vpow.pop %v7882
      %v7884 = vmul.f32 %v7671, 1.442695
      %v7885 = vpow.pop %v7884
      %v7886 = vmul.f32 %v7672, 1.442695
      %v7887 = vpow.pop %v7886
      %v7888 = vmul.f32 %v7673, 1.442695
      %v7889 = vpow.pop %v7888
      %v7890 = vmul.f32 %v7674, 1.442695
      %v7891 = vpow.pop %v7890
      %v7892 = vmul.f32 %v7675, 1.442695
      %v7893 = vpow.pop %v7892
      %v7894 = vmul.f32 %v7676, 1.442695
      %v7895 = vpow.pop %v7894
      %v7896 = vmul.f32 %v7677, 1.442695
      %v7897 = vpow.pop %v7896
      %v7898 = vmul.f32 %v7678, 1.442695
      %v7899 = vpow.pop %v7898
      %v7900 = vmul.f32 %v7679, 1.442695
      %v7901 = vpow.pop %v7900
      %v7902 = vmul.f32 %v7680, 1.442695
      %v7903 = vpow.pop %v7902
      %v7904 = vmul.f32 %v7681, 1.442695
      %v7905 = vpow.pop %v7904
      %v7906 = vmul.f32 %v7682, 1.442695
      %v7907 = vpow.pop %v7906
      %v7908 = vmul.f32 %v7683, 1.442695
      %v7909 = vpow.pop %v7908
      %v7910 = vmul.f32 %v7684, 1.442695
      %v7911 = vpow.pop %v7910
      %v7912 = vmul.f32 %v7685, 1.442695
      %v7913 = vpow.pop %v7912
      %v7914 = vmul.f32 %v7686, 1.442695
      %v7915 = vpow.pop %v7914
      %v7916 = vmul.f32 %v7687, 1.442695
      %v7917 = vpow.pop %v7916
      %v7918 = vmul.f32 %v7688, 1.442695
      %v7919 = vpow.pop %v7918
      %v7920 = vmul.f32 %v7689, 1.442695
      %v7921 = vpow.pop %v7920
      %v7922 = vmul.f32 %v7690, 1.442695
      %v7923 = vpow.pop %v7922
      %v7924 = vmul.f32 %v7691, 1.442695
      %v7925 = vpow.pop %v7924
      %v7926 = vmul.f32 %v7692, 1.442695
      %v7927 = vpow.pop %v7926
      %v7928 = vmul.f32 %v7693, 1.442695
      %v7929 = vpow.pop %v7928
      %v7930 = vmul.f32 %v7694, 1.442695
      %v7931 = vpow.pop %v7930
      %v7932 = vmul.f32 %v7695, 1.442695
      %v7933 = vpow.pop %v7932
      %v7934 = vmul.f32 %v7696, 1.442695
      %v7935 = vpow.pop %v7934
      %v7936 = vmul.f32 %v7697, 1.442695
      %v7937 = vpow.pop %v7936
      %v7938 = vmul.f32 %v7698, 1.442695
      %v7939 = vpow.pop %v7938
      %v7940 = vmul.f32 %v7699, 1.442695
      %v7941 = vpow.pop %v7940
      %v7942 = vmul.f32 %v7700, 1.442695
      %v7943 = vpow.pop %v7942
      %v7944 = vmul.f32 %v7701, 1.442695
      %v7945 = vpow.pop %v7944
      %v7946 = vmul.f32 %v7702, 1.442695
      %v7947 = vpow.pop %v7946
      %v7948 = vmul.f32 %v7703, 1.442695
      %v7949 = vpow.pop %v7948
      %v7950 = vmul.f32 %v7704, 1.442695
      %v7951 = vpow.pop %v7950
      %v7952 = vmul.f32 %v7705, 1.442695
      %v7953 = vpow.pop %v7952
      %v7954 = vmul.f32 %v7706, 1.442695
      %v7955 = vpow.pop %v7954
      %v7956 = vmul.f32 %v7707, 1.442695
      %v7957 = vpow.pop %v7956
      %v7958 = vmul.f32 %v7708, 1.442695
      %v7959 = vpow.pop %v7958
      %v7960 = vmul.f32 %v7709, 1.442695
      %v7961 = vpow.pop %v7960
      %v7962 = vmul.f32 %v7710, 1.442695
      %v7963 = vpow.pop %v7962
      %v7964 = vmul.f32 %v7711, 1.442695
      %v7965 = vpow.pop %v7964
      %v7966 = vmul.f32 %v7712, 1.442695
      %v7967 = vpow.pop %v7966
      %v7968 = vmul.f32 %v7713, 1.442695
      %v7969 = vpow.pop %v7968
      %v7970 = vadd.f32 %v7715, 1.0
      %v7971 = vadd.f32 %v7717, 1.0
      %v7972 = vadd.f32 %v7719, 1.0
      %v7973 = vadd.f32 %v7721, 1.0
      %v7974 = vadd.f32 %v7723, 1.0
      %v7975 = vadd.f32 %v7725, 1.0
      %v7976 = vadd.f32 %v7727, 1.0
      %v7977 = vadd.f32 %v7729, 1.0
      %v7978 = vadd.f32 %v7731, 1.0
      %v7979 = vadd.f32 %v7733, 1.0
      %v7980 = vadd.f32 %v7735, 1.0
      %v7981 = vadd.f32 %v7737, 1.0
      %v7982 = vadd.f32 %v7739, 1.0
      %v7983 = vadd.f32 %v7741, 1.0
      %v7984 = vadd.f32 %v7743, 1.0
      %v7985 = vadd.f32 %v7745, 1.0
      %v7986 = vadd.f32 %v7747, 1.0
      %v7987 = vadd.f32 %v7749, 1.0
      %v7988 = vadd.f32 %v7751, 1.0
      %v7989 = vadd.f32 %v7753, 1.0
      %v7990 = vadd.f32 %v7755, 1.0
      %v7991 = vadd.f32 %v7757, 1.0
      %v7992 = vadd.f32 %v7759, 1.0
      %v7993 = vadd.f32 %v7761, 1.0
      %v7994 = vadd.f32 %v7763, 1.0
      %v7995 = vadd.f32 %v7765, 1.0
      %v7996 = vadd.f32 %v7767, 1.0
      %v7997 = vadd.f32 %v7769, 1.0
      %v7998 = vadd.f32 %v7771, 1.0
      %v7999 = vadd.f32 %v7773, 1.0
      %v8000 = vadd.f32 %v7775, 1.0
      %v8001 = vadd.f32 %v7777, 1.0
      %v8002 = vadd.f32 %v7779, 1.0
      %v8003 = vadd.f32 %v7781, 1.0
      %v8004 = vadd.f32 %v7783, 1.0
      %v8005 = vadd.f32 %v7785, 1.0
      %v8006 = vadd.f32 %v7787, 1.0
      %v8007 = vadd.f32 %v7789, 1.0
      %v8008 = vadd.f32 %v7791, 1.0
      %v8009 = vadd.f32 %v7793, 1.0
      %v8010 = vadd.f32 %v7795, 1.0
      %v8011 = vadd.f32 %v7797, 1.0
      %v8012 = vadd.f32 %v7799, 1.0
      %v8013 = vadd.f32 %v7801, 1.0
      %v8014 = vadd.f32 %v7803, 1.0
      %v8015 = vadd.f32 %v7805, 1.0
      %v8016 = vadd.f32 %v7807, 1.0
      %v8017 = vadd.f32 %v7809, 1.0
      %v8018 = vadd.f32 %v7811, 1.0
      %v8019 = vadd.f32 %v7813, 1.0
      %v8020 = vadd.f32 %v7815, 1.0
      %v8021 = vadd.f32 %v7817, 1.0
      %v8022 = vadd.f32 %v7819, 1.0
      %v8023 = vadd.f32 %v7821, 1.0
      %v8024 = vadd.f32 %v7823, 1.0
      %v8025 = vadd.f32 %v7825, 1.0
      %v8026 = vadd.f32 %v7827, 1.0
      %v8027 = vadd.f32 %v7829, 1.0
      %v8028 = vadd.f32 %v7831, 1.0
      %v8029 = vadd.f32 %v7833, 1.0
      %v8030 = vadd.f32 %v7835, 1.0
      %v8031 = vadd.f32 %v7837, 1.0
      %v8032 = vadd.f32 %v7839, 1.0
      %v8033 = vadd.f32 %v7841, 1.0
      %v8034 = vadd.f32 %v7843, 1.0
      %v8035 = vadd.f32 %v7845, 1.0
      %v8036 = vadd.f32 %v7847, 1.0
      %v8037 = vadd.f32 %v7849, 1.0
      %v8038 = vadd.f32 %v7851, 1.0
      %v8039 = vadd.f32 %v7853, 1.0
      %v8040 = vadd.f32 %v7855, 1.0
      %v8041 = vadd.f32 %v7857, 1.0
      %v8042 = vadd.f32 %v7859, 1.0
      %v8043 = vadd.f32 %v7861, 1.0
      %v8044 = vadd.f32 %v7863, 1.0
      %v8045 = vadd.f32 %v7865, 1.0
      %v8046 = vadd.f32 %v7867, 1.0
      %v8047 = vadd.f32 %v7869, 1.0
      %v8048 = vadd.f32 %v7871, 1.0
      %v8049 = vadd.f32 %v7873, 1.0
      %v8050 = vadd.f32 %v7875, 1.0
      %v8051 = vadd.f32 %v7877, 1.0
      %v8052 = vadd.f32 %v7879, 1.0
      %v8053 = vadd.f32 %v7881, 1.0
      %v8054 = vadd.f32 %v7883, 1.0
      %v8055 = vadd.f32 %v7885, 1.0
      %v8056 = vadd.f32 %v7887, 1.0
      %v8057 = vadd.f32 %v7889, 1.0
      %v8058 = vadd.f32 %v7891, 1.0
      %v8059 = vadd.f32 %v7893, 1.0
      %v8060 = vadd.f32 %v7895, 1.0
      %v8061 = vadd.f32 %v7897, 1.0
      %v8062 = vadd.f32 %v7899, 1.0
      %v8063 = vadd.f32 %v7901, 1.0
      %v8064 = vadd.f32 %v7903, 1.0
      %v8065 = vadd.f32 %v7905, 1.0
      %v8066 = vadd.f32 %v7907, 1.0
      %v8067 = vadd.f32 %v7909, 1.0
      %v8068 = vadd.f32 %v7911, 1.0
      %v8069 = vadd.f32 %v7913, 1.0
      %v8070 = vadd.f32 %v7915, 1.0
      %v8071 = vadd.f32 %v7917, 1.0
      %v8072 = vadd.f32 %v7919, 1.0
      %v8073 = vadd.f32 %v7921, 1.0
      %v8074 = vadd.f32 %v7923, 1.0
      %v8075 = vadd.f32 %v7925, 1.0
      %v8076 = vadd.f32 %v7927, 1.0
      %v8077 = vadd.f32 %v7929, 1.0
      %v8078 = vadd.f32 %v7931, 1.0
      %v8079 = vadd.f32 %v7933, 1.0
      %v8080 = vadd.f32 %v7935, 1.0
      %v8081 = vadd.f32 %v7937, 1.0
      %v8082 = vadd.f32 %v7939, 1.0
      %v8083 = vadd.f32 %v7941, 1.0
      %v8084 = vadd.f32 %v7943, 1.0
      %v8085 = vadd.f32 %v7945, 1.0
      %v8086 = vadd.f32 %v7947, 1.0
      %v8087 = vadd.f32 %v7949, 1.0
      %v8088 = vadd.f32 %v7951, 1.0
      %v8089 = vadd.f32 %v7953, 1.0
      %v8090 = vadd.f32 %v7955, 1.0
      %v8091 = vadd.f32 %v7957, 1.0
      %v8092 = vadd.f32 %v7959, 1.0
      %v8093 = vadd.f32 %v7961, 1.0
      %v8094 = vadd.f32 %v7963, 1.0
      %v8095 = vadd.f32 %v7965, 1.0
      %v8096 = vadd.f32 %v7967, 1.0
      %v8097 = vadd.f32 %v7969, 1.0
      %v8098 = vrcp.pop %v7970
      %v8099 = vmul.f32 1.0, %v8098
      %v8100 = vrcp.pop %v7971
      %v8101 = vmul.f32 1.0, %v8100
      %v8102 = vrcp.pop %v7972
      %v8103 = vmul.f32 1.0, %v8102
      %v8104 = vrcp.pop %v7973
      %v8105 = vmul.f32 1.0, %v8104
      %v8106 = vrcp.pop %v7974
      %v8107 = vmul.f32 1.0, %v8106
      %v8108 = vrcp.pop %v7975
      %v8109 = vmul.f32 1.0, %v8108
      %v8110 = vrcp.pop %v7976
      %v8111 = vmul.f32 1.0, %v8110
      %v8112 = vrcp.pop %v7977
      %v8113 = vmul.f32 1.0, %v8112
      %v8114 = vrcp.pop %v7978
      %v8115 = vmul.f32 1.0, %v8114
      %v8116 = vrcp.pop %v7979
      %v8117 = vmul.f32 1.0, %v8116
      %v8118 = vrcp.pop %v7980
      %v8119 = vmul.f32 1.0, %v8118
      %v8120 = vrcp.pop %v7981
      %v8121 = vmul.f32 1.0, %v8120
      %v8122 = vrcp.pop %v7982
      %v8123 = vmul.f32 1.0, %v8122
      %v8124 = vrcp.pop %v7983
      %v8125 = vmul.f32 1.0, %v8124
      %v8126 = vrcp.pop %v7984
      %v8127 = vmul.f32 1.0, %v8126
      %v8128 = vrcp.pop %v7985
      %v8129 = vmul.f32 1.0, %v8128
      %v8130 = vrcp.pop %v7986
      %v8131 = vmul.f32 1.0, %v8130
      %v8132 = vrcp.pop %v7987
      %v8133 = vmul.f32 1.0, %v8132
      %v8134 = vrcp.pop %v7988
      %v8135 = vmul.f32 1.0, %v8134
      %v8136 = vrcp.pop %v7989
      %v8137 = vmul.f32 1.0, %v8136
      %v8138 = vrcp.pop %v7990
      %v8139 = vmul.f32 1.0, %v8138
      %v8140 = vrcp.pop %v7991
      %v8141 = vmul.f32 1.0, %v8140
      %v8142 = vrcp.pop %v7992
      %v8143 = vmul.f32 1.0, %v8142
      %v8144 = vrcp.pop %v7993
      %v8145 = vmul.f32 1.0, %v8144
      %v8146 = vrcp.pop %v7994
      %v8147 = vmul.f32 1.0, %v8146
      %v8148 = vrcp.pop %v7995
      %v8149 = vmul.f32 1.0, %v8148
      %v8150 = vrcp.pop %v7996
      %v8151 = vmul.f32 1.0, %v8150
      %v8152 = vrcp.pop %v7997
      %v8153 = vmul.f32 1.0, %v8152
      %v8154 = vrcp.pop %v7998
      %v8155 = vmul.f32 1.0, %v8154
      %v8156 = vrcp.pop %v7999
      %v8157 = vmul.f32 1.0, %v8156
      %v8158 = vrcp.pop %v8000
      %v8159 = vmul.f32 1.0, %v8158
      %v8160 = vrcp.pop %v8001
      %v8161 = vmul.f32 1.0, %v8160
      %v8162 = vrcp.pop %v8002
      %v8163 = vmul.f32 1.0, %v8162
      %v8164 = vrcp.pop %v8003
      %v8165 = vmul.f32 1.0, %v8164
      %v8166 = vrcp.pop %v8004
      %v8167 = vmul.f32 1.0, %v8166
      %v8168 = vrcp.pop %v8005
      %v8169 = vmul.f32 1.0, %v8168
      %v8170 = vrcp.pop %v8006
      %v8171 = vmul.f32 1.0, %v8170
      %v8172 = vrcp.pop %v8007
      %v8173 = vmul.f32 1.0, %v8172
      %v8174 = vrcp.pop %v8008
      %v8175 = vmul.f32 1.0, %v8174
      %v8176 = vrcp.pop %v8009
      %v8177 = vmul.f32 1.0, %v8176
      %v8178 = vrcp.pop %v8010
      %v8179 = vmul.f32 1.0, %v8178
      %v8180 = vrcp.pop %v8011
      %v8181 = vmul.f32 1.0, %v8180
      %v8182 = vrcp.pop %v8012
      %v8183 = vmul.f32 1.0, %v8182
      %v8184 = vrcp.pop %v8013
      %v8185 = vmul.f32 1.0, %v8184
      %v8186 = vrcp.pop %v8014
      %v8187 = vmul.f32 1.0, %v8186
      %v8188 = vrcp.pop %v8015
      %v8189 = vmul.f32 1.0, %v8188
      %v8190 = vrcp.pop %v8016
      %v8191 = vmul.f32 1.0, %v8190
      %v8192 = vrcp.pop %v8017
      %v8193 = vmul.f32 1.0, %v8192
      %v8194 = vrcp.pop %v8018
      %v8195 = vmul.f32 1.0, %v8194
      %v8196 = vrcp.pop %v8019
      %v8197 = vmul.f32 1.0, %v8196
      %v8198 = vrcp.pop %v8020
      %v8199 = vmul.f32 1.0, %v8198
      %v8200 = vrcp.pop %v8021
      %v8201 = vmul.f32 1.0, %v8200
      %v8202 = vrcp.pop %v8022
      %v8203 = vmul.f32 1.0, %v8202
      %v8204 = vrcp.pop %v8023
      %v8205 = vmul.f32 1.0, %v8204
      %v8206 = vrcp.pop %v8024
      %v8207 = vmul.f32 1.0, %v8206
      %v8208 = vrcp.pop %v8025
      %v8209 = vmul.f32 1.0, %v8208
      %v8210 = vrcp.pop %v8026
      %v8211 = vmul.f32 1.0, %v8210
      %v8212 = vrcp.pop %v8027
      %v8213 = vmul.f32 1.0, %v8212
      %v8214 = vrcp.pop %v8028
      %v8215 = vmul.f32 1.0, %v8214
      %v8216 = vrcp.pop %v8029
      %v8217 = vmul.f32 1.0, %v8216
      %v8218 = vrcp.pop %v8030
      %v8219 = vmul.f32 1.0, %v8218
      %v8220 = vrcp.pop %v8031
      %v8221 = vmul.f32 1.0, %v8220
      %v8222 = vrcp.pop %v8032
      %v8223 = vmul.f32 1.0, %v8222
      %v8224 = vrcp.pop %v8033
      %v8225 = vmul.f32 1.0, %v8224
      %v8226 = vrcp.pop %v8034
      %v8227 = vmul.f32 1.0, %v8226
      %v8228 = vrcp.pop %v8035
      %v8229 = vmul.f32 1.0, %v8228
      %v8230 = vrcp.pop %v8036
      %v8231 = vmul.f32 1.0, %v8230
      %v8232 = vrcp.pop %v8037
      %v8233 = vmul.f32 1.0, %v8232
      %v8234 = vrcp.pop %v8038
      %v8235 = vmul.f32 1.0, %v8234
      %v8236 = vrcp.pop %v8039
      %v8237 = vmul.f32 1.0, %v8236
      %v8238 = vrcp.pop %v8040
      %v8239 = vmul.f32 1.0, %v8238
      %v8240 = vrcp.pop %v8041
      %v8241 = vmul.f32 1.0, %v8240
      %v8242 = vrcp.pop %v8042
      %v8243 = vmul.f32 1.0, %v8242
      %v8244 = vrcp.pop %v8043
      %v8245 = vmul.f32 1.0, %v8244
      %v8246 = vrcp.pop %v8044
      %v8247 = vmul.f32 1.0, %v8246
      %v8248 = vrcp.pop %v8045
      %v8249 = vmul.f32 1.0, %v8248
      %v8250 = vrcp.pop %v8046
      %v8251 = vmul.f32 1.0, %v8250
      %v8252 = vrcp.pop %v8047
      %v8253 = vmul.f32 1.0, %v8252
      %v8254 = vrcp.pop %v8048
      %v8255 = vmul.f32 1.0, %v8254
      %v8256 = vrcp.pop %v8049
      %v8257 = vmul.f32 1.0, %v8256
      %v8258 = vrcp.pop %v8050
      %v8259 = vmul.f32 1.0, %v8258
      %v8260 = vrcp.pop %v8051
      %v8261 = vmul.f32 1.0, %v8260
      %v8262 = vrcp.pop %v8052
      %v8263 = vmul.f32 1.0, %v8262
      %v8264 = vrcp.pop %v8053
      %v8265 = vmul.f32 1.0, %v8264
      %v8266 = vrcp.pop %v8054
      %v8267 = vmul.f32 1.0, %v8266
      %v8268 = vrcp.pop %v8055
      %v8269 = vmul.f32 1.0, %v8268
      %v8270 = vrcp.pop %v8056
      %v8271 = vmul.f32 1.0, %v8270
      %v8272 = vrcp.pop %v8057
      %v8273 = vmul.f32 1.0, %v8272
      %v8274 = vrcp.pop %v8058
      %v8275 = vmul.f32 1.0, %v8274
      %v8276 = vrcp.pop %v8059
      %v8277 = vmul.f32 1.0, %v8276
      %v8278 = vrcp.pop %v8060
      %v8279 = vmul.f32 1.0, %v8278
      %v8280 = vrcp.pop %v8061
      %v8281 = vmul.f32 1.0, %v8280
      %v8282 = vrcp.pop %v8062
      %v8283 = vmul.f32 1.0, %v8282
      %v8284 = vrcp.pop %v8063
      %v8285 = vmul.f32 1.0, %v8284
      %v8286 = vrcp.pop %v8064
      %v8287 = vmul.f32 1.0, %v8286
      %v8288 = vrcp.pop %v8065
      %v8289 = vmul.f32 1.0, %v8288
      %v8290 = vrcp.pop %v8066
      %v8291 = vmul.f32 1.0, %v8290
      %v8292 = vrcp.pop %v8067
      %v8293 = vmul.f32 1.0, %v8292
      %v8294 = vrcp.pop %v8068
      %v8295 = vmul.f32 1.0, %v8294
      %v8296 = vrcp.pop %v8069
      %v8297 = vmul.f32 1.0, %v8296
      %v8298 = vrcp.pop %v8070
      %v8299 = vmul.f32 1.0, %v8298
      %v8300 = vrcp.pop %v8071
      %v8301 = vmul.f32 1.0, %v8300
      %v8302 = vrcp.pop %v8072
      %v8303 = vmul.f32 1.0, %v8302
      %v8304 = vrcp.pop %v8073
      %v8305 = vmul.f32 1.0, %v8304
      %v8306 = vrcp.pop %v8074
      %v8307 = vmul.f32 1.0, %v8306
      %v8308 = vrcp.pop %v8075
      %v8309 = vmul.f32 1.0, %v8308
      %v8310 = vrcp.pop %v8076
      %v8311 = vmul.f32 1.0, %v8310
      %v8312 = vrcp.pop %v8077
      %v8313 = vmul.f32 1.0, %v8312
      %v8314 = vrcp.pop %v8078
      %v8315 = vmul.f32 1.0, %v8314
      %v8316 = vrcp.pop %v8079
      %v8317 = vmul.f32 1.0, %v8316
      %v8318 = vrcp.pop %v8080
      %v8319 = vmul.f32 1.0, %v8318
      %v8320 = vrcp.pop %v8081
      %v8321 = vmul.f32 1.0, %v8320
      %v8322 = vrcp.pop %v8082
      %v8323 = vmul.f32 1.0, %v8322
      %v8324 = vrcp.pop %v8083
      %v8325 = vmul.f32 1.0, %v8324
      %v8326 = vrcp.pop %v8084
      %v8327 = vmul.f32 1.0, %v8326
      %v8328 = vrcp.pop %v8085
      %v8329 = vmul.f32 1.0, %v8328
      %v8330 = vrcp.pop %v8086
      %v8331 = vmul.f32 1.0, %v8330
      %v8332 = vrcp.pop %v8087
      %v8333 = vmul.f32 1.0, %v8332
      %v8334 = vrcp.pop %v8088
      %v8335 = vmul.f32 1.0, %v8334
      %v8336 = vrcp.pop %v8089
      %v8337 = vmul.f32 1.0, %v8336
      %v8338 = vrcp.pop %v8090
      %v8339 = vmul.f32 1.0, %v8338
      %v8340 = vrcp.pop %v8091
      %v8341 = vmul.f32 1.0, %v8340
      %v8342 = vrcp.pop %v8092
      %v8343 = vmul.f32 1.0, %v8342
      %v8344 = vrcp.pop %v8093
      %v8345 = vmul.f32 1.0, %v8344
      %v8346 = vrcp.pop %v8094
      %v8347 = vmul.f32 1.0, %v8346
      %v8348 = vrcp.pop %v8095
      %v8349 = vmul.f32 1.0, %v8348
      %v8350 = vrcp.pop %v8096
      %v8351 = vmul.f32 1.0, %v8350
      %v8352 = vrcp.pop %v8097
      %v8353 = vmul.f32 1.0, %v8352
      %v8354 = vmul.f32 %v7458, %v8099
      %v8355 = vmul.f32 %v7459, %v8101
      %v8356 = vmul.f32 %v7460, %v8103
      %v8357 = vmul.f32 %v7461, %v8105
      %v8358 = vmul.f32 %v7462, %v8107
      %v8359 = vmul.f32 %v7463, %v8109
      %v8360 = vmul.f32 %v7464, %v8111
      %v8361 = vmul.f32 %v7465, %v8113
      %v8362 = vmul.f32 %v7466, %v8115
      %v8363 = vmul.f32 %v7467, %v8117
      %v8364 = vmul.f32 %v7468, %v8119
      %v8365 = vmul.f32 %v7469, %v8121
      %v8366 = vmul.f32 %v7470, %v8123
      %v8367 = vmul.f32 %v7471, %v8125
      %v8368 = vmul.f32 %v7472, %v8127
      %v8369 = vmul.f32 %v7473, %v8129
      %v8370 = vmul.f32 %v7474, %v8131
      %v8371 = vmul.f32 %v7475, %v8133
      %v8372 = vmul.f32 %v7476, %v8135
      %v8373 = vmul.f32 %v7477, %v8137
      %v8374 = vmul.f32 %v7478, %v8139
      %v8375 = vmul.f32 %v7479, %v8141
      %v8376 = vmul.f32 %v7480, %v8143
      %v8377 = vmul.f32 %v7481, %v8145
      %v8378 = vmul.f32 %v7482, %v8147
      %v8379 = vmul.f32 %v7483, %v8149
      %v8380 = vmul.f32 %v7484, %v8151
      %v8381 = vmul.f32 %v7485, %v8153
      %v8382 = vmul.f32 %v7486, %v8155
      %v8383 = vmul.f32 %v7487, %v8157
      %v8384 = vmul.f32 %v7488, %v8159
      %v8385 = vmul.f32 %v7489, %v8161
      %v8386 = vmul.f32 %v7490, %v8163
      %v8387 = vmul.f32 %v7491, %v8165
      %v8388 = vmul.f32 %v7492, %v8167
      %v8389 = vmul.f32 %v7493, %v8169
      %v8390 = vmul.f32 %v7494, %v8171
      %v8391 = vmul.f32 %v7495, %v8173
      %v8392 = vmul.f32 %v7496, %v8175
      %v8393 = vmul.f32 %v7497, %v8177
      %v8394 = vmul.f32 %v7498, %v8179
      %v8395 = vmul.f32 %v7499, %v8181
      %v8396 = vmul.f32 %v7500, %v8183
      %v8397 = vmul.f32 %v7501, %v8185
      %v8398 = vmul.f32 %v7502, %v8187
      %v8399 = vmul.f32 %v7503, %v8189
      %v8400 = vmul.f32 %v7504, %v8191
      %v8401 = vmul.f32 %v7505, %v8193
      %v8402 = vmul.f32 %v7506, %v8195
      %v8403 = vmul.f32 %v7507, %v8197
      %v8404 = vmul.f32 %v7508, %v8199
      %v8405 = vmul.f32 %v7509, %v8201
      %v8406 = vmul.f32 %v7510, %v8203
      %v8407 = vmul.f32 %v7511, %v8205
      %v8408 = vmul.f32 %v7512, %v8207
      %v8409 = vmul.f32 %v7513, %v8209
      %v8410 = vmul.f32 %v7514, %v8211
      %v8411 = vmul.f32 %v7515, %v8213
      %v8412 = vmul.f32 %v7516, %v8215
      %v8413 = vmul.f32 %v7517, %v8217
      %v8414 = vmul.f32 %v7518, %v8219
      %v8415 = vmul.f32 %v7519, %v8221
      %v8416 = vmul.f32 %v7520, %v8223
      %v8417 = vmul.f32 %v7521, %v8225
      %v8418 = vmul.f32 %v7522, %v8227
      %v8419 = vmul.f32 %v7523, %v8229
      %v8420 = vmul.f32 %v7524, %v8231
      %v8421 = vmul.f32 %v7525, %v8233
      %v8422 = vmul.f32 %v7526, %v8235
      %v8423 = vmul.f32 %v7527, %v8237
      %v8424 = vmul.f32 %v7528, %v8239
      %v8425 = vmul.f32 %v7529, %v8241
      %v8426 = vmul.f32 %v7530, %v8243
      %v8427 = vmul.f32 %v7531, %v8245
      %v8428 = vmul.f32 %v7532, %v8247
      %v8429 = vmul.f32 %v7533, %v8249
      %v8430 = vmul.f32 %v7534, %v8251
      %v8431 = vmul.f32 %v7535, %v8253
      %v8432 = vmul.f32 %v7536, %v8255
      %v8433 = vmul.f32 %v7537, %v8257
      %v8434 = vmul.f32 %v7538, %v8259
      %v8435 = vmul.f32 %v7539, %v8261
      %v8436 = vmul.f32 %v7540, %v8263
      %v8437 = vmul.f32 %v7541, %v8265
      %v8438 = vmul.f32 %v7542, %v8267
      %v8439 = vmul.f32 %v7543, %v8269
      %v8440 = vmul.f32 %v7544, %v8271
      %v8441 = vmul.f32 %v7545, %v8273
      %v8442 = vmul.f32 %v7546, %v8275
      %v8443 = vmul.f32 %v7547, %v8277
      %v8444 = vmul.f32 %v7548, %v8279
      %v8445 = vmul.f32 %v7549, %v8281
      %v8446 = vmul.f32 %v7550, %v8283
      %v8447 = vmul.f32 %v7551, %v8285
      %v8448 = vmul.f32 %v7552, %v8287
      %v8449 = vmul.f32 %v7553, %v8289
      %v8450 = vmul.f32 %v7554, %v8291
      %v8451 = vmul.f32 %v7555, %v8293
      %v8452 = vmul.f32 %v7556, %v8295
      %v8453 = vmul.f32 %v7557, %v8297
      %v8454 = vmul.f32 %v7558, %v8299
      %v8455 = vmul.f32 %v7559, %v8301
      %v8456 = vmul.f32 %v7560, %v8303
      %v8457 = vmul.f32 %v7561, %v8305
      %v8458 = vmul.f32 %v7562, %v8307
      %v8459 = vmul.f32 %v7563, %v8309
      %v8460 = vmul.f32 %v7564, %v8311
      %v8461 = vmul.f32 %v7565, %v8313
      %v8462 = vmul.f32 %v7566, %v8315
      %v8463 = vmul.f32 %v7567, %v8317
      %v8464 = vmul.f32 %v7568, %v8319
      %v8465 = vmul.f32 %v7569, %v8321
      %v8466 = vmul.f32 %v7570, %v8323
      %v8467 = vmul.f32 %v7571, %v8325
      %v8468 = vmul.f32 %v7572, %v8327
      %v8469 = vmul.f32 %v7573, %v8329
      %v8470 = vmul.f32 %v7574, %v8331
      %v8471 = vmul.f32 %v7575, %v8333
      %v8472 = vmul.f32 %v7576, %v8335
      %v8473 = vmul.f32 %v7577, %v8337
      %v8474 = vmul.f32 %v7578, %v8339
      %v8475 = vmul.f32 %v7579, %v8341
      %v8476 = vmul.f32 %v7580, %v8343
      %v8477 = vmul.f32 %v7581, %v8345
      %v8478 = vmul.f32 %v7582, %v8347
      %v8479 = vmul.f32 %v7583, %v8349
      %v8480 = vmul.f32 %v7584, %v8351
      %v8481 = vmul.f32 %v7585, %v8353
      %v8482 = vld [vmem:[%s2] sm:$0x1]
      %v8484 = vlaneseq
      %v8485 = vshrl.u32 %v8484, 7
      %v8486 = vsub.s32 0, %v8485
      %v8487 = vrot.slane %v8482, %v8486
      %v8489 = vmul.f32 %v8354, %v8487
      %v8490 = vmul.f32 %v8355, %v8487
      %v8491 = vmul.f32 %v8356, %v8487
      %v8492 = vmul.f32 %v8357, %v8487
      %v8493 = vmul.f32 %v8358, %v8487
      %v8494 = vmul.f32 %v8359, %v8487
      %v8495 = vmul.f32 %v8360, %v8487
      %v8496 = vmul.f32 %v8361, %v8487
      %v8497 = vmul.f32 %v8362, %v8487
      %v8498 = vmul.f32 %v8363, %v8487
      %v8499 = vmul.f32 %v8364, %v8487
      %v8500 = vmul.f32 %v8365, %v8487
      %v8501 = vmul.f32 %v8366, %v8487
      %v8502 = vmul.f32 %v8367, %v8487
      %v8503 = vmul.f32 %v8368, %v8487
      %v8504 = vmul.f32 %v8369, %v8487
      %v8505 = vmul.f32 %v8370, %v8487
      %v8506 = vmul.f32 %v8371, %v8487
      %v8507 = vmul.f32 %v8372, %v8487
      %v8508 = vmul.f32 %v8373, %v8487
      %v8509 = vmul.f32 %v8374, %v8487
      %v8510 = vmul.f32 %v8375, %v8487
      %v8511 = vmul.f32 %v8376, %v8487
      %v8512 = vmul.f32 %v8377, %v8487
      %v8513 = vmul.f32 %v8378, %v8487
      %v8514 = vmul.f32 %v8379, %v8487
      %v8515 = vmul.f32 %v8380, %v8487
      %v8516 = vmul.f32 %v8381, %v8487
      %v8517 = vmul.f32 %v8382, %v8487
      %v8518 = vmul.f32 %v8383, %v8487
      %v8519 = vmul.f32 %v8384, %v8487
      %v8520 = vmul.f32 %v8385, %v8487
      %v8521 = vmul.f32 %v8386, %v8487
      %v8522 = vmul.f32 %v8387, %v8487
      %v8523 = vmul.f32 %v8388, %v8487
      %v8524 = vmul.f32 %v8389, %v8487
      %v8525 = vmul.f32 %v8390, %v8487
      %v8526 = vmul.f32 %v8391, %v8487
      %v8527 = vmul.f32 %v8392, %v8487
      %v8528 = vmul.f32 %v8393, %v8487
      %v8529 = vmul.f32 %v8394, %v8487
      %v8530 = vmul.f32 %v8395, %v8487
      %v8531 = vmul.f32 %v8396, %v8487
      %v8532 = vmul.f32 %v8397, %v8487
      %v8533 = vmul.f32 %v8398, %v8487
      %v8534 = vmul.f32 %v8399, %v8487
      %v8535 = vmul.f32 %v8400, %v8487
      %v8536 = vmul.f32 %v8401, %v8487
      %v8537 = vmul.f32 %v8402, %v8487
      %v8538 = vmul.f32 %v8403, %v8487
      %v8539 = vmul.f32 %v8404, %v8487
      %v8540 = vmul.f32 %v8405, %v8487
      %v8541 = vmul.f32 %v8406, %v8487
      %v8542 = vmul.f32 %v8407, %v8487
      %v8543 = vmul.f32 %v8408, %v8487
      %v8544 = vmul.f32 %v8409, %v8487
      %v8545 = vmul.f32 %v8410, %v8487
      %v8546 = vmul.f32 %v8411, %v8487
      %v8547 = vmul.f32 %v8412, %v8487
      %v8548 = vmul.f32 %v8413, %v8487
      %v8549 = vmul.f32 %v8414, %v8487
      %v8550 = vmul.f32 %v8415, %v8487
      %v8551 = vmul.f32 %v8416, %v8487
      %v8552 = vmul.f32 %v8417, %v8487
      %v8553 = vmul.f32 %v8418, %v8487
      %v8554 = vmul.f32 %v8419, %v8487
      %v8555 = vmul.f32 %v8420, %v8487
      %v8556 = vmul.f32 %v8421, %v8487
      %v8557 = vmul.f32 %v8422, %v8487
      %v8558 = vmul.f32 %v8423, %v8487
      %v8559 = vmul.f32 %v8424, %v8487
      %v8560 = vmul.f32 %v8425, %v8487
      %v8561 = vmul.f32 %v8426, %v8487
      %v8562 = vmul.f32 %v8427, %v8487
      %v8563 = vmul.f32 %v8428, %v8487
      %v8564 = vmul.f32 %v8429, %v8487
      %v8565 = vmul.f32 %v8430, %v8487
      %v8566 = vmul.f32 %v8431, %v8487
      %v8567 = vmul.f32 %v8432, %v8487
      %v8568 = vmul.f32 %v8433, %v8487
      %v8569 = vmul.f32 %v8434, %v8487
      %v8570 = vmul.f32 %v8435, %v8487
      %v8571 = vmul.f32 %v8436, %v8487
      %v8572 = vmul.f32 %v8437, %v8487
      %v8573 = vmul.f32 %v8438, %v8487
      %v8574 = vmul.f32 %v8439, %v8487
      %v8575 = vmul.f32 %v8440, %v8487
      %v8576 = vmul.f32 %v8441, %v8487
      %v8577 = vmul.f32 %v8442, %v8487
      %v8578 = vmul.f32 %v8443, %v8487
      %v8579 = vmul.f32 %v8444, %v8487
      %v8580 = vmul.f32 %v8445, %v8487
      %v8581 = vmul.f32 %v8446, %v8487
      %v8582 = vmul.f32 %v8447, %v8487
      %v8583 = vmul.f32 %v8448, %v8487
      %v8584 = vmul.f32 %v8449, %v8487
      %v8585 = vmul.f32 %v8450, %v8487
      %v8586 = vmul.f32 %v8451, %v8487
      %v8587 = vmul.f32 %v8452, %v8487
      %v8588 = vmul.f32 %v8453, %v8487
      %v8589 = vmul.f32 %v8454, %v8487
      %v8590 = vmul.f32 %v8455, %v8487
      %v8591 = vmul.f32 %v8456, %v8487
      %v8592 = vmul.f32 %v8457, %v8487
      %v8593 = vmul.f32 %v8458, %v8487
      %v8594 = vmul.f32 %v8459, %v8487
      %v8595 = vmul.f32 %v8460, %v8487
      %v8596 = vmul.f32 %v8461, %v8487
      %v8597 = vmul.f32 %v8462, %v8487
      %v8598 = vmul.f32 %v8463, %v8487
      %v8599 = vmul.f32 %v8464, %v8487
      %v8600 = vmul.f32 %v8465, %v8487
      %v8601 = vmul.f32 %v8466, %v8487
      %v8602 = vmul.f32 %v8467, %v8487
      %v8603 = vmul.f32 %v8468, %v8487
      %v8604 = vmul.f32 %v8469, %v8487
      %v8605 = vmul.f32 %v8470, %v8487
      %v8606 = vmul.f32 %v8471, %v8487
      %v8607 = vmul.f32 %v8472, %v8487
      %v8608 = vmul.f32 %v8473, %v8487
      %v8609 = vmul.f32 %v8474, %v8487
      %v8610 = vmul.f32 %v8475, %v8487
      %v8611 = vmul.f32 %v8476, %v8487
      %v8612 = vmul.f32 %v8477, %v8487
      %v8613 = vmul.f32 %v8478, %v8487
      %v8614 = vmul.f32 %v8479, %v8487
      %v8615 = vmul.f32 %v8480, %v8487
      %v8616 = vmul.f32 %v8481, %v8487
      %8617 = vadd.xlane.f32.xlu0 %v8489
      %v8618 = vpop.xlane.xlu0 %8617
      %8619 = vadd.xlane.f32.xlu0 %v8490
      %v8620 = vpop.xlane.xlu0 %8619
      %8621 = vadd.xlane.f32.xlu0 %v8491
      %v8622 = vpop.xlane.xlu0 %8621
      %8623 = vadd.xlane.f32.xlu0 %v8492
      %v8624 = vpop.xlane.xlu0 %8623
      %8625 = vadd.xlane.f32.xlu0 %v8493
      %v8626 = vpop.xlane.xlu0 %8625
      %8627 = vadd.xlane.f32.xlu0 %v8494
      %v8628 = vpop.xlane.xlu0 %8627
      %8629 = vadd.xlane.f32.xlu0 %v8495
      %v8630 = vpop.xlane.xlu0 %8629
      %8631 = vadd.xlane.f32.xlu0 %v8496
      %v8632 = vpop.xlane.xlu0 %8631
      %8633 = vadd.xlane.f32.xlu0 %v8497
      %v8634 = vpop.xlane.xlu0 %8633
      %8635 = vadd.xlane.f32.xlu0 %v8498
      %v8636 = vpop.xlane.xlu0 %8635
      %8637 = vadd.xlane.f32.xlu0 %v8499
      %v8638 = vpop.xlane.xlu0 %8637
      %8639 = vadd.xlane.f32.xlu0 %v8500
      %v8640 = vpop.xlane.xlu0 %8639
      %8641 = vadd.xlane.f32.xlu0 %v8501
      %v8642 = vpop.xlane.xlu0 %8641
      %8643 = vadd.xlane.f32.xlu0 %v8502
      %v8644 = vpop.xlane.xlu0 %8643
      %8645 = vadd.xlane.f32.xlu0 %v8503
      %v8646 = vpop.xlane.xlu0 %8645
      %8647 = vadd.xlane.f32.xlu0 %v8504
      %v8648 = vpop.xlane.xlu0 %8647
      %8649 = vadd.xlane.f32.xlu0 %v8505
      %v8650 = vpop.xlane.xlu0 %8649
      %8651 = vadd.xlane.f32.xlu0 %v8506
      %v8652 = vpop.xlane.xlu0 %8651
      %8653 = vadd.xlane.f32.xlu0 %v8507
      %v8654 = vpop.xlane.xlu0 %8653
      %8655 = vadd.xlane.f32.xlu0 %v8508
      %v8656 = vpop.xlane.xlu0 %8655
      %8657 = vadd.xlane.f32.xlu0 %v8509
      %v8658 = vpop.xlane.xlu0 %8657
      %8659 = vadd.xlane.f32.xlu0 %v8510
      %v8660 = vpop.xlane.xlu0 %8659
      %8661 = vadd.xlane.f32.xlu0 %v8511
      %v8662 = vpop.xlane.xlu0 %8661
      %8663 = vadd.xlane.f32.xlu0 %v8512
      %v8664 = vpop.xlane.xlu0 %8663
      %8665 = vadd.xlane.f32.xlu0 %v8513
      %v8666 = vpop.xlane.xlu0 %8665
      %8667 = vadd.xlane.f32.xlu0 %v8514
      %v8668 = vpop.xlane.xlu0 %8667
      %8669 = vadd.xlane.f32.xlu0 %v8515
      %v8670 = vpop.xlane.xlu0 %8669
      %8671 = vadd.xlane.f32.xlu0 %v8516
      %v8672 = vpop.xlane.xlu0 %8671
      %8673 = vadd.xlane.f32.xlu0 %v8517
      %v8674 = vpop.xlane.xlu0 %8673
      %8675 = vadd.xlane.f32.xlu0 %v8518
      %v8676 = vpop.xlane.xlu0 %8675
      %8677 = vadd.xlane.f32.xlu0 %v8519
      %v8678 = vpop.xlane.xlu0 %8677
      %8679 = vadd.xlane.f32.xlu0 %v8520
      %v8680 = vpop.xlane.xlu0 %8679
      %8681 = vadd.xlane.f32.xlu0 %v8521
      %v8682 = vpop.xlane.xlu0 %8681
      %8683 = vadd.xlane.f32.xlu0 %v8522
      %v8684 = vpop.xlane.xlu0 %8683
      %8685 = vadd.xlane.f32.xlu0 %v8523
      %v8686 = vpop.xlane.xlu0 %8685
      %8687 = vadd.xlane.f32.xlu0 %v8524
      %v8688 = vpop.xlane.xlu0 %8687
      %8689 = vadd.xlane.f32.xlu0 %v8525
      %v8690 = vpop.xlane.xlu0 %8689
      %8691 = vadd.xlane.f32.xlu0 %v8526
      %v8692 = vpop.xlane.xlu0 %8691
      %8693 = vadd.xlane.f32.xlu0 %v8527
      %v8694 = vpop.xlane.xlu0 %8693
      %8695 = vadd.xlane.f32.xlu0 %v8528
      %v8696 = vpop.xlane.xlu0 %8695
      %8697 = vadd.xlane.f32.xlu0 %v8529
      %v8698 = vpop.xlane.xlu0 %8697
      %8699 = vadd.xlane.f32.xlu0 %v8530
      %v8700 = vpop.xlane.xlu0 %8699
      %8701 = vadd.xlane.f32.xlu0 %v8531
      %v8702 = vpop.xlane.xlu0 %8701
      %8703 = vadd.xlane.f32.xlu0 %v8532
      %v8704 = vpop.xlane.xlu0 %8703
      %8705 = vadd.xlane.f32.xlu0 %v8533
      %v8706 = vpop.xlane.xlu0 %8705
      %8707 = vadd.xlane.f32.xlu0 %v8534
      %v8708 = vpop.xlane.xlu0 %8707
      %8709 = vadd.xlane.f32.xlu0 %v8535
      %v8710 = vpop.xlane.xlu0 %8709
      %8711 = vadd.xlane.f32.xlu0 %v8536
      %v8712 = vpop.xlane.xlu0 %8711
      %8713 = vadd.xlane.f32.xlu0 %v8537
      %v8714 = vpop.xlane.xlu0 %8713
      %8715 = vadd.xlane.f32.xlu0 %v8538
      %v8716 = vpop.xlane.xlu0 %8715
      %8717 = vadd.xlane.f32.xlu0 %v8539
      %v8718 = vpop.xlane.xlu0 %8717
      %8719 = vadd.xlane.f32.xlu0 %v8540
      %v8720 = vpop.xlane.xlu0 %8719
      %8721 = vadd.xlane.f32.xlu0 %v8541
      %v8722 = vpop.xlane.xlu0 %8721
      %8723 = vadd.xlane.f32.xlu0 %v8542
      %v8724 = vpop.xlane.xlu0 %8723
      %8725 = vadd.xlane.f32.xlu0 %v8543
      %v8726 = vpop.xlane.xlu0 %8725
      %8727 = vadd.xlane.f32.xlu0 %v8544
      %v8728 = vpop.xlane.xlu0 %8727
      %8729 = vadd.xlane.f32.xlu0 %v8545
      %v8730 = vpop.xlane.xlu0 %8729
      %8731 = vadd.xlane.f32.xlu0 %v8546
      %v8732 = vpop.xlane.xlu0 %8731
      %8733 = vadd.xlane.f32.xlu0 %v8547
      %v8734 = vpop.xlane.xlu0 %8733
      %8735 = vadd.xlane.f32.xlu0 %v8548
      %v8736 = vpop.xlane.xlu0 %8735
      %8737 = vadd.xlane.f32.xlu0 %v8549
      %v8738 = vpop.xlane.xlu0 %8737
      %8739 = vadd.xlane.f32.xlu0 %v8550
      %v8740 = vpop.xlane.xlu0 %8739
      %8741 = vadd.xlane.f32.xlu0 %v8551
      %v8742 = vpop.xlane.xlu0 %8741
      %8743 = vadd.xlane.f32.xlu0 %v8552
      %v8744 = vpop.xlane.xlu0 %8743
      %8745 = vadd.xlane.f32.xlu0 %v8553
      %v8746 = vpop.xlane.xlu0 %8745
      %8747 = vadd.xlane.f32.xlu0 %v8554
      %v8748 = vpop.xlane.xlu0 %8747
      %8749 = vadd.xlane.f32.xlu0 %v8555
      %v8750 = vpop.xlane.xlu0 %8749
      %8751 = vadd.xlane.f32.xlu0 %v8556
      %v8752 = vpop.xlane.xlu0 %8751
      %8753 = vadd.xlane.f32.xlu0 %v8557
      %v8754 = vpop.xlane.xlu0 %8753
      %8755 = vadd.xlane.f32.xlu0 %v8558
      %v8756 = vpop.xlane.xlu0 %8755
      %8757 = vadd.xlane.f32.xlu0 %v8559
      %v8758 = vpop.xlane.xlu0 %8757
      %8759 = vadd.xlane.f32.xlu0 %v8560
      %v8760 = vpop.xlane.xlu0 %8759
      %8761 = vadd.xlane.f32.xlu0 %v8561
      %v8762 = vpop.xlane.xlu0 %8761
      %8763 = vadd.xlane.f32.xlu0 %v8562
      %v8764 = vpop.xlane.xlu0 %8763
      %8765 = vadd.xlane.f32.xlu0 %v8563
      %v8766 = vpop.xlane.xlu0 %8765
      %8767 = vadd.xlane.f32.xlu0 %v8564
      %v8768 = vpop.xlane.xlu0 %8767
      %8769 = vadd.xlane.f32.xlu0 %v8565
      %v8770 = vpop.xlane.xlu0 %8769
      %8771 = vadd.xlane.f32.xlu0 %v8566
      %v8772 = vpop.xlane.xlu0 %8771
      %8773 = vadd.xlane.f32.xlu0 %v8567
      %v8774 = vpop.xlane.xlu0 %8773
      %8775 = vadd.xlane.f32.xlu0 %v8568
      %v8776 = vpop.xlane.xlu0 %8775
      %8777 = vadd.xlane.f32.xlu0 %v8569
      %v8778 = vpop.xlane.xlu0 %8777
      %8779 = vadd.xlane.f32.xlu0 %v8570
      %v8780 = vpop.xlane.xlu0 %8779
      %8781 = vadd.xlane.f32.xlu0 %v8571
      %v8782 = vpop.xlane.xlu0 %8781
      %8783 = vadd.xlane.f32.xlu0 %v8572
      %v8784 = vpop.xlane.xlu0 %8783
      %8785 = vadd.xlane.f32.xlu0 %v8573
      %v8786 = vpop.xlane.xlu0 %8785
      %8787 = vadd.xlane.f32.xlu0 %v8574
      %v8788 = vpop.xlane.xlu0 %8787
      %8789 = vadd.xlane.f32.xlu0 %v8575
      %v8790 = vpop.xlane.xlu0 %8789
      %8791 = vadd.xlane.f32.xlu0 %v8576
      %v8792 = vpop.xlane.xlu0 %8791
      %8793 = vadd.xlane.f32.xlu0 %v8577
      %v8794 = vpop.xlane.xlu0 %8793
      %8795 = vadd.xlane.f32.xlu0 %v8578
      %v8796 = vpop.xlane.xlu0 %8795
      %8797 = vadd.xlane.f32.xlu0 %v8579
      %v8798 = vpop.xlane.xlu0 %8797
      %8799 = vadd.xlane.f32.xlu0 %v8580
      %v8800 = vpop.xlane.xlu0 %8799
      %8801 = vadd.xlane.f32.xlu0 %v8581
      %v8802 = vpop.xlane.xlu0 %8801
      %8803 = vadd.xlane.f32.xlu0 %v8582
      %v8804 = vpop.xlane.xlu0 %8803
      %8805 = vadd.xlane.f32.xlu0 %v8583
      %v8806 = vpop.xlane.xlu0 %8805
      %8807 = vadd.xlane.f32.xlu0 %v8584
      %v8808 = vpop.xlane.xlu0 %8807
      %8809 = vadd.xlane.f32.xlu0 %v8585
      %v8810 = vpop.xlane.xlu0 %8809
      %8811 = vadd.xlane.f32.xlu0 %v8586
      %v8812 = vpop.xlane.xlu0 %8811
      %8813 = vadd.xlane.f32.xlu0 %v8587
      %v8814 = vpop.xlane.xlu0 %8813
      %8815 = vadd.xlane.f32.xlu0 %v8588
      %v8816 = vpop.xlane.xlu0 %8815
      %8817 = vadd.xlane.f32.xlu0 %v8589
      %v8818 = vpop.xlane.xlu0 %8817
      %8819 = vadd.xlane.f32.xlu0 %v8590
      %v8820 = vpop.xlane.xlu0 %8819
      %8821 = vadd.xlane.f32.xlu0 %v8591
      %v8822 = vpop.xlane.xlu0 %8821
      %8823 = vadd.xlane.f32.xlu0 %v8592
      %v8824 = vpop.xlane.xlu0 %8823
      %8825 = vadd.xlane.f32.xlu0 %v8593
      %v8826 = vpop.xlane.xlu0 %8825
      %8827 = vadd.xlane.f32.xlu0 %v8594
      %v8828 = vpop.xlane.xlu0 %8827
      %8829 = vadd.xlane.f32.xlu0 %v8595
      %v8830 = vpop.xlane.xlu0 %8829
      %8831 = vadd.xlane.f32.xlu0 %v8596
      %v8832 = vpop.xlane.xlu0 %8831
      %8833 = vadd.xlane.f32.xlu0 %v8597
      %v8834 = vpop.xlane.xlu0 %8833
      %8835 = vadd.xlane.f32.xlu0 %v8598
      %v8836 = vpop.xlane.xlu0 %8835
      %8837 = vadd.xlane.f32.xlu0 %v8599
      %v8838 = vpop.xlane.xlu0 %8837
      %8839 = vadd.xlane.f32.xlu0 %v8600
      %v8840 = vpop.xlane.xlu0 %8839
      %8841 = vadd.xlane.f32.xlu0 %v8601
      %v8842 = vpop.xlane.xlu0 %8841
      %8843 = vadd.xlane.f32.xlu0 %v8602
      %v8844 = vpop.xlane.xlu0 %8843
      %8845 = vadd.xlane.f32.xlu0 %v8603
      %v8846 = vpop.xlane.xlu0 %8845
      %8847 = vadd.xlane.f32.xlu0 %v8604
      %v8848 = vpop.xlane.xlu0 %8847
      %8849 = vadd.xlane.f32.xlu0 %v8605
      %v8850 = vpop.xlane.xlu0 %8849
      %8851 = vadd.xlane.f32.xlu0 %v8606
      %v8852 = vpop.xlane.xlu0 %8851
      %8853 = vadd.xlane.f32.xlu0 %v8607
      %v8854 = vpop.xlane.xlu0 %8853
      %8855 = vadd.xlane.f32.xlu0 %v8608
      %v8856 = vpop.xlane.xlu0 %8855
      %8857 = vadd.xlane.f32.xlu0 %v8609
      %v8858 = vpop.xlane.xlu0 %8857
      %8859 = vadd.xlane.f32.xlu0 %v8610
      %v8860 = vpop.xlane.xlu0 %8859
      %8861 = vadd.xlane.f32.xlu0 %v8611
      %v8862 = vpop.xlane.xlu0 %8861
      %8863 = vadd.xlane.f32.xlu0 %v8612
      %v8864 = vpop.xlane.xlu0 %8863
      %8865 = vadd.xlane.f32.xlu0 %v8613
      %v8866 = vpop.xlane.xlu0 %8865
      %8867 = vadd.xlane.f32.xlu0 %v8614
      %v8868 = vpop.xlane.xlu0 %8867
      %8869 = vadd.xlane.f32.xlu0 %v8615
      %v8870 = vpop.xlane.xlu0 %8869
      %8871 = vadd.xlane.f32.xlu0 %v8616
      %v8872 = vpop.xlane.xlu0 %8871
      %v8873 = vlaneseq
      %v8874 = vshrl.u32 %v8873, 7
      %v8875 = vlaneseq
      %v8876 = vand.u32 %v8875, 127
      %vm8877 = vcmp.eq.s32.totalorder %v8874, %v8876
      %v8878 = vsel %vm8877, 1, 0
      %v8879 = vcvt.s32.f32 %v8878
      %v9008 = vlaneseq
      %v9009 = vshrl.u32 %v9008, 7
      %v9010 = vsub.s32 %v8876, %v9009
      %v9011 = vrot.slane %v8618, %v9010
      %v9012 = vlaneseq
      %v9013 = vshrl.u32 %v9012, 7
      %v9014 = vsub.s32 %v8876, %v9013
      %v9015 = vrot.slane %v8620, %v9014
      %v9016 = vlaneseq
      %v9017 = vshrl.u32 %v9016, 7
      %v9018 = vsub.s32 %v8876, %v9017
      %v9019 = vrot.slane %v8622, %v9018
      %v9020 = vlaneseq
      %v9021 = vshrl.u32 %v9020, 7
      %v9022 = vsub.s32 %v8876, %v9021
      %v9023 = vrot.slane %v8624, %v9022
      %v9024 = vlaneseq
      %v9025 = vshrl.u32 %v9024, 7
      %v9026 = vsub.s32 %v8876, %v9025
      %v9027 = vrot.slane %v8626, %v9026
      %v9028 = vlaneseq
      %v9029 = vshrl.u32 %v9028, 7
      %v9030 = vsub.s32 %v8876, %v9029
      %v9031 = vrot.slane %v8628, %v9030
      %v9032 = vlaneseq
      %v9033 = vshrl.u32 %v9032, 7
      %v9034 = vsub.s32 %v8876, %v9033
      %v9035 = vrot.slane %v8630, %v9034
      %v9036 = vlaneseq
      %v9037 = vshrl.u32 %v9036, 7
      %v9038 = vsub.s32 %v8876, %v9037
      %v9039 = vrot.slane %v8632, %v9038
      %v9040 = vlaneseq
      %v9041 = vshrl.u32 %v9040, 7
      %v9042 = vsub.s32 %v8876, %v9041
      %v9043 = vrot.slane %v8634, %v9042
      %v9044 = vlaneseq
      %v9045 = vshrl.u32 %v9044, 7
      %v9046 = vsub.s32 %v8876, %v9045
      %v9047 = vrot.slane %v8636, %v9046
      %v9048 = vlaneseq
      %v9049 = vshrl.u32 %v9048, 7
      %v9050 = vsub.s32 %v8876, %v9049
      %v9051 = vrot.slane %v8638, %v9050
      %v9052 = vlaneseq
      %v9053 = vshrl.u32 %v9052, 7
      %v9054 = vsub.s32 %v8876, %v9053
      %v9055 = vrot.slane %v8640, %v9054
      %v9056 = vlaneseq
      %v9057 = vshrl.u32 %v9056, 7
      %v9058 = vsub.s32 %v8876, %v9057
      %v9059 = vrot.slane %v8642, %v9058
      %v9060 = vlaneseq
      %v9061 = vshrl.u32 %v9060, 7
      %v9062 = vsub.s32 %v8876, %v9061
      %v9063 = vrot.slane %v8644, %v9062
      %v9064 = vlaneseq
      %v9065 = vshrl.u32 %v9064, 7
      %v9066 = vsub.s32 %v8876, %v9065
      %v9067 = vrot.slane %v8646, %v9066
      %v9068 = vlaneseq
      %v9069 = vshrl.u32 %v9068, 7
      %v9070 = vsub.s32 %v8876, %v9069
      %v9071 = vrot.slane %v8648, %v9070
      %v9072 = vlaneseq
      %v9073 = vshrl.u32 %v9072, 7
      %v9074 = vsub.s32 %v8876, %v9073
      %v9075 = vrot.slane %v8650, %v9074
      %v9076 = vlaneseq
      %v9077 = vshrl.u32 %v9076, 7
      %v9078 = vsub.s32 %v8876, %v9077
      %v9079 = vrot.slane %v8652, %v9078
      %v9080 = vlaneseq
      %v9081 = vshrl.u32 %v9080, 7
      %v9082 = vsub.s32 %v8876, %v9081
      %v9083 = vrot.slane %v8654, %v9082
      %v9084 = vlaneseq
      %v9085 = vshrl.u32 %v9084, 7
      %v9086 = vsub.s32 %v8876, %v9085
      %v9087 = vrot.slane %v8656, %v9086
      %v9088 = vlaneseq
      %v9089 = vshrl.u32 %v9088, 7
      %v9090 = vsub.s32 %v8876, %v9089
      %v9091 = vrot.slane %v8658, %v9090
      %v9092 = vlaneseq
      %v9093 = vshrl.u32 %v9092, 7
      %v9094 = vsub.s32 %v8876, %v9093
      %v9095 = vrot.slane %v8660, %v9094
      %v9096 = vlaneseq
      %v9097 = vshrl.u32 %v9096, 7
      %v9098 = vsub.s32 %v8876, %v9097
      %v9099 = vrot.slane %v8662, %v9098
      %v9100 = vlaneseq
      %v9101 = vshrl.u32 %v9100, 7
      %v9102 = vsub.s32 %v8876, %v9101
      %v9103 = vrot.slane %v8664, %v9102
      %v9104 = vlaneseq
      %v9105 = vshrl.u32 %v9104, 7
      %v9106 = vsub.s32 %v8876, %v9105
      %v9107 = vrot.slane %v8666, %v9106
      %v9108 = vlaneseq
      %v9109 = vshrl.u32 %v9108, 7
      %v9110 = vsub.s32 %v8876, %v9109
      %v9111 = vrot.slane %v8668, %v9110
      %v9112 = vlaneseq
      %v9113 = vshrl.u32 %v9112, 7
      %v9114 = vsub.s32 %v8876, %v9113
      %v9115 = vrot.slane %v8670, %v9114
      %v9116 = vlaneseq
      %v9117 = vshrl.u32 %v9116, 7
      %v9118 = vsub.s32 %v8876, %v9117
      %v9119 = vrot.slane %v8672, %v9118
      %v9120 = vlaneseq
      %v9121 = vshrl.u32 %v9120, 7
      %v9122 = vsub.s32 %v8876, %v9121
      %v9123 = vrot.slane %v8674, %v9122
      %v9124 = vlaneseq
      %v9125 = vshrl.u32 %v9124, 7
      %v9126 = vsub.s32 %v8876, %v9125
      %v9127 = vrot.slane %v8676, %v9126
      %v9128 = vlaneseq
      %v9129 = vshrl.u32 %v9128, 7
      %v9130 = vsub.s32 %v8876, %v9129
      %v9131 = vrot.slane %v8678, %v9130
      %v9132 = vlaneseq
      %v9133 = vshrl.u32 %v9132, 7
      %v9134 = vsub.s32 %v8876, %v9133
      %v9135 = vrot.slane %v8680, %v9134
      %v9136 = vlaneseq
      %v9137 = vshrl.u32 %v9136, 7
      %v9138 = vsub.s32 %v8876, %v9137
      %v9139 = vrot.slane %v8682, %v9138
      %v9140 = vlaneseq
      %v9141 = vshrl.u32 %v9140, 7
      %v9142 = vsub.s32 %v8876, %v9141
      %v9143 = vrot.slane %v8684, %v9142
      %v9144 = vlaneseq
      %v9145 = vshrl.u32 %v9144, 7
      %v9146 = vsub.s32 %v8876, %v9145
      %v9147 = vrot.slane %v8686, %v9146
      %v9148 = vlaneseq
      %v9149 = vshrl.u32 %v9148, 7
      %v9150 = vsub.s32 %v8876, %v9149
      %v9151 = vrot.slane %v8688, %v9150
      %v9152 = vlaneseq
      %v9153 = vshrl.u32 %v9152, 7
      %v9154 = vsub.s32 %v8876, %v9153
      %v9155 = vrot.slane %v8690, %v9154
      %v9156 = vlaneseq
      %v9157 = vshrl.u32 %v9156, 7
      %v9158 = vsub.s32 %v8876, %v9157
      %v9159 = vrot.slane %v8692, %v9158
      %v9160 = vlaneseq
      %v9161 = vshrl.u32 %v9160, 7
      %v9162 = vsub.s32 %v8876, %v9161
      %v9163 = vrot.slane %v8694, %v9162
      %v9164 = vlaneseq
      %v9165 = vshrl.u32 %v9164, 7
      %v9166 = vsub.s32 %v8876, %v9165
      %v9167 = vrot.slane %v8696, %v9166
      %v9168 = vlaneseq
      %v9169 = vshrl.u32 %v9168, 7
      %v9170 = vsub.s32 %v8876, %v9169
      %v9171 = vrot.slane %v8698, %v9170
      %v9172 = vlaneseq
      %v9173 = vshrl.u32 %v9172, 7
      %v9174 = vsub.s32 %v8876, %v9173
      %v9175 = vrot.slane %v8700, %v9174
      %v9176 = vlaneseq
      %v9177 = vshrl.u32 %v9176, 7
      %v9178 = vsub.s32 %v8876, %v9177
      %v9179 = vrot.slane %v8702, %v9178
      %v9180 = vlaneseq
      %v9181 = vshrl.u32 %v9180, 7
      %v9182 = vsub.s32 %v8876, %v9181
      %v9183 = vrot.slane %v8704, %v9182
      %v9184 = vlaneseq
      %v9185 = vshrl.u32 %v9184, 7
      %v9186 = vsub.s32 %v8876, %v9185
      %v9187 = vrot.slane %v8706, %v9186
      %v9188 = vlaneseq
      %v9189 = vshrl.u32 %v9188, 7
      %v9190 = vsub.s32 %v8876, %v9189
      %v9191 = vrot.slane %v8708, %v9190
      %v9192 = vlaneseq
      %v9193 = vshrl.u32 %v9192, 7
      %v9194 = vsub.s32 %v8876, %v9193
      %v9195 = vrot.slane %v8710, %v9194
      %v9196 = vlaneseq
      %v9197 = vshrl.u32 %v9196, 7
      %v9198 = vsub.s32 %v8876, %v9197
      %v9199 = vrot.slane %v8712, %v9198
      %v9200 = vlaneseq
      %v9201 = vshrl.u32 %v9200, 7
      %v9202 = vsub.s32 %v8876, %v9201
      %v9203 = vrot.slane %v8714, %v9202
      %v9204 = vlaneseq
      %v9205 = vshrl.u32 %v9204, 7
      %v9206 = vsub.s32 %v8876, %v9205
      %v9207 = vrot.slane %v8716, %v9206
      %v9208 = vlaneseq
      %v9209 = vshrl.u32 %v9208, 7
      %v9210 = vsub.s32 %v8876, %v9209
      %v9211 = vrot.slane %v8718, %v9210
      %v9212 = vlaneseq
      %v9213 = vshrl.u32 %v9212, 7
      %v9214 = vsub.s32 %v8876, %v9213
      %v9215 = vrot.slane %v8720, %v9214
      %v9216 = vlaneseq
      %v9217 = vshrl.u32 %v9216, 7
      %v9218 = vsub.s32 %v8876, %v9217
      %v9219 = vrot.slane %v8722, %v9218
      %v9220 = vlaneseq
      %v9221 = vshrl.u32 %v9220, 7
      %v9222 = vsub.s32 %v8876, %v9221
      %v9223 = vrot.slane %v8724, %v9222
      %v9224 = vlaneseq
      %v9225 = vshrl.u32 %v9224, 7
      %v9226 = vsub.s32 %v8876, %v9225
      %v9227 = vrot.slane %v8726, %v9226
      %v9228 = vlaneseq
      %v9229 = vshrl.u32 %v9228, 7
      %v9230 = vsub.s32 %v8876, %v9229
      %v9231 = vrot.slane %v8728, %v9230
      %v9232 = vlaneseq
      %v9233 = vshrl.u32 %v9232, 7
      %v9234 = vsub.s32 %v8876, %v9233
      %v9235 = vrot.slane %v8730, %v9234
      %v9236 = vlaneseq
      %v9237 = vshrl.u32 %v9236, 7
      %v9238 = vsub.s32 %v8876, %v9237
      %v9239 = vrot.slane %v8732, %v9238
      %v9240 = vlaneseq
      %v9241 = vshrl.u32 %v9240, 7
      %v9242 = vsub.s32 %v8876, %v9241
      %v9243 = vrot.slane %v8734, %v9242
      %v9244 = vlaneseq
      %v9245 = vshrl.u32 %v9244, 7
      %v9246 = vsub.s32 %v8876, %v9245
      %v9247 = vrot.slane %v8736, %v9246
      %v9248 = vlaneseq
      %v9249 = vshrl.u32 %v9248, 7
      %v9250 = vsub.s32 %v8876, %v9249
      %v9251 = vrot.slane %v8738, %v9250
      %v9252 = vlaneseq
      %v9253 = vshrl.u32 %v9252, 7
      %v9254 = vsub.s32 %v8876, %v9253
      %v9255 = vrot.slane %v8740, %v9254
      %v9256 = vlaneseq
      %v9257 = vshrl.u32 %v9256, 7
      %v9258 = vsub.s32 %v8876, %v9257
      %v9259 = vrot.slane %v8742, %v9258
      %v9260 = vlaneseq
      %v9261 = vshrl.u32 %v9260, 7
      %v9262 = vsub.s32 %v8876, %v9261
      %v9263 = vrot.slane %v8744, %v9262
      %v9264 = vlaneseq
      %v9265 = vshrl.u32 %v9264, 7
      %v9266 = vsub.s32 %v8876, %v9265
      %v9267 = vrot.slane %v8746, %v9266
      %v9268 = vlaneseq
      %v9269 = vshrl.u32 %v9268, 7
      %v9270 = vsub.s32 %v8876, %v9269
      %v9271 = vrot.slane %v8748, %v9270
      %v9272 = vlaneseq
      %v9273 = vshrl.u32 %v9272, 7
      %v9274 = vsub.s32 %v8876, %v9273
      %v9275 = vrot.slane %v8750, %v9274
      %v9276 = vlaneseq
      %v9277 = vshrl.u32 %v9276, 7
      %v9278 = vsub.s32 %v8876, %v9277
      %v9279 = vrot.slane %v8752, %v9278
      %v9280 = vlaneseq
      %v9281 = vshrl.u32 %v9280, 7
      %v9282 = vsub.s32 %v8876, %v9281
      %v9283 = vrot.slane %v8754, %v9282
      %v9284 = vlaneseq
      %v9285 = vshrl.u32 %v9284, 7
      %v9286 = vsub.s32 %v8876, %v9285
      %v9287 = vrot.slane %v8756, %v9286
      %v9288 = vlaneseq
      %v9289 = vshrl.u32 %v9288, 7
      %v9290 = vsub.s32 %v8876, %v9289
      %v9291 = vrot.slane %v8758, %v9290
      %v9292 = vlaneseq
      %v9293 = vshrl.u32 %v9292, 7
      %v9294 = vsub.s32 %v8876, %v9293
      %v9295 = vrot.slane %v8760, %v9294
      %v9296 = vlaneseq
      %v9297 = vshrl.u32 %v9296, 7
      %v9298 = vsub.s32 %v8876, %v9297
      %v9299 = vrot.slane %v8762, %v9298
      %v9300 = vlaneseq
      %v9301 = vshrl.u32 %v9300, 7
      %v9302 = vsub.s32 %v8876, %v9301
      %v9303 = vrot.slane %v8764, %v9302
      %v9304 = vlaneseq
      %v9305 = vshrl.u32 %v9304, 7
      %v9306 = vsub.s32 %v8876, %v9305
      %v9307 = vrot.slane %v8766, %v9306
      %v9308 = vlaneseq
      %v9309 = vshrl.u32 %v9308, 7
      %v9310 = vsub.s32 %v8876, %v9309
      %v9311 = vrot.slane %v8768, %v9310
      %v9312 = vlaneseq
      %v9313 = vshrl.u32 %v9312, 7
      %v9314 = vsub.s32 %v8876, %v9313
      %v9315 = vrot.slane %v8770, %v9314
      %v9316 = vlaneseq
      %v9317 = vshrl.u32 %v9316, 7
      %v9318 = vsub.s32 %v8876, %v9317
      %v9319 = vrot.slane %v8772, %v9318
      %v9320 = vlaneseq
      %v9321 = vshrl.u32 %v9320, 7
      %v9322 = vsub.s32 %v8876, %v9321
      %v9323 = vrot.slane %v8774, %v9322
      %v9324 = vlaneseq
      %v9325 = vshrl.u32 %v9324, 7
      %v9326 = vsub.s32 %v8876, %v9325
      %v9327 = vrot.slane %v8776, %v9326
      %v9328 = vlaneseq
      %v9329 = vshrl.u32 %v9328, 7
      %v9330 = vsub.s32 %v8876, %v9329
      %v9331 = vrot.slane %v8778, %v9330
      %v9332 = vlaneseq
      %v9333 = vshrl.u32 %v9332, 7
      %v9334 = vsub.s32 %v8876, %v9333
      %v9335 = vrot.slane %v8780, %v9334
      %v9336 = vlaneseq
      %v9337 = vshrl.u32 %v9336, 7
      %v9338 = vsub.s32 %v8876, %v9337
      %v9339 = vrot.slane %v8782, %v9338
      %v9340 = vlaneseq
      %v9341 = vshrl.u32 %v9340, 7
      %v9342 = vsub.s32 %v8876, %v9341
      %v9343 = vrot.slane %v8784, %v9342
      %v9344 = vlaneseq
      %v9345 = vshrl.u32 %v9344, 7
      %v9346 = vsub.s32 %v8876, %v9345
      %v9347 = vrot.slane %v8786, %v9346
      %v9348 = vlaneseq
      %v9349 = vshrl.u32 %v9348, 7
      %v9350 = vsub.s32 %v8876, %v9349
      %v9351 = vrot.slane %v8788, %v9350
      %v9352 = vlaneseq
      %v9353 = vshrl.u32 %v9352, 7
      %v9354 = vsub.s32 %v8876, %v9353
      %v9355 = vrot.slane %v8790, %v9354
      %v9356 = vlaneseq
      %v9357 = vshrl.u32 %v9356, 7
      %v9358 = vsub.s32 %v8876, %v9357
      %v9359 = vrot.slane %v8792, %v9358
      %v9360 = vlaneseq
      %v9361 = vshrl.u32 %v9360, 7
      %v9362 = vsub.s32 %v8876, %v9361
      %v9363 = vrot.slane %v8794, %v9362
      %v9364 = vlaneseq
      %v9365 = vshrl.u32 %v9364, 7
      %v9366 = vsub.s32 %v8876, %v9365
      %v9367 = vrot.slane %v8796, %v9366
      %v9368 = vlaneseq
      %v9369 = vshrl.u32 %v9368, 7
      %v9370 = vsub.s32 %v8876, %v9369
      %v9371 = vrot.slane %v8798, %v9370
      %v9372 = vlaneseq
      %v9373 = vshrl.u32 %v9372, 7
      %v9374 = vsub.s32 %v8876, %v9373
      %v9375 = vrot.slane %v8800, %v9374
      %v9376 = vlaneseq
      %v9377 = vshrl.u32 %v9376, 7
      %v9378 = vsub.s32 %v8876, %v9377
      %v9379 = vrot.slane %v8802, %v9378
      %v9380 = vlaneseq
      %v9381 = vshrl.u32 %v9380, 7
      %v9382 = vsub.s32 %v8876, %v9381
      %v9383 = vrot.slane %v8804, %v9382
      %v9384 = vlaneseq
      %v9385 = vshrl.u32 %v9384, 7
      %v9386 = vsub.s32 %v8876, %v9385
      %v9387 = vrot.slane %v8806, %v9386
      %v9388 = vlaneseq
      %v9389 = vshrl.u32 %v9388, 7
      %v9390 = vsub.s32 %v8876, %v9389
      %v9391 = vrot.slane %v8808, %v9390
      %v9392 = vlaneseq
      %v9393 = vshrl.u32 %v9392, 7
      %v9394 = vsub.s32 %v8876, %v9393
      %v9395 = vrot.slane %v8810, %v9394
      %v9396 = vlaneseq
      %v9397 = vshrl.u32 %v9396, 7
      %v9398 = vsub.s32 %v8876, %v9397
      %v9399 = vrot.slane %v8812, %v9398
      %v9400 = vlaneseq
      %v9401 = vshrl.u32 %v9400, 7
      %v9402 = vsub.s32 %v8876, %v9401
      %v9403 = vrot.slane %v8814, %v9402
      %v9404 = vlaneseq
      %v9405 = vshrl.u32 %v9404, 7
      %v9406 = vsub.s32 %v8876, %v9405
      %v9407 = vrot.slane %v8816, %v9406
      %v9408 = vlaneseq
      %v9409 = vshrl.u32 %v9408, 7
      %v9410 = vsub.s32 %v8876, %v9409
      %v9411 = vrot.slane %v8818, %v9410
      %v9412 = vlaneseq
      %v9413 = vshrl.u32 %v9412, 7
      %v9414 = vsub.s32 %v8876, %v9413
      %v9415 = vrot.slane %v8820, %v9414
      %v9416 = vlaneseq
      %v9417 = vshrl.u32 %v9416, 7
      %v9418 = vsub.s32 %v8876, %v9417
      %v9419 = vrot.slane %v8822, %v9418
      %v9420 = vlaneseq
      %v9421 = vshrl.u32 %v9420, 7
      %v9422 = vsub.s32 %v8876, %v9421
      %v9423 = vrot.slane %v8824, %v9422
      %v9424 = vlaneseq
      %v9425 = vshrl.u32 %v9424, 7
      %v9426 = vsub.s32 %v8876, %v9425
      %v9427 = vrot.slane %v8826, %v9426
      %v9428 = vlaneseq
      %v9429 = vshrl.u32 %v9428, 7
      %v9430 = vsub.s32 %v8876, %v9429
      %v9431 = vrot.slane %v8828, %v9430
      %v9432 = vlaneseq
      %v9433 = vshrl.u32 %v9432, 7
      %v9434 = vsub.s32 %v8876, %v9433
      %v9435 = vrot.slane %v8830, %v9434
      %v9436 = vlaneseq
      %v9437 = vshrl.u32 %v9436, 7
      %v9438 = vsub.s32 %v8876, %v9437
      %v9439 = vrot.slane %v8832, %v9438
      %v9440 = vlaneseq
      %v9441 = vshrl.u32 %v9440, 7
      %v9442 = vsub.s32 %v8876, %v9441
      %v9443 = vrot.slane %v8834, %v9442
      %v9444 = vlaneseq
      %v9445 = vshrl.u32 %v9444, 7
      %v9446 = vsub.s32 %v8876, %v9445
      %v9447 = vrot.slane %v8836, %v9446
      %v9448 = vlaneseq
      %v9449 = vshrl.u32 %v9448, 7
      %v9450 = vsub.s32 %v8876, %v9449
      %v9451 = vrot.slane %v8838, %v9450
      %v9452 = vlaneseq
      %v9453 = vshrl.u32 %v9452, 7
      %v9454 = vsub.s32 %v8876, %v9453
      %v9455 = vrot.slane %v8840, %v9454
      %v9456 = vlaneseq
      %v9457 = vshrl.u32 %v9456, 7
      %v9458 = vsub.s32 %v8876, %v9457
      %v9459 = vrot.slane %v8842, %v9458
      %v9460 = vlaneseq
      %v9461 = vshrl.u32 %v9460, 7
      %v9462 = vsub.s32 %v8876, %v9461
      %v9463 = vrot.slane %v8844, %v9462
      %v9464 = vlaneseq
      %v9465 = vshrl.u32 %v9464, 7
      %v9466 = vsub.s32 %v8876, %v9465
      %v9467 = vrot.slane %v8846, %v9466
      %v9468 = vlaneseq
      %v9469 = vshrl.u32 %v9468, 7
      %v9470 = vsub.s32 %v8876, %v9469
      %v9471 = vrot.slane %v8848, %v9470
      %v9472 = vlaneseq
      %v9473 = vshrl.u32 %v9472, 7
      %v9474 = vsub.s32 %v8876, %v9473
      %v9475 = vrot.slane %v8850, %v9474
      %v9476 = vlaneseq
      %v9477 = vshrl.u32 %v9476, 7
      %v9478 = vsub.s32 %v8876, %v9477
      %v9479 = vrot.slane %v8852, %v9478
      %v9480 = vlaneseq
      %v9481 = vshrl.u32 %v9480, 7
      %v9482 = vsub.s32 %v8876, %v9481
      %v9483 = vrot.slane %v8854, %v9482
      %v9484 = vlaneseq
      %v9485 = vshrl.u32 %v9484, 7
      %v9486 = vsub.s32 %v8876, %v9485
      %v9487 = vrot.slane %v8856, %v9486
      %v9488 = vlaneseq
      %v9489 = vshrl.u32 %v9488, 7
      %v9490 = vsub.s32 %v8876, %v9489
      %v9491 = vrot.slane %v8858, %v9490
      %v9492 = vlaneseq
      %v9493 = vshrl.u32 %v9492, 7
      %v9494 = vsub.s32 %v8876, %v9493
      %v9495 = vrot.slane %v8860, %v9494
      %v9496 = vlaneseq
      %v9497 = vshrl.u32 %v9496, 7
      %v9498 = vsub.s32 %v8876, %v9497
      %v9499 = vrot.slane %v8862, %v9498
      %v9500 = vlaneseq
      %v9501 = vshrl.u32 %v9500, 7
      %v9502 = vsub.s32 %v8876, %v9501
      %v9503 = vrot.slane %v8864, %v9502
      %v9504 = vlaneseq
      %v9505 = vshrl.u32 %v9504, 7
      %v9506 = vsub.s32 %v8876, %v9505
      %v9507 = vrot.slane %v8866, %v9506
      %v9508 = vlaneseq
      %v9509 = vshrl.u32 %v9508, 7
      %v9510 = vsub.s32 %v8876, %v9509
      %v9511 = vrot.slane %v8868, %v9510
      %v9512 = vlaneseq
      %v9513 = vshrl.u32 %v9512, 7
      %v9514 = vsub.s32 %v8876, %v9513
      %v9515 = vrot.slane %v8870, %v9514
      %v9516 = vlaneseq
      %v9517 = vshrl.u32 %v9516, 7
      %v9518 = vsub.s32 %v8876, %v9517
      %v9519 = vrot.slane %v8872, %v9518
      %vm9520 = vcmask 1041409
      %v9521 = vsel %vm9520, %v9015, %v9011
      %vm9522 = vcmask 1042434
      %v9523 = vsel %vm9522, %v9019, %v9521
      %vm9524 = vcmask 1043459
      %v9525 = vsel %vm9524, %v9023, %v9523
      %vm9526 = vcmask 1044484
      %v9527 = vsel %vm9526, %v9027, %v9525
      %vm9528 = vcmask 1045509
      %v9529 = vsel %vm9528, %v9031, %v9527
      %vm9530 = vcmask 1046534
      %v9531 = vsel %vm9530, %v9035, %v9529
      %vm9532 = vcmask 1047559
      %v9533 = vsel %vm9532, %v9039, %v9531
      %v9534 = vsel %vm9520, %v9047, %v9043
      %v9535 = vsel %vm9522, %v9051, %v9534
      %v9536 = vsel %vm9524, %v9055, %v9535
      %v9537 = vsel %vm9526, %v9059, %v9536
      %v9538 = vsel %vm9528, %v9063, %v9537
      %v9539 = vsel %vm9530, %v9067, %v9538
      %v9540 = vsel %vm9532, %v9071, %v9539
      %v9541 = vsel %vm9520, %v9079, %v9075
      %v9542 = vsel %vm9522, %v9083, %v9541
      %v9543 = vsel %vm9524, %v9087, %v9542
      %v9544 = vsel %vm9526, %v9091, %v9543
      %v9545 = vsel %vm9528, %v9095, %v9544
      %v9546 = vsel %vm9530, %v9099, %v9545
      %v9547 = vsel %vm9532, %v9103, %v9546
      %v9548 = vsel %vm9520, %v9111, %v9107
      %v9549 = vsel %vm9522, %v9115, %v9548
      %v9550 = vsel %vm9524, %v9119, %v9549
      %v9551 = vsel %vm9526, %v9123, %v9550
      %v9552 = vsel %vm9528, %v9127, %v9551
      %v9553 = vsel %vm9530, %v9131, %v9552
      %v9554 = vsel %vm9532, %v9135, %v9553
      %v9555 = vsel %vm9520, %v9143, %v9139
      %v9556 = vsel %vm9522, %v9147, %v9555
      %v9557 = vsel %vm9524, %v9151, %v9556
      %v9558 = vsel %vm9526, %v9155, %v9557
      %v9559 = vsel %vm9528, %v9159, %v9558
      %v9560 = vsel %vm9530, %v9163, %v9559
      %v9561 = vsel %vm9532, %v9167, %v9560
      %v9562 = vsel %vm9520, %v9175, %v9171
      %v9563 = vsel %vm9522, %v9179, %v9562
      %v9564 = vsel %vm9524, %v9183, %v9563
      %v9565 = vsel %vm9526, %v9187, %v9564
      %v9566 = vsel %vm9528, %v9191, %v9565
      %v9567 = vsel %vm9530, %v9195, %v9566
      %v9568 = vsel %vm9532, %v9199, %v9567
      %v9569 = vsel %vm9520, %v9207, %v9203
      %v9570 = vsel %vm9522, %v9211, %v9569
      %v9571 = vsel %vm9524, %v9215, %v9570
      %v9572 = vsel %vm9526, %v9219, %v9571
      %v9573 = vsel %vm9528, %v9223, %v9572
      %v9574 = vsel %vm9530, %v9227, %v9573
      %v9575 = vsel %vm9532, %v9231, %v9574
      %v9576 = vsel %vm9520, %v9239, %v9235
      %v9577 = vsel %vm9522, %v9243, %v9576
      %v9578 = vsel %vm9524, %v9247, %v9577
      %v9579 = vsel %vm9526, %v9251, %v9578
      %v9580 = vsel %vm9528, %v9255, %v9579
      %v9581 = vsel %vm9530, %v9259, %v9580
      %v9582 = vsel %vm9532, %v9263, %v9581
      %v9583 = vsel %vm9520, %v9271, %v9267
      %v9584 = vsel %vm9522, %v9275, %v9583
      %v9585 = vsel %vm9524, %v9279, %v9584
      %v9586 = vsel %vm9526, %v9283, %v9585
      %v9587 = vsel %vm9528, %v9287, %v9586
      %v9588 = vsel %vm9530, %v9291, %v9587
      %v9589 = vsel %vm9532, %v9295, %v9588
      %v9590 = vsel %vm9520, %v9303, %v9299
      %v9591 = vsel %vm9522, %v9307, %v9590
      %v9592 = vsel %vm9524, %v9311, %v9591
      %v9593 = vsel %vm9526, %v9315, %v9592
      %v9594 = vsel %vm9528, %v9319, %v9593
      %v9595 = vsel %vm9530, %v9323, %v9594
      %v9596 = vsel %vm9532, %v9327, %v9595
      %v9597 = vsel %vm9520, %v9335, %v9331
      %v9598 = vsel %vm9522, %v9339, %v9597
      %v9599 = vsel %vm9524, %v9343, %v9598
      %v9600 = vsel %vm9526, %v9347, %v9599
      %v9601 = vsel %vm9528, %v9351, %v9600
      %v9602 = vsel %vm9530, %v9355, %v9601
      %v9603 = vsel %vm9532, %v9359, %v9602
      %v9604 = vsel %vm9520, %v9367, %v9363
      %v9605 = vsel %vm9522, %v9371, %v9604
      %v9606 = vsel %vm9524, %v9375, %v9605
      %v9607 = vsel %vm9526, %v9379, %v9606
      %v9608 = vsel %vm9528, %v9383, %v9607
      %v9609 = vsel %vm9530, %v9387, %v9608
      %v9610 = vsel %vm9532, %v9391, %v9609
      %v9611 = vsel %vm9520, %v9399, %v9395
      %v9612 = vsel %vm9522, %v9403, %v9611
      %v9613 = vsel %vm9524, %v9407, %v9612
      %v9614 = vsel %vm9526, %v9411, %v9613
      %v9615 = vsel %vm9528, %v9415, %v9614
      %v9616 = vsel %vm9530, %v9419, %v9615
      %v9617 = vsel %vm9532, %v9423, %v9616
      %v9618 = vsel %vm9520, %v9431, %v9427
      %v9619 = vsel %vm9522, %v9435, %v9618
      %v9620 = vsel %vm9524, %v9439, %v9619
      %v9621 = vsel %vm9526, %v9443, %v9620
      %v9622 = vsel %vm9528, %v9447, %v9621
      %v9623 = vsel %vm9530, %v9451, %v9622
      %v9624 = vsel %vm9532, %v9455, %v9623
      %v9625 = vsel %vm9520, %v9463, %v9459
      %v9626 = vsel %vm9522, %v9467, %v9625
      %v9627 = vsel %vm9524, %v9471, %v9626
      %v9628 = vsel %vm9526, %v9475, %v9627
      %v9629 = vsel %vm9528, %v9479, %v9628
      %v9630 = vsel %vm9530, %v9483, %v9629
      %v9631 = vsel %vm9532, %v9487, %v9630
      %v9632 = vsel %vm9520, %v9495, %v9491
      %v9633 = vsel %vm9522, %v9499, %v9632
      %v9634 = vsel %vm9524, %v9503, %v9633
      %v9635 = vsel %vm9526, %v9507, %v9634
      %v9636 = vsel %vm9528, %v9511, %v9635
      %v9637 = vsel %vm9530, %v9515, %v9636
      %v9638 = vsel %vm9532, %v9519, %v9637
      %vm9639 = vcmask 64512
      %v9641 = vsel %vm9639, %v8879, 0
      %v9643 = vsel %vm9639, %v9533, 0
      %v9645 = vsel %vm9639, %v9540, 0
      %v9647 = vsel %vm9639, %v9547, 0
      %v9649 = vsel %vm9639, %v9554, 0
      %v9651 = vsel %vm9639, %v9561, 0
      %v9653 = vsel %vm9639, %v9568, 0
      %v9655 = vsel %vm9639, %v9575, 0
      %v9657 = vsel %vm9639, %v9582, 0
      %v9659 = vsel %vm9639, %v9589, 0
      %v9661 = vsel %vm9639, %v9596, 0
      %v9663 = vsel %vm9639, %v9603, 0
      %v9665 = vsel %vm9639, %v9610, 0
      %v9667 = vsel %vm9639, %v9617, 0
      %v9669 = vsel %vm9639, %v9624, 0
      %v9671 = vsel %vm9639, %v9631, 0
      %v9673 = vsel %vm9639, %v9638, 0
      %9675 = vmatprep.subr.mxu0 0.0
      %v9676 = vand.u32 %v9643, 4294901760
      %9677 = vmatpush1.xpose.msra.mxu0 %v9676
      %9678 = vmatprep.subr.mxu0 0.0
      %v9679 = vand.u32 %v9645, 4294901760
      %9680 = vmatpush1.xpose.msra.mxu0 %v9679
      %9681 = vmatprep.subr.mxu0 0.0
      %v9682 = vand.u32 %v9647, 4294901760
      %9683 = vmatpush1.xpose.msra.mxu0 %v9682
      %9684 = vmatprep.subr.mxu0 0.0
      %v9685 = vand.u32 %v9649, 4294901760
      %9686 = vmatpush1.xpose.msra.mxu0 %v9685
      %9687 = vmatprep.subr.mxu0 0.0
      %v9688 = vand.u32 %v9651, 4294901760
      %9689 = vmatpush1.xpose.msra.mxu0 %v9688
      %9690 = vmatprep.subr.mxu0 0.0
      %v9691 = vand.u32 %v9653, 4294901760
      %9692 = vmatpush1.xpose.msra.mxu0 %v9691
      %9693 = vmatprep.subr.mxu0 0.0
      %v9694 = vand.u32 %v9655, 4294901760
      %9695 = vmatpush1.xpose.msra.mxu0 %v9694
      %9696 = vmatprep.subr.mxu0 0.0
      %v9697 = vand.u32 %v9657, 4294901760
      %9698 = vmatpush1.xpose.msra.mxu0 %v9697
      %9699 = vmatprep.subr.mxu0 0.0
      %v9700 = vand.u32 %v9659, 4294901760
      %9701 = vmatpush1.xpose.msra.mxu0 %v9700
      %9702 = vmatprep.subr.mxu0 0.0
      %v9703 = vand.u32 %v9661, 4294901760
      %9704 = vmatpush1.xpose.msra.mxu0 %v9703
      %9705 = vmatprep.subr.mxu0 0.0
      %v9706 = vand.u32 %v9663, 4294901760
      %9707 = vmatpush1.xpose.msra.mxu0 %v9706
      %9708 = vmatprep.subr.mxu0 0.0
      %v9709 = vand.u32 %v9665, 4294901760
      %9710 = vmatpush1.xpose.msra.mxu0 %v9709
      %9711 = vmatprep.subr.mxu0 0.0
      %v9712 = vand.u32 %v9667, 4294901760
      %9713 = vmatpush1.xpose.msra.mxu0 %v9712
      %9714 = vmatprep.subr.mxu0 0.0
      %v9715 = vand.u32 %v9669, 4294901760
      %9716 = vmatpush1.xpose.msra.mxu0 %v9715
      %9717 = vmatprep.subr.mxu0 0.0
      %v9718 = vand.u32 %v9671, 4294901760
      %9719 = vmatpush1.xpose.msra.mxu0 %v9718
      %9720 = vmatprep.subr.mxu0 0.0
      %v9721 = vand.u32 %v9673, 4294901760
      %9722 = vmatpush1.xpose.msra.mxu0 %v9721
      %9723 = vmatprep.subr.mxu0 0.0
      %9724 = vmatpush1.xpose.msra.mxu0 0.0
      %9725 = vmatprep.subr.mxu0 0.0
      %9726 = vmatpush1.xpose.msra.mxu0 0.0
      %9727 = vmatprep.subr.mxu0 0.0
      %9728 = vmatpush1.xpose.msra.mxu0 0.0
      %9729 = vmatprep.subr.mxu0 0.0
      %9730 = vmatpush1.xpose.msra.mxu0 0.0
      %9731 = vmatprep.subr.mxu0 0.0
      %9732 = vmatpush1.xpose.msra.mxu0 0.0
      %9733 = vmatprep.subr.mxu0 0.0
      %9734 = vmatpush1.xpose.msra.mxu0 0.0
      %9735 = vmatprep.subr.mxu0 0.0
      %9736 = vmatpush1.xpose.msra.mxu0 0.0
      %9737 = vmatprep.subr.mxu0 0.0
      %9738 = vmatpush1.xpose.msra.mxu0 0.0
      %9739 = vmatprep.subr.mxu0 0.0
      %9740 = vmatpush1.xpose.msra.mxu0 0.0
      %9741 = vmatprep.subr.mxu0 0.0
      %9742 = vmatpush1.xpose.msra.mxu0 0.0
      %9743 = vmatprep.subr.mxu0 0.0
      %9744 = vmatpush1.xpose.msra.mxu0 0.0
      %9745 = vmatprep.subr.mxu0 0.0
      %9746 = vmatpush1.xpose.msra.mxu0 0.0
      %9747 = vmatprep.subr.mxu0 0.0
      %9748 = vmatpush1.xpose.msra.mxu0 0.0
      %9749 = vmatprep.subr.mxu0 0.0
      %9750 = vmatpush1.xpose.msra.mxu0 0.0
      %9751 = vmatprep.subr.mxu0 0.0
      %9752 = vmatpush1.xpose.msra.mxu0 0.0
      %9753 = vmatprep.subr.mxu0 0.0
      %9754 = vmatpush1.xpose.msra.mxu0 0.0
      %9755 = vmatprep.mubr.f32.mxu0 0.0
      %v9756 = vand.u32 %v9641, 4294901760
      %v9757 = vsub.f32 %v9641, %v9756
      %v9758 = vand.u32 %v9757, 4294901760
      %v9759 = vsub.f32 %v9757, %v9758
      %v9760 = vand.u32 %v9759, 4294901760
      %9761 = vmatmul.mubr.f32.gmra.mrb[0].mxu0 %v9760
      %v9762 = vpop.f32.mrb[0].mxu0
      %v9763 = vadd.f32 0.0, %v9762
      %v9764 = vpop.f32.mrb[0].mxu0
      %9765 = vdwg.mxu0
      %9766 = vmatprep.subr.mxu0 0.0
      %v9767 = vand.u32 %v9643, 4294901760
      %v9768 = vsub.f32 %v9643, %v9767
      %v9769 = vand.u32 %v9768, 4294901760
      %v9770 = vsub.f32 %v9768, %v9769
      %v9771 = vand.u32 %v9770, 4294901760
      %9772 = vmatpush1.xpose.msra.mxu0 %v9771
      %9773 = vmatprep.subr.mxu0 0.0
      %v9774 = vand.u32 %v9645, 4294901760
      %v9775 = vsub.f32 %v9645, %v9774
      %v9776 = vand.u32 %v9775, 4294901760
      %v9777 = vsub.f32 %v9775, %v9776
      %v9778 = vand.u32 %v9777, 4294901760
      %9779 = vmatpush1.xpose.msra.mxu0 %v9778
      %9780 = vmatprep.subr.mxu0 0.0
      %v9781 = vand.u32 %v9647, 4294901760
      %v9782 = vsub.f32 %v9647, %v9781
      %v9783 = vand.u32 %v9782, 4294901760
      %v9784 = vsub.f32 %v9782, %v9783
      %v9785 = vand.u32 %v9784, 4294901760
      %9786 = vmatpush1.xpose.msra.mxu0 %v9785
      %9787 = vmatprep.subr.mxu0 0.0
      %v9788 = vand.u32 %v9649, 4294901760
      %v9789 = vsub.f32 %v9649, %v9788
      %v9790 = vand.u32 %v9789, 4294901760
      %v9791 = vsub.f32 %v9789, %v9790
      %v9792 = vand.u32 %v9791, 4294901760
      %9793 = vmatpush1.xpose.msra.mxu0 %v9792
      %9794 = vmatprep.subr.mxu0 0.0
      %v9795 = vand.u32 %v9651, 4294901760
      %v9796 = vsub.f32 %v9651, %v9795
      %v9797 = vand.u32 %v9796, 4294901760
      %v9798 = vsub.f32 %v9796, %v9797
      %v9799 = vand.u32 %v9798, 4294901760
      %9800 = vmatpush1.xpose.msra.mxu0 %v9799
      %9801 = vmatprep.subr.mxu0 0.0
      %v9802 = vand.u32 %v9653, 4294901760
      %v9803 = vsub.f32 %v9653, %v9802
      %v9804 = vand.u32 %v9803, 4294901760
      %v9805 = vsub.f32 %v9803, %v9804
      %v9806 = vand.u32 %v9805, 4294901760
      %9807 = vmatpush1.xpose.msra.mxu0 %v9806
      %9808 = vmatprep.subr.mxu0 0.0
      %v9809 = vand.u32 %v9655, 4294901760
      %v9810 = vsub.f32 %v9655, %v9809
      %v9811 = vand.u32 %v9810, 4294901760
      %v9812 = vsub.f32 %v9810, %v9811
      %v9813 = vand.u32 %v9812, 4294901760
      %9814 = vmatpush1.xpose.msra.mxu0 %v9813
      %9815 = vmatprep.subr.mxu0 0.0
      %v9816 = vand.u32 %v9657, 4294901760
      %v9817 = vsub.f32 %v9657, %v9816
      %v9818 = vand.u32 %v9817, 4294901760
      %v9819 = vsub.f32 %v9817, %v9818
      %v9820 = vand.u32 %v9819, 4294901760
      %9821 = vmatpush1.xpose.msra.mxu0 %v9820
      %9822 = vmatprep.subr.mxu0 0.0
      %v9823 = vand.u32 %v9659, 4294901760
      %v9824 = vsub.f32 %v9659, %v9823
      %v9825 = vand.u32 %v9824, 4294901760
      %v9826 = vsub.f32 %v9824, %v9825
      %v9827 = vand.u32 %v9826, 4294901760
      %9828 = vmatpush1.xpose.msra.mxu0 %v9827
      %9829 = vmatprep.subr.mxu0 0.0
      %v9830 = vand.u32 %v9661, 4294901760
      %v9831 = vsub.f32 %v9661, %v9830
      %v9832 = vand.u32 %v9831, 4294901760
      %v9833 = vsub.f32 %v9831, %v9832
      %v9834 = vand.u32 %v9833, 4294901760
      %9835 = vmatpush1.xpose.msra.mxu0 %v9834
      %9836 = vmatprep.subr.mxu0 0.0
      %v9837 = vand.u32 %v9663, 4294901760
      %v9838 = vsub.f32 %v9663, %v9837
      %v9839 = vand.u32 %v9838, 4294901760
      %v9840 = vsub.f32 %v9838, %v9839
      %v9841 = vand.u32 %v9840, 4294901760
      %9842 = vmatpush1.xpose.msra.mxu0 %v9841
      %9843 = vmatprep.subr.mxu0 0.0
      %v9844 = vand.u32 %v9665, 4294901760
      %v9845 = vsub.f32 %v9665, %v9844
      %v9846 = vand.u32 %v9845, 4294901760
      %v9847 = vsub.f32 %v9845, %v9846
      %v9848 = vand.u32 %v9847, 4294901760
      %9849 = vmatpush1.xpose.msra.mxu0 %v9848
      %9850 = vmatprep.subr.mxu0 0.0
      %v9851 = vand.u32 %v9667, 4294901760
      %v9852 = vsub.f32 %v9667, %v9851
      %v9853 = vand.u32 %v9852, 4294901760
      %v9854 = vsub.f32 %v9852, %v9853
      %v9855 = vand.u32 %v9854, 4294901760
      %9856 = vmatpush1.xpose.msra.mxu0 %v9855
      %9857 = vmatprep.subr.mxu0 0.0
      %v9858 = vand.u32 %v9669, 4294901760
      %v9859 = vsub.f32 %v9669, %v9858
      %v9860 = vand.u32 %v9859, 4294901760
      %v9861 = vsub.f32 %v9859, %v9860
      %v9862 = vand.u32 %v9861, 4294901760
      %9863 = vmatpush1.xpose.msra.mxu0 %v9862
      %9864 = vmatprep.subr.mxu0 0.0
      %v9865 = vand.u32 %v9671, 4294901760
      %v9866 = vsub.f32 %v9671, %v9865
      %v9867 = vand.u32 %v9866, 4294901760
      %v9868 = vsub.f32 %v9866, %v9867
      %v9869 = vand.u32 %v9868, 4294901760
      %9870 = vmatpush1.xpose.msra.mxu0 %v9869
      %9871 = vmatprep.subr.mxu0 0.0
      %v9872 = vand.u32 %v9673, 4294901760
      %v9873 = vsub.f32 %v9673, %v9872
      %v9874 = vand.u32 %v9873, 4294901760
      %v9875 = vsub.f32 %v9873, %v9874
      %v9876 = vand.u32 %v9875, 4294901760
      %9877 = vmatpush1.xpose.msra.mxu0 %v9876
      %9878 = vmatprep.subr.mxu0 0.0
      %9879 = vmatpush1.xpose.msra.mxu0 0.0
      %9880 = vmatprep.subr.mxu0 0.0
      %9881 = vmatpush1.xpose.msra.mxu0 0.0
      %9882 = vmatprep.subr.mxu0 0.0
      %9883 = vmatpush1.xpose.msra.mxu0 0.0
      %9884 = vmatprep.subr.mxu0 0.0
      %9885 = vmatpush1.xpose.msra.mxu0 0.0
      %9886 = vmatprep.subr.mxu0 0.0
      %9887 = vmatpush1.xpose.msra.mxu0 0.0
      %9888 = vmatprep.subr.mxu0 0.0
      %9889 = vmatpush1.xpose.msra.mxu0 0.0
      %9890 = vmatprep.subr.mxu0 0.0
      %9891 = vmatpush1.xpose.msra.mxu0 0.0
      %9892 = vmatprep.subr.mxu0 0.0
      %9893 = vmatpush1.xpose.msra.mxu0 0.0
      %9894 = vmatprep.subr.mxu0 0.0
      %9895 = vmatpush1.xpose.msra.mxu0 0.0
      %9896 = vmatprep.subr.mxu0 0.0
      %9897 = vmatpush1.xpose.msra.mxu0 0.0
      %9898 = vmatprep.subr.mxu0 0.0
      %9899 = vmatpush1.xpose.msra.mxu0 0.0
      %9900 = vmatprep.subr.mxu0 0.0
      %9901 = vmatpush1.xpose.msra.mxu0 0.0
      %9902 = vmatprep.subr.mxu0 0.0
      %9903 = vmatpush1.xpose.msra.mxu0 0.0
      %9904 = vmatprep.subr.mxu0 0.0
      %9905 = vmatpush1.xpose.msra.mxu0 0.0
      %9906 = vmatprep.subr.mxu0 0.0
      %9907 = vmatpush1.xpose.msra.mxu0 0.0
      %9908 = vmatprep.subr.mxu0 0.0
      %9909 = vmatpush1.xpose.msra.mxu0 0.0
      %9910 = vmatprep.mubr.f32.mxu0 0.0
      %v9911 = vand.u32 %v9641, 4294901760
      %9912 = vmatmul.mubr.f32.gmra.mrb[0].mxu0 %v9911
      %v9913 = vpop.f32.mrb[0].mxu0
      %v9914 = vadd.f32 %v9763, %v9913
      %v9915 = vpop.f32.mrb[0].mxu0
      %9916 = vdwg.mxu0
      %9917 = vmatprep.subr.mxu0 0.0
      %v9918 = vand.u32 %v9643, 4294901760
      %v9919 = vsub.f32 %v9643, %v9918
      %9920 = vmatpush1.xpose.msra.mxu0 %v9919
      %9921 = vmatprep.subr.mxu0 0.0
      %v9922 = vand.u32 %v9645, 4294901760
      %v9923 = vsub.f32 %v9645, %v9922
      %9924 = vmatpush1.xpose.msra.mxu0 %v9923
      %9925 = vmatprep.subr.mxu0 0.0
      %v9926 = vand.u32 %v9647, 4294901760
      %v9927 = vsub.f32 %v9647, %v9926
      %9928 = vmatpush1.xpose.msra.mxu0 %v9927
      %9929 = vmatprep.subr.mxu0 0.0
      %v9930 = vand.u32 %v9649, 4294901760
      %v9931 = vsub.f32 %v9649, %v9930
      %9932 = vmatpush1.xpose.msra.mxu0 %v9931
      %9933 = vmatprep.subr.mxu0 0.0
      %v9934 = vand.u32 %v9651, 4294901760
      %v9935 = vsub.f32 %v9651, %v9934
      %9936 = vmatpush1.xpose.msra.mxu0 %v9935
      %9937 = vmatprep.subr.mxu0 0.0
      %v9938 = vand.u32 %v9653, 4294901760
      %v9939 = vsub.f32 %v9653, %v9938
      %9940 = vmatpush1.xpose.msra.mxu0 %v9939
      %9941 = vmatprep.subr.mxu0 0.0
      %v9942 = vand.u32 %v9655, 4294901760
      %v9943 = vsub.f32 %v9655, %v9942
      %9944 = vmatpush1.xpose.msra.mxu0 %v9943
      %9945 = vmatprep.subr.mxu0 0.0
      %v9946 = vand.u32 %v9657, 4294901760
      %v9947 = vsub.f32 %v9657, %v9946
      %9948 = vmatpush1.xpose.msra.mxu0 %v9947
      %9949 = vmatprep.subr.mxu0 0.0
      %v9950 = vand.u32 %v9659, 4294901760
      %v9951 = vsub.f32 %v9659, %v9950
      %9952 = vmatpush1.xpose.msra.mxu0 %v9951
      %9953 = vmatprep.subr.mxu0 0.0
      %v9954 = vand.u32 %v9661, 4294901760
      %v9955 = vsub.f32 %v9661, %v9954
      %9956 = vmatpush1.xpose.msra.mxu0 %v9955
      %9957 = vmatprep.subr.mxu0 0.0
      %v9958 = vand.u32 %v9663, 4294901760
      %v9959 = vsub.f32 %v9663, %v9958
      %9960 = vmatpush1.xpose.msra.mxu0 %v9959
      %9961 = vmatprep.subr.mxu0 0.0
      %v9962 = vand.u32 %v9665, 4294901760
      %v9963 = vsub.f32 %v9665, %v9962
      %9964 = vmatpush1.xpose.msra.mxu0 %v9963
      %9965 = vmatprep.subr.mxu0 0.0
      %v9966 = vand.u32 %v9667, 4294901760
      %v9967 = vsub.f32 %v9667, %v9966
      %9968 = vmatpush1.xpose.msra.mxu0 %v9967
      %9969 = vmatprep.subr.mxu0 0.0
      %v9970 = vand.u32 %v9669, 4294901760
      %v9971 = vsub.f32 %v9669, %v9970
      %9972 = vmatpush1.xpose.msra.mxu0 %v9971
      %9973 = vmatprep.subr.mxu0 0.0
      %v9974 = vand.u32 %v9671, 4294901760
      %v9975 = vsub.f32 %v9671, %v9974
      %9976 = vmatpush1.xpose.msra.mxu0 %v9975
      %9977 = vmatprep.subr.mxu0 0.0
      %v9978 = vand.u32 %v9673, 4294901760
      %v9979 = vsub.f32 %v9673, %v9978
      %9980 = vmatpush1.xpose.msra.mxu0 %v9979
      %9981 = vmatprep.subr.mxu0 0.0
      %9982 = vmatpush1.xpose.msra.mxu0 0.0
      %9983 = vmatprep.subr.mxu0 0.0
      %9984 = vmatpush1.xpose.msra.mxu0 0.0
      %9985 = vmatprep.subr.mxu0 0.0
      %9986 = vmatpush1.xpose.msra.mxu0 0.0
      %9987 = vmatprep.subr.mxu0 0.0
      %9988 = vmatpush1.xpose.msra.mxu0 0.0
      %9989 = vmatprep.subr.mxu0 0.0
      %9990 = vmatpush1.xpose.msra.mxu0 0.0
      %9991 = vmatprep.subr.mxu0 0.0
      %9992 = vmatpush1.xpose.msra.mxu0 0.0
      %9993 = vmatprep.subr.mxu0 0.0
      %9994 = vmatpush1.xpose.msra.mxu0 0.0
      %9995 = vmatprep.subr.mxu0 0.0
      %9996 = vmatpush1.xpose.msra.mxu0 0.0
      %9997 = vmatprep.subr.mxu0 0.0
      %9998 = vmatpush1.xpose.msra.mxu0 0.0
      %9999 = vmatprep.subr.mxu0 0.0
      %10000 = vmatpush1.xpose.msra.mxu0 0.0
      %10001 = vmatprep.subr.mxu0 0.0
      %10002 = vmatpush1.xpose.msra.mxu0 0.0
      %10003 = vmatprep.subr.mxu0 0.0
      %10004 = vmatpush1.xpose.msra.mxu0 0.0
      %10005 = vmatprep.subr.mxu0 0.0
      %10006 = vmatpush1.xpose.msra.mxu0 0.0
      %10007 = vmatprep.subr.mxu0 0.0
      %10008 = vmatpush1.xpose.msra.mxu0 0.0
      %10009 = vmatprep.subr.mxu0 0.0
      %10010 = vmatpush1.xpose.msra.mxu0 0.0
      %10011 = vmatprep.subr.mxu0 0.0
      %10012 = vmatpush1.xpose.msra.mxu0 0.0
      %10013 = vmatprep.mubr.f32.mxu0 0.0
      %v10014 = vand.u32 %v9641, 4294901760
      %v10015 = vsub.f32 %v9641, %v10014
      %10016 = vmatmul.mubr.f32.gmra.mrb[0].mxu0 %v10015
      %v10017 = vpop.f32.mrb[0].mxu0
      %v10018 = vadd.f32 %v9914, %v10017
      %v10019 = vpop.f32.mrb[0].mxu0
      %10020 = vdwg.mxu0
      %10021 = vmatprep.subr.mxu0 0.0
      %v10022 = vand.u32 %v9643, 4294901760
      %10023 = vmatpush1.xpose.msra.mxu0 %v10022
      %10024 = vmatprep.subr.mxu0 0.0
      %v10025 = vand.u32 %v9645, 4294901760
      %10026 = vmatpush1.xpose.msra.mxu0 %v10025
      %10027 = vmatprep.subr.mxu0 0.0
      %v10028 = vand.u32 %v9647, 4294901760
      %10029 = vmatpush1.xpose.msra.mxu0 %v10028
      %10030 = vmatprep.subr.mxu0 0.0
      %v10031 = vand.u32 %v9649, 4294901760
      %10032 = vmatpush1.xpose.msra.mxu0 %v10031
      %10033 = vmatprep.subr.mxu0 0.0
      %v10034 = vand.u32 %v9651, 4294901760
      %10035 = vmatpush1.xpose.msra.mxu0 %v10034
      %10036 = vmatprep.subr.mxu0 0.0
      %v10037 = vand.u32 %v9653, 4294901760
      %10038 = vmatpush1.xpose.msra.mxu0 %v10037
      %10039 = vmatprep.subr.mxu0 0.0
      %v10040 = vand.u32 %v9655, 4294901760
      %10041 = vmatpush1.xpose.msra.mxu0 %v10040
      %10042 = vmatprep.subr.mxu0 0.0
      %v10043 = vand.u32 %v9657, 4294901760
      %10044 = vmatpush1.xpose.msra.mxu0 %v10043
      %10045 = vmatprep.subr.mxu0 0.0
      %v10046 = vand.u32 %v9659, 4294901760
      %10047 = vmatpush1.xpose.msra.mxu0 %v10046
      %10048 = vmatprep.subr.mxu0 0.0
      %v10049 = vand.u32 %v9661, 4294901760
      %10050 = vmatpush1.xpose.msra.mxu0 %v10049
      %10051 = vmatprep.subr.mxu0 0.0
      %v10052 = vand.u32 %v9663, 4294901760
      %10053 = vmatpush1.xpose.msra.mxu0 %v10052
      %10054 = vmatprep.subr.mxu0 0.0
      %v10055 = vand.u32 %v9665, 4294901760
      %10056 = vmatpush1.xpose.msra.mxu0 %v10055
      %10057 = vmatprep.subr.mxu0 0.0
      %v10058 = vand.u32 %v9667, 4294901760
      %10059 = vmatpush1.xpose.msra.mxu0 %v10058
      %10060 = vmatprep.subr.mxu0 0.0
      %v10061 = vand.u32 %v9669, 4294901760
      %10062 = vmatpush1.xpose.msra.mxu0 %v10061
      %10063 = vmatprep.subr.mxu0 0.0
      %v10064 = vand.u32 %v9671, 4294901760
      %10065 = vmatpush1.xpose.msra.mxu0 %v10064
      %10066 = vmatprep.subr.mxu0 0.0
      %v10067 = vand.u32 %v9673, 4294901760
      %10068 = vmatpush1.xpose.msra.mxu0 %v10067
      %10069 = vmatprep.subr.mxu0 0.0
      %10070 = vmatpush1.xpose.msra.mxu0 0.0
      %10071 = vmatprep.subr.mxu0 0.0
      %10072 = vmatpush1.xpose.msra.mxu0 0.0
      %10073 = vmatprep.subr.mxu0 0.0
      %10074 = vmatpush1.xpose.msra.mxu0 0.0
      %10075 = vmatprep.subr.mxu0 0.0
      %10076 = vmatpush1.xpose.msra.mxu0 0.0
      %10077 = vmatprep.subr.mxu0 0.0
      %10078 = vmatpush1.xpose.msra.mxu0 0.0
      %10079 = vmatprep.subr.mxu0 0.0
      %10080 = vmatpush1.xpose.msra.mxu0 0.0
      %10081 = vmatprep.subr.mxu0 0.0
      %10082 = vmatpush1.xpose.msra.mxu0 0.0
      %10083 = vmatprep.subr.mxu0 0.0
      %10084 = vmatpush1.xpose.msra.mxu0 0.0
      %10085 = vmatprep.subr.mxu0 0.0
      %10086 = vmatpush1.xpose.msra.mxu0 0.0
      %10087 = vmatprep.subr.mxu0 0.0
      %10088 = vmatpush1.xpose.msra.mxu0 0.0
      %10089 = vmatprep.subr.mxu0 0.0
      %10090 = vmatpush1.xpose.msra.mxu0 0.0
      %10091 = vmatprep.subr.mxu0 0.0
      %10092 = vmatpush1.xpose.msra.mxu0 0.0
      %10093 = vmatprep.subr.mxu0 0.0
      %10094 = vmatpush1.xpose.msra.mxu0 0.0
      %10095 = vmatprep.subr.mxu0 0.0
      %10096 = vmatpush1.xpose.msra.mxu0 0.0
      %10097 = vmatprep.subr.mxu0 0.0
      %10098 = vmatpush1.xpose.msra.mxu0 0.0
      %10099 = vmatprep.subr.mxu0 0.0
      %10100 = vmatpush1.xpose.msra.mxu0 0.0
      %10101 = vmatprep.mubr.f32.mxu0 0.0
      %v10102 = vand.u32 %v9641, 4294901760
      %v10103 = vsub.f32 %v9641, %v10102
      %v10104 = vand.u32 %v10103, 4294901760
      %10105 = vmatmul.mubr.f32.gmra.mrb[0].mxu0 %v10104
      %v10106 = vpop.f32.mrb[0].mxu0
      %v10107 = vadd.f32 %v10018, %v10106
      %v10108 = vpop.f32.mrb[0].mxu0
      %10109 = vdwg.mxu0
      %10110 = vmatprep.subr.mxu0 0.0
      %v10111 = vand.u32 %v9643, 4294901760
      %v10112 = vsub.f32 %v9643, %v10111
      %v10113 = vand.u32 %v10112, 4294901760
      %10114 = vmatpush1.xpose.msra.mxu0 %v10113
      %10115 = vmatprep.subr.mxu0 0.0
      %v10116 = vand.u32 %v9645, 4294901760
      %v10117 = vsub.f32 %v9645, %v10116
      %v10118 = vand.u32 %v10117, 4294901760
      %10119 = vmatpush1.xpose.msra.mxu0 %v10118
      %10120 = vmatprep.subr.mxu0 0.0
      %v10121 = vand.u32 %v9647, 4294901760
      %v10122 = vsub.f32 %v9647, %v10121
      %v10123 = vand.u32 %v10122, 4294901760
      %10124 = vmatpush1.xpose.msra.mxu0 %v10123
      %10125 = vmatprep.subr.mxu0 0.0
      %v10126 = vand.u32 %v9649, 4294901760
      %v10127 = vsub.f32 %v9649, %v10126
      %v10128 = vand.u32 %v10127, 4294901760
      %10129 = vmatpush1.xpose.msra.mxu0 %v10128
      %10130 = vmatprep.subr.mxu0 0.0
      %v10131 = vand.u32 %v9651, 4294901760
      %v10132 = vsub.f32 %v9651, %v10131
      %v10133 = vand.u32 %v10132, 4294901760
      %10134 = vmatpush1.xpose.msra.mxu0 %v10133
      %10135 = vmatprep.subr.mxu0 0.0
      %v10136 = vand.u32 %v9653, 4294901760
      %v10137 = vsub.f32 %v9653, %v10136
      %v10138 = vand.u32 %v10137, 4294901760
      %10139 = vmatpush1.xpose.msra.mxu0 %v10138
      %10140 = vmatprep.subr.mxu0 0.0
      %v10141 = vand.u32 %v9655, 4294901760
      %v10142 = vsub.f32 %v9655, %v10141
      %v10143 = vand.u32 %v10142, 4294901760
      %10144 = vmatpush1.xpose.msra.mxu0 %v10143
      %10145 = vmatprep.subr.mxu0 0.0
      %v10146 = vand.u32 %v9657, 4294901760
      %v10147 = vsub.f32 %v9657, %v10146
      %v10148 = vand.u32 %v10147, 4294901760
      %10149 = vmatpush1.xpose.msra.mxu0 %v10148
      %10150 = vmatprep.subr.mxu0 0.0
      %v10151 = vand.u32 %v9659, 4294901760
      %v10152 = vsub.f32 %v9659, %v10151
      %v10153 = vand.u32 %v10152, 4294901760
      %10154 = vmatpush1.xpose.msra.mxu0 %v10153
      %10155 = vmatprep.subr.mxu0 0.0
      %v10156 = vand.u32 %v9661, 4294901760
      %v10157 = vsub.f32 %v9661, %v10156
      %v10158 = vand.u32 %v10157, 4294901760
      %10159 = vmatpush1.xpose.msra.mxu0 %v10158
      %10160 = vmatprep.subr.mxu0 0.0
      %v10161 = vand.u32 %v9663, 4294901760
      %v10162 = vsub.f32 %v9663, %v10161
      %v10163 = vand.u32 %v10162, 4294901760
      %10164 = vmatpush1.xpose.msra.mxu0 %v10163
      %10165 = vmatprep.subr.mxu0 0.0
      %v10166 = vand.u32 %v9665, 4294901760
      %v10167 = vsub.f32 %v9665, %v10166
      %v10168 = vand.u32 %v10167, 4294901760
      %10169 = vmatpush1.xpose.msra.mxu0 %v10168
      %10170 = vmatprep.subr.mxu0 0.0
      %v10171 = vand.u32 %v9667, 4294901760
      %v10172 = vsub.f32 %v9667, %v10171
      %v10173 = vand.u32 %v10172, 4294901760
      %10174 = vmatpush1.xpose.msra.mxu0 %v10173
      %10175 = vmatprep.subr.mxu0 0.0
      %v10176 = vand.u32 %v9669, 4294901760
      %v10177 = vsub.f32 %v9669, %v10176
      %v10178 = vand.u32 %v10177, 4294901760
      %10179 = vmatpush1.xpose.msra.mxu0 %v10178
      %10180 = vmatprep.subr.mxu0 0.0
      %v10181 = vand.u32 %v9671, 4294901760
      %v10182 = vsub.f32 %v9671, %v10181
      %v10183 = vand.u32 %v10182, 4294901760
      %10184 = vmatpush1.xpose.msra.mxu0 %v10183
      %10185 = vmatprep.subr.mxu0 0.0
      %v10186 = vand.u32 %v9673, 4294901760
      %v10187 = vsub.f32 %v9673, %v10186
      %v10188 = vand.u32 %v10187, 4294901760
      %10189 = vmatpush1.xpose.msra.mxu0 %v10188
      %10190 = vmatprep.subr.mxu0 0.0
      %10191 = vmatpush1.xpose.msra.mxu0 0.0
      %10192 = vmatprep.subr.mxu0 0.0
      %10193 = vmatpush1.xpose.msra.mxu0 0.0
      %10194 = vmatprep.subr.mxu0 0.0
      %10195 = vmatpush1.xpose.msra.mxu0 0.0
      %10196 = vmatprep.subr.mxu0 0.0
      %10197 = vmatpush1.xpose.msra.mxu0 0.0
      %10198 = vmatprep.subr.mxu0 0.0
      %10199 = vmatpush1.xpose.msra.mxu0 0.0
      %10200 = vmatprep.subr.mxu0 0.0
      %10201 = vmatpush1.xpose.msra.mxu0 0.0
      %10202 = vmatprep.subr.mxu0 0.0
      %10203 = vmatpush1.xpose.msra.mxu0 0.0
      %10204 = vmatprep.subr.mxu0 0.0
      %10205 = vmatpush1.xpose.msra.mxu0 0.0
      %10206 = vmatprep.subr.mxu0 0.0
      %10207 = vmatpush1.xpose.msra.mxu0 0.0
      %10208 = vmatprep.subr.mxu0 0.0
      %10209 = vmatpush1.xpose.msra.mxu0 0.0
      %10210 = vmatprep.subr.mxu0 0.0
      %10211 = vmatpush1.xpose.msra.mxu0 0.0
      %10212 = vmatprep.subr.mxu0 0.0
      %10213 = vmatpush1.xpose.msra.mxu0 0.0
      %10214 = vmatprep.subr.mxu0 0.0
      %10215 = vmatpush1.xpose.msra.mxu0 0.0
      %10216 = vmatprep.subr.mxu0 0.0
      %10217 = vmatpush1.xpose.msra.mxu0 0.0
      %10218 = vmatprep.subr.mxu0 0.0
      %10219 = vmatpush1.xpose.msra.mxu0 0.0
      %10220 = vmatprep.subr.mxu0 0.0
      %10221 = vmatpush1.xpose.msra.mxu0 0.0
      %10222 = vmatprep.mubr.f32.mxu0 0.0
      %v10223 = vand.u32 %v9641, 4294901760
      %10224 = vmatmul.mubr.f32.gmra.mrb[0].mxu0 %v10223
      %v10225 = vpop.f32.mrb[0].mxu0
      %v10226 = vadd.f32 %v10107, %v10225
      %v10227 = vpop.f32.mrb[0].mxu0
      %10228 = vdwg.mxu0
      %10229 = vmatprep.subr.mxu0 0.0
      %v10230 = vand.u32 %v9643, 4294901760
      %10231 = vmatpush1.xpose.msra.mxu0 %v10230
      %10232 = vmatprep.subr.mxu0 0.0
      %v10233 = vand.u32 %v9645, 4294901760
      %10234 = vmatpush1.xpose.msra.mxu0 %v10233
      %10235 = vmatprep.subr.mxu0 0.0
      %v10236 = vand.u32 %v9647, 4294901760
      %10237 = vmatpush1.xpose.msra.mxu0 %v10236
      %10238 = vmatprep.subr.mxu0 0.0
      %v10239 = vand.u32 %v9649, 4294901760
      %10240 = vmatpush1.xpose.msra.mxu0 %v10239
      %10241 = vmatprep.subr.mxu0 0.0
      %v10242 = vand.u32 %v9651, 4294901760
      %10243 = vmatpush1.xpose.msra.mxu0 %v10242
      %10244 = vmatprep.subr.mxu0 0.0
      %v10245 = vand.u32 %v9653, 4294901760
      %10246 = vmatpush1.xpose.msra.mxu0 %v10245
      %10247 = vmatprep.subr.mxu0 0.0
      %v10248 = vand.u32 %v9655, 4294901760
      %10249 = vmatpush1.xpose.msra.mxu0 %v10248
      %10250 = vmatprep.subr.mxu0 0.0
      %v10251 = vand.u32 %v9657, 4294901760
      %10252 = vmatpush1.xpose.msra.mxu0 %v10251
      %10253 = vmatprep.subr.mxu0 0.0
      %v10254 = vand.u32 %v9659, 4294901760
      %10255 = vmatpush1.xpose.msra.mxu0 %v10254
      %10256 = vmatprep.subr.mxu0 0.0
      %v10257 = vand.u32 %v9661, 4294901760
      %10258 = vmatpush1.xpose.msra.mxu0 %v10257
      %10259 = vmatprep.subr.mxu0 0.0
      %v10260 = vand.u32 %v9663, 4294901760
      %10261 = vmatpush1.xpose.msra.mxu0 %v10260
      %10262 = vmatprep.subr.mxu0 0.0
      %v10263 = vand.u32 %v9665, 4294901760
      %10264 = vmatpush1.xpose.msra.mxu0 %v10263
      %10265 = vmatprep.subr.mxu0 0.0
      %v10266 = vand.u32 %v9667, 4294901760
      %10267 = vmatpush1.xpose.msra.mxu0 %v10266
      %10268 = vmatprep.subr.mxu0 0.0
      %v10269 = vand.u32 %v9669, 4294901760
      %10270 = vmatpush1.xpose.msra.mxu0 %v10269
      %10271 = vmatprep.subr.mxu0 0.0
      %v10272 = vand.u32 %v9671, 4294901760
      %10273 = vmatpush1.xpose.msra.mxu0 %v10272
      %10274 = vmatprep.subr.mxu0 0.0
      %v10275 = vand.u32 %v9673, 4294901760
      %10276 = vmatpush1.xpose.msra.mxu0 %v10275
      %10277 = vmatprep.subr.mxu0 0.0
      %10278 = vmatpush1.xpose.msra.mxu0 0.0
      %10279 = vmatprep.subr.mxu0 0.0
      %10280 = vmatpush1.xpose.msra.mxu0 0.0
      %10281 = vmatprep.subr.mxu0 0.0
      %10282 = vmatpush1.xpose.msra.mxu0 0.0
      %10283 = vmatprep.subr.mxu0 0.0
      %10284 = vmatpush1.xpose.msra.mxu0 0.0
      %10285 = vmatprep.subr.mxu0 0.0
      %10286 = vmatpush1.xpose.msra.mxu0 0.0
      %10287 = vmatprep.subr.mxu0 0.0
      %10288 = vmatpush1.xpose.msra.mxu0 0.0
      %10289 = vmatprep.subr.mxu0 0.0
      %10290 = vmatpush1.xpose.msra.mxu0 0.0
      %10291 = vmatprep.subr.mxu0 0.0
      %10292 = vmatpush1.xpose.msra.mxu0 0.0
      %10293 = vmatprep.subr.mxu0 0.0
      %10294 = vmatpush1.xpose.msra.mxu0 0.0
      %10295 = vmatprep.subr.mxu0 0.0
      %10296 = vmatpush1.xpose.msra.mxu0 0.0
      %10297 = vmatprep.subr.mxu0 0.0
      %10298 = vmatpush1.xpose.msra.mxu0 0.0
      %10299 = vmatprep.subr.mxu0 0.0
      %10300 = vmatpush1.xpose.msra.mxu0 0.0
      %10301 = vmatprep.subr.mxu0 0.0
      %10302 = vmatpush1.xpose.msra.mxu0 0.0
      %10303 = vmatprep.subr.mxu0 0.0
      %10304 = vmatpush1.xpose.msra.mxu0 0.0
      %10305 = vmatprep.subr.mxu0 0.0
      %10306 = vmatpush1.xpose.msra.mxu0 0.0
      %10307 = vmatprep.subr.mxu0 0.0
      %10308 = vmatpush1.xpose.msra.mxu0 0.0
      %10309 = vmatprep.mubr.f32.mxu0 0.0
      %v10310 = vand.u32 %v9641, 4294901760
      %10311 = vmatmul.mubr.f32.gmra.mrb[0].mxu0 %v10310
      %v10312 = vpop.f32.mrb[0].mxu0
      %v10313 = vadd.f32 %v10226, %v10312
      %v10314 = vpop.f32.mrb[0].mxu0
      %10315 = vdwg.mxu0
      %v10316 = vrot.slane %v10313, 4
      %v10317 = vmax.f32 %v10313, %v10316
      %v10318 = vrot.slane %v10317, 2
      %v10319 = vmax.f32 %v10317, %v10318
      %v10320 = vrot.slane %v10319, 1
      %v10321 = vmax.f32 %v10319, %v10320
      %v10322 = vsub.f32 %v10313, %v10321
      %v10323 = vmul.f32 %v10322, 1.442695
      %v10324 = vpow.pop %v10323
      %v10325 = vrot.slane %v10324, 4
      %v10326 = vadd.f32 %v10324, %v10325
      %v10327 = vrot.slane %v10326, 2
      %v10328 = vadd.f32 %v10326, %v10327
      %v10329 = vrot.slane %v10328, 1
      %v10330 = vadd.f32 %v10328, %v10329
      %v10331 = vrcp.pop %v10330
      %v10332 = vmul.f32 %v10324, %v10331
      %10333 = vst [vmem:[%s170] sm:$0xff] %v10332
      %p10334 = scmp.lt.s32.totalorder %s14, 1
      %s10335 = scalar_select %p10334, %s14, 1
      %s10336 = smul.addr %s10335, 8
      %s10337 = scalar_lea.vmem %s3, %s10336
      // Predicated region
      $region33: #{attention_model_forward_batched.1} parent=31 // pred_check
        %p10338 = pneg %p100
      $region34: #{attention_model_forward_batched.1} parent=31 // pred_check_branch
        %10340 = sbr.rel (%p10338) target = $region36
      $region35: #{attention_model_forward_batched.1} parent=31 // pred_region
        _
      $region36: #{attention_model_forward_batched.1} parent=31 // pred_fallthru
        _
    $region32: #{attention_model_forward_batched.1} parent=5 // pred_fallthru
      _
    %p10341 = scmp.le.s32.totalorder 2, %s9
    // Predicated region
    $region37: #{attention_model_forward_batched.1} parent=5 // pred_check
      %p10342 = pneg %p10341
    $region38: #{attention_model_forward_batched.1} parent=5 // pred_check_branch
      %10344 = sbr.rel (%p10342) target = $region40
    $region39: #{attention_model_forward_batched.1} parent=5 // pred_region
      %s10345 = ssub.s32 %s9, 2
      // Predicated region
      $region41: #{attention_model_forward_batched.1} parent=39 // pred_check
        %p10346 = pneg %p106
      $region42: #{attention_model_forward_batched.1} parent=39 // pred_check_branch
        %10348 = sbr.rel (%p10346) target = $region44
      $region43: #{attention_model_forward_batched.1} parent=39 // pred_region
        %p10349 = scmp.lt.s32.totalorder %s15, 1
        %s10350 = scalar_select %p10349, %s15, 1
        %s10351 = smul.addr %s10350, 8
        %s10352 = scalar_lea.vmem %s3, %s10351
      $region44: #{attention_model_forward_batched.1} parent=39 // pred_fallthru
        _
    $region40: #{attention_model_forward_batched.1} parent=5 // pred_fallthru
      _
  $region6: #{attention_model_forward_batched.1} parent=0 // loop_footer
    %s13 = sadd.s32 1, %s9
  $region7: #{attention_model_forward_batched.1} parent=0 // loop_footer_branch
    %8 = sbr.rel target = $region3
  $region8: #{attention_model_forward_batched.1} parent=0 // loop_exit
    _

</llo_original>
